<compile_context>
chip_gen: v6e
topology: v6e:2x2x1
jax: 0.10.0
libtpu: 0.0.40
codegen_flags: <defaults>
</compile_context>

<pallas_src>
import functools
import math

import jax
import jax.numpy as jnp
from jax.experimental import pallas as pl
from jax.experimental.pallas import tpu as pltpu


_EPS = 1e-5
_MAX_ROW_TILE = 512     # rows per VMEM tile for row-streamed kernels
_MAX_FFN_TILE = 2048    # max lanes of the 4H FFN hidden kept live at once

_SINGLE_BUFFER_WEIGHTS = True   # flipped off in __main__ if this JAX build
                                # rejects pipeline_mode on pallas_call specs


# ----------------------------------------------------------------------------
# In-kernel helpers
# ----------------------------------------------------------------------------
def _gelu_exact(x):
    # exact GELU (erf), matching PyTorch nn.GELU / F.gelu default
    return 0.5 * x * (1.0 + jax.lax.erf(x * (1.0 / math.sqrt(2.0))))
# TODO(synk): tanh-GELU / pl.reciprocal(approx=True) softmax would move work to
#             the idle EUP slot (biggest win on v5e) if fidelity budget allows.


def _layernorm(x, gamma, beta, eps=_EPS):
    x = x.astype(jnp.float32)
    mu = jnp.mean(x, axis=-1, keepdims=True)
    var = jnp.mean((x - mu) ** 2, axis=-1, keepdims=True)
    return ((x - mu) * jax.lax.rsqrt(var + eps) * gamma.astype(jnp.float32)
            + beta.astype(jnp.float32))


# ----------------------------------------------------------------------------
# Spec / compiler-param helpers
# ----------------------------------------------------------------------------
def _spec(shape, index_map, *, single_buffer=False):
    """BlockSpec helper.  single_buffer=True requests a single VMEM buffer for
    blocks whose index never changes (replicated weights / biases), halving
    their VMEM footprint vs. the default double-buffering."""
    if single_buffer and _SINGLE_BUFFER_WEIGHTS and hasattr(pl, "Buffered"):
        try:
            return pl.BlockSpec(shape, index_map, pipeline_mode=pl.Buffered(1))
        except Exception:  # older BlockSpec signature -> plain double buffering
            pass
    return pl.BlockSpec(shape, index_map)


def _est_bytes(*shapes):
    total = 0
    for s in shapes:
        n = 1
        for d in s:
            n *= d
        total += n
    return 4 * total    # conservative: assume f32 storage


def _cparams(block_bytes, dim_sems=None):
    # Explicit scoped-VMEM budget: default is only ~16-32 MiB which is below
    # what large row tiles + resident weights need at realistic H.
    vmem = int(min(128 * 1024 * 1024, max(32 * 1024 * 1024, 3 * block_bytes)))
    if dim_sems is None:
        return pltpu.CompilerParams(vmem_limit_bytes=vmem)
    return pltpu.CompilerParams(dimension_semantics=dim_sems,
                                vmem_limit_bytes=vmem)


# ----------------------------------------------------------------------------
# Kernel: fused knowledge retrieval
#   q       = GELU(pooled @ W1 + b1) @ W2 + b2            [B, K]
#   weights = softmax(q . kb)                              [B, M]
#   out     = weights @ kb                                 [B, K]
# ----------------------------------------------------------------------------
def _retrieval_kernel(pooled_ref, w1_ref, b1_ref, w2_ref, b2_ref, kb_ref,
                      kw_ref, retr_ref):
    x = pooled_ref[...].astype(jnp.float32)
    h = _gelu_exact(jnp.dot(x, w1_ref[...], preferred_element_type=jnp.float32)
                    + b1_ref[...].astype(jnp.float32))
    q = (jnp.dot(h, w2_ref[...], preferred_element_type=jnp.float32)
         + b2_ref[...].astype(jnp.float32))
    kb = kb_ref[...].astype(jnp.float32)
    # q @ kb^T without materializing the transpose.
    scores = jax.lax.dot_general(q, kb, (((1,), (1,)), ((), ())),
                                 preferred_element_type=jnp.float32)    # [B, M]
    scores = scores - jnp.max(scores, axis=-1, keepdims=True)
    e = jnp.exp(scores)
    w = e / jnp.sum(e, axis=-1, keepdims=True)
    kw_ref[...] = w.astype(kw_ref.dtype)
    retr_ref[...] = jnp.dot(w, kb,
                            preferred_element_type=jnp.float32).astype(retr_ref.dtype)


def retrieval(pooled, params):
    B, H = pooled.shape
    M, K = params["knowledge_memory"].shape
    est = _est_bytes((B, H), (H, H), (H, K), (M, K), (B, M), (B, K)) * 2
    return pl.pallas_call(
        _retrieval_kernel,
        out_shape=(jax.ShapeDtypeStruct((B, M), pooled.dtype),   # knowledge weights
                   jax.ShapeDtypeStruct((B, K), pooled.dtype)),  # retrieved knowledge
        compiler_params=_cparams(est),
    )(pooled, params["retr_w1"], params["retr_b1"],
      params["retr_w2"], params["retr_b2"], params["knowledge_memory"])


# ----------------------------------------------------------------------------
# Kernel: knowledge attention, closed form.
# Keys/values are one vector broadcast over S -> uniform softmax -> ctx == v.
#   kc[b] = (retrieved[b] @ Wv + bv) @ Wo + bo   (exact; Q/K projections cancel)
# ----------------------------------------------------------------------------
def _knowledge_ctx_kernel(r_ref, wv_ref, bv_ref, wo_ref, bo_ref, o_ref):
    r = r_ref[...]
    v = (jnp.dot(r, wv_ref[...], preferred_element_type=jnp.float32)
         + bv_ref[...].astype(jnp.float32))
    o = (jnp.dot(v, wo_ref[...], preferred_element_type=jnp.float32)
         + bo_ref[...].astype(jnp.float32))
    o_ref[...] = o.astype(o_ref.dtype)


def knowledge_ctx(retrieved, ka):
    B, H = retrieved.shape
    est = _est_bytes((B, H), (H, H), (H, H), (B, H)) * 2
    return pl.pallas_call(
        _knowledge_ctx_kernel,
        out_shape=jax.ShapeDtypeStruct((B, H), retrieved.dtype),
        compiler_params=_cparams(est),
    )(retrieved, ka["wv"], ka["bv"], ka["wo"], ka["bo"])


# ----------------------------------------------------------------------------
# Kernel: fused knowledge integration (concat avoided by splitting W1; the
# knowledge context arrives as a per-batch [1,H] block, broadcast over rows)
#   t = x @ W1a + kc @ W1b + b1 ; t = GELU(LN(t)) ; y = t @ W2 + b2
# ----------------------------------------------------------------------------
def _integration_kernel(x_ref, kc_ref, w1a_ref, w1b_ref, b1_ref,
                        g_ref, be_ref, w2_ref, b2_ref, o_ref):
    x = x_ref[0]                                    # [ts, H]
    kc = kc_ref[0]                                  # [1, H]
    t = (jnp.dot(x, w1a_ref[...], preferred_element_type=jnp.float32)
         + jnp.dot(kc, w1b_ref[...], preferred_element_type=jnp.float32)
         + b1_ref[...].astype(jnp.float32))
    t = _gelu_exact(_layernorm(t, g_ref[...], be_ref[...]))
    y = (jnp.dot(t, w2_ref[...], preferred_element_type=jnp.float32)
         + b2_ref[...].astype(jnp.float32))
    o_ref[0] = y.astype(o_ref.dtype)


def knowledge_integration(x, kc, p):
    B, S, H = x.shape
    ts = S if S <= _MAX_ROW_TILE else _MAX_ROW_TILE
    kc3 = kc.reshape(B, 1, H)
    est = _est_bytes((ts, H), (ts, H), (H, H), (H, H), (H, H), (ts, H)) * 2
    const = lambda b, s: (0, 0)
    return pl.pallas_call(
        _integration_kernel,
        grid=(B, pl.cdiv(S, ts)),
        in_specs=[
            pl.BlockSpec((1, ts, H), lambda b, s: (b, s, 0)),
            pl.BlockSpec((1, 1, H), lambda b, s: (b, 0, 0)),
            _spec((H, H), const, single_buffer=True),
            _spec((H, H), const, single_buffer=True),
            _spec((1, H), const, single_buffer=True),
            _spec((1, H), const, single_buffer=True),
            _spec((1, H), const, single_buffer=True),
            _spec((H, H), const, single_buffer=True),
            _spec((1, H), const, single_buffer=True),
        ],
        out_specs=pl.BlockSpec((1, ts, H), lambda b, s: (b, s, 0)),
        out_shape=jax.ShapeDtypeStruct((B, S, H), x.dtype),
        compiler_params=_cparams(est, ("parallel", "parallel")),
    )(x, kc3, p["ki_w1a"], p["ki_w1b"], p["ki_b1"],
      p["ki_ln_g"], p["ki_ln_b"], p["ki_w2"], p["ki_b2"])


# ----------------------------------------------------------------------------
# Kernel: fused self-attention half of a post-norm TransformerEncoderLayer.
# Per batch element:
#   qkv  = x @ Wqkv + bqkv                     (one packed [S,H]x[H,3H] MXU pass)
#   per head h: ctx_h = softmax(q_h k_h^T / sqrt(hd)) v_h
#   sa   = sum_h ctx_h @ Wo[h-rows] + bo       (head merge folded into Wo accum)
#   y    = LN1(x + sa)
# q/k/v/ctx never leave VMEM; only one [S,S] score tile is live at a time.
# ----------------------------------------------------------------------------
def _attention_kernel(x_ref, wqkv_ref, bqkv_ref, wo_ref, bo_ref, g1_ref, be1_ref,
                      o_ref, *, num_heads, scale):
    x = x_ref[0]                                    # [S, H]
    S, H = x.shape
    hd = H // num_heads
    qkv = (jnp.dot(x, wqkv_ref[...], preferred_element_type=jnp.float32)
           + bqkv_ref[...].astype(jnp.float32))     # [S, 3H]
    wo = wo_ref[...]                                # [H, H]
    sa = None
    for h in range(num_heads):
        lo = h * hd
        qh = qkv[:, lo:lo + hd]
        kh = qkv[:, H + lo:H + lo + hd]
        vh = qkv[:, 2 * H + lo:2 * H + lo + hd]
        s = jax.lax.dot_general(qh, kh, (((1,), (1,)), ((), ())),
                                preferred_element_type=jnp.float32) * scale  # [S,S]
        s = s - jnp.max(s, axis=-1, keepdims=True)
        p = jnp.exp(s)
        p = p / jnp.sum(p, axis=-1, keepdims=True)
        ctx_h = jnp.dot(p, vh, preferred_element_type=jnp.float32)           # [S,hd]
        part = jnp.dot(ctx_h, wo[lo:lo + hd, :],
                       preferred_element_type=jnp.float32)                   # [S,H]
        sa = part if sa is None else sa + part
    sa = sa + bo_ref[...].astype(jnp.float32)
    y = _layernorm(x.astype(jnp.float32) + sa, g1_ref[...], be1_ref[...])
    o_ref[0] = y.astype(o_ref.dtype)


def attention_block(x, lp, *, num_heads):
    B, S, H = x.shape
    est = _est_bytes((S, H), (S, H), (S, 3 * H), (H, 3 * H), (H, H),
                     (S, S), (S, H)) * 2
    const = lambda b: (0, 0)
    return pl.pallas_call(
        functools.partial(_attention_kernel, num_heads=num_heads,
                          scale=1.0 / math.sqrt(H // num_heads)),
        grid=(B,),
        in_specs=[
            pl.BlockSpec((1, S, H), lambda b: (b, 0, 0)),
            _spec((H, 3 * H), const, single_buffer=True),
            _spec((1, 3 * H), const, single_buffer=True),
            _spec((H, H), const, single_buffer=True),
            _spec((1, H), const, single_buffer=True),
            _spec((1, H), const, single_buffer=True),
            _spec((1, H), const, single_buffer=True),
        ],
        out_specs=pl.BlockSpec((1, S, H), lambda b: (b, 0, 0)),
        out_shape=jax.ShapeDtypeStruct((B, S, H), x.dtype),
        compiler_params=_cparams(est, ("parallel",)),
    )(x, lp["w_qkv"], lp["b_qkv"], lp["wo"], lp["bo"], lp["ln1_g"], lp["ln1_b"])


# ----------------------------------------------------------------------------
# Kernel: fused FFN tail of the encoder layer, with the 4H hidden dim tiled
# over an 'arbitrary' reduction axis so the W1/W2 blocks stay small:
#   acc = sum_k GELU(y @ W1[:,k] + b1[k]) @ W2[k,:]
#   out = LN2(y + acc + b2)
# ----------------------------------------------------------------------------
def _ffn_tail_kernel(y_ref, w1_ref, b1_ref, w2_ref, b2_ref, g2_ref, be2_ref,
                     o_ref, acc_ref):
    k = pl.program_id(1)

    @pl.when(k == 0)
    def _():
        acc_ref[...] = jnp.zeros_like(acc_ref)

    y = y_ref[...]
    h = _gelu_exact(jnp.dot(y, w1_ref[...], preferred_element_type=jnp.float32)
                    + b1_ref[...].astype(jnp.float32))
    acc_ref[...] += jnp.dot(h, w2_ref[...], preferred_element_type=jnp.float32)

    @pl.when(k == pl.num_programs(1) - 1)
    def _():
        z = acc_ref[...] + b2_ref[...].astype(jnp.float32) + y.astype(jnp.float32)
        o_ref[...] = _layernorm(z, g2_ref[...], be2_ref[...]).astype(o_ref.dtype)


def _ffn_k_tile(fh):
    if fh <= _MAX_FFN_TILE:
        return fh
    for cand in (_MAX_FFN_TILE, 1024, 512, 256, 128):
        if fh % cand == 0:
            return cand
    return fh


def ffn_block(y2d, lp):
    N, H = y2d.shape
    FH = lp["ff_w1"].shape[1]
    tm = N if N <= _MAX_ROW_TILE else _MAX_ROW_TILE
    tk = _ffn_k_tile(FH)
    nk = FH // tk
    kconst = nk == 1
    est = _est_bytes((tm, H), (tm, H), (H, tk), (tk, H), (tm, tk), (tm, H)) * 2
    return pl.pallas_call(
        _ffn_tail_kernel,
        grid=(pl.cdiv(N, tm), nk),
        in_specs=[
            pl.BlockSpec((tm, H), lambda i, k: (i, 0)),
            _spec((H, tk), lambda i, k: (0, k), single_buffer=kconst),
            _spec((1, tk), lambda i, k: (0, k), single_buffer=kconst),
            _spec((tk, H), lambda i, k: (k, 0), single_buffer=kconst),
            _spec((1, H), lambda i, k: (0, 0), single_buffer=True),
            _spec((1, H), lambda i, k: (0, 0), single_buffer=True),
            _spec((1, H), lambda i, k: (0, 0), single_buffer=True),
        ],
        out_specs=pl.BlockSpec((tm, H), lambda i, k: (i, 0)),
        out_shape=jax.ShapeDtypeStruct((N, H), y2d.dtype),
        scratch_shapes=[pltpu.VMEM((tm, H), jnp.float32)],
        compiler_params=_cparams(est, ("parallel", "arbitrary")),
    )(y2d, lp["ff_w1"], lp["ff_b1"], lp["ff_w2"], lp["ff_b2"],
      lp["ln2_g"], lp["ln2_b"])


# ----------------------------------------------------------------------------
# Kernel: fused output projection (Linear + LayerNorm)
# ----------------------------------------------------------------------------
def _out_proj_kernel(x_ref, w_ref, b_ref, g_ref, be_ref, o_ref):
    x = x_ref[...]
    y = (jnp.dot(x, w_ref[...], preferred_element_type=jnp.float32)
         + b_ref[...].astype(jnp.float32))
    o_ref[...] = _layernorm(y, g_ref[...], be_ref[...]).astype(o_ref.dtype)


def output_projection(x2d, p):
    N, H = x2d.shape
    tm = N if N <= _MAX_ROW_TILE else _MAX_ROW_TILE
    est = _est_bytes((tm, H), (H, H), (tm, H)) * 2
    const = lambda i: (0, 0)
    return pl.pallas_call(
        _out_proj_kernel,
        grid=(pl.cdiv(N, tm),),
        in_specs=[
            pl.BlockSpec((tm, H), lambda i: (i, 0)),
            _spec((H, H), const, single_buffer=True),
            _spec((1, H), const, single_buffer=True),
            _spec((1, H), const, single_buffer=True),
            _spec((1, H), const, single_buffer=True),
        ],
        out_specs=pl.BlockSpec((tm, H), lambda i: (i, 0)),
        out_shape=jax.ShapeDtypeStruct((N, H), x2d.dtype),
        compiler_params=_cparams(est, ("parallel",)),
    )(x2d, p["out_w"], p["out_b"], p["out_ln_g"], p["out_ln_b"])


# ----------------------------------------------------------------------------
# Parameter initialization (deterministic, synthetic; std=0.02 like initialize())
# Weights stored as [in, out] so kernels compute y = x @ W + b.  QKV weights of
# each encoder layer are packed into a single [H, 3H] matrix.
# ----------------------------------------------------------------------------
def init_params(key, H, K, M, dtype=jnp.float32):
    keys = iter(jax.random.split(key, 64))

    def w(shape):
        return (jax.random.normal(next(keys), shape, jnp.float32) * 0.02).astype(dtype)

    def zeros(shape):
        return jnp.zeros(shape, dtype)

    def ones(shape):
        return jnp.ones(shape, dtype)

    def layer_params():
        return dict(
            w_qkv=w((H, 3 * H)), b_qkv=zeros((1, 3 * H)),
            wo=w((H, H)), bo=zeros((1, H)),
            ln1_g=ones((1, H)), ln1_b=zeros((1, H)),
            ff_w1=w((H, 4 * H)), ff_b1=zeros((1, 4 * H)),
            ff_w2=w((4 * H, H)), ff_b2=zeros((1, H)),
            ln2_g=ones((1, H)), ln2_b=zeros((1, H)),
        )

    return dict(
        # knowledge_retriever: Linear(H,H) -> GELU -> Linear(H,K)
        retr_w1=w((H, H)), retr_b1=zeros((1, H)),
        retr_w2=w((H, K)), retr_b2=zeros((1, K)),
        # knowledge_memory
        knowledge_memory=w((M, K)),
        # knowledge_attention: only V / out projections are mathematically used
        # (Q/K cancel under the uniform softmax over a broadcast key/value).
        ka=dict(wv=w((H, H)), bv=zeros((1, H)), wo=w((H, H)), bo=zeros((1, H))),
        # knowledge_integration: Linear(2H,H) split into two H-halves -> LN -> GELU -> Linear(H,H)
        ki_w1a=w((H, H)), ki_w1b=w((H, H)), ki_b1=zeros((1, H)),
        ki_ln_g=ones((1, H)), ki_ln_b=zeros((1, H)),
        ki_w2=w((H, H)), ki_b2=zeros((1, H)),
        # output projection: Linear(H,H) -> LN
        out_w=w((H, H)), out_b=zeros((1, H)),
        out_ln_g=ones((1, H)), out_ln_b=zeros((1, H)),
        # two post-norm TransformerEncoderLayers
        layers=[layer_params() for _ in range(2)],
    )


# ----------------------------------------------------------------------------
# Forward pass (mirrors KnowledgeReasoner.forward with mask/external = None)
# ----------------------------------------------------------------------------
def knowledge_reasoner_forward(params, hidden_states, *, num_heads):
    B, S, H = hidden_states.shape
    M, K = params["knowledge_memory"].shape
    assert K == H, "knowledge_size must equal hidden_size for the attention step"
    assert H % num_heads == 0
    N = B * S

    # --- knowledge retrieval (single fused kernel) ---------------------------
    pooled = jnp.mean(hidden_states, axis=1)                                 # [B,H]
    knowledge_weights, retrieved = retrieval(pooled, params)                 # [B,M],[B,K]

    # --- knowledge attention: exact closed form -------------------------------
    kc = knowledge_ctx(retrieved, params["ka"])                              # [B,H]

    # --- knowledge integration (fused; kc streamed as [1,H] per-batch block) -
    reasoned = knowledge_integration(hidden_states, kc, params)              # [B,S,H]

    # --- reasoning transformer layers (post-norm encoder layers) -------------
    for lp in params["layers"]:
        y = attention_block(reasoned, lp, num_heads=num_heads)               # LN1(x+SA(x))
        reasoned = ffn_block(y.reshape(N, H), lp).reshape(B, S, H)           # LN2(y+FFN(y))

    # --- output projection (fused Linear + LN) --------------------------------
    output = output_projection(reasoned.reshape(N, H), params).reshape(B, S, H)

    reasoning_info = dict(
        knowledge_weights=knowledge_weights,
        retrieved_knowledge=jnp.broadcast_to(retrieved[:, None, :], (B, S, K)),
        knowledge_context=jnp.broadcast_to(kc[:, None, :], (B, S, H)),
    )
    return output, reasoning_info


# ----------------------------------------------------------------------------
if __name__ == "__main__":
    B, S, H = 2, 8, 32          # batch, seq, hidden
    K, M = 32, 16               # knowledge_size (== H), max_knowledge_items
    NUM_HEADS = 4

    key = jax.random.PRNGKey(0)
    pkey, xkey = jax.random.split(key)
    params = init_params(pkey, H, K, M)
    hidden_states = jax.random.normal(xkey, (B, S, H), jnp.float32)

    def _run():
        fwd = jax.jit(functools.partial(knowledge_reasoner_forward,
                                        num_heads=NUM_HEADS))
        o, i = fwd(params, hidden_states)
        jax.block_until_ready((o, i))
        return o, i

    try:
        out, info = _run()
    except Exception:
        # Fallback: disable single-buffered weight specs if this JAX/Mosaic
        # build rejects pipeline_mode=pl.Buffered(1) on pallas_call BlockSpecs.
        _SINGLE_BUFFER_WEIGHTS = False
        out, info = _run()

    assert out.shape == (B, S, H)
    assert info["knowledge_weights"].shape == (B, M)
    assert info["retrieved_knowledge"].shape == (B, S, K)
    assert info["knowledge_context"].shape == (B, S, H)
    print("KERNEL_OK")
</pallas_src>

<mosaic_0001>
module attributes {stable_mosaic.version = 11 : i64} {
  func.func @_retrieval_kernel(%arg0: memref<2x32xf32, #tpu.memory_space<vmem>>, %arg1: memref<32x32xf32, #tpu.memory_space<vmem>>, %arg2: memref<1x32xf32, #tpu.memory_space<vmem>>, %arg3: memref<32x32xf32, #tpu.memory_space<vmem>>, %arg4: memref<1x32xf32, #tpu.memory_space<vmem>>, %arg5: memref<16x32xf32, #tpu.memory_space<vmem>>, %arg6: memref<2x16xf32, #tpu.memory_space<vmem>>, %arg7: memref<2x32xf32, #tpu.memory_space<vmem>>) attributes {dimension_semantics = [], scalar_prefetch = 0 : i64, scratch_operands = 0 : i64, tpu.core_type = #tpu.core_type<tc>} {
    %c0 = arith.constant 0 : index
    %c0_0 = arith.constant 0 : index
    %0 = vector.load %arg0[%c0, %c0_0] : memref<2x32xf32, #tpu.memory_space<vmem>>, vector<2x32xf32>
    %c0_1 = arith.constant 0 : index
    %c0_2 = arith.constant 0 : index
    %1 = vector.load %arg1[%c0_1, %c0_2] : memref<32x32xf32, #tpu.memory_space<vmem>>, vector<32x32xf32>
    %cst = arith.constant dense<0.000000e+00> : vector<2x32xf32>
    %2 = tpu.matmul %0, %1, %cst {dimension_numbers = #tpu.dot_dimension_numbers<[1], [0], [0], [1], [0, 0, 1, 1], [], []>} : vector<2x32xf32>, vector<32x32xf32>, vector<2x32xf32> -> vector<2x32xf32>
    %c0_3 = arith.constant 0 : index
    %c0_4 = arith.constant 0 : index
    %3 = vector.load %arg2[%c0_3, %c0_4] : memref<1x32xf32, #tpu.memory_space<vmem>>, vector<1x32xf32>
    %4 = vector.broadcast %3 : vector<1x32xf32> to vector<2x32xf32>
    %5 = arith.addf %2, %4 : vector<2x32xf32>
    %cst_5 = arith.constant 5.000000e-01 : f32
    %6 = vector.broadcast %cst_5 : f32 to vector<2x32xf32>
    %7 = arith.mulf %6, %5 : vector<2x32xf32>
    %cst_6 = arith.constant 0.707106769 : f32
    %8 = vector.broadcast %cst_6 : f32 to vector<2x32xf32>
    %9 = arith.mulf %5, %8 : vector<2x32xf32>
    %10 = math.erf %9 : vector<2x32xf32>
    %cst_7 = arith.constant 1.000000e+00 : f32
    %11 = vector.broadcast %cst_7 : f32 to vector<2x32xf32>
    %12 = arith.addf %11, %10 : vector<2x32xf32>
    %13 = arith.mulf %7, %12 : vector<2x32xf32>
    %c0_8 = arith.constant 0 : index
    %c0_9 = arith.constant 0 : index
    %14 = vector.load %arg3[%c0_8, %c0_9] : memref<32x32xf32, #tpu.memory_space<vmem>>, vector<32x32xf32>
    %cst_10 = arith.constant dense<0.000000e+00> : vector<2x32xf32>
    %15 = tpu.matmul %13, %14, %cst_10 {dimension_numbers = #tpu.dot_dimension_numbers<[1], [0], [0], [1], [0, 0, 1, 1], [], []>} : vector<2x32xf32>, vector<32x32xf32>, vector<2x32xf32> -> vector<2x32xf32>
    %c0_11 = arith.constant 0 : index
    %c0_12 = arith.constant 0 : index
    %16 = vector.load %arg4[%c0_11, %c0_12] : memref<1x32xf32, #tpu.memory_space<vmem>>, vector<1x32xf32>
    %17 = vector.broadcast %16 : vector<1x32xf32> to vector<2x32xf32>
    %18 = arith.addf %15, %17 : vector<2x32xf32>
    %c0_13 = arith.constant 0 : index
    %c0_14 = arith.constant 0 : index
    %19 = vector.load %arg5[%c0_13, %c0_14] : memref<16x32xf32, #tpu.memory_space<vmem>>, vector<16x32xf32>
    %cst_15 = arith.constant dense<0.000000e+00> : vector<2x16xf32>
    %20 = tpu.matmul %18, %19, %cst_15 {dimension_numbers = #tpu.dot_dimension_numbers<[1], [1], [0], [0], [0, 0, 1, 0], [], []>} : vector<2x32xf32>, vector<16x32xf32>, vector<2x16xf32> -> vector<2x16xf32>
    %cst_16 = arith.constant dense<0xFF800000> : vector<2xf32>
    %21 = vector.multi_reduction <maximumf>, %20, %cst_16 [1] : vector<2x16xf32> to vector<2xf32>
    %22 = vector.shape_cast %21 : vector<2xf32> to vector<2x1xf32>
    %23 = vector.broadcast %22 : vector<2x1xf32> to vector<2x16xf32>
    %24 = arith.subf %20, %23 : vector<2x16xf32>
    %25 = math.exp %24 : vector<2x16xf32>
    %cst_17 = arith.constant dense<0.000000e+00> : vector<2xf32>
    %26 = vector.multi_reduction <add>, %25, %cst_17 [1] : vector<2x16xf32> to vector<2xf32>
    %27 = vector.shape_cast %26 : vector<2xf32> to vector<2x1xf32>
    %28 = vector.broadcast %27 : vector<2x1xf32> to vector<2x16xf32>
    %29 = arith.divf %25, %28 : vector<2x16xf32>
    %c0_18 = arith.constant 0 : index
    %c0_19 = arith.constant 0 : index
    %30 = vector.load %arg6[%c0_18, %c0_19] : memref<2x16xf32, #tpu.memory_space<vmem>>, vector<2x16xf32>
    tpu.vector_store %arg6[%c0_18, %c0_19], %29 {strides = array<i32>} : memref<2x16xf32, #tpu.memory_space<vmem>>, vector<2x16xf32>,
    %cst_20 = arith.constant dense<0.000000e+00> : vector<2x32xf32>
    %31 = tpu.matmul %29, %19, %cst_20 {dimension_numbers = #tpu.dot_dimension_numbers<[1], [0], [0], [1], [0, 0, 1, 1], [], []>} : vector<2x16xf32>, vector<16x32xf32>, vector<2x32xf32> -> vector<2x32xf32>
    %c0_21 = arith.constant 0 : index
    %c0_22 = arith.constant 0 : index
    %32 = vector.load %arg7[%c0_21, %c0_22] : memref<2x32xf32, #tpu.memory_space<vmem>>, vector<2x32xf32>
    tpu.vector_store %arg7[%c0_21, %c0_22], %31 {strides = array<i32>} : memref<2x32xf32, #tpu.memory_space<vmem>>, vector<2x32xf32>,
    return
  }
}

module attributes {stable_mosaic.version = 11 : i64} {
  func.func @_knowledge_ctx_kernel(%arg0: memref<2x32xf32, #tpu.memory_space<vmem>>, %arg1: memref<32x32xf32, #tpu.memory_space<vmem>>, %arg2: memref<1x32xf32, #tpu.memory_space<vmem>>, %arg3: memref<32x32xf32, #tpu.memory_space<vmem>>, %arg4: memref<1x32xf32, #tpu.memory_space<vmem>>, %arg5: memref<2x32xf32, #tpu.memory_space<vmem>>) attributes {dimension_semantics = [], scalar_prefetch = 0 : i64, scratch_operands = 0 : i64, tpu.core_type = #tpu.core_type<tc>} {
    %c0 = arith.constant 0 : index
    %c0_0 = arith.constant 0 : index
    %0 = vector.load %arg0[%c0, %c0_0] : memref<2x32xf32, #tpu.memory_space<vmem>>, vector<2x32xf32>
    %c0_1 = arith.constant 0 : index
    %c0_2 = arith.constant 0 : index
    %1 = vector.load %arg1[%c0_1, %c0_2] : memref<32x32xf32, #tpu.memory_space<vmem>>, vector<32x32xf32>
    %cst = arith.constant dense<0.000000e+00> : vector<2x32xf32>
    %2 = tpu.matmul %0, %1, %cst {dimension_numbers = #tpu.dot_dimension_numbers<[1], [0], [0], [1], [0, 0, 1, 1], [], []>} : vector<2x32xf32>, vector<32x32xf32>, vector<2x32xf32> -> vector<2x32xf32>
    %c0_3 = arith.constant 0 : index
    %c0_4 = arith.constant 0 : index
    %3 = vector.load %arg2[%c0_3, %c0_4] : memref<1x32xf32, #tpu.memory_space<vmem>>, vector<1x32xf32>
    %4 = vector.broadcast %3 : vector<1x32xf32> to vector<2x32xf32>
    %5 = arith.addf %2, %4 : vector<2x32xf32>
    %c0_5 = arith.constant 0 : index
    %c0_6 = arith.constant 0 : index
    %6 = vector.load %arg3[%c0_5, %c0_6] : memref<32x32xf32, #tpu.memory_space<vmem>>, vector<32x32xf32>
    %cst_7 = arith.constant dense<0.000000e+00> : vector<2x32xf32>
    %7 = tpu.matmul %5, %6, %cst_7 {dimension_numbers = #tpu.dot_dimension_numbers<[1], [0], [0], [1], [0, 0, 1, 1], [], []>} : vector<2x32xf32>, vector<32x32xf32>, vector<2x32xf32> -> vector<2x32xf32>
    %c0_8 = arith.constant 0 : index
    %c0_9 = arith.constant 0 : index
    %8 = vector.load %arg4[%c0_8, %c0_9] : memref<1x32xf32, #tpu.memory_space<vmem>>, vector<1x32xf32>
    %9 = vector.broadcast %8 : vector<1x32xf32> to vector<2x32xf32>
    %10 = arith.addf %7, %9 : vector<2x32xf32>
    %c0_10 = arith.constant 0 : index
    %c0_11 = arith.constant 0 : index
    %11 = vector.load %arg5[%c0_10, %c0_11] : memref<2x32xf32, #tpu.memory_space<vmem>>, vector<2x32xf32>
    tpu.vector_store %arg5[%c0_10, %c0_11], %10 {strides = array<i32>} : memref<2x32xf32, #tpu.memory_space<vmem>>, vector<2x32xf32>,
    return
  }
}

module attributes {stable_mosaic.version = 11 : i64} {
  func.func @_integration_kernel(%arg0: i32, %arg1: i32, %arg2: memref<1x8x32xf32, #tpu.memory_space<vmem>>, %arg3: memref<1x1x32xf32, #tpu.memory_space<vmem>>, %arg4: memref<32x32xf32, #tpu.memory_space<vmem>>, %arg5: memref<32x32xf32, #tpu.memory_space<vmem>>, %arg6: memref<1x32xf32, #tpu.memory_space<vmem>>, %arg7: memref<1x32xf32, #tpu.memory_space<vmem>>, %arg8: memref<1x32xf32, #tpu.memory_space<vmem>>, %arg9: memref<32x32xf32, #tpu.memory_space<vmem>>, %arg10: memref<1x32xf32, #tpu.memory_space<vmem>>, %arg11: memref<1x8x32xf32, #tpu.memory_space<vmem>>) attributes {dimension_semantics = [#tpu.dimension_semantics<parallel>, #tpu.dimension_semantics<parallel>], iteration_bounds = array<i64: 2, 1>, scalar_prefetch = 0 : i64, scratch_operands = 0 : i64, tpu.core_type = #tpu.core_type<tc>, window_params = [{transform_indices = @transform_0, window_bounds = array<i64: 1, 8, 32>}, {transform_indices = @transform_1, window_bounds = array<i64: 1, 1, 32>}, {pipeline_mode = #tpu.pipeline_mode<synchronous>, transform_indices = @transform_2, window_bounds = array<i64: 32, 32>}, {pipeline_mode = #tpu.pipeline_mode<synchronous>, transform_indices = @transform_3, window_bounds = array<i64: 32, 32>}, {pipeline_mode = #tpu.pipeline_mode<synchronous>, transform_indices = @transform_4, window_bounds = array<i64: 1, 32>}, {pipeline_mode = #tpu.pipeline_mode<synchronous>, transform_indices = @transform_5, window_bounds = array<i64: 1, 32>}, {pipeline_mode = #tpu.pipeline_mode<synchronous>, transform_indices = @transform_6, window_bounds = array<i64: 1, 32>}, {pipeline_mode = #tpu.pipeline_mode<synchronous>, transform_indices = @transform_7, window_bounds = array<i64: 32, 32>}, {pipeline_mode = #tpu.pipeline_mode<synchronous>, transform_indices = @transform_8, window_bounds = array<i64: 1, 32>}, {transform_indices = @transform_9, window_bounds = array<i64: 1, 8, 32>}]} {
    %c0 = arith.constant 0 : index
    %c0_0 = arith.constant 0 : index
    %c0_1 = arith.constant 0 : index
    %0 = vector.load %arg2[%c0, %c0_0, %c0_1] : memref<1x8x32xf32, #tpu.memory_space<vmem>>, vector<1x8x32xf32>
    %1 = vector.shape_cast %0 : vector<1x8x32xf32> to vector<8x32xf32>
    %c0_2 = arith.constant 0 : index
    %c0_3 = arith.constant 0 : index
    %c0_4 = arith.constant 0 : index
    %2 = vector.load %arg3[%c0_2, %c0_3, %c0_4] : memref<1x1x32xf32, #tpu.memory_space<vmem>>, vector<1x1x32xf32>
    %3 = vector.shape_cast %2 : vector<1x1x32xf32> to vector<1x32xf32>
    %c0_5 = arith.constant 0 : index
    %c0_6 = arith.constant 0 : index
    %4 = vector.load %arg4[%c0_5, %c0_6] : memref<32x32xf32, #tpu.memory_space<vmem>>, vector<32x32xf32>
    %cst = arith.constant dense<0.000000e+00> : vector<8x32xf32>
    %5 = tpu.matmul %1, %4, %cst {dimension_numbers = #tpu.dot_dimension_numbers<[1], [0], [0], [1], [0, 0, 1, 1], [], []>} : vector<8x32xf32>, vector<32x32xf32>, vector<8x32xf32> -> vector<8x32xf32>
    %c0_7 = arith.constant 0 : index
    %c0_8 = arith.constant 0 : index
    %6 = vector.load %arg5[%c0_7, %c0_8] : memref<32x32xf32, #tpu.memory_space<vmem>>, vector<32x32xf32>
    %cst_9 = arith.constant dense<0.000000e+00> : vector<1x32xf32>
    %7 = tpu.matmul %3, %6, %cst_9 {dimension_numbers = #tpu.dot_dimension_numbers<[1], [0], [0], [1], [0, 0, 1, 1], [], []>} : vector<1x32xf32>, vector<32x32xf32>, vector<1x32xf32> -> vector<1x32xf32>
    %8 = vector.broadcast %7 : vector<1x32xf32> to vector<8x32xf32>
    %9 = arith.addf %5, %8 : vector<8x32xf32>
    %c0_10 = arith.constant 0 : index
    %c0_11 = arith.constant 0 : index
    %10 = vector.load %arg6[%c0_10, %c0_11] : memref<1x32xf32, #tpu.memory_space<vmem>>, vector<1x32xf32>
    %11 = vector.broadcast %10 : vector<1x32xf32> to vector<8x32xf32>
    %12 = arith.addf %9, %11 : vector<8x32xf32>
    %c0_12 = arith.constant 0 : index
    %c0_13 = arith.constant 0 : index
    %13 = vector.load %arg7[%c0_12, %c0_13] : memref<1x32xf32, #tpu.memory_space<vmem>>, vector<1x32xf32>
    %c0_14 = arith.constant 0 : index
    %c0_15 = arith.constant 0 : index
    %14 = vector.load %arg8[%c0_14, %c0_15] : memref<1x32xf32, #tpu.memory_space<vmem>>, vector<1x32xf32>
    %cst_16 = arith.constant dense<0.000000e+00> : vector<8xf32>
    %15 = vector.multi_reduction <add>, %12, %cst_16 [1] : vector<8x32xf32> to vector<8xf32>
    %16 = vector.shape_cast %15 : vector<8xf32> to vector<8x1xf32>
    %cst_17 = arith.constant 3.200000e+01 : f32
    %17 = vector.broadcast %cst_17 : f32 to vector<8x1xf32>
    %18 = arith.divf %16, %17 : vector<8x1xf32>
    %19 = vector.broadcast %18 : vector<8x1xf32> to vector<8x32xf32>
    %20 = arith.subf %12, %19 : vector<8x32xf32>
    %21 = arith.mulf %20, %20 : vector<8x32xf32>
    %cst_18 = arith.constant dense<0.000000e+00> : vector<8xf32>
    %22 = vector.multi_reduction <add>, %21, %cst_18 [1] : vector<8x32xf32> to vector<8xf32>
    %23 = vector.shape_cast %22 : vector<8xf32> to vector<8x1xf32>
    %cst_19 = arith.constant 3.200000e+01 : f32
    %24 = vector.broadcast %cst_19 : f32 to vector<8x1xf32>
    %25 = arith.divf %23, %24 : vector<8x1xf32>
    %26 = vector.broadcast %18 : vector<8x1xf32> to vector<8x32xf32>
    %27 = arith.subf %12, %26 : vector<8x32xf32>
    %cst_20 = arith.constant 9.99999974E-6 : f32
    %28 = vector.broadcast %cst_20 : f32 to vector<8x1xf32>
    %29 = arith.addf %25, %28 : vector<8x1xf32>
    %30 = math.rsqrt %29 : vector<8x1xf32>
    %31 = vector.broadcast %30 : vector<8x1xf32> to vector<8x32xf32>
    %32 = arith.mulf %27, %31 : vector<8x32xf32>
    %33 = vector.broadcast %13 : vector<1x32xf32> to vector<8x32xf32>
    %34 = arith.mulf %32, %33 : vector<8x32xf32>
    %35 = vector.broadcast %14 : vector<1x32xf32> to vector<8x32xf32>
    %36 = arith.addf %34, %35 : vector<8x32xf32>
    %cst_21 = arith.constant 5.000000e-01 : f32
    %37 = vector.broadcast %cst_21 : f32 to vector<8x32xf32>
    %38 = arith.mulf %37, %36 : vector<8x32xf32>
    %cst_22 = arith.constant 0.707106769 : f32
    %39 = vector.broadcast %cst_22 : f32 to vector<8x32xf32>
    %40 = arith.mulf %36, %39 : vector<8x32xf32>
    %41 = math.erf %40 : vector<8x32xf32>
    %cst_23 = arith.constant 1.000000e+00 : f32
    %42 = vector.broadcast %cst_23 : f32 to vector<8x32xf32>
    %43 = arith.addf %42, %41 : vector<8x32xf32>
    %44 = arith.mulf %38, %43 : vector<8x32xf32>
    %c0_24 = arith.constant 0 : index
    %c0_25 = arith.constant 0 : index
    %45 = vector.load %arg9[%c0_24, %c0_25] : memref<32x32xf32, #tpu.memory_space<vmem>>, vector<32x32xf32>
    %cst_26 = arith.constant dense<0.000000e+00> : vector<8x32xf32>
    %46 = tpu.matmul %44, %45, %cst_26 {dimension_numbers = #tpu.dot_dimension_numbers<[1], [0], [0], [1], [0, 0, 1, 1], [], []>} : vector<8x32xf32>, vector<32x32xf32>, vector<8x32xf32> -> vector<8x32xf32>
    %c0_27 = arith.constant 0 : index
    %c0_28 = arith.constant 0 : index
    %47 = vector.load %arg10[%c0_27, %c0_28] : memref<1x32xf32, #tpu.memory_space<vmem>>, vector<1x32xf32>
    %48 = vector.broadcast %47 : vector<1x32xf32> to vector<8x32xf32>
    %49 = arith.addf %46, %48 : vector<8x32xf32>
    %c0_29 = arith.constant 0 : index
    %c0_30 = arith.constant 0 : index
    %c0_31 = arith.constant 0 : index
    %50 = vector.load %arg11[%c0_29, %c0_30, %c0_31] : memref<1x8x32xf32, #tpu.memory_space<vmem>>, vector<1x8x32xf32>
    %51 = vector.shape_cast %50 : vector<1x8x32xf32> to vector<8x32xf32>
    %52 = vector.shape_cast %49 : vector<8x32xf32> to vector<1x8x32xf32>
    tpu.vector_store %arg11[%c0_29, %c0_30, %c0_31], %52 {strides = array<i32>} : memref<1x8x32xf32, #tpu.memory_space<vmem>>, vector<1x8x32xf32>,
    return
  }
  func.func @transform_0(%arg0: i32, %arg1: i32) -> (i32, i32, i32) {
    %c0_i32 = arith.constant 0 : i32
    %c0_i32_0 = arith.constant 0 : i32
    return %arg0, %arg1, %c0_i32 : i32, i32, i32
  }
  func.func @transform_1(%arg0: i32, %arg1: i32) -> (i32, i32, i32) {
    %c0_i32 = arith.constant 0 : i32
    %c0_i32_0 = arith.constant 0 : i32
    %c0_i32_1 = arith.constant 0 : i32
    return %arg0, %c0_i32, %c0_i32_0 : i32, i32, i32
  }
  func.func @transform_2(%arg0: i32, %arg1: i32) -> (i32, i32) {
    %c0_i32 = arith.constant 0 : i32
    %c0_i32_0 = arith.constant 0 : i32
    %c0_i32_1 = arith.constant 0 : i32
    return %c0_i32, %c0_i32_0 : i32, i32
  }
  func.func @transform_3(%arg0: i32, %arg1: i32) -> (i32, i32) {
    %c0_i32 = arith.constant 0 : i32
    %c0_i32_0 = arith.constant 0 : i32
    %c0_i32_1 = arith.constant 0 : i32
    return %c0_i32, %c0_i32_0 : i32, i32
  }
  func.func @transform_4(%arg0: i32, %arg1: i32) -> (i32, i32) {
    %c0_i32 = arith.constant 0 : i32
    %c0_i32_0 = arith.constant 0 : i32
    %c0_i32_1 = arith.constant 0 : i32
    return %c0_i32, %c0_i32_0 : i32, i32
  }
  func.func @transform_5(%arg0: i32, %arg1: i32) -> (i32, i32) {
    %c0_i32 = arith.constant 0 : i32
    %c0_i32_0 = arith.constant 0 : i32
    %c0_i32_1 = arith.constant 0 : i32
    return %c0_i32, %c0_i32_0 : i32, i32
  }
  func.func @transform_6(%arg0: i32, %arg1: i32) -> (i32, i32) {
    %c0_i32 = arith.constant 0 : i32
    %c0_i32_0 = arith.constant 0 : i32
    %c0_i32_1 = arith.constant 0 : i32
    return %c0_i32, %c0_i32_0 : i32, i32
  }
  func.func @transform_7(%arg0: i32, %arg1: i32) -> (i32, i32) {
    %c0_i32 = arith.constant 0 : i32
    %c0_i32_0 = arith.constant 0 : i32
    %c0_i32_1 = arith.constant 0 : i32
    return %c0_i32, %c0_i32_0 : i32, i32
  }
  func.func @transform_8(%arg0: i32, %arg1: i32) -> (i32, i32) {
    %c0_i32 = arith.constant 0 : i32
    %c0_i32_0 = arith.constant 0 : i32
    %c0_i32_1 = arith.constant 0 : i32
    return %c0_i32, %c0_i32_0 : i32, i32
  }
  func.func @transform_9(%arg0: i32, %arg1: i32) -> (i32, i32, i32) {
    %c0_i32 = arith.constant 0 : i32
    %c0_i32_0 = arith.constant 0 : i32
    return %arg0, %arg1, %c0_i32 : i32, i32, i32
  }
}

module attributes {stable_mosaic.version = 11 : i64} {
  func.func @_attention_kernel(%arg0: i32, %arg1: memref<1x8x32xf32, #tpu.memory_space<vmem>>, %arg2: memref<32x96xf32, #tpu.memory_space<vmem>>, %arg3: memref<1x96xf32, #tpu.memory_space<vmem>>, %arg4: memref<32x32xf32, #tpu.memory_space<vmem>>, %arg5: memref<1x32xf32, #tpu.memory_space<vmem>>, %arg6: memref<1x32xf32, #tpu.memory_space<vmem>>, %arg7: memref<1x32xf32, #tpu.memory_space<vmem>>, %arg8: memref<1x8x32xf32, #tpu.memory_space<vmem>>) attributes {dimension_semantics = [#tpu.dimension_semantics<parallel>], iteration_bounds = array<i64: 2>, scalar_prefetch = 0 : i64, scratch_operands = 0 : i64, tpu.core_type = #tpu.core_type<tc>, window_params = [{transform_indices = @transform_0, window_bounds = array<i64: 1, 8, 32>}, {pipeline_mode = #tpu.pipeline_mode<synchronous>, transform_indices = @transform_1, window_bounds = array<i64: 32, 96>}, {pipeline_mode = #tpu.pipeline_mode<synchronous>, transform_indices = @transform_2, window_bounds = array<i64: 1, 96>}, {pipeline_mode = #tpu.pipeline_mode<synchronous>, transform_indices = @transform_3, window_bounds = array<i64: 32, 32>}, {pipeline_mode = #tpu.pipeline_mode<synchronous>, transform_indices = @transform_4, window_bounds = array<i64: 1, 32>}, {pipeline_mode = #tpu.pipeline_mode<synchronous>, transform_indices = @transform_5, window_bounds = array<i64: 1, 32>}, {pipeline_mode = #tpu.pipeline_mode<synchronous>, transform_indices = @transform_6, window_bounds = array<i64: 1, 32>}, {transform_indices = @transform_7, window_bounds = array<i64: 1, 8, 32>}]} {
    %c0 = arith.constant 0 : index
    %c0_0 = arith.constant 0 : index
    %c0_1 = arith.constant 0 : index
    %0 = vector.load %arg1[%c0, %c0_0, %c0_1] : memref<1x8x32xf32, #tpu.memory_space<vmem>>, vector<1x8x32xf32>
    %1 = vector.shape_cast %0 : vector<1x8x32xf32> to vector<8x32xf32>
    %c0_2 = arith.constant 0 : index
    %c0_3 = arith.constant 0 : index
    %2 = vector.load %arg2[%c0_2, %c0_3] : memref<32x96xf32, #tpu.memory_space<vmem>>, vector<32x96xf32>
    %cst = arith.constant dense<0.000000e+00> : vector<8x96xf32>
    %3 = tpu.matmul %1, %2, %cst {dimension_numbers = #tpu.dot_dimension_numbers<[1], [0], [0], [1], [0, 0, 1, 1], [], []>} : vector<8x32xf32>, vector<32x96xf32>, vector<8x96xf32> -> vector<8x96xf32>
    %c0_4 = arith.constant 0 : index
    %c0_5 = arith.constant 0 : index
    %4 = vector.load %arg3[%c0_4, %c0_5] : memref<1x96xf32, #tpu.memory_space<vmem>>, vector<1x96xf32>
    %5 = vector.broadcast %4 : vector<1x96xf32> to vector<8x96xf32>
    %6 = arith.addf %3, %5 : vector<8x96xf32>
    %c0_6 = arith.constant 0 : index
    %c0_7 = arith.constant 0 : index
    %7 = vector.load %arg4[%c0_6, %c0_7] : memref<32x32xf32, #tpu.memory_space<vmem>>, vector<32x32xf32>
    %8 = vector.extract_strided_slice %6 {offsets = [0, 0], sizes = [8, 8], strides = [1, 1]} : vector<8x96xf32> to vector<8x8xf32>
    %9 = vector.extract_strided_slice %6 {offsets = [0, 32], sizes = [8, 8], strides = [1, 1]} : vector<8x96xf32> to vector<8x8xf32>
    %10 = vector.extract_strided_slice %6 {offsets = [0, 64], sizes = [8, 8], strides = [1, 1]} : vector<8x96xf32> to vector<8x8xf32>
    %cst_8 = arith.constant dense<0.000000e+00> : vector<8x8xf32>
    %11 = tpu.matmul %8, %9, %cst_8 {dimension_numbers = #tpu.dot_dimension_numbers<[1], [1], [0], [0], [0, 0, 1, 0], [], []>} : vector<8x8xf32>, vector<8x8xf32>, vector<8x8xf32> -> vector<8x8xf32>
    %cst_9 = arith.constant 0.353553385 : f32
    %12 = vector.broadcast %cst_9 : f32 to vector<8x8xf32>
    %13 = arith.mulf %11, %12 : vector<8x8xf32>
    %cst_10 = arith.constant dense<0xFF800000> : vector<8xf32>
    %14 = vector.multi_reduction <maximumf>, %13, %cst_10 [1] : vector<8x8xf32> to vector<8xf32>
    %15 = vector.shape_cast %14 : vector<8xf32> to vector<8x1xf32>
    %16 = vector.broadcast %15 : vector<8x1xf32> to vector<8x8xf32>
    %17 = arith.subf %13, %16 : vector<8x8xf32>
    %18 = math.exp %17 : vector<8x8xf32>
    %cst_11 = arith.constant dense<0.000000e+00> : vector<8xf32>
    %19 = vector.multi_reduction <add>, %18, %cst_11 [1] : vector<8x8xf32> to vector<8xf32>
    %20 = vector.shape_cast %19 : vector<8xf32> to vector<8x1xf32>
    %21 = vector.broadcast %20 : vector<8x1xf32> to vector<8x8xf32>
    %22 = arith.divf %18, %21 : vector<8x8xf32>
    %cst_12 = arith.constant dense<0.000000e+00> : vector<8x8xf32>
    %23 = tpu.matmul %22, %10, %cst_12 {dimension_numbers = #tpu.dot_dimension_numbers<[1], [0], [0], [1], [0, 0, 1, 1], [], []>} : vector<8x8xf32>, vector<8x8xf32>, vector<8x8xf32> -> vector<8x8xf32>
    %24 = vector.extract_strided_slice %7 {offsets = [0, 0], sizes = [8, 32], strides = [1, 1]} : vector<32x32xf32> to vector<8x32xf32>
    %cst_13 = arith.constant dense<0.000000e+00> : vector<8x32xf32>
    %25 = tpu.matmul %23, %24, %cst_13 {dimension_numbers = #tpu.dot_dimension_numbers<[1], [0], [0], [1], [0, 0, 1, 1], [], []>} : vector<8x8xf32>, vector<8x32xf32>, vector<8x32xf32> -> vector<8x32xf32>
    %26 = vector.extract_strided_slice %6 {offsets = [0, 8], sizes = [8, 8], strides = [1, 1]} : vector<8x96xf32> to vector<8x8xf32>
    %27 = vector.extract_strided_slice %6 {offsets = [0, 40], sizes = [8, 8], strides = [1, 1]} : vector<8x96xf32> to vector<8x8xf32>
    %28 = vector.extract_strided_slice %6 {offsets = [0, 72], sizes = [8, 8], strides = [1, 1]} : vector<8x96xf32> to vector<8x8xf32>
    %cst_14 = arith.constant dense<0.000000e+00> : vector<8x8xf32>
    %29 = tpu.matmul %26, %27, %cst_14 {dimension_numbers = #tpu.dot_dimension_numbers<[1], [1], [0], [0], [0, 0, 1, 0], [], []>} : vector<8x8xf32>, vector<8x8xf32>, vector<8x8xf32> -> vector<8x8xf32>
    %cst_15 = arith.constant 0.353553385 : f32
    %30 = vector.broadcast %cst_15 : f32 to vector<8x8xf32>
    %31 = arith.mulf %29, %30 : vector<8x8xf32>
    %cst_16 = arith.constant dense<0xFF800000> : vector<8xf32>
    %32 = vector.multi_reduction <maximumf>, %31, %cst_16 [1] : vector<8x8xf32> to vector<8xf32>
    %33 = vector.shape_cast %32 : vector<8xf32> to vector<8x1xf32>
    %34 = vector.broadcast %33 : vector<8x1xf32> to vector<8x8xf32>
    %35 = arith.subf %31, %34 : vector<8x8xf32>
    %36 = math.exp %35 : vector<8x8xf32>
    %cst_17 = arith.constant dense<0.000000e+00> : vector<8xf32>
    %37 = vector.multi_reduction <add>, %36, %cst_17 [1] : vector<8x8xf32> to vector<8xf32>
    %38 = vector.shape_cast %37 : vector<8xf32> to vector<8x1xf32>
    %39 = vector.broadcast %38 : vector<8x1xf32> to vector<8x8xf32>
    %40 = arith.divf %36, %39 : vector<8x8xf32>
    %cst_18 = arith.constant dense<0.000000e+00> : vector<8x8xf32>
    %41 = tpu.matmul %40, %28, %cst_18 {dimension_numbers = #tpu.dot_dimension_numbers<[1], [0], [0], [1], [0, 0, 1, 1], [], []>} : vector<8x8xf32>, vector<8x8xf32>, vector<8x8xf32> -> vector<8x8xf32>
    %42 = vector.extract_strided_slice %7 {offsets = [8, 0], sizes = [8, 32], strides = [1, 1]} : vector<32x32xf32> to vector<8x32xf32>
    %cst_19 = arith.constant dense<0.000000e+00> : vector<8x32xf32>
    %43 = tpu.matmul %41, %42, %cst_19 {dimension_numbers = #tpu.dot_dimension_numbers<[1], [0], [0], [1], [0, 0, 1, 1], [], []>} : vector<8x8xf32>, vector<8x32xf32>, vector<8x32xf32> -> vector<8x32xf32>
    %44 = arith.addf %25, %43 : vector<8x32xf32>
    %45 = vector.extract_strided_slice %6 {offsets = [0, 16], sizes = [8, 8], strides = [1, 1]} : vector<8x96xf32> to vector<8x8xf32>
    %46 = vector.extract_strided_slice %6 {offsets = [0, 48], sizes = [8, 8], strides = [1, 1]} : vector<8x96xf32> to vector<8x8xf32>
    %47 = vector.extract_strided_slice %6 {offsets = [0, 80], sizes = [8, 8], strides = [1, 1]} : vector<8x96xf32> to vector<8x8xf32>
    %cst_20 = arith.constant dense<0.000000e+00> : vector<8x8xf32>
    %48 = tpu.matmul %45, %46, %cst_20 {dimension_numbers = #tpu.dot_dimension_numbers<[1], [1], [0], [0], [0, 0, 1, 0], [], []>} : vector<8x8xf32>, vector<8x8xf32>, vector<8x8xf32> -> vector<8x8xf32>
    %cst_21 = arith.constant 0.353553385 : f32
    %49 = vector.broadcast %cst_21 : f32 to vector<8x8xf32>
    %50 = arith.mulf %48, %49 : vector<8x8xf32>
    %cst_22 = arith.constant dense<0xFF800000> : vector<8xf32>
    %51 = vector.multi_reduction <maximumf>, %50, %cst_22 [1] : vector<8x8xf32> to vector<8xf32>
    %52 = vector.shape_cast %51 : vector<8xf32> to vector<8x1xf32>
    %53 = vector.broadcast %52 : vector<8x1xf32> to vector<8x8xf32>
    %54 = arith.subf %50, %53 : vector<8x8xf32>
    %55 = math.exp %54 : vector<8x8xf32>
    %cst_23 = arith.constant dense<0.000000e+00> : vector<8xf32>
    %56 = vector.multi_reduction <add>, %55, %cst_23 [1] : vector<8x8xf32> to vector<8xf32>
    %57 = vector.shape_cast %56 : vector<8xf32> to vector<8x1xf32>
    %58 = vector.broadcast %57 : vector<8x1xf32> to vector<8x8xf32>
    %59 = arith.divf %55, %58 : vector<8x8xf32>
    %cst_24 = arith.constant dense<0.000000e+00> : vector<8x8xf32>
    %60 = tpu.matmul %59, %47, %cst_24 {dimension_numbers = #tpu.dot_dimension_numbers<[1], [0], [0], [1], [0, 0, 1, 1], [], []>} : vector<8x8xf32>, vector<8x8xf32>, vector<8x8xf32> -> vector<8x8xf32>
    %61 = vector.extract_strided_slice %7 {offsets = [16, 0], sizes = [8, 32], strides = [1, 1]} : vector<32x32xf32> to vector<8x32xf32>
    %cst_25 = arith.constant dense<0.000000e+00> : vector<8x32xf32>
    %62 = tpu.matmul %60, %61, %cst_25 {dimension_numbers = #tpu.dot_dimension_numbers<[1], [0], [0], [1], [0, 0, 1, 1], [], []>} : vector<8x8xf32>, vector<8x32xf32>, vector<8x32xf32> -> vector<8x32xf32>
    %63 = arith.addf %44, %62 : vector<8x32xf32>
    %64 = vector.extract_strided_slice %6 {offsets = [0, 24], sizes = [8, 8], strides = [1, 1]} : vector<8x96xf32> to vector<8x8xf32>
    %65 = vector.extract_strided_slice %6 {offsets = [0, 56], sizes = [8, 8], strides = [1, 1]} : vector<8x96xf32> to vector<8x8xf32>
    %66 = vector.extract_strided_slice %6 {offsets = [0, 88], sizes = [8, 8], strides = [1, 1]} : vector<8x96xf32> to vector<8x8xf32>
    %cst_26 = arith.constant dense<0.000000e+00> : vector<8x8xf32>
    %67 = tpu.matmul %64, %65, %cst_26 {dimension_numbers = #tpu.dot_dimension_numbers<[1], [1], [0], [0], [0, 0, 1, 0], [], []>} : vector<8x8xf32>, vector<8x8xf32>, vector<8x8xf32> -> vector<8x8xf32>
    %cst_27 = arith.constant 0.353553385 : f32
    %68 = vector.broadcast %cst_27 : f32 to vector<8x8xf32>
    %69 = arith.mulf %67, %68 : vector<8x8xf32>
    %cst_28 = arith.constant dense<0xFF800000> : vector<8xf32>
    %70 = vector.multi_reduction <maximumf>, %69, %cst_28 [1] : vector<8x8xf32> to vector<8xf32>
    %71 = vector.shape_cast %70 : vector<8xf32> to vector<8x1xf32>
    %72 = vector.broadcast %71 : vector<8x1xf32> to vector<8x8xf32>
    %73 = arith.subf %69, %72 : vector<8x8xf32>
    %74 = math.exp %73 : vector<8x8xf32>
    %cst_29 = arith.constant dense<0.000000e+00> : vector<8xf32>
    %75 = vector.multi_reduction <add>, %74, %cst_29 [1] : vector<8x8xf32> to vector<8xf32>
    %76 = vector.shape_cast %75 : vector<8xf32> to vector<8x1xf32>
    %77 = vector.broadcast %76 : vector<8x1xf32> to vector<8x8xf32>
    %78 = arith.divf %74, %77 : vector<8x8xf32>
    %cst_30 = arith.constant dense<0.000000e+00> : vector<8x8xf32>
    %79 = tpu.matmul %78, %66, %cst_30 {dimension_numbers = #tpu.dot_dimension_numbers<[1], [0], [0], [1], [0, 0, 1, 1], [], []>} : vector<8x8xf32>, vector<8x8xf32>, vector<8x8xf32> -> vector<8x8xf32>
    %80 = vector.extract_strided_slice %7 {offsets = [24, 0], sizes = [8, 32], strides = [1, 1]} : vector<32x32xf32> to vector<8x32xf32>
    %cst_31 = arith.constant dense<0.000000e+00> : vector<8x32xf32>
    %81 = tpu.matmul %79, %80, %cst_31 {dimension_numbers = #tpu.dot_dimension_numbers<[1], [0], [0], [1], [0, 0, 1, 1], [], []>} : vector<8x8xf32>, vector<8x32xf32>, vector<8x32xf32> -> vector<8x32xf32>
    %82 = arith.addf %63, %81 : vector<8x32xf32>
    %c0_32 = arith.constant 0 : index
    %c0_33 = arith.constant 0 : index
    %83 = vector.load %arg5[%c0_32, %c0_33] : memref<1x32xf32, #tpu.memory_space<vmem>>, vector<1x32xf32>
    %84 = vector.broadcast %83 : vector<1x32xf32> to vector<8x32xf32>
    %85 = arith.addf %82, %84 : vector<8x32xf32>
    %86 = arith.addf %1, %85 : vector<8x32xf32>
    %c0_34 = arith.constant 0 : index
    %c0_35 = arith.constant 0 : index
    %87 = vector.load %arg6[%c0_34, %c0_35] : memref<1x32xf32, #tpu.memory_space<vmem>>, vector<1x32xf32>
    %c0_36 = arith.constant 0 : index
    %c0_37 = arith.constant 0 : index
    %88 = vector.load %arg7[%c0_36, %c0_37] : memref<1x32xf32, #tpu.memory_space<vmem>>, vector<1x32xf32>
    %cst_38 = arith.constant dense<0.000000e+00> : vector<8xf32>
    %89 = vector.multi_reduction <add>, %86, %cst_38 [1] : vector<8x32xf32> to vector<8xf32>
    %90 = vector.shape_cast %89 : vector<8xf32> to vector<8x1xf32>
    %cst_39 = arith.constant 3.200000e+01 : f32
    %91 = vector.broadcast %cst_39 : f32 to vector<8x1xf32>
    %92 = arith.divf %90, %91 : vector<8x1xf32>
    %93 = vector.broadcast %92 : vector<8x1xf32> to vector<8x32xf32>
    %94 = arith.subf %86, %93 : vector<8x32xf32>
    %95 = arith.mulf %94, %94 : vector<8x32xf32>
    %cst_40 = arith.constant dense<0.000000e+00> : vector<8xf32>
    %96 = vector.multi_reduction <add>, %95, %cst_40 [1] : vector<8x32xf32> to vector<8xf32>
    %97 = vector.shape_cast %96 : vector<8xf32> to vector<8x1xf32>
    %cst_41 = arith.constant 3.200000e+01 : f32
    %98 = vector.broadcast %cst_41 : f32 to vector<8x1xf32>
    %99 = arith.divf %97, %98 : vector<8x1xf32>
    %100 = vector.broadcast %92 : vector<8x1xf32> to vector<8x32xf32>
    %101 = arith.subf %86, %100 : vector<8x32xf32>
    %cst_42 = arith.constant 9.99999974E-6 : f32
    %102 = vector.broadcast %cst_42 : f32 to vector<8x1xf32>
    %103 = arith.addf %99, %102 : vector<8x1xf32>
    %104 = math.rsqrt %103 : vector<8x1xf32>
    %105 = vector.broadcast %104 : vector<8x1xf32> to vector<8x32xf32>
    %106 = arith.mulf %101, %105 : vector<8x32xf32>
    %107 = vector.broadcast %87 : vector<1x32xf32> to vector<8x32xf32>
    %108 = arith.mulf %106, %107 : vector<8x32xf32>
    %109 = vector.broadcast %88 : vector<1x32xf32> to vector<8x32xf32>
    %110 = arith.addf %108, %109 : vector<8x32xf32>
    %c0_43 = arith.constant 0 : index
    %c0_44 = arith.constant 0 : index
    %c0_45 = arith.constant 0 : index
    %111 = vector.load %arg8[%c0_43, %c0_44, %c0_45] : memref<1x8x32xf32, #tpu.memory_space<vmem>>, vector<1x8x32xf32>
    %112 = vector.shape_cast %111 : vector<1x8x32xf32> to vector<8x32xf32>
    %113 = vector.shape_cast %110 : vector<8x32xf32> to vector<1x8x32xf32>
    tpu.vector_store %arg8[%c0_43, %c0_44, %c0_45], %113 {strides = array<i32>} : memref<1x8x32xf32, #tpu.memory_space<vmem>>, vector<1x8x32xf32>,
    return
  }
  func.func @transform_0(%arg0: i32) -> (i32, i32, i32) {
    %c0_i32 = arith.constant 0 : i32
    %c0_i32_0 = arith.constant 0 : i32
    %c0_i32_1 = arith.constant 0 : i32
    return %arg0, %c0_i32, %c0_i32_0 : i32, i32, i32
  }
  func.func @transform_1(%arg0: i32) -> (i32, i32) {
    %c0_i32 = arith.constant 0 : i32
    %c0_i32_0 = arith.constant 0 : i32
    %c0_i32_1 = arith.constant 0 : i32
    return %c0_i32, %c0_i32_0 : i32, i32
  }
  func.func @transform_2(%arg0: i32) -> (i32, i32) {
    %c0_i32 = arith.constant 0 : i32
    %c0_i32_0 = arith.constant 0 : i32
    %c0_i32_1 = arith.constant 0 : i32
    return %c0_i32, %c0_i32_0 : i32, i32
  }
  func.func @transform_3(%arg0: i32) -> (i32, i32) {
    %c0_i32 = arith.constant 0 : i32
    %c0_i32_0 = arith.constant 0 : i32
    %c0_i32_1 = arith.constant 0 : i32
    return %c0_i32, %c0_i32_0 : i32, i32
  }
  func.func @transform_4(%arg0: i32) -> (i32, i32) {
    %c0_i32 = arith.constant 0 : i32
    %c0_i32_0 = arith.constant 0 : i32
    %c0_i32_1 = arith.constant 0 : i32
    return %c0_i32, %c0_i32_0 : i32, i32
  }
  func.func @transform_5(%arg0: i32) -> (i32, i32) {
    %c0_i32 = arith.constant 0 : i32
    %c0_i32_0 = arith.constant 0 : i32
    %c0_i32_1 = arith.constant 0 : i32
    return %c0_i32, %c0_i32_0 : i32, i32
  }
  func.func @transform_6(%arg0: i32) -> (i32, i32) {
    %c0_i32 = arith.constant 0 : i32
    %c0_i32_0 = arith.constant 0 : i32
    %c0_i32_1 = arith.constant 0 : i32
    return %c0_i32, %c0_i32_0 : i32, i32
  }
  func.func @transform_7(%arg0: i32) -> (i32, i32, i32) {
    %c0_i32 = arith.constant 0 : i32
    %c0_i32_0 = arith.constant 0 : i32
    %c0_i32_1 = arith.constant 0 : i32
    return %arg0, %c0_i32, %c0_i32_0 : i32, i32, i32
  }
}

module attributes {stable_mosaic.version = 11 : i64} {
  func.func @_ffn_tail_kernel(%arg0: i32, %arg1: i32, %arg2: memref<16x32xf32, #tpu.memory_space<vmem>>, %arg3: memref<32x128xf32, #tpu.memory_space<vmem>>, %arg4: memref<1x128xf32, #tpu.memory_space<vmem>>, %arg5: memref<128x32xf32, #tpu.memory_space<vmem>>, %arg6: memref<1x32xf32, #tpu.memory_space<vmem>>, %arg7: memref<1x32xf32, #tpu.memory_space<vmem>>, %arg8: memref<1x32xf32, #tpu.memory_space<vmem>>, %arg9: memref<16x32xf32, #tpu.memory_space<vmem>>, %arg10: memref<16x32xf32, #tpu.memory_space<vmem>>) attributes {dimension_semantics = [#tpu.dimension_semantics<parallel>, #tpu.dimension_semantics<arbitrary>], iteration_bounds = array<i64: 1, 1>, scalar_prefetch = 0 : i64, scratch_operands = 1 : i64, tpu.core_type = #tpu.core_type<tc>, window_params = [{transform_indices = @transform_0, window_bounds = array<i64: 16, 32>}, {pipeline_mode = #tpu.pipeline_mode<synchronous>, transform_indices = @transform_1, window_bounds = array<i64: 32, 128>}, {pipeline_mode = #tpu.pipeline_mode<synchronous>, transform_indices = @transform_2, window_bounds = array<i64: 1, 128>}, {pipeline_mode = #tpu.pipeline_mode<synchronous>, transform_indices = @transform_3, window_bounds = array<i64: 128, 32>}, {pipeline_mode = #tpu.pipeline_mode<synchronous>, transform_indices = @transform_4, window_bounds = array<i64: 1, 32>}, {pipeline_mode = #tpu.pipeline_mode<synchronous>, transform_indices = @transform_5, window_bounds = array<i64: 1, 32>}, {pipeline_mode = #tpu.pipeline_mode<synchronous>, transform_indices = @transform_6, window_bounds = array<i64: 1, 32>}, {transform_indices = @transform_7, window_bounds = array<i64: 16, 32>}]} {
    %c0_i32 = arith.constant 0 : i32
    %0 = arith.cmpi eq, %arg1, %c0_i32 : i32
    %1 = arith.extui %0 : i1 to i32
    %c0_i32_0 = arith.constant 0 : i32
    %2 = arith.cmpi ne, %1, %c0_i32_0 : i32
    scf.if %2 {
      %cst_18 = arith.constant 0.000000e+00 : f32
      %25 = vector.broadcast %cst_18 : f32 to vector<16x32xf32>
      %c0_19 = arith.constant 0 : index
      %c0_20 = arith.constant 0 : index
      %26 = vector.load %arg10[%c0_19, %c0_20] : memref<16x32xf32, #tpu.memory_space<vmem>>, vector<16x32xf32>
      tpu.vector_store %arg10[%c0_19, %c0_20], %25 {strides = array<i32>} : memref<16x32xf32, #tpu.memory_space<vmem>>, vector<16x32xf32>,
    } else {
    }
    %c0 = arith.constant 0 : index
    %c0_1 = arith.constant 0 : index
    %3 = vector.load %arg2[%c0, %c0_1] : memref<16x32xf32, #tpu.memory_space<vmem>>, vector<16x32xf32>
    %c0_2 = arith.constant 0 : index
    %c0_3 = arith.constant 0 : index
    %4 = vector.load %arg3[%c0_2, %c0_3] : memref<32x128xf32, #tpu.memory_space<vmem>>, vector<32x128xf32>
    %cst = arith.constant dense<0.000000e+00> : vector<16x128xf32>
    %5 = tpu.matmul %3, %4, %cst {dimension_numbers = #tpu.dot_dimension_numbers<[1], [0], [0], [1], [0, 0, 1, 1], [], []>} : vector<16x32xf32>, vector<32x128xf32>, vector<16x128xf32> -> vector<16x128xf32>
    %c0_4 = arith.constant 0 : index
    %c0_5 = arith.constant 0 : index
    %6 = vector.load %arg4[%c0_4, %c0_5] : memref<1x128xf32, #tpu.memory_space<vmem>>, vector<1x128xf32>
    %7 = vector.broadcast %6 : vector<1x128xf32> to vector<16x128xf32>
    %8 = arith.addf %5, %7 : vector<16x128xf32>
    %cst_6 = arith.constant 5.000000e-01 : f32
    %9 = vector.broadcast %cst_6 : f32 to vector<16x128xf32>
    %10 = arith.mulf %9, %8 : vector<16x128xf32>
    %cst_7 = arith.constant 0.707106769 : f32
    %11 = vector.broadcast %cst_7 : f32 to vector<16x128xf32>
    %12 = arith.mulf %8, %11 : vector<16x128xf32>
    %13 = math.erf %12 : vector<16x128xf32>
    %cst_8 = arith.constant 1.000000e+00 : f32
    %14 = vector.broadcast %cst_8 : f32 to vector<16x128xf32>
    %15 = arith.addf %14, %13 : vector<16x128xf32>
    %16 = arith.mulf %10, %15 : vector<16x128xf32>
    %c0_9 = arith.constant 0 : index
    %c0_10 = arith.constant 0 : index
    %17 = vector.load %arg10[%c0_9, %c0_10] : memref<16x32xf32, #tpu.memory_space<vmem>>, vector<16x32xf32>
    %c0_11 = arith.constant 0 : index
    %c0_12 = arith.constant 0 : index
    %18 = vector.load %arg5[%c0_11, %c0_12] : memref<128x32xf32, #tpu.memory_space<vmem>>, vector<128x32xf32>
    %cst_13 = arith.constant dense<0.000000e+00> : vector<16x32xf32>
    %19 = tpu.matmul %16, %18, %cst_13 {dimension_numbers = #tpu.dot_dimension_numbers<[1], [0], [0], [1], [0, 0, 1, 1], [], []>} : vector<16x128xf32>, vector<128x32xf32>, vector<16x32xf32> -> vector<16x32xf32>
    %20 = arith.addf %17, %19 : vector<16x32xf32>
    %c0_14 = arith.constant 0 : index
    %c0_15 = arith.constant 0 : index
    %21 = vector.load %arg10[%c0_14, %c0_15] : memref<16x32xf32, #tpu.memory_space<vmem>>, vector<16x32xf32>
    tpu.vector_store %arg10[%c0_14, %c0_15], %20 {strides = array<i32>} : memref<16x32xf32, #tpu.memory_space<vmem>>, vector<16x32xf32>,
    %c0_i32_16 = arith.constant 0 : i32
    %22 = arith.cmpi eq, %arg1, %c0_i32_16 : i32
    %23 = arith.extui %22 : i1 to i32
    %c0_i32_17 = arith.constant 0 : i32
    %24 = arith.cmpi ne, %23, %c0_i32_17 : i32
    scf.if %24 {
      %c0_18 = arith.constant 0 : index
      %c0_19 = arith.constant 0 : index
      %25 = vector.load %arg10[%c0_18, %c0_19] : memref<16x32xf32, #tpu.memory_space<vmem>>, vector<16x32xf32>
      %c0_20 = arith.constant 0 : index
      %c0_21 = arith.constant 0 : index
      %26 = vector.load %arg6[%c0_20, %c0_21] : memref<1x32xf32, #tpu.memory_space<vmem>>, vector<1x32xf32>
      %27 = vector.broadcast %26 : vector<1x32xf32> to vector<16x32xf32>
      %28 = arith.addf %25, %27 : vector<16x32xf32>
      %29 = arith.addf %28, %3 : vector<16x32xf32>
      %c0_22 = arith.constant 0 : index
      %c0_23 = arith.constant 0 : index
      %30 = vector.load %arg7[%c0_22, %c0_23] : memref<1x32xf32, #tpu.memory_space<vmem>>, vector<1x32xf32>
      %c0_24 = arith.constant 0 : index
      %c0_25 = arith.constant 0 : index
      %31 = vector.load %arg8[%c0_24, %c0_25] : memref<1x32xf32, #tpu.memory_space<vmem>>, vector<1x32xf32>
      %cst_26 = arith.constant dense<0.000000e+00> : vector<16xf32>
      %32 = vector.multi_reduction <add>, %29, %cst_26 [1] : vector<16x32xf32> to vector<16xf32>
      %33 = vector.shape_cast %32 : vector<16xf32> to vector<16x1xf32>
      %cst_27 = arith.constant 3.200000e+01 : f32
      %34 = vector.broadcast %cst_27 : f32 to vector<16x1xf32>
      %35 = arith.divf %33, %34 : vector<16x1xf32>
      %36 = vector.broadcast %35 : vector<16x1xf32> to vector<16x32xf32>
      %37 = arith.subf %29, %36 : vector<16x32xf32>
      %38 = arith.mulf %37, %37 : vector<16x32xf32>
      %cst_28 = arith.constant dense<0.000000e+00> : vector<16xf32>
      %39 = vector.multi_reduction <add>, %38, %cst_28 [1] : vector<16x32xf32> to vector<16xf32>
      %40 = vector.shape_cast %39 : vector<16xf32> to vector<16x1xf32>
      %cst_29 = arith.constant 3.200000e+01 : f32
      %41 = vector.broadcast %cst_29 : f32 to vector<16x1xf32>
      %42 = arith.divf %40, %41 : vector<16x1xf32>
      %43 = vector.broadcast %35 : vector<16x1xf32> to vector<16x32xf32>
      %44 = arith.subf %29, %43 : vector<16x32xf32>
      %cst_30 = arith.constant 9.99999974E-6 : f32
      %45 = vector.broadcast %cst_30 : f32 to vector<16x1xf32>
      %46 = arith.addf %42, %45 : vector<16x1xf32>
      %47 = math.rsqrt %46 : vector<16x1xf32>
      %48 = vector.broadcast %47 : vector<16x1xf32> to vector<16x32xf32>
      %49 = arith.mulf %44, %48 : vector<16x32xf32>
      %50 = vector.broadcast %30 : vector<1x32xf32> to vector<16x32xf32>
      %51 = arith.mulf %49, %50 : vector<16x32xf32>
      %52 = vector.broadcast %31 : vector<1x32xf32> to vector<16x32xf32>
      %53 = arith.addf %51, %52 : vector<16x32xf32>
      %c0_31 = arith.constant 0 : index
      %c0_32 = arith.constant 0 : index
      %54 = vector.load %arg9[%c0_31, %c0_32] : memref<16x32xf32, #tpu.memory_space<vmem>>, vector<16x32xf32>
      tpu.vector_store %arg9[%c0_31, %c0_32], %53 {strides = array<i32>} : memref<16x32xf32, #tpu.memory_space<vmem>>, vector<16x32xf32>,
    } else {
    }
    return
  }
  func.func @transform_0(%arg0: i32, %arg1: i32) -> (i32, i32) {
    %c0_i32 = arith.constant 0 : i32
    %c0_i32_0 = arith.constant 0 : i32
    return %arg0, %c0_i32 : i32, i32
  }
  func.func @transform_1(%arg0: i32, %arg1: i32) -> (i32, i32) {
    %c0_i32 = arith.constant 0 : i32
    %c0_i32_0 = arith.constant 0 : i32
    return %c0_i32, %arg1 : i32, i32
  }
  func.func @transform_2(%arg0: i32, %arg1: i32) -> (i32, i32) {
    %c0_i32 = arith.constant 0 : i32
    %c0_i32_0 = arith.constant 0 : i32
    return %c0_i32, %arg1 : i32, i32
  }
  func.func @transform_3(%arg0: i32, %arg1: i32) -> (i32, i32) {
    %c0_i32 = arith.constant 0 : i32
    %c0_i32_0 = arith.constant 0 : i32
    return %arg1, %c0_i32 : i32, i32
  }
  func.func @transform_4(%arg0: i32, %arg1: i32) -> (i32, i32) {
    %c0_i32 = arith.constant 0 : i32
    %c0_i32_0 = arith.constant 0 : i32
    %c0_i32_1 = arith.constant 0 : i32
    return %c0_i32, %c0_i32_0 : i32, i32
  }
  func.func @transform_5(%arg0: i32, %arg1: i32) -> (i32, i32) {
    %c0_i32 = arith.constant 0 : i32
    %c0_i32_0 = arith.constant 0 : i32
    %c0_i32_1 = arith.constant 0 : i32
    return %c0_i32, %c0_i32_0 : i32, i32
  }
  func.func @transform_6(%arg0: i32, %arg1: i32) -> (i32, i32) {
    %c0_i32 = arith.constant 0 : i32
    %c0_i32_0 = arith.constant 0 : i32
    %c0_i32_1 = arith.constant 0 : i32
    return %c0_i32, %c0_i32_0 : i32, i32
  }
  func.func @transform_7(%arg0: i32, %arg1: i32) -> (i32, i32) {
    %c0_i32 = arith.constant 0 : i32
    %c0_i32_0 = arith.constant 0 : i32
    return %arg0, %c0_i32 : i32, i32
  }
}

module attributes {stable_mosaic.version = 11 : i64} {
  func.func @_out_proj_kernel(%arg0: i32, %arg1: memref<16x32xf32, #tpu.memory_space<vmem>>, %arg2: memref<32x32xf32, #tpu.memory_space<vmem>>, %arg3: memref<1x32xf32, #tpu.memory_space<vmem>>, %arg4: memref<1x32xf32, #tpu.memory_space<vmem>>, %arg5: memref<1x32xf32, #tpu.memory_space<vmem>>, %arg6: memref<16x32xf32, #tpu.memory_space<vmem>>) attributes {dimension_semantics = [#tpu.dimension_semantics<parallel>], iteration_bounds = array<i64: 1>, scalar_prefetch = 0 : i64, scratch_operands = 0 : i64, tpu.core_type = #tpu.core_type<tc>, window_params = [{transform_indices = @transform_0, window_bounds = array<i64: 16, 32>}, {pipeline_mode = #tpu.pipeline_mode<synchronous>, transform_indices = @transform_1, window_bounds = array<i64: 32, 32>}, {pipeline_mode = #tpu.pipeline_mode<synchronous>, transform_indices = @transform_2, window_bounds = array<i64: 1, 32>}, {pipeline_mode = #tpu.pipeline_mode<synchronous>, transform_indices = @transform_3, window_bounds = array<i64: 1, 32>}, {pipeline_mode = #tpu.pipeline_mode<synchronous>, transform_indices = @transform_4, window_bounds = array<i64: 1, 32>}, {transform_indices = @transform_5, window_bounds = array<i64: 16, 32>}]} {
    %c0 = arith.constant 0 : index
    %c0_0 = arith.constant 0 : index
    %0 = vector.load %arg1[%c0, %c0_0] : memref<16x32xf32, #tpu.memory_space<vmem>>, vector<16x32xf32>
    %c0_1 = arith.constant 0 : index
    %c0_2 = arith.constant 0 : index
    %1 = vector.load %arg2[%c0_1, %c0_2] : memref<32x32xf32, #tpu.memory_space<vmem>>, vector<32x32xf32>
    %cst = arith.constant dense<0.000000e+00> : vector<16x32xf32>
    %2 = tpu.matmul %0, %1, %cst {dimension_numbers = #tpu.dot_dimension_numbers<[1], [0], [0], [1], [0, 0, 1, 1], [], []>} : vector<16x32xf32>, vector<32x32xf32>, vector<16x32xf32> -> vector<16x32xf32>
    %c0_3 = arith.constant 0 : index
    %c0_4 = arith.constant 0 : index
    %3 = vector.load %arg3[%c0_3, %c0_4] : memref<1x32xf32, #tpu.memory_space<vmem>>, vector<1x32xf32>
    %4 = vector.broadcast %3 : vector<1x32xf32> to vector<16x32xf32>
    %5 = arith.addf %2, %4 : vector<16x32xf32>
    %c0_5 = arith.constant 0 : index
    %c0_6 = arith.constant 0 : index
    %6 = vector.load %arg4[%c0_5, %c0_6] : memref<1x32xf32, #tpu.memory_space<vmem>>, vector<1x32xf32>
    %c0_7 = arith.constant 0 : index
    %c0_8 = arith.constant 0 : index
    %7 = vector.load %arg5[%c0_7, %c0_8] : memref<1x32xf32, #tpu.memory_space<vmem>>, vector<1x32xf32>
    %cst_9 = arith.constant dense<0.000000e+00> : vector<16xf32>
    %8 = vector.multi_reduction <add>, %5, %cst_9 [1] : vector<16x32xf32> to vector<16xf32>
    %9 = vector.shape_cast %8 : vector<16xf32> to vector<16x1xf32>
    %cst_10 = arith.constant 3.200000e+01 : f32
    %10 = vector.broadcast %cst_10 : f32 to vector<16x1xf32>
    %11 = arith.divf %9, %10 : vector<16x1xf32>
    %12 = vector.broadcast %11 : vector<16x1xf32> to vector<16x32xf32>
    %13 = arith.subf %5, %12 : vector<16x32xf32>
    %14 = arith.mulf %13, %13 : vector<16x32xf32>
    %cst_11 = arith.constant dense<0.000000e+00> : vector<16xf32>
    %15 = vector.multi_reduction <add>, %14, %cst_11 [1] : vector<16x32xf32> to vector<16xf32>
    %16 = vector.shape_cast %15 : vector<16xf32> to vector<16x1xf32>
    %cst_12 = arith.constant 3.200000e+01 : f32
    %17 = vector.broadcast %cst_12 : f32 to vector<16x1xf32>
    %18 = arith.divf %16, %17 : vector<16x1xf32>
    %19 = vector.broadcast %11 : vector<16x1xf32> to vector<16x32xf32>
    %20 = arith.subf %5, %19 : vector<16x32xf32>
    %cst_13 = arith.constant 9.99999974E-6 : f32
    %21 = vector.broadcast %cst_13 : f32 to vector<16x1xf32>
    %22 = arith.addf %18, %21 : vector<16x1xf32>
    %23 = math.rsqrt %22 : vector<16x1xf32>
    %24 = vector.broadcast %23 : vector<16x1xf32> to vector<16x32xf32>
    %25 = arith.mulf %20, %24 : vector<16x32xf32>
    %26 = vector.broadcast %6 : vector<1x32xf32> to vector<16x32xf32>
    %27 = arith.mulf %25, %26 : vector<16x32xf32>
    %28 = vector.broadcast %7 : vector<1x32xf32> to vector<16x32xf32>
    %29 = arith.addf %27, %28 : vector<16x32xf32>
    %c0_14 = arith.constant 0 : index
    %c0_15 = arith.constant 0 : index
    %30 = vector.load %arg6[%c0_14, %c0_15] : memref<16x32xf32, #tpu.memory_space<vmem>>, vector<16x32xf32>
    tpu.vector_store %arg6[%c0_14, %c0_15], %29 {strides = array<i32>} : memref<16x32xf32, #tpu.memory_space<vmem>>, vector<16x32xf32>,
    return
  }
  func.func @transform_0(%arg0: i32) -> (i32, i32) {
    %c0_i32 = arith.constant 0 : i32
    %c0_i32_0 = arith.constant 0 : i32
    return %arg0, %c0_i32 : i32, i32
  }
  func.func @transform_1(%arg0: i32) -> (i32, i32) {
    %c0_i32 = arith.constant 0 : i32
    %c0_i32_0 = arith.constant 0 : i32
    %c0_i32_1 = arith.constant 0 : i32
    return %c0_i32, %c0_i32_0 : i32, i32
  }
  func.func @transform_2(%arg0: i32) -> (i32, i32) {
    %c0_i32 = arith.constant 0 : i32
    %c0_i32_0 = arith.constant 0 : i32
    %c0_i32_1 = arith.constant 0 : i32
    return %c0_i32, %c0_i32_0 : i32, i32
  }
  func.func @transform_3(%arg0: i32) -> (i32, i32) {
    %c0_i32 = arith.constant 0 : i32
    %c0_i32_0 = arith.constant 0 : i32
    %c0_i32_1 = arith.constant 0 : i32
    return %c0_i32, %c0_i32_0 : i32, i32
  }
  func.func @transform_4(%arg0: i32) -> (i32, i32) {
    %c0_i32 = arith.constant 0 : i32
    %c0_i32_0 = arith.constant 0 : i32
    %c0_i32_1 = arith.constant 0 : i32
    return %c0_i32, %c0_i32_0 : i32, i32
  }
  func.func @transform_5(%arg0: i32) -> (i32, i32) {
    %c0_i32 = arith.constant 0 : i32
    %c0_i32_0 = arith.constant 0 : i32
    return %arg0, %c0_i32 : i32, i32
  }
}

module attributes {stable_mosaic.version = 11 : i64} {
  func.func @_retrieval_kernel(%arg0: memref<2x32xf32, #tpu.memory_space<vmem>>, %arg1: memref<32x32xf32, #tpu.memory_space<vmem>>, %arg2: memref<1x32xf32, #tpu.memory_space<vmem>>, %arg3: memref<32x32xf32, #tpu.memory_space<vmem>>, %arg4: memref<1x32xf32, #tpu.memory_space<vmem>>, %arg5: memref<16x32xf32, #tpu.memory_space<vmem>>, %arg6: memref<2x16xf32, #tpu.memory_space<vmem>>, %arg7: memref<2x32xf32, #tpu.memory_space<vmem>>) attributes {dimension_semantics = [], scalar_prefetch = 0 : i64, scratch_operands = 0 : i64, tpu.core_type = #tpu.core_type<tc>} {
    %c0 = arith.constant 0 : index
    %c0_0 = arith.constant 0 : index
    %0 = vector.load %arg0[%c0, %c0_0] : memref<2x32xf32, #tpu.memory_space<vmem>>, vector<2x32xf32>
    %c0_1 = arith.constant 0 : index
    %c0_2 = arith.constant 0 : index
    %1 = vector.load %arg1[%c0_1, %c0_2] : memref<32x32xf32, #tpu.memory_space<vmem>>, vector<32x32xf32>
    %cst = arith.constant dense<0.000000e+00> : vector<2x32xf32>
    %2 = tpu.matmul %0, %1, %cst {dimension_numbers = #tpu.dot_dimension_numbers<[1], [0], [0], [1], [0, 0, 1, 1], [], []>} : vector<2x32xf32>, vector<32x32xf32>, vector<2x32xf32> -> vector<2x32xf32>
    %c0_3 = arith.constant 0 : index
    %c0_4 = arith.constant 0 : index
    %3 = vector.load %arg2[%c0_3, %c0_4] : memref<1x32xf32, #tpu.memory_space<vmem>>, vector<1x32xf32>
    %4 = vector.broadcast %3 : vector<1x32xf32> to vector<2x32xf32>
    %5 = arith.addf %2, %4 : vector<2x32xf32>
    %cst_5 = arith.constant 5.000000e-01 : f32
    %6 = vector.broadcast %cst_5 : f32 to vector<2x32xf32>
    %7 = arith.mulf %6, %5 : vector<2x32xf32>
    %cst_6 = arith.constant 0.707106769 : f32
    %8 = vector.broadcast %cst_6 : f32 to vector<2x32xf32>
    %9 = arith.mulf %5, %8 : vector<2x32xf32>
    %10 = math.erf %9 : vector<2x32xf32>
    %cst_7 = arith.constant 1.000000e+00 : f32
    %11 = vector.broadcast %cst_7 : f32 to vector<2x32xf32>
    %12 = arith.addf %11, %10 : vector<2x32xf32>
    %13 = arith.mulf %7, %12 : vector<2x32xf32>
    %c0_8 = arith.constant 0 : index
    %c0_9 = arith.constant 0 : index
    %14 = vector.load %arg3[%c0_8, %c0_9] : memref<32x32xf32, #tpu.memory_space<vmem>>, vector<32x32xf32>
    %cst_10 = arith.constant dense<0.000000e+00> : vector<2x32xf32>
    %15 = tpu.matmul %13, %14, %cst_10 {dimension_numbers = #tpu.dot_dimension_numbers<[1], [0], [0], [1], [0, 0, 1, 1], [], []>} : vector<2x32xf32>, vector<32x32xf32>, vector<2x32xf32> -> vector<2x32xf32>
    %c0_11 = arith.constant 0 : index
    %c0_12 = arith.constant 0 : index
    %16 = vector.load %arg4[%c0_11, %c0_12] : memref<1x32xf32, #tpu.memory_space<vmem>>, vector<1x32xf32>
    %17 = vector.broadcast %16 : vector<1x32xf32> to vector<2x32xf32>
    %18 = arith.addf %15, %17 : vector<2x32xf32>
    %c0_13 = arith.constant 0 : index
    %c0_14 = arith.constant 0 : index
    %19 = vector.load %arg5[%c0_13, %c0_14] : memref<16x32xf32, #tpu.memory_space<vmem>>, vector<16x32xf32>
    %cst_15 = arith.constant dense<0.000000e+00> : vector<2x16xf32>
    %20 = tpu.matmul %18, %19, %cst_15 {dimension_numbers = #tpu.dot_dimension_numbers<[1], [1], [0], [0], [0, 0, 1, 0], [], []>} : vector<2x32xf32>, vector<16x32xf32>, vector<2x16xf32> -> vector<2x16xf32>
    %cst_16 = arith.constant dense<0xFF800000> : vector<2xf32>
    %21 = vector.multi_reduction <maximumf>, %20, %cst_16 [1] : vector<2x16xf32> to vector<2xf32>
    %22 = vector.shape_cast %21 : vector<2xf32> to vector<2x1xf32>
    %23 = vector.broadcast %22 : vector<2x1xf32> to vector<2x16xf32>
    %24 = arith.subf %20, %23 : vector<2x16xf32>
    %25 = math.exp %24 : vector<2x16xf32>
    %cst_17 = arith.constant dense<0.000000e+00> : vector<2xf32>
    %26 = vector.multi_reduction <add>, %25, %cst_17 [1] : vector<2x16xf32> to vector<2xf32>
    %27 = vector.shape_cast %26 : vector<2xf32> to vector<2x1xf32>
    %28 = vector.broadcast %27 : vector<2x1xf32> to vector<2x16xf32>
    %29 = arith.divf %25, %28 : vector<2x16xf32>
    %c0_18 = arith.constant 0 : index
    %c0_19 = arith.constant 0 : index
    %30 = vector.load %arg6[%c0_18, %c0_19] : memref<2x16xf32, #tpu.memory_space<vmem>>, vector<2x16xf32>
    tpu.vector_store %arg6[%c0_18, %c0_19], %29 {strides = array<i32>} : memref<2x16xf32, #tpu.memory_space<vmem>>, vector<2x16xf32>,
    %cst_20 = arith.constant dense<0.000000e+00> : vector<2x32xf32>
    %31 = tpu.matmul %29, %19, %cst_20 {dimension_numbers = #tpu.dot_dimension_numbers<[1], [0], [0], [1], [0, 0, 1, 1], [], []>} : vector<2x16xf32>, vector<16x32xf32>, vector<2x32xf32> -> vector<2x32xf32>
    %c0_21 = arith.constant 0 : index
    %c0_22 = arith.constant 0 : index
    %32 = vector.load %arg7[%c0_21, %c0_22] : memref<2x32xf32, #tpu.memory_space<vmem>>, vector<2x32xf32>
    tpu.vector_store %arg7[%c0_21, %c0_22], %31 {strides = array<i32>} : memref<2x32xf32, #tpu.memory_space<vmem>>, vector<2x32xf32>,
    return
  }
}

module attributes {stable_mosaic.version = 11 : i64} {
  func.func @_knowledge_ctx_kernel(%arg0: memref<2x32xf32, #tpu.memory_space<vmem>>, %arg1: memref<32x32xf32, #tpu.memory_space<vmem>>, %arg2: memref<1x32xf32, #tpu.memory_space<vmem>>, %arg3: memref<32x32xf32, #tpu.memory_space<vmem>>, %arg4: memref<1x32xf32, #tpu.memory_space<vmem>>, %arg5: memref<2x32xf32, #tpu.memory_space<vmem>>) attributes {dimension_semantics = [], scalar_prefetch = 0 : i64, scratch_operands = 0 : i64, tpu.core_type = #tpu.core_type<tc>} {
    %c0 = arith.constant 0 : index
    %c0_0 = arith.constant 0 : index
    %0 = vector.load %arg0[%c0, %c0_0] : memref<2x32xf32, #tpu.memory_space<vmem>>, vector<2x32xf32>
    %c0_1 = arith.constant 0 : index
    %c0_2 = arith.constant 0 : index
    %1 = vector.load %arg1[%c0_1, %c0_2] : memref<32x32xf32, #tpu.memory_space<vmem>>, vector<32x32xf32>
    %cst = arith.constant dense<0.000000e+00> : vector<2x32xf32>
    %2 = tpu.matmul %0, %1, %cst {dimension_numbers = #tpu.dot_dimension_numbers<[1], [0], [0], [1], [0, 0, 1, 1], [], []>} : vector<2x32xf32>, vector<32x32xf32>, vector<2x32xf32> -> vector<2x32xf32>
    %c0_3 = arith.constant 0 : index
    %c0_4 = arith.constant 0 : index
    %3 = vector.load %arg2[%c0_3, %c0_4] : memref<1x32xf32, #tpu.memory_space<vmem>>, vector<1x32xf32>
    %4 = vector.broadcast %3 : vector<1x32xf32> to vector<2x32xf32>
    %5 = arith.addf %2, %4 : vector<2x32xf32>
    %c0_5 = arith.constant 0 : index
    %c0_6 = arith.constant 0 : index
    %6 = vector.load %arg3[%c0_5, %c0_6] : memref<32x32xf32, #tpu.memory_space<vmem>>, vector<32x32xf32>
    %cst_7 = arith.constant dense<0.000000e+00> : vector<2x32xf32>
    %7 = tpu.matmul %5, %6, %cst_7 {dimension_numbers = #tpu.dot_dimension_numbers<[1], [0], [0], [1], [0, 0, 1, 1], [], []>} : vector<2x32xf32>, vector<32x32xf32>, vector<2x32xf32> -> vector<2x32xf32>
    %c0_8 = arith.constant 0 : index
    %c0_9 = arith.constant 0 : index
    %8 = vector.load %arg4[%c0_8, %c0_9] : memref<1x32xf32, #tpu.memory_space<vmem>>, vector<1x32xf32>
    %9 = vector.broadcast %8 : vector<1x32xf32> to vector<2x32xf32>
    %10 = arith.addf %7, %9 : vector<2x32xf32>
    %c0_10 = arith.constant 0 : index
    %c0_11 = arith.constant 0 : index
    %11 = vector.load %arg5[%c0_10, %c0_11] : memref<2x32xf32, #tpu.memory_space<vmem>>, vector<2x32xf32>
    tpu.vector_store %arg5[%c0_10, %c0_11], %10 {strides = array<i32>} : memref<2x32xf32, #tpu.memory_space<vmem>>, vector<2x32xf32>,
    return
  }
}

module attributes {stable_mosaic.version = 11 : i64} {
  func.func @_integration_kernel(%arg0: i32, %arg1: i32, %arg2: memref<1x8x32xf32, #tpu.memory_space<vmem>>, %arg3: memref<1x1x32xf32, #tpu.memory_space<vmem>>, %arg4: memref<32x32xf32, #tpu.memory_space<vmem>>, %arg5: memref<32x32xf32, #tpu.memory_space<vmem>>, %arg6: memref<1x32xf32, #tpu.memory_space<vmem>>, %arg7: memref<1x32xf32, #tpu.memory_space<vmem>>, %arg8: memref<1x32xf32, #tpu.memory_space<vmem>>, %arg9: memref<32x32xf32, #tpu.memory_space<vmem>>, %arg10: memref<1x32xf32, #tpu.memory_space<vmem>>, %arg11: memref<1x8x32xf32, #tpu.memory_space<vmem>>) attributes {dimension_semantics = [#tpu.dimension_semantics<parallel>, #tpu.dimension_semantics<parallel>], iteration_bounds = array<i64: 2, 1>, scalar_prefetch = 0 : i64, scratch_operands = 0 : i64, tpu.core_type = #tpu.core_type<tc>, window_params = [{transform_indices = @transform_0, window_bounds = array<i64: 1, 8, 32>}, {transform_indices = @transform_1, window_bounds = array<i64: 1, 1, 32>}, {pipeline_mode = #tpu.pipeline_mode<synchronous>, transform_indices = @transform_2, window_bounds = array<i64: 32, 32>}, {pipeline_mode = #tpu.pipeline_mode<synchronous>, transform_indices = @transform_3, window_bounds = array<i64: 32, 32>}, {pipeline_mode = #tpu.pipeline_mode<synchronous>, transform_indices = @transform_4, window_bounds = array<i64: 1, 32>}, {pipeline_mode = #tpu.pipeline_mode<synchronous>, transform_indices = @transform_5, window_bounds = array<i64: 1, 32>}, {pipeline_mode = #tpu.pipeline_mode<synchronous>, transform_indices = @transform_6, window_bounds = array<i64: 1, 32>}, {pipeline_mode = #tpu.pipeline_mode<synchronous>, transform_indices = @transform_7, window_bounds = array<i64: 32, 32>}, {pipeline_mode = #tpu.pipeline_mode<synchronous>, transform_indices = @transform_8, window_bounds = array<i64: 1, 32>}, {transform_indices = @transform_9, window_bounds = array<i64: 1, 8, 32>}]} {
    %c0 = arith.constant 0 : index
    %c0_0 = arith.constant 0 : index
    %c0_1 = arith.constant 0 : index
    %0 = vector.load %arg2[%c0, %c0_0, %c0_1] : memref<1x8x32xf32, #tpu.memory_space<vmem>>, vector<1x8x32xf32>
    %1 = vector.shape_cast %0 : vector<1x8x32xf32> to vector<8x32xf32>
    %c0_2 = arith.constant 0 : index
    %c0_3 = arith.constant 0 : index
    %c0_4 = arith.constant 0 : index
    %2 = vector.load %arg3[%c0_2, %c0_3, %c0_4] : memref<1x1x32xf32, #tpu.memory_space<vmem>>, vector<1x1x32xf32>
    %3 = vector.shape_cast %2 : vector<1x1x32xf32> to vector<1x32xf32>
    %c0_5 = arith.constant 0 : index
    %c0_6 = arith.constant 0 : index
    %4 = vector.load %arg4[%c0_5, %c0_6] : memref<32x32xf32, #tpu.memory_space<vmem>>, vector<32x32xf32>
    %cst = arith.constant dense<0.000000e+00> : vector<8x32xf32>
    %5 = tpu.matmul %1, %4, %cst {dimension_numbers = #tpu.dot_dimension_numbers<[1], [0], [0], [1], [0, 0, 1, 1], [], []>} : vector<8x32xf32>, vector<32x32xf32>, vector<8x32xf32> -> vector<8x32xf32>
    %c0_7 = arith.constant 0 : index
    %c0_8 = arith.constant 0 : index
    %6 = vector.load %arg5[%c0_7, %c0_8] : memref<32x32xf32, #tpu.memory_space<vmem>>, vector<32x32xf32>
    %cst_9 = arith.constant dense<0.000000e+00> : vector<1x32xf32>
    %7 = tpu.matmul %3, %6, %cst_9 {dimension_numbers = #tpu.dot_dimension_numbers<[1], [0], [0], [1], [0, 0, 1, 1], [], []>} : vector<1x32xf32>, vector<32x32xf32>, vector<1x32xf32> -> vector<1x32xf32>
    %8 = vector.broadcast %7 : vector<1x32xf32> to vector<8x32xf32>
    %9 = arith.addf %5, %8 : vector<8x32xf32>
    %c0_10 = arith.constant 0 : index
    %c0_11 = arith.constant 0 : index
    %10 = vector.load %arg6[%c0_10, %c0_11] : memref<1x32xf32, #tpu.memory_space<vmem>>, vector<1x32xf32>
    %11 = vector.broadcast %10 : vector<1x32xf32> to vector<8x32xf32>
    %12 = arith.addf %9, %11 : vector<8x32xf32>
    %c0_12 = arith.constant 0 : index
    %c0_13 = arith.constant 0 : index
    %13 = vector.load %arg7[%c0_12, %c0_13] : memref<1x32xf32, #tpu.memory_space<vmem>>, vector<1x32xf32>
    %c0_14 = arith.constant 0 : index
    %c0_15 = arith.constant 0 : index
    %14 = vector.load %arg8[%c0_14, %c0_15] : memref<1x32xf32, #tpu.memory_space<vmem>>, vector<1x32xf32>
    %cst_16 = arith.constant dense<0.000000e+00> : vector<8xf32>
    %15 = vector.multi_reduction <add>, %12, %cst_16 [1] : vector<8x32xf32> to vector<8xf32>
    %16 = vector.shape_cast %15 : vector<8xf32> to vector<8x1xf32>
    %cst_17 = arith.constant 3.200000e+01 : f32
    %17 = vector.broadcast %cst_17 : f32 to vector<8x1xf32>
    %18 = arith.divf %16, %17 : vector<8x1xf32>
    %19 = vector.broadcast %18 : vector<8x1xf32> to vector<8x32xf32>
    %20 = arith.subf %12, %19 : vector<8x32xf32>
    %21 = arith.mulf %20, %20 : vector<8x32xf32>
    %cst_18 = arith.constant dense<0.000000e+00> : vector<8xf32>
    %22 = vector.multi_reduction <add>, %21, %cst_18 [1] : vector<8x32xf32> to vector<8xf32>
    %23 = vector.shape_cast %22 : vector<8xf32> to vector<8x1xf32>
    %cst_19 = arith.constant 3.200000e+01 : f32
    %24 = vector.broadcast %cst_19 : f32 to vector<8x1xf32>
    %25 = arith.divf %23, %24 : vector<8x1xf32>
    %26 = vector.broadcast %18 : vector<8x1xf32> to vector<8x32xf32>
    %27 = arith.subf %12, %26 : vector<8x32xf32>
    %cst_20 = arith.constant 9.99999974E-6 : f32
    %28 = vector.broadcast %cst_20 : f32 to vector<8x1xf32>
    %29 = arith.addf %25, %28 : vector<8x1xf32>
    %30 = math.rsqrt %29 : vector<8x1xf32>
    %31 = vector.broadcast %30 : vector<8x1xf32> to vector<8x32xf32>
    %32 = arith.mulf %27, %31 : vector<8x32xf32>
    %33 = vector.broadcast %13 : vector<1x32xf32> to vector<8x32xf32>
    %34 = arith.mulf %32, %33 : vector<8x32xf32>
    %35 = vector.broadcast %14 : vector<1x32xf32> to vector<8x32xf32>
    %36 = arith.addf %34, %35 : vector<8x32xf32>
    %cst_21 = arith.constant 5.000000e-01 : f32
    %37 = vector.broadcast %cst_21 : f32 to vector<8x32xf32>
    %38 = arith.mulf %37, %36 : vector<8x32xf32>
    %cst_22 = arith.constant 0.707106769 : f32
    %39 = vector.broadcast %cst_22 : f32 to vector<8x32xf32>
    %40 = arith.mulf %36, %39 : vector<8x32xf32>
    %41 = math.erf %40 : vector<8x32xf32>
    %cst_23 = arith.constant 1.000000e+00 : f32
    %42 = vector.broadcast %cst_23 : f32 to vector<8x32xf32>
    %43 = arith.addf %42, %41 : vector<8x32xf32>
    %44 = arith.mulf %38, %43 : vector<8x32xf32>
    %c0_24 = arith.constant 0 : index
    %c0_25 = arith.constant 0 : index
    %45 = vector.load %arg9[%c0_24, %c0_25] : memref<32x32xf32, #tpu.memory_space<vmem>>, vector<32x32xf32>
    %cst_26 = arith.constant dense<0.000000e+00> : vector<8x32xf32>
    %46 = tpu.matmul %44, %45, %cst_26 {dimension_numbers = #tpu.dot_dimension_numbers<[1], [0], [0], [1], [0, 0, 1, 1], [], []>} : vector<8x32xf32>, vector<32x32xf32>, vector<8x32xf32> -> vector<8x32xf32>
    %c0_27 = arith.constant 0 : index
    %c0_28 = arith.constant 0 : index
    %47 = vector.load %arg10[%c0_27, %c0_28] : memref<1x32xf32, #tpu.memory_space<vmem>>, vector<1x32xf32>
    %48 = vector.broadcast %47 : vector<1x32xf32> to vector<8x32xf32>
    %49 = arith.addf %46, %48 : vector<8x32xf32>
    %c0_29 = arith.constant 0 : index
    %c0_30 = arith.constant 0 : index
    %c0_31 = arith.constant 0 : index
    %50 = vector.load %arg11[%c0_29, %c0_30, %c0_31] : memref<1x8x32xf32, #tpu.memory_space<vmem>>, vector<1x8x32xf32>
    %51 = vector.shape_cast %50 : vector<1x8x32xf32> to vector<8x32xf32>
    %52 = vector.shape_cast %49 : vector<8x32xf32> to vector<1x8x32xf32>
    tpu.vector_store %arg11[%c0_29, %c0_30, %c0_31], %52 {strides = array<i32>} : memref<1x8x32xf32, #tpu.memory_space<vmem>>, vector<1x8x32xf32>,
    return
  }
  func.func @transform_0(%arg0: i32, %arg1: i32) -> (i32, i32, i32) {
    %c0_i32 = arith.constant 0 : i32
    %c0_i32_0 = arith.constant 0 : i32
    return %arg0, %arg1, %c0_i32 : i32, i32, i32
  }
  func.func @transform_1(%arg0: i32, %arg1: i32) -> (i32, i32, i32) {
    %c0_i32 = arith.constant 0 : i32
    %c0_i32_0 = arith.constant 0 : i32
    %c0_i32_1 = arith.constant 0 : i32
    return %arg0, %c0_i32, %c0_i32_0 : i32, i32, i32
  }
  func.func @transform_2(%arg0: i32, %arg1: i32) -> (i32, i32) {
    %c0_i32 = arith.constant 0 : i32
    %c0_i32_0 = arith.constant 0 : i32
    %c0_i32_1 = arith.constant 0 : i32
    return %c0_i32, %c0_i32_0 : i32, i32
  }
  func.func @transform_3(%arg0: i32, %arg1: i32) -> (i32, i32) {
    %c0_i32 = arith.constant 0 : i32
    %c0_i32_0 = arith.constant 0 : i32
    %c0_i32_1 = arith.constant 0 : i32
    return %c0_i32, %c0_i32_0 : i32, i32
  }
  func.func @transform_4(%arg0: i32, %arg1: i32) -> (i32, i32) {
    %c0_i32 = arith.constant 0 : i32
    %c0_i32_0 = arith.constant 0 : i32
    %c0_i32_1 = arith.constant 0 : i32
    return %c0_i32, %c0_i32_0 : i32, i32
  }
  func.func @transform_5(%arg0: i32, %arg1: i32) -> (i32, i32) {
    %c0_i32 = arith.constant 0 : i32
    %c0_i32_0 = arith.constant 0 : i32
    %c0_i32_1 = arith.constant 0 : i32
    return %c0_i32, %c0_i32_0 : i32, i32
  }
  func.func @transform_6(%arg0: i32, %arg1: i32) -> (i32, i32) {
    %c0_i32 = arith.constant 0 : i32
    %c0_i32_0 = arith.constant 0 : i32
    %c0_i32_1 = arith.constant 0 : i32
    return %c0_i32, %c0_i32_0 : i32, i32
  }
  func.func @transform_7(%arg0: i32, %arg1: i32) -> (i32, i32) {
    %c0_i32 = arith.constant 0 : i32
    %c0_i32_0 = arith.constant 0 : i32
    %c0_i32_1 = arith.constant 0 : i32
    return %c0_i32, %c0_i32_0 : i32, i32
  }
  func.func @transform_8(%arg0: i32, %arg1: i32) -> (i32, i32) {
    %c0_i32 = arith.constant 0 : i32
    %c0_i32_0 = arith.constant 0 : i32
    %c0_i32_1 = arith.constant 0 : i32
    return %c0_i32, %c0_i32_0 : i32, i32
  }
  func.func @transform_9(%arg0: i32, %arg1: i32) -> (i32, i32, i32) {
    %c0_i32 = arith.constant 0 : i32
    %c0_i32_0 = arith.constant 0 : i32
    return %arg0, %arg1, %c0_i32 : i32, i32, i32
  }
}

module attributes {stable_mosaic.version = 11 : i64} {
  func.func @_attention_kernel(%arg0: i32, %arg1: memref<1x8x32xf32, #tpu.memory_space<vmem>>, %arg2: memref<32x96xf32, #tpu.memory_space<vmem>>, %arg3: memref<1x96xf32, #tpu.memory_space<vmem>>, %arg4: memref<32x32xf32, #tpu.memory_space<vmem>>, %arg5: memref<1x32xf32, #tpu.memory_space<vmem>>, %arg6: memref<1x32xf32, #tpu.memory_space<vmem>>, %arg7: memref<1x32xf32, #tpu.memory_space<vmem>>, %arg8: memref<1x8x32xf32, #tpu.memory_space<vmem>>) attributes {dimension_semantics = [#tpu.dimension_semantics<parallel>], iteration_bounds = array<i64: 2>, scalar_prefetch = 0 : i64, scratch_operands = 0 : i64, tpu.core_type = #tpu.core_type<tc>, window_params = [{transform_indices = @transform_0, window_bounds = array<i64: 1, 8, 32>}, {pipeline_mode = #tpu.pipeline_mode<synchronous>, transform_indices = @transform_1, window_bounds = array<i64: 32, 96>}, {pipeline_mode = #tpu.pipeline_mode<synchronous>, transform_indices = @transform_2, window_bounds = array<i64: 1, 96>}, {pipeline_mode = #tpu.pipeline_mode<synchronous>, transform_indices = @transform_3, window_bounds = array<i64: 32, 32>}, {pipeline_mode = #tpu.pipeline_mode<synchronous>, transform_indices = @transform_4, window_bounds = array<i64: 1, 32>}, {pipeline_mode = #tpu.pipeline_mode<synchronous>, transform_indices = @transform_5, window_bounds = array<i64: 1, 32>}, {pipeline_mode = #tpu.pipeline_mode<synchronous>, transform_indices = @transform_6, window_bounds = array<i64: 1, 32>}, {transform_indices = @transform_7, window_bounds = array<i64: 1, 8, 32>}]} {
    %c0 = arith.constant 0 : index
    %c0_0 = arith.constant 0 : index
    %c0_1 = arith.constant 0 : index
    %0 = vector.load %arg1[%c0, %c0_0, %c0_1] : memref<1x8x32xf32, #tpu.memory_space<vmem>>, vector<1x8x32xf32>
    %1 = vector.shape_cast %0 : vector<1x8x32xf32> to vector<8x32xf32>
    %c0_2 = arith.constant 0 : index
    %c0_3 = arith.constant 0 : index
    %2 = vector.load %arg2[%c0_2, %c0_3] : memref<32x96xf32, #tpu.memory_space<vmem>>, vector<32x96xf32>
    %cst = arith.constant dense<0.000000e+00> : vector<8x96xf32>
    %3 = tpu.matmul %1, %2, %cst {dimension_numbers = #tpu.dot_dimension_numbers<[1], [0], [0], [1], [0, 0, 1, 1], [], []>} : vector<8x32xf32>, vector<32x96xf32>, vector<8x96xf32> -> vector<8x96xf32>
    %c0_4 = arith.constant 0 : index
    %c0_5 = arith.constant 0 : index
    %4 = vector.load %arg3[%c0_4, %c0_5] : memref<1x96xf32, #tpu.memory_space<vmem>>, vector<1x96xf32>
    %5 = vector.broadcast %4 : vector<1x96xf32> to vector<8x96xf32>
    %6 = arith.addf %3, %5 : vector<8x96xf32>
    %c0_6 = arith.constant 0 : index
    %c0_7 = arith.constant 0 : index
    %7 = vector.load %arg4[%c0_6, %c0_7] : memref<32x32xf32, #tpu.memory_space<vmem>>, vector<32x32xf32>
    %8 = vector.extract_strided_slice %6 {offsets = [0, 0], sizes = [8, 8], strides = [1, 1]} : vector<8x96xf32> to vector<8x8xf32>
    %9 = vector.extract_strided_slice %6 {offsets = [0, 32], sizes = [8, 8], strides = [1, 1]} : vector<8x96xf32> to vector<8x8xf32>
    %10 = vector.extract_strided_slice %6 {offsets = [0, 64], sizes = [8, 8], strides = [1, 1]} : vector<8x96xf32> to vector<8x8xf32>
    %cst_8 = arith.constant dense<0.000000e+00> : vector<8x8xf32>
    %11 = tpu.matmul %8, %9, %cst_8 {dimension_numbers = #tpu.dot_dimension_numbers<[1], [1], [0], [0], [0, 0, 1, 0], [], []>} : vector<8x8xf32>, vector<8x8xf32>, vector<8x8xf32> -> vector<8x8xf32>
    %cst_9 = arith.constant 0.353553385 : f32
    %12 = vector.broadcast %cst_9 : f32 to vector<8x8xf32>
    %13 = arith.mulf %11, %12 : vector<8x8xf32>
    %cst_10 = arith.constant dense<0xFF800000> : vector<8xf32>
    %14 = vector.multi_reduction <maximumf>, %13, %cst_10 [1] : vector<8x8xf32> to vector<8xf32>
    %15 = vector.shape_cast %14 : vector<8xf32> to vector<8x1xf32>
    %16 = vector.broadcast %15 : vector<8x1xf32> to vector<8x8xf32>
    %17 = arith.subf %13, %16 : vector<8x8xf32>
    %18 = math.exp %17 : vector<8x8xf32>
    %cst_11 = arith.constant dense<0.000000e+00> : vector<8xf32>
    %19 = vector.multi_reduction <add>, %18, %cst_11 [1] : vector<8x8xf32> to vector<8xf32>
    %20 = vector.shape_cast %19 : vector<8xf32> to vector<8x1xf32>
    %21 = vector.broadcast %20 : vector<8x1xf32> to vector<8x8xf32>
    %22 = arith.divf %18, %21 : vector<8x8xf32>
    %cst_12 = arith.constant dense<0.000000e+00> : vector<8x8xf32>
    %23 = tpu.matmul %22, %10, %cst_12 {dimension_numbers = #tpu.dot_dimension_numbers<[1], [0], [0], [1], [0, 0, 1, 1], [], []>} : vector<8x8xf32>, vector<8x8xf32>, vector<8x8xf32> -> vector<8x8xf32>
    %24 = vector.extract_strided_slice %7 {offsets = [0, 0], sizes = [8, 32], strides = [1, 1]} : vector<32x32xf32> to vector<8x32xf32>
    %cst_13 = arith.constant dense<0.000000e+00> : vector<8x32xf32>
    %25 = tpu.matmul %23, %24, %cst_13 {dimension_numbers = #tpu.dot_dimension_numbers<[1], [0], [0], [1], [0, 0, 1, 1], [], []>} : vector<8x8xf32>, vector<8x32xf32>, vector<8x32xf32> -> vector<8x32xf32>
    %26 = vector.extract_strided_slice %6 {offsets = [0, 8], sizes = [8, 8], strides = [1, 1]} : vector<8x96xf32> to vector<8x8xf32>
    %27 = vector.extract_strided_slice %6 {offsets = [0, 40], sizes = [8, 8], strides = [1, 1]} : vector<8x96xf32> to vector<8x8xf32>
    %28 = vector.extract_strided_slice %6 {offsets = [0, 72], sizes = [8, 8], strides = [1, 1]} : vector<8x96xf32> to vector<8x8xf32>
    %cst_14 = arith.constant dense<0.000000e+00> : vector<8x8xf32>
    %29 = tpu.matmul %26, %27, %cst_14 {dimension_numbers = #tpu.dot_dimension_numbers<[1], [1], [0], [0], [0, 0, 1, 0], [], []>} : vector<8x8xf32>, vector<8x8xf32>, vector<8x8xf32> -> vector<8x8xf32>
    %cst_15 = arith.constant 0.353553385 : f32
    %30 = vector.broadcast %cst_15 : f32 to vector<8x8xf32>
    %31 = arith.mulf %29, %30 : vector<8x8xf32>
    %cst_16 = arith.constant dense<0xFF800000> : vector<8xf32>
    %32 = vector.multi_reduction <maximumf>, %31, %cst_16 [1] : vector<8x8xf32> to vector<8xf32>
    %33 = vector.shape_cast %32 : vector<8xf32> to vector<8x1xf32>
    %34 = vector.broadcast %33 : vector<8x1xf32> to vector<8x8xf32>
    %35 = arith.subf %31, %34 : vector<8x8xf32>
    %36 = math.exp %35 : vector<8x8xf32>
    %cst_17 = arith.constant dense<0.000000e+00> : vector<8xf32>
    %37 = vector.multi_reduction <add>, %36, %cst_17 [1] : vector<8x8xf32> to vector<8xf32>
    %38 = vector.shape_cast %37 : vector<8xf32> to vector<8x1xf32>
    %39 = vector.broadcast %38 : vector<8x1xf32> to vector<8x8xf32>
    %40 = arith.divf %36, %39 : vector<8x8xf32>
    %cst_18 = arith.constant dense<0.000000e+00> : vector<8x8xf32>
    %41 = tpu.matmul %40, %28, %cst_18 {dimension_numbers = #tpu.dot_dimension_numbers<[1], [0], [0], [1], [0, 0, 1, 1], [], []>} : vector<8x8xf32>, vector<8x8xf32>, vector<8x8xf32> -> vector<8x8xf32>
    %42 = vector.extract_strided_slice %7 {offsets = [8, 0], sizes = [8, 32], strides = [1, 1]} : vector<32x32xf32> to vector<8x32xf32>
    %cst_19 = arith.constant dense<0.000000e+00> : vector<8x32xf32>
    %43 = tpu.matmul %41, %42, %cst_19 {dimension_numbers = #tpu.dot_dimension_numbers<[1], [0], [0], [1], [0, 0, 1, 1], [], []>} : vector<8x8xf32>, vector<8x32xf32>, vector<8x32xf32> -> vector<8x32xf32>
    %44 = arith.addf %25, %43 : vector<8x32xf32>
    %45 = vector.extract_strided_slice %6 {offsets = [0, 16], sizes = [8, 8], strides = [1, 1]} : vector<8x96xf32> to vector<8x8xf32>
    %46 = vector.extract_strided_slice %6 {offsets = [0, 48], sizes = [8, 8], strides = [1, 1]} : vector<8x96xf32> to vector<8x8xf32>
    %47 = vector.extract_strided_slice %6 {offsets = [0, 80], sizes = [8, 8], strides = [1, 1]} : vector<8x96xf32> to vector<8x8xf32>
    %cst_20 = arith.constant dense<0.000000e+00> : vector<8x8xf32>
    %48 = tpu.matmul %45, %46, %cst_20 {dimension_numbers = #tpu.dot_dimension_numbers<[1], [1], [0], [0], [0, 0, 1, 0], [], []>} : vector<8x8xf32>, vector<8x8xf32>, vector<8x8xf32> -> vector<8x8xf32>
    %cst_21 = arith.constant 0.353553385 : f32
    %49 = vector.broadcast %cst_21 : f32 to vector<8x8xf32>
    %50 = arith.mulf %48, %49 : vector<8x8xf32>
    %cst_22 = arith.constant dense<0xFF800000> : vector<8xf32>
    %51 = vector.multi_reduction <maximumf>, %50, %cst_22 [1] : vector<8x8xf32> to vector<8xf32>
    %52 = vector.shape_cast %51 : vector<8xf32> to vector<8x1xf32>
    %53 = vector.broadcast %52 : vector<8x1xf32> to vector<8x8xf32>
    %54 = arith.subf %50, %53 : vector<8x8xf32>
    %55 = math.exp %54 : vector<8x8xf32>
    %cst_23 = arith.constant dense<0.000000e+00> : vector<8xf32>
    %56 = vector.multi_reduction <add>, %55, %cst_23 [1] : vector<8x8xf32> to vector<8xf32>
    %57 = vector.shape_cast %56 : vector<8xf32> to vector<8x1xf32>
    %58 = vector.broadcast %57 : vector<8x1xf32> to vector<8x8xf32>
    %59 = arith.divf %55, %58 : vector<8x8xf32>
    %cst_24 = arith.constant dense<0.000000e+00> : vector<8x8xf32>
    %60 = tpu.matmul %59, %47, %cst_24 {dimension_numbers = #tpu.dot_dimension_numbers<[1], [0], [0], [1], [0, 0, 1, 1], [], []>} : vector<8x8xf32>, vector<8x8xf32>, vector<8x8xf32> -> vector<8x8xf32>
    %61 = vector.extract_strided_slice %7 {offsets = [16, 0], sizes = [8, 32], strides = [1, 1]} : vector<32x32xf32> to vector<8x32xf32>
    %cst_25 = arith.constant dense<0.000000e+00> : vector<8x32xf32>
    %62 = tpu.matmul %60, %61, %cst_25 {dimension_numbers = #tpu.dot_dimension_numbers<[1], [0], [0], [1], [0, 0, 1, 1], [], []>} : vector<8x8xf32>, vector<8x32xf32>, vector<8x32xf32> -> vector<8x32xf32>
    %63 = arith.addf %44, %62 : vector<8x32xf32>
    %64 = vector.extract_strided_slice %6 {offsets = [0, 24], sizes = [8, 8], strides = [1, 1]} : vector<8x96xf32> to vector<8x8xf32>
    %65 = vector.extract_strided_slice %6 {offsets = [0, 56], sizes = [8, 8], strides = [1, 1]} : vector<8x96xf32> to vector<8x8xf32>
    %66 = vector.extract_strided_slice %6 {offsets = [0, 88], sizes = [8, 8], strides = [1, 1]} : vector<8x96xf32> to vector<8x8xf32>
    %cst_26 = arith.constant dense<0.000000e+00> : vector<8x8xf32>
    %67 = tpu.matmul %64, %65, %cst_26 {dimension_numbers = #tpu.dot_dimension_numbers<[1], [1], [0], [0], [0, 0, 1, 0], [], []>} : vector<8x8xf32>, vector<8x8xf32>, vector<8x8xf32> -> vector<8x8xf32>
    %cst_27 = arith.constant 0.353553385 : f32
    %68 = vector.broadcast %cst_27 : f32 to vector<8x8xf32>
    %69 = arith.mulf %67, %68 : vector<8x8xf32>
    %cst_28 = arith.constant dense<0xFF800000> : vector<8xf32>
    %70 = vector.multi_reduction <maximumf>, %69, %cst_28 [1] : vector<8x8xf32> to vector<8xf32>
    %71 = vector.shape_cast %70 : vector<8xf32> to vector<8x1xf32>
    %72 = vector.broadcast %71 : vector<8x1xf32> to vector<8x8xf32>
    %73 = arith.subf %69, %72 : vector<8x8xf32>
    %74 = math.exp %73 : vector<8x8xf32>
    %cst_29 = arith.constant dense<0.000000e+00> : vector<8xf32>
    %75 = vector.multi_reduction <add>, %74, %cst_29 [1] : vector<8x8xf32> to vector<8xf32>
    %76 = vector.shape_cast %75 : vector<8xf32> to vector<8x1xf32>
    %77 = vector.broadcast %76 : vector<8x1xf32> to vector<8x8xf32>
    %78 = arith.divf %74, %77 : vector<8x8xf32>
    %cst_30 = arith.constant dense<0.000000e+00> : vector<8x8xf32>
    %79 = tpu.matmul %78, %66, %cst_30 {dimension_numbers = #tpu.dot_dimension_numbers<[1], [0], [0], [1], [0, 0, 1, 1], [], []>} : vector<8x8xf32>, vector<8x8xf32>, vector<8x8xf32> -> vector<8x8xf32>
    %80 = vector.extract_strided_slice %7 {offsets = [24, 0], sizes = [8, 32], strides = [1, 1]} : vector<32x32xf32> to vector<8x32xf32>
    %cst_31 = arith.constant dense<0.000000e+00> : vector<8x32xf32>
    %81 = tpu.matmul %79, %80, %cst_31 {dimension_numbers = #tpu.dot_dimension_numbers<[1], [0], [0], [1], [0, 0, 1, 1], [], []>} : vector<8x8xf32>, vector<8x32xf32>, vector<8x32xf32> -> vector<8x32xf32>
    %82 = arith.addf %63, %81 : vector<8x32xf32>
    %c0_32 = arith.constant 0 : index
    %c0_33 = arith.constant 0 : index
    %83 = vector.load %arg5[%c0_32, %c0_33] : memref<1x32xf32, #tpu.memory_space<vmem>>, vector<1x32xf32>
    %84 = vector.broadcast %83 : vector<1x32xf32> to vector<8x32xf32>
    %85 = arith.addf %82, %84 : vector<8x32xf32>
    %86 = arith.addf %1, %85 : vector<8x32xf32>
    %c0_34 = arith.constant 0 : index
    %c0_35 = arith.constant 0 : index
    %87 = vector.load %arg6[%c0_34, %c0_35] : memref<1x32xf32, #tpu.memory_space<vmem>>, vector<1x32xf32>
    %c0_36 = arith.constant 0 : index
    %c0_37 = arith.constant 0 : index
    %88 = vector.load %arg7[%c0_36, %c0_37] : memref<1x32xf32, #tpu.memory_space<vmem>>, vector<1x32xf32>
    %cst_38 = arith.constant dense<0.000000e+00> : vector<8xf32>
    %89 = vector.multi_reduction <add>, %86, %cst_38 [1] : vector<8x32xf32> to vector<8xf32>
    %90 = vector.shape_cast %89 : vector<8xf32> to vector<8x1xf32>
    %cst_39 = arith.constant 3.200000e+01 : f32
    %91 = vector.broadcast %cst_39 : f32 to vector<8x1xf32>
    %92 = arith.divf %90, %91 : vector<8x1xf32>
    %93 = vector.broadcast %92 : vector<8x1xf32> to vector<8x32xf32>
    %94 = arith.subf %86, %93 : vector<8x32xf32>
    %95 = arith.mulf %94, %94 : vector<8x32xf32>
    %cst_40 = arith.constant dense<0.000000e+00> : vector<8xf32>
    %96 = vector.multi_reduction <add>, %95, %cst_40 [1] : vector<8x32xf32> to vector<8xf32>
    %97 = vector.shape_cast %96 : vector<8xf32> to vector<8x1xf32>
    %cst_41 = arith.constant 3.200000e+01 : f32
    %98 = vector.broadcast %cst_41 : f32 to vector<8x1xf32>
    %99 = arith.divf %97, %98 : vector<8x1xf32>
    %100 = vector.broadcast %92 : vector<8x1xf32> to vector<8x32xf32>
    %101 = arith.subf %86, %100 : vector<8x32xf32>
    %cst_42 = arith.constant 9.99999974E-6 : f32
    %102 = vector.broadcast %cst_42 : f32 to vector<8x1xf32>
    %103 = arith.addf %99, %102 : vector<8x1xf32>
    %104 = math.rsqrt %103 : vector<8x1xf32>
    %105 = vector.broadcast %104 : vector<8x1xf32> to vector<8x32xf32>
    %106 = arith.mulf %101, %105 : vector<8x32xf32>
    %107 = vector.broadcast %87 : vector<1x32xf32> to vector<8x32xf32>
    %108 = arith.mulf %106, %107 : vector<8x32xf32>
    %109 = vector.broadcast %88 : vector<1x32xf32> to vector<8x32xf32>
    %110 = arith.addf %108, %109 : vector<8x32xf32>
    %c0_43 = arith.constant 0 : index
    %c0_44 = arith.constant 0 : index
    %c0_45 = arith.constant 0 : index
    %111 = vector.load %arg8[%c0_43, %c0_44, %c0_45] : memref<1x8x32xf32, #tpu.memory_space<vmem>>, vector<1x8x32xf32>
    %112 = vector.shape_cast %111 : vector<1x8x32xf32> to vector<8x32xf32>
    %113 = vector.shape_cast %110 : vector<8x32xf32> to vector<1x8x32xf32>
    tpu.vector_store %arg8[%c0_43, %c0_44, %c0_45], %113 {strides = array<i32>} : memref<1x8x32xf32, #tpu.memory_space<vmem>>, vector<1x8x32xf32>,
    return
  }
  func.func @transform_0(%arg0: i32) -> (i32, i32, i32) {
    %c0_i32 = arith.constant 0 : i32
    %c0_i32_0 = arith.constant 0 : i32
    %c0_i32_1 = arith.constant 0 : i32
    return %arg0, %c0_i32, %c0_i32_0 : i32, i32, i32
  }
  func.func @transform_1(%arg0: i32) -> (i32, i32) {
    %c0_i32 = arith.constant 0 : i32
    %c0_i32_0 = arith.constant 0 : i32
    %c0_i32_1 = arith.constant 0 : i32
    return %c0_i32, %c0_i32_0 : i32, i32
  }
  func.func @transform_2(%arg0: i32) -> (i32, i32) {
    %c0_i32 = arith.constant 0 : i32
    %c0_i32_0 = arith.constant 0 : i32
    %c0_i32_1 = arith.constant 0 : i32
    return %c0_i32, %c0_i32_0 : i32, i32
  }
  func.func @transform_3(%arg0: i32) -> (i32, i32) {
    %c0_i32 = arith.constant 0 : i32
    %c0_i32_0 = arith.constant 0 : i32
    %c0_i32_1 = arith.constant 0 : i32
    return %c0_i32, %c0_i32_0 : i32, i32
  }
  func.func @transform_4(%arg0: i32) -> (i32, i32) {
    %c0_i32 = arith.constant 0 : i32
    %c0_i32_0 = arith.constant 0 : i32
    %c0_i32_1 = arith.constant 0 : i32
    return %c0_i32, %c0_i32_0 : i32, i32
  }
  func.func @transform_5(%arg0: i32) -> (i32, i32) {
    %c0_i32 = arith.constant 0 : i32
    %c0_i32_0 = arith.constant 0 : i32
    %c0_i32_1 = arith.constant 0 : i32
    return %c0_i32, %c0_i32_0 : i32, i32
  }
  func.func @transform_6(%arg0: i32) -> (i32, i32) {
    %c0_i32 = arith.constant 0 : i32
    %c0_i32_0 = arith.constant 0 : i32
    %c0_i32_1 = arith.constant 0 : i32
    return %c0_i32, %c0_i32_0 : i32, i32
  }
  func.func @transform_7(%arg0: i32) -> (i32, i32, i32) {
    %c0_i32 = arith.constant 0 : i32
    %c0_i32_0 = arith.constant 0 : i32
    %c0_i32_1 = arith.constant 0 : i32
    return %arg0, %c0_i32, %c0_i32_0 : i32, i32, i32
  }
}

module attributes {stable_mosaic.version = 11 : i64} {
  func.func @_out_proj_kernel(%arg0: i32, %arg1: memref<16x32xf32, #tpu.memory_space<vmem>>, %arg2: memref<32x32xf32, #tpu.memory_space<vmem>>, %arg3: memref<1x32xf32, #tpu.memory_space<vmem>>, %arg4: memref<1x32xf32, #tpu.memory_space<vmem>>, %arg5: memref<1x32xf32, #tpu.memory_space<vmem>>, %arg6: memref<16x32xf32, #tpu.memory_space<vmem>>) attributes {dimension_semantics = [#tpu.dimension_semantics<parallel>], iteration_bounds = array<i64: 1>, scalar_prefetch = 0 : i64, scratch_operands = 0 : i64, tpu.core_type = #tpu.core_type<tc>, window_params = [{transform_indices = @transform_0, window_bounds = array<i64: 16, 32>}, {pipeline_mode = #tpu.pipeline_mode<synchronous>, transform_indices = @transform_1, window_bounds = array<i64: 32, 32>}, {pipeline_mode = #tpu.pipeline_mode<synchronous>, transform_indices = @transform_2, window_bounds = array<i64: 1, 32>}, {pipeline_mode = #tpu.pipeline_mode<synchronous>, transform_indices = @transform_3, window_bounds = array<i64: 1, 32>}, {pipeline_mode = #tpu.pipeline_mode<synchronous>, transform_indices = @transform_4, window_bounds = array<i64: 1, 32>}, {transform_indices = @transform_5, window_bounds = array<i64: 16, 32>}]} {
    %c0 = arith.constant 0 : index
    %c0_0 = arith.constant 0 : index
    %0 = vector.load %arg1[%c0, %c0_0] : memref<16x32xf32, #tpu.memory_space<vmem>>, vector<16x32xf32>
    %c0_1 = arith.constant 0 : index
    %c0_2 = arith.constant 0 : index
    %1 = vector.load %arg2[%c0_1, %c0_2] : memref<32x32xf32, #tpu.memory_space<vmem>>, vector<32x32xf32>
    %cst = arith.constant dense<0.000000e+00> : vector<16x32xf32>
    %2 = tpu.matmul %0, %1, %cst {dimension_numbers = #tpu.dot_dimension_numbers<[1], [0], [0], [1], [0, 0, 1, 1], [], []>} : vector<16x32xf32>, vector<32x32xf32>, vector<16x32xf32> -> vector<16x32xf32>
    %c0_3 = arith.constant 0 : index
    %c0_4 = arith.constant 0 : index
    %3 = vector.load %arg3[%c0_3, %c0_4] : memref<1x32xf32, #tpu.memory_space<vmem>>, vector<1x32xf32>
    %4 = vector.broadcast %3 : vector<1x32xf32> to vector<16x32xf32>
    %5 = arith.addf %2, %4 : vector<16x32xf32>
    %c0_5 = arith.constant 0 : index
    %c0_6 = arith.constant 0 : index
    %6 = vector.load %arg4[%c0_5, %c0_6] : memref<1x32xf32, #tpu.memory_space<vmem>>, vector<1x32xf32>
    %c0_7 = arith.constant 0 : index
    %c0_8 = arith.constant 0 : index
    %7 = vector.load %arg5[%c0_7, %c0_8] : memref<1x32xf32, #tpu.memory_space<vmem>>, vector<1x32xf32>
    %cst_9 = arith.constant dense<0.000000e+00> : vector<16xf32>
    %8 = vector.multi_reduction <add>, %5, %cst_9 [1] : vector<16x32xf32> to vector<16xf32>
    %9 = vector.shape_cast %8 : vector<16xf32> to vector<16x1xf32>
    %cst_10 = arith.constant 3.200000e+01 : f32
    %10 = vector.broadcast %cst_10 : f32 to vector<16x1xf32>
    %11 = arith.divf %9, %10 : vector<16x1xf32>
    %12 = vector.broadcast %11 : vector<16x1xf32> to vector<16x32xf32>
    %13 = arith.subf %5, %12 : vector<16x32xf32>
    %14 = arith.mulf %13, %13 : vector<16x32xf32>
    %cst_11 = arith.constant dense<0.000000e+00> : vector<16xf32>
    %15 = vector.multi_reduction <add>, %14, %cst_11 [1] : vector<16x32xf32> to vector<16xf32>
    %16 = vector.shape_cast %15 : vector<16xf32> to vector<16x1xf32>
    %cst_12 = arith.constant 3.200000e+01 : f32
    %17 = vector.broadcast %cst_12 : f32 to vector<16x1xf32>
    %18 = arith.divf %16, %17 : vector<16x1xf32>
    %19 = vector.broadcast %11 : vector<16x1xf32> to vector<16x32xf32>
    %20 = arith.subf %5, %19 : vector<16x32xf32>
    %cst_13 = arith.constant 9.99999974E-6 : f32
    %21 = vector.broadcast %cst_13 : f32 to vector<16x1xf32>
    %22 = arith.addf %18, %21 : vector<16x1xf32>
    %23 = math.rsqrt %22 : vector<16x1xf32>
    %24 = vector.broadcast %23 : vector<16x1xf32> to vector<16x32xf32>
    %25 = arith.mulf %20, %24 : vector<16x32xf32>
    %26 = vector.broadcast %6 : vector<1x32xf32> to vector<16x32xf32>
    %27 = arith.mulf %25, %26 : vector<16x32xf32>
    %28 = vector.broadcast %7 : vector<1x32xf32> to vector<16x32xf32>
    %29 = arith.addf %27, %28 : vector<16x32xf32>
    %c0_14 = arith.constant 0 : index
    %c0_15 = arith.constant 0 : index
    %30 = vector.load %arg6[%c0_14, %c0_15] : memref<16x32xf32, #tpu.memory_space<vmem>>, vector<16x32xf32>
    tpu.vector_store %arg6[%c0_14, %c0_15], %29 {strides = array<i32>} : memref<16x32xf32, #tpu.memory_space<vmem>>, vector<16x32xf32>,
    return
  }
  func.func @transform_0(%arg0: i32) -> (i32, i32) {
    %c0_i32 = arith.constant 0 : i32
    %c0_i32_0 = arith.constant 0 : i32
    return %arg0, %c0_i32 : i32, i32
  }
  func.func @transform_1(%arg0: i32) -> (i32, i32) {
    %c0_i32 = arith.constant 0 : i32
    %c0_i32_0 = arith.constant 0 : i32
    %c0_i32_1 = arith.constant 0 : i32
    return %c0_i32, %c0_i32_0 : i32, i32
  }
  func.func @transform_2(%arg0: i32) -> (i32, i32) {
    %c0_i32 = arith.constant 0 : i32
    %c0_i32_0 = arith.constant 0 : i32
    %c0_i32_1 = arith.constant 0 : i32
    return %c0_i32, %c0_i32_0 : i32, i32
  }
  func.func @transform_3(%arg0: i32) -> (i32, i32) {
    %c0_i32 = arith.constant 0 : i32
    %c0_i32_0 = arith.constant 0 : i32
    %c0_i32_1 = arith.constant 0 : i32
    return %c0_i32, %c0_i32_0 : i32, i32
  }
  func.func @transform_4(%arg0: i32) -> (i32, i32) {
    %c0_i32 = arith.constant 0 : i32
    %c0_i32_0 = arith.constant 0 : i32
    %c0_i32_1 = arith.constant 0 : i32
    return %c0_i32, %c0_i32_0 : i32, i32
  }
  func.func @transform_5(%arg0: i32) -> (i32, i32) {
    %c0_i32 = arith.constant 0 : i32
    %c0_i32_0 = arith.constant 0 : i32
    return %arg0, %c0_i32 : i32, i32
  }
}

module attributes {stable_mosaic.version = 11 : i64} {
  func.func @_ffn_tail_kernel(%arg0: i32, %arg1: i32, %arg2: memref<16x32xf32, #tpu.memory_space<vmem>>, %arg3: memref<32x128xf32, #tpu.memory_space<vmem>>, %arg4: memref<1x128xf32, #tpu.memory_space<vmem>>, %arg5: memref<128x32xf32, #tpu.memory_space<vmem>>, %arg6: memref<1x32xf32, #tpu.memory_space<vmem>>, %arg7: memref<1x32xf32, #tpu.memory_space<vmem>>, %arg8: memref<1x32xf32, #tpu.memory_space<vmem>>, %arg9: memref<16x32xf32, #tpu.memory_space<vmem>>, %arg10: memref<16x32xf32, #tpu.memory_space<vmem>>) attributes {dimension_semantics = [#tpu.dimension_semantics<parallel>, #tpu.dimension_semantics<arbitrary>], iteration_bounds = array<i64: 1, 1>, scalar_prefetch = 0 : i64, scratch_operands = 1 : i64, tpu.core_type = #tpu.core_type<tc>, window_params = [{transform_indices = @transform_0, window_bounds = array<i64: 16, 32>}, {transform_indices = @transform_1, window_bounds = array<i64: 32, 128>}, {transform_indices = @transform_2, window_bounds = array<i64: 1, 128>}, {transform_indices = @transform_3, window_bounds = array<i64: 128, 32>}, {pipeline_mode = #tpu.pipeline_mode<synchronous>, transform_indices = @transform_4, window_bounds = array<i64: 1, 32>}, {pipeline_mode = #tpu.pipeline_mode<synchronous>, transform_indices = @transform_5, window_bounds = array<i64: 1, 32>}, {pipeline_mode = #tpu.pipeline_mode<synchronous>, transform_indices = @transform_6, window_bounds = array<i64: 1, 32>}, {transform_indices = @transform_7, window_bounds = array<i64: 16, 32>}]} {
    %c0_i32 = arith.constant 0 : i32
    %0 = arith.cmpi eq, %arg1, %c0_i32 : i32
    %1 = arith.extui %0 : i1 to i32
    %c0_i32_0 = arith.constant 0 : i32
    %2 = arith.cmpi ne, %1, %c0_i32_0 : i32
    scf.if %2 {
      %cst_18 = arith.constant 0.000000e+00 : f32
      %25 = vector.broadcast %cst_18 : f32 to vector<16x32xf32>
      %c0_19 = arith.constant 0 : index
      %c0_20 = arith.constant 0 : index
      %26 = vector.load %arg10[%c0_19, %c0_20] : memref<16x32xf32, #tpu.memory_space<vmem>>, vector<16x32xf32>
      tpu.vector_store %arg10[%c0_19, %c0_20], %25 {strides = array<i32>} : memref<16x32xf32, #tpu.memory_space<vmem>>, vector<16x32xf32>,
    } else {
    }
    %c0 = arith.constant 0 : index
    %c0_1 = arith.constant 0 : index
    %3 = vector.load %arg2[%c0, %c0_1] : memref<16x32xf32, #tpu.memory_space<vmem>>, vector<16x32xf32>
    %c0_2 = arith.constant 0 : index
    %c0_3 = arith.constant 0 : index
    %4 = vector.load %arg3[%c0_2, %c0_3] : memref<32x128xf32, #tpu.memory_space<vmem>>, vector<32x128xf32>
    %cst = arith.constant dense<0.000000e+00> : vector<16x128xf32>
    %5 = tpu.matmul %3, %4, %cst {dimension_numbers = #tpu.dot_dimension_numbers<[1], [0], [0], [1], [0, 0, 1, 1], [], []>} : vector<16x32xf32>, vector<32x128xf32>, vector<16x128xf32> -> vector<16x128xf32>
    %c0_4 = arith.constant 0 : index
    %c0_5 = arith.constant 0 : index
    %6 = vector.load %arg4[%c0_4, %c0_5] : memref<1x128xf32, #tpu.memory_space<vmem>>, vector<1x128xf32>
    %7 = vector.broadcast %6 : vector<1x128xf32> to vector<16x128xf32>
    %8 = arith.addf %5, %7 : vector<16x128xf32>
    %cst_6 = arith.constant 5.000000e-01 : f32
    %9 = vector.broadcast %cst_6 : f32 to vector<16x128xf32>
    %10 = arith.mulf %9, %8 : vector<16x128xf32>
    %cst_7 = arith.constant 0.707106769 : f32
    %11 = vector.broadcast %cst_7 : f32 to vector<16x128xf32>
    %12 = arith.mulf %8, %11 : vector<16x128xf32>
    %13 = math.erf %12 : vector<16x128xf32>
    %cst_8 = arith.constant 1.000000e+00 : f32
    %14 = vector.broadcast %cst_8 : f32 to vector<16x128xf32>
    %15 = arith.addf %14, %13 : vector<16x128xf32>
    %16 = arith.mulf %10, %15 : vector<16x128xf32>
    %c0_9 = arith.constant 0 : index
    %c0_10 = arith.constant 0 : index
    %17 = vector.load %arg10[%c0_9, %c0_10] : memref<16x32xf32, #tpu.memory_space<vmem>>, vector<16x32xf32>
    %c0_11 = arith.constant 0 : index
    %c0_12 = arith.constant 0 : index
    %18 = vector.load %arg5[%c0_11, %c0_12] : memref<128x32xf32, #tpu.memory_space<vmem>>, vector<128x32xf32>
    %cst_13 = arith.constant dense<0.000000e+00> : vector<16x32xf32>
    %19 = tpu.matmul %16, %18, %cst_13 {dimension_numbers = #tpu.dot_dimension_numbers<[1], [0], [0], [1], [0, 0, 1, 1], [], []>} : vector<16x128xf32>, vector<128x32xf32>, vector<16x32xf32> -> vector<16x32xf32>
    %20 = arith.addf %17, %19 : vector<16x32xf32>
    %c0_14 = arith.constant 0 : index
    %c0_15 = arith.constant 0 : index
    %21 = vector.load %arg10[%c0_14, %c0_15] : memref<16x32xf32, #tpu.memory_space<vmem>>, vector<16x32xf32>
    tpu.vector_store %arg10[%c0_14, %c0_15], %20 {strides = array<i32>} : memref<16x32xf32, #tpu.memory_space<vmem>>, vector<16x32xf32>,
    %c0_i32_16 = arith.constant 0 : i32
    %22 = arith.cmpi eq, %arg1, %c0_i32_16 : i32
    %23 = arith.extui %22 : i1 to i32
    %c0_i32_17 = arith.constant 0 : i32
    %24 = arith.cmpi ne, %23, %c0_i32_17 : i32
    scf.if %24 {
      %c0_18 = arith.constant 0 : index
      %c0_19 = arith.constant 0 : index
      %25 = vector.load %arg10[%c0_18, %c0_19] : memref<16x32xf32, #tpu.memory_space<vmem>>, vector<16x32xf32>
      %c0_20 = arith.constant 0 : index
      %c0_21 = arith.constant 0 : index
      %26 = vector.load %arg6[%c0_20, %c0_21] : memref<1x32xf32, #tpu.memory_space<vmem>>, vector<1x32xf32>
      %27 = vector.broadcast %26 : vector<1x32xf32> to vector<16x32xf32>
      %28 = arith.addf %25, %27 : vector<16x32xf32>
      %29 = arith.addf %28, %3 : vector<16x32xf32>
      %c0_22 = arith.constant 0 : index
      %c0_23 = arith.constant 0 : index
      %30 = vector.load %arg7[%c0_22, %c0_23] : memref<1x32xf32, #tpu.memory_space<vmem>>, vector<1x32xf32>
      %c0_24 = arith.constant 0 : index
      %c0_25 = arith.constant 0 : index
      %31 = vector.load %arg8[%c0_24, %c0_25] : memref<1x32xf32, #tpu.memory_space<vmem>>, vector<1x32xf32>
      %cst_26 = arith.constant dense<0.000000e+00> : vector<16xf32>
      %32 = vector.multi_reduction <add>, %29, %cst_26 [1] : vector<16x32xf32> to vector<16xf32>
      %33 = vector.shape_cast %32 : vector<16xf32> to vector<16x1xf32>
      %cst_27 = arith.constant 3.200000e+01 : f32
      %34 = vector.broadcast %cst_27 : f32 to vector<16x1xf32>
      %35 = arith.divf %33, %34 : vector<16x1xf32>
      %36 = vector.broadcast %35 : vector<16x1xf32> to vector<16x32xf32>
      %37 = arith.subf %29, %36 : vector<16x32xf32>
      %38 = arith.mulf %37, %37 : vector<16x32xf32>
      %cst_28 = arith.constant dense<0.000000e+00> : vector<16xf32>
      %39 = vector.multi_reduction <add>, %38, %cst_28 [1] : vector<16x32xf32> to vector<16xf32>
      %40 = vector.shape_cast %39 : vector<16xf32> to vector<16x1xf32>
      %cst_29 = arith.constant 3.200000e+01 : f32
      %41 = vector.broadcast %cst_29 : f32 to vector<16x1xf32>
      %42 = arith.divf %40, %41 : vector<16x1xf32>
      %43 = vector.broadcast %35 : vector<16x1xf32> to vector<16x32xf32>
      %44 = arith.subf %29, %43 : vector<16x32xf32>
      %cst_30 = arith.constant 9.99999974E-6 : f32
      %45 = vector.broadcast %cst_30 : f32 to vector<16x1xf32>
      %46 = arith.addf %42, %45 : vector<16x1xf32>
      %47 = math.rsqrt %46 : vector<16x1xf32>
      %48 = vector.broadcast %47 : vector<16x1xf32> to vector<16x32xf32>
      %49 = arith.mulf %44, %48 : vector<16x32xf32>
      %50 = vector.broadcast %30 : vector<1x32xf32> to vector<16x32xf32>
      %51 = arith.mulf %49, %50 : vector<16x32xf32>
      %52 = vector.broadcast %31 : vector<1x32xf32> to vector<16x32xf32>
      %53 = arith.addf %51, %52 : vector<16x32xf32>
      %c0_31 = arith.constant 0 : index
      %c0_32 = arith.constant 0 : index
      %54 = vector.load %arg9[%c0_31, %c0_32] : memref<16x32xf32, #tpu.memory_space<vmem>>, vector<16x32xf32>
      tpu.vector_store %arg9[%c0_31, %c0_32], %53 {strides = array<i32>} : memref<16x32xf32, #tpu.memory_space<vmem>>, vector<16x32xf32>,
    } else {
    }
    return
  }
  func.func @transform_0(%arg0: i32, %arg1: i32) -> (i32, i32) {
    %c0_i32 = arith.constant 0 : i32
    %c0_i32_0 = arith.constant 0 : i32
    return %arg0, %c0_i32 : i32, i32
  }
  func.func @transform_1(%arg0: i32, %arg1: i32) -> (i32, i32) {
    %c0_i32 = arith.constant 0 : i32
    %c0_i32_0 = arith.constant 0 : i32
    return %c0_i32, %arg1 : i32, i32
  }
  func.func @transform_2(%arg0: i32, %arg1: i32) -> (i32, i32) {
    %c0_i32 = arith.constant 0 : i32
    %c0_i32_0 = arith.constant 0 : i32
    return %c0_i32, %arg1 : i32, i32
  }
  func.func @transform_3(%arg0: i32, %arg1: i32) -> (i32, i32) {
    %c0_i32 = arith.constant 0 : i32
    %c0_i32_0 = arith.constant 0 : i32
    return %arg1, %c0_i32 : i32, i32
  }
  func.func @transform_4(%arg0: i32, %arg1: i32) -> (i32, i32) {
    %c0_i32 = arith.constant 0 : i32
    %c0_i32_0 = arith.constant 0 : i32
    %c0_i32_1 = arith.constant 0 : i32
    return %c0_i32, %c0_i32_0 : i32, i32
  }
  func.func @transform_5(%arg0: i32, %arg1: i32) -> (i32, i32) {
    %c0_i32 = arith.constant 0 : i32
    %c0_i32_0 = arith.constant 0 : i32
    %c0_i32_1 = arith.constant 0 : i32
    return %c0_i32, %c0_i32_0 : i32, i32
  }
  func.func @transform_6(%arg0: i32, %arg1: i32) -> (i32, i32) {
    %c0_i32 = arith.constant 0 : i32
    %c0_i32_0 = arith.constant 0 : i32
    %c0_i32_1 = arith.constant 0 : i32
    return %c0_i32, %c0_i32_0 : i32, i32
  }
  func.func @transform_7(%arg0: i32, %arg1: i32) -> (i32, i32) {
    %c0_i32 = arith.constant 0 : i32
    %c0_i32_0 = arith.constant 0 : i32
    return %arg0, %c0_i32 : i32, i32
  }
}

</mosaic_0001>

<llo_original>
// kernel: knowledge_reasoner_forward.9
$region0: #{knowledge_reasoner_forward.9}
  #allocation0 [shape = 'u32[]', space=smem, size = 0x4, offset = 0x4, fixed_abs, tag = 'smem constant byte address 0x4 - core index']
  #allocation1 [shape = 'u32[144,128]{1,0:T(1,128)}', space=vmem, size = 0x12000, scoped, tag = 'internal scratch']
  %s0 = inlined_call_operand.vmem [shape: f32[2,32], index: 0, kind: input, shape index: {}]
  %s1 = inlined_call_operand.vmem [shape: f32[32,32], index: 1, kind: input, shape index: {}]
  %s2 = inlined_call_operand.vmem [shape: f32[1,32], index: 2, kind: input, shape index: {}]
  %s3 = inlined_call_operand.vmem [shape: f32[32,32], index: 3, kind: input, shape index: {}]
  %s4 = inlined_call_operand.vmem [shape: f32[1,32], index: 4, kind: input, shape index: {}]
  %s5 = inlined_call_operand.vmem [shape: f32[2,32], index: 5, kind: output, shape index: {}]
  %s6 = sld [smem:[#allocation0]]
  $region30: #{knowledge_reasoner_forward.9} parent=0
    _
  %s8 = ssub.s32 1, %s6
  %s9 = scalar_select 0, %s8, %s6
  // Predicated region
  $region2: #{knowledge_reasoner_forward.9} parent=0 // pred_check
    _
  $region3: #{knowledge_reasoner_forward.9} parent=0 // pred_check_branch
    %11 = sbr.rel (0) target = $region5
  $region4: #{knowledge_reasoner_forward.9} parent=0 // pred_region
    _
  $region5: #{knowledge_reasoner_forward.9} parent=0 // pred_fallthru
    _
  // Predicated region
  $region6: #{knowledge_reasoner_forward.9} parent=0 // pred_check
    _
  $region7: #{knowledge_reasoner_forward.9} parent=0 // pred_check_branch
    %13 = sbr.rel (0) target = $region9
  $region8: #{knowledge_reasoner_forward.9} parent=0 // pred_region
    _
  $region9: #{knowledge_reasoner_forward.9} parent=0 // pred_fallthru
    _
  // Predicated region
  $region10: #{knowledge_reasoner_forward.9} parent=0 // pred_check
    _
  $region11: #{knowledge_reasoner_forward.9} parent=0 // pred_check_branch
    %15 = sbr.rel (0) target = $region13
  $region12: #{knowledge_reasoner_forward.9} parent=0 // pred_region
    _
  $region13: #{knowledge_reasoner_forward.9} parent=0 // pred_fallthru
    _
  // Predicated region
  $region14: #{knowledge_reasoner_forward.9} parent=0 // pred_check
    _
  $region15: #{knowledge_reasoner_forward.9} parent=0 // pred_check_branch
    %17 = sbr.rel (0) target = $region17
  $region16: #{knowledge_reasoner_forward.9} parent=0 // pred_region
    _
  $region17: #{knowledge_reasoner_forward.9} parent=0 // pred_fallthru
    _
  // Predicated region
  $region18: #{knowledge_reasoner_forward.9} parent=0 // pred_check
    _
  $region19: #{knowledge_reasoner_forward.9} parent=0 // pred_check_branch
    %19 = sbr.rel (0) target = $region21
  $region20: #{knowledge_reasoner_forward.9} parent=0 // pred_region
    _
  $region21: #{knowledge_reasoner_forward.9} parent=0 // pred_fallthru
    _
  %v20 = vld [vmem:[%s0] sm:$0x3]
  %v21 = vld [vmem:[%s1] sm:$0xff]
  %v22 = vld [vmem:[%s1 + $0x8] sm:$0xff]
  %v23 = vld [vmem:[%s1 + $0x10] sm:$0xff]
  %v24 = vld [vmem:[%s1 + $0x18] sm:$0xff]
  %v25 = vld [vmem:[%s2] sm:$0x1]
  %v27 = vlaneseq
  %v28 = vshrl.u32 %v27, 7
  %v29 = vsub.s32 0, %v28
  %v30 = vrot.slane %v25, %v29
  %vm32 = vcmask 261120
  %v34 = vsel %vm32, %v20, 0
  %36 = vmatprep.subr.mxu0 0.0
  %37 = vmatpush1.msra.mxu0 0.0
  %38 = vmatprep.subr.mxu0 0.0
  %39 = vmatpush1.msra.mxu0 0.0
  %40 = vmatprep.subr.mxu0 0.0
  %41 = vmatpush1.msra.mxu0 0.0
  %42 = vmatprep.subr.mxu0 0.0
  %43 = vmatpush1.msra.mxu0 0.0
  %44 = vmatprep.subr.mxu0 0.0
  %45 = vmatpush1.msra.mxu0 0.0
  %46 = vmatprep.subr.mxu0 0.0
  %47 = vmatpush1.msra.mxu0 0.0
  %48 = vmatprep.subr.mxu0 0.0
  %49 = vmatpush1.msra.mxu0 0.0
  %50 = vmatprep.subr.mxu0 0.0
  %51 = vmatpush1.msra.mxu0 0.0
  %52 = vmatprep.subr.mxu0 0.0
  %53 = vmatpush1.msra.mxu0 0.0
  %54 = vmatprep.subr.mxu0 0.0
  %55 = vmatpush1.msra.mxu0 0.0
  %56 = vmatprep.subr.mxu0 0.0
  %57 = vmatpush1.msra.mxu0 0.0
  %58 = vmatprep.subr.mxu0 0.0
  %59 = vmatpush1.msra.mxu0 0.0
  %60 = vmatprep.subr.mxu0 0.0
  %61 = vmatpush1.msra.mxu0 %v24
  %62 = vmatprep.subr.mxu0 0.0
  %63 = vmatpush1.msra.mxu0 %v23
  %64 = vmatprep.subr.mxu0 0.0
  %65 = vmatpush1.msra.mxu0 %v22
  %66 = vmatprep.subr.mxu0 0.0
  %67 = vmatpush1.msra.mxu0 %v21
  %68 = vmatprep.subr.mxu0 0.0
  %69 = vmatpush2.msra.mxu0 0.0
  %70 = vmatprep.subr.mxu0 0.0
  %71 = vmatpush2.msra.mxu0 0.0
  %72 = vmatprep.subr.mxu0 0.0
  %73 = vmatpush2.msra.mxu0 0.0
  %74 = vmatprep.subr.mxu0 0.0
  %75 = vmatpush2.msra.mxu0 0.0
  %76 = vmatprep.subr.mxu0 0.0
  %77 = vmatpush2.msra.mxu0 0.0
  %78 = vmatprep.subr.mxu0 0.0
  %79 = vmatpush2.msra.mxu0 0.0
  %80 = vmatprep.subr.mxu0 0.0
  %81 = vmatpush2.msra.mxu0 0.0
  %82 = vmatprep.subr.mxu0 0.0
  %83 = vmatpush2.msra.mxu0 0.0
  %84 = vmatprep.subr.mxu0 0.0
  %85 = vmatpush2.msra.mxu0 0.0
  %86 = vmatprep.subr.mxu0 0.0
  %87 = vmatpush2.msra.mxu0 0.0
  %88 = vmatprep.subr.mxu0 0.0
  %89 = vmatpush2.msra.mxu0 0.0
  %90 = vmatprep.subr.mxu0 0.0
  %91 = vmatpush2.msra.mxu0 0.0
  %92 = vmatprep.subr.mxu0 0.0
  %93 = vmatpush2.msra.mxu0 0.0
  %94 = vmatprep.subr.mxu0 0.0
  %95 = vmatpush2.msra.mxu0 0.0
  %96 = vmatprep.subr.mxu0 0.0
  %97 = vmatpush2.msra.mxu0 0.0
  %98 = vmatprep.subr.mxu0 0.0
  %99 = vmatpush2.msra.mxu0 0.0
  %100 = vmatprep.mubr.f32.mxu0 0.0
  %101 = vmatmul.mubr.f32.gmra.mxu0 %v34
  %v102 = vpop.f32.mrf.mxu0
  %v103 = vadd.f32 %v30, %v102
  %v104 = vpop.f32.mrf.mxu0
  %105 = vdwg.mxu0
  %v106 = vld [vmem:[%s3] sm:$0xff]
  %v107 = vld [vmem:[%s3 + $0x8] sm:$0xff]
  %v108 = vld [vmem:[%s3 + $0x10] sm:$0xff]
  %v109 = vld [vmem:[%s3 + $0x18] sm:$0xff]
  %v110 = vld [vmem:[%s4] sm:$0x1]
  %v112 = vlaneseq
  %v113 = vshrl.u32 %v112, 7
  %v114 = vsub.s32 0, %v113
  %v115 = vrot.slane %v110, %v114
  %v118 = vsel %vm32, %v103, 0
  %120 = vmatprep.subr.mxu0 0.0
  %121 = vmatpush1.msra.mxu0 0.0
  %122 = vmatprep.subr.mxu0 0.0
  %123 = vmatpush1.msra.mxu0 0.0
  %124 = vmatprep.subr.mxu0 0.0
  %125 = vmatpush1.msra.mxu0 0.0
  %126 = vmatprep.subr.mxu0 0.0
  %127 = vmatpush1.msra.mxu0 0.0
  %128 = vmatprep.subr.mxu0 0.0
  %129 = vmatpush1.msra.mxu0 0.0
  %130 = vmatprep.subr.mxu0 0.0
  %131 = vmatpush1.msra.mxu0 0.0
  %132 = vmatprep.subr.mxu0 0.0
  %133 = vmatpush1.msra.mxu0 0.0
  %134 = vmatprep.subr.mxu0 0.0
  %135 = vmatpush1.msra.mxu0 0.0
  %136 = vmatprep.subr.mxu0 0.0
  %137 = vmatpush1.msra.mxu0 0.0
  %138 = vmatprep.subr.mxu0 0.0
  %139 = vmatpush1.msra.mxu0 0.0
  %140 = vmatprep.subr.mxu0 0.0
  %141 = vmatpush1.msra.mxu0 0.0
  %142 = vmatprep.subr.mxu0 0.0
  %143 = vmatpush1.msra.mxu0 0.0
  %144 = vmatprep.subr.mxu0 0.0
  %145 = vmatpush1.msra.mxu0 %v109
  %146 = vmatprep.subr.mxu0 0.0
  %147 = vmatpush1.msra.mxu0 %v108
  %148 = vmatprep.subr.mxu0 0.0
  %149 = vmatpush1.msra.mxu0 %v107
  %150 = vmatprep.subr.mxu0 0.0
  %151 = vmatpush1.msra.mxu0 %v106
  %152 = vmatprep.subr.mxu0 0.0
  %153 = vmatpush2.msra.mxu0 0.0
  %154 = vmatprep.subr.mxu0 0.0
  %155 = vmatpush2.msra.mxu0 0.0
  %156 = vmatprep.subr.mxu0 0.0
  %157 = vmatpush2.msra.mxu0 0.0
  %158 = vmatprep.subr.mxu0 0.0
  %159 = vmatpush2.msra.mxu0 0.0
  %160 = vmatprep.subr.mxu0 0.0
  %161 = vmatpush2.msra.mxu0 0.0
  %162 = vmatprep.subr.mxu0 0.0
  %163 = vmatpush2.msra.mxu0 0.0
  %164 = vmatprep.subr.mxu0 0.0
  %165 = vmatpush2.msra.mxu0 0.0
  %166 = vmatprep.subr.mxu0 0.0
  %167 = vmatpush2.msra.mxu0 0.0
  %168 = vmatprep.subr.mxu0 0.0
  %169 = vmatpush2.msra.mxu0 0.0
  %170 = vmatprep.subr.mxu0 0.0
  %171 = vmatpush2.msra.mxu0 0.0
  %172 = vmatprep.subr.mxu0 0.0
  %173 = vmatpush2.msra.mxu0 0.0
  %174 = vmatprep.subr.mxu0 0.0
  %175 = vmatpush2.msra.mxu0 0.0
  %176 = vmatprep.subr.mxu0 0.0
  %177 = vmatpush2.msra.mxu0 0.0
  %178 = vmatprep.subr.mxu0 0.0
  %179 = vmatpush2.msra.mxu0 0.0
  %180 = vmatprep.subr.mxu0 0.0
  %181 = vmatpush2.msra.mxu0 0.0
  %182 = vmatprep.subr.mxu0 0.0
  %183 = vmatpush2.msra.mxu0 0.0
  %184 = vmatprep.mubr.f32.mxu0 0.0
  %185 = vmatmul.mubr.f32.gmra.mxu0 %v118
  %v186 = vpop.f32.mrf.mxu0
  %v187 = vadd.f32 %v115, %v186
  %v188 = vpop.f32.mrf.mxu0
  %189 = vdwg.mxu0
  %vm190 = vcmask 254976
  %191 = vst.msk [vmem:[%s5] sm:$0x3] %vm190, %v187
  // Predicated region
  $region22: #{knowledge_reasoner_forward.9} parent=0 // pred_check
    _
  $region23: #{knowledge_reasoner_forward.9} parent=0 // pred_check_branch
    %193 = sbr.rel (0) target = $region25
  $region24: #{knowledge_reasoner_forward.9} parent=0 // pred_region
    _
  $region25: #{knowledge_reasoner_forward.9} parent=0 // pred_fallthru
    _
  // Predicated region
  $region26: #{knowledge_reasoner_forward.9} parent=0 // pred_check
    _
  $region27: #{knowledge_reasoner_forward.9} parent=0 // pred_check_branch
    %195 = sbr.rel (0) target = $region29
  $region28: #{knowledge_reasoner_forward.9} parent=0 // pred_region
    _
  $region29: #{knowledge_reasoner_forward.9} parent=0 // pred_fallthru
    _

// kernel: knowledge_reasoner_forward.8
$region0: #{knowledge_reasoner_forward.8}
  #allocation0 [shape = 'u32[]', space=smem, size = 0x4, offset = 0x4, fixed_abs, tag = 'smem constant byte address 0x4 - core index']
  #allocation1 [shape = 'u32[144,128]{1,0:T(1,128)}', space=vmem, size = 0x12000, scoped, tag = 'internal scratch']
  %s0 = inlined_call_operand.vmem [shape: f32[2,32], index: 0, kind: input, shape index: {}]
  %s1 = inlined_call_operand.vmem [shape: f32[32,32], index: 1, kind: input, shape index: {}]
  %s2 = inlined_call_operand.vmem [shape: f32[1,32], index: 2, kind: input, shape index: {}]
  %s3 = inlined_call_operand.vmem [shape: f32[32,32], index: 3, kind: input, shape index: {}]
  %s4 = inlined_call_operand.hbm [shape: f32[1,32], index: 4, kind: input, shape index: {}]
  %s5 = inlined_call_operand.vmem [shape: f32[16,32], index: 5, kind: input, shape index: {}]
  %s6 = inlined_call_operand.hbm [shape: f32[2,16], index: 6, kind: output, shape index: {0}]
  %s7 = inlined_call_operand.vmem [shape: f32[2,32], index: 7, kind: output, shape index: {1}]
  %8 = xla_tuple %s6, %s7
  %s9 = sld [smem:[#allocation0]]
  $region46: #{knowledge_reasoner_forward.8} parent=0
    _
  %s11 = ssub.s32 1, %s9
  %s12 = scalar_select 0, %s11, %s9
  $region1: #{knowledge_reasoner_forward.8} parent=0
    #allocation2 [shape = 'u8[512]{0}', space=vmem, size = 0x400, scoped, tag = 'input window, operand 4, single buffered']
    #allocation3 [shape = 's32[1]{0}', space=sflag, size = 0x4, scoped, tag = 'scoped memory for knowledge_reasoner_forward.8']
    #allocation4 [shape = 's32[1]{0}', space=sflag, size = 0x4, scoped, tag = 'scoped memory for knowledge_reasoner_forward.8']
    #allocation5 [shape = 'u8[1024]{0}', space=vmem, size = 0x400, scoped, tag = 'output window, operand 0, single buffered']
    %13 = vsyncpa [#allocation3], 0
    %14 = vsyncpa [#allocation4], 0
    // Predicated region
    $region2: #{knowledge_reasoner_forward.8} parent=1 // pred_check
      _
    $region3: #{knowledge_reasoner_forward.8} parent=1 // pred_check_branch
      %16 = sbr.rel (0) target = $region5
    $region4: #{knowledge_reasoner_forward.8} parent=1 // pred_region
      _
    $region5: #{knowledge_reasoner_forward.8} parent=1 // pred_fallthru
      _
    // Predicated region
    $region6: #{knowledge_reasoner_forward.8} parent=1 // pred_check
      _
    $region7: #{knowledge_reasoner_forward.8} parent=1 // pred_check_branch
      %18 = sbr.rel (0) target = $region9
    $region8: #{knowledge_reasoner_forward.8} parent=1 // pred_region
      _
    $region9: #{knowledge_reasoner_forward.8} parent=1 // pred_fallthru
      _
    // Predicated region
    $region10: #{knowledge_reasoner_forward.8} parent=1 // pred_check
      _
    $region11: #{knowledge_reasoner_forward.8} parent=1 // pred_check_branch
      %20 = sbr.rel (0) target = $region13
    $region12: #{knowledge_reasoner_forward.8} parent=1 // pred_region
      _
    $region13: #{knowledge_reasoner_forward.8} parent=1 // pred_fallthru
      _
    // Predicated region
    $region14: #{knowledge_reasoner_forward.8} parent=1 // pred_check
      _
    $region15: #{knowledge_reasoner_forward.8} parent=1 // pred_check_branch
      %22 = sbr.rel (0) target = $region17
    $region16: #{knowledge_reasoner_forward.8} parent=1 // pred_region
      _
    $region17: #{knowledge_reasoner_forward.8} parent=1 // pred_fallthru
      _
    // Predicated region
    $region18: #{knowledge_reasoner_forward.8} parent=1 // pred_check
      _
    $region19: #{knowledge_reasoner_forward.8} parent=1 // pred_check_branch
      %24 = sbr.rel (0) target = $region21
    $region20: #{knowledge_reasoner_forward.8} parent=1 // pred_region
      %s26 = ssub.s32 16, 16
      %27 = vsyncadd [#allocation3], %s26
      %s29 = sshll.u32 [#allocation2], 4
      %s30 = int_to_ptr.vmem [resolvable:$true] %s29
      %32 = dma.hbm_to_vmem [thread:$0]  %s4, 16, %s30, [#allocation3]
    $region21: #{knowledge_reasoner_forward.8} parent=1 // pred_fallthru
      _
    // Predicated region
    $region22: #{knowledge_reasoner_forward.8} parent=1 // pred_check
      _
    $region23: #{knowledge_reasoner_forward.8} parent=1 // pred_check_branch
      %34 = sbr.rel (0) target = $region25
    $region24: #{knowledge_reasoner_forward.8} parent=1 // pred_region
      _
    $region25: #{knowledge_reasoner_forward.8} parent=1 // pred_fallthru
      _
    // Predicated region
    $region26: #{knowledge_reasoner_forward.8} parent=1 // pred_check
      _
    $region27: #{knowledge_reasoner_forward.8} parent=1 // pred_check_branch
      %36 = sbr.rel (0) target = $region29
    $region28: #{knowledge_reasoner_forward.8} parent=1 // pred_region
      %37 = dma.done [#allocation3], 16
    $region29: #{knowledge_reasoner_forward.8} parent=1 // pred_fallthru
      _
    %v38 = vld [vmem:[%s0] sm:$0x3]
    %v39 = vld [vmem:[%s1] sm:$0xff]
    %v40 = vld [vmem:[%s1 + $0x8] sm:$0xff]
    %v41 = vld [vmem:[%s1 + $0x10] sm:$0xff]
    %v42 = vld [vmem:[%s1 + $0x18] sm:$0xff]
    %v43 = vld [vmem:[%s2] sm:$0x1]
    %v45 = vlaneseq
    %v46 = vshrl.u32 %v45, 7
    %v47 = vsub.s32 0, %v46
    %v48 = vrot.slane %v43, %v47
    %vm50 = vcmask 261120
    %v52 = vsel %vm50, %v38, 0
    %54 = vmatprep.subr.mxu0 0.0
    %55 = vmatpush1.msra.mxu0 0.0
    %56 = vmatprep.subr.mxu0 0.0
    %57 = vmatpush1.msra.mxu0 0.0
    %58 = vmatprep.subr.mxu0 0.0
    %59 = vmatpush1.msra.mxu0 0.0
    %60 = vmatprep.subr.mxu0 0.0
    %61 = vmatpush1.msra.mxu0 0.0
    %62 = vmatprep.subr.mxu0 0.0
    %63 = vmatpush1.msra.mxu0 0.0
    %64 = vmatprep.subr.mxu0 0.0
    %65 = vmatpush1.msra.mxu0 0.0
    %66 = vmatprep.subr.mxu0 0.0
    %67 = vmatpush1.msra.mxu0 0.0
    %68 = vmatprep.subr.mxu0 0.0
    %69 = vmatpush1.msra.mxu0 0.0
    %70 = vmatprep.subr.mxu0 0.0
    %71 = vmatpush1.msra.mxu0 0.0
    %72 = vmatprep.subr.mxu0 0.0
    %73 = vmatpush1.msra.mxu0 0.0
    %74 = vmatprep.subr.mxu0 0.0
    %75 = vmatpush1.msra.mxu0 0.0
    %76 = vmatprep.subr.mxu0 0.0
    %77 = vmatpush1.msra.mxu0 0.0
    %78 = vmatprep.subr.mxu0 0.0
    %79 = vmatpush1.msra.mxu0 %v42
    %80 = vmatprep.subr.mxu0 0.0
    %81 = vmatpush1.msra.mxu0 %v41
    %82 = vmatprep.subr.mxu0 0.0
    %83 = vmatpush1.msra.mxu0 %v40
    %84 = vmatprep.subr.mxu0 0.0
    %85 = vmatpush1.msra.mxu0 %v39
    %86 = vmatprep.subr.mxu0 0.0
    %87 = vmatpush2.msra.mxu0 0.0
    %88 = vmatprep.subr.mxu0 0.0
    %89 = vmatpush2.msra.mxu0 0.0
    %90 = vmatprep.subr.mxu0 0.0
    %91 = vmatpush2.msra.mxu0 0.0
    %92 = vmatprep.subr.mxu0 0.0
    %93 = vmatpush2.msra.mxu0 0.0
    %94 = vmatprep.subr.mxu0 0.0
    %95 = vmatpush2.msra.mxu0 0.0
    %96 = vmatprep.subr.mxu0 0.0
    %97 = vmatpush2.msra.mxu0 0.0
    %98 = vmatprep.subr.mxu0 0.0
    %99 = vmatpush2.msra.mxu0 0.0
    %100 = vmatprep.subr.mxu0 0.0
    %101 = vmatpush2.msra.mxu0 0.0
    %102 = vmatprep.subr.mxu0 0.0
    %103 = vmatpush2.msra.mxu0 0.0
    %104 = vmatprep.subr.mxu0 0.0
    %105 = vmatpush2.msra.mxu0 0.0
    %106 = vmatprep.subr.mxu0 0.0
    %107 = vmatpush2.msra.mxu0 0.0
    %108 = vmatprep.subr.mxu0 0.0
    %109 = vmatpush2.msra.mxu0 0.0
    %110 = vmatprep.subr.mxu0 0.0
    %111 = vmatpush2.msra.mxu0 0.0
    %112 = vmatprep.subr.mxu0 0.0
    %113 = vmatpush2.msra.mxu0 0.0
    %114 = vmatprep.subr.mxu0 0.0
    %115 = vmatpush2.msra.mxu0 0.0
    %116 = vmatprep.subr.mxu0 0.0
    %117 = vmatpush2.msra.mxu0 0.0
    %118 = vmatprep.mubr.f32.mxu0 0.0
    %119 = vmatmul.mubr.f32.gmra.mxu0 %v52
    %v120 = vpop.f32.mrf.mxu0
    %v121 = vadd.f32 %v48, %v120
    %v122 = vpop.f32.mrf.mxu0
    %123 = vdwg.mxu0
    %v124 = vmul.f32 %v121, 0.5
    %v125 = vmul.f32 %v121, 0.70710677
    %v126 = verf.f32.pop %v125
    %v127 = vadd.f32 %v126, 1.0
    %v128 = vmul.f32 %v124, %v127
    %v129 = vld [vmem:[%s3] sm:$0xff]
    %v130 = vld [vmem:[%s3 + $0x8] sm:$0xff]
    %v131 = vld [vmem:[%s3 + $0x10] sm:$0xff]
    %v132 = vld [vmem:[%s3 + $0x18] sm:$0xff]
    %v133 = vld [vmem:[#allocation2] sm:$0x1]
    %v135 = vlaneseq
    %v136 = vshrl.u32 %v135, 7
    %v137 = vsub.s32 0, %v136
    %v138 = vrot.slane %v133, %v137
    %v141 = vsel %vm50, %v128, 0
    %143 = vmatprep.subr.mxu0 0.0
    %144 = vmatpush1.msra.mxu0 0.0
    %145 = vmatprep.subr.mxu0 0.0
    %146 = vmatpush1.msra.mxu0 0.0
    %147 = vmatprep.subr.mxu0 0.0
    %148 = vmatpush1.msra.mxu0 0.0
    %149 = vmatprep.subr.mxu0 0.0
    %150 = vmatpush1.msra.mxu0 0.0
    %151 = vmatprep.subr.mxu0 0.0
    %152 = vmatpush1.msra.mxu0 0.0
    %153 = vmatprep.subr.mxu0 0.0
    %154 = vmatpush1.msra.mxu0 0.0
    %155 = vmatprep.subr.mxu0 0.0
    %156 = vmatpush1.msra.mxu0 0.0
    %157 = vmatprep.subr.mxu0 0.0
    %158 = vmatpush1.msra.mxu0 0.0
    %159 = vmatprep.subr.mxu0 0.0
    %160 = vmatpush1.msra.mxu0 0.0
    %161 = vmatprep.subr.mxu0 0.0
    %162 = vmatpush1.msra.mxu0 0.0
    %163 = vmatprep.subr.mxu0 0.0
    %164 = vmatpush1.msra.mxu0 0.0
    %165 = vmatprep.subr.mxu0 0.0
    %166 = vmatpush1.msra.mxu0 0.0
    %167 = vmatprep.subr.mxu0 0.0
    %168 = vmatpush1.msra.mxu0 %v132
    %169 = vmatprep.subr.mxu0 0.0
    %170 = vmatpush1.msra.mxu0 %v131
    %171 = vmatprep.subr.mxu0 0.0
    %172 = vmatpush1.msra.mxu0 %v130
    %173 = vmatprep.subr.mxu0 0.0
    %174 = vmatpush1.msra.mxu0 %v129
    %175 = vmatprep.subr.mxu0 0.0
    %176 = vmatpush2.msra.mxu0 0.0
    %177 = vmatprep.subr.mxu0 0.0
    %178 = vmatpush2.msra.mxu0 0.0
    %179 = vmatprep.subr.mxu0 0.0
    %180 = vmatpush2.msra.mxu0 0.0
    %181 = vmatprep.subr.mxu0 0.0
    %182 = vmatpush2.msra.mxu0 0.0
    %183 = vmatprep.subr.mxu0 0.0
    %184 = vmatpush2.msra.mxu0 0.0
    %185 = vmatprep.subr.mxu0 0.0
    %186 = vmatpush2.msra.mxu0 0.0
    %187 = vmatprep.subr.mxu0 0.0
    %188 = vmatpush2.msra.mxu0 0.0
    %189 = vmatprep.subr.mxu0 0.0
    %190 = vmatpush2.msra.mxu0 0.0
    %191 = vmatprep.subr.mxu0 0.0
    %192 = vmatpush2.msra.mxu0 0.0
    %193 = vmatprep.subr.mxu0 0.0
    %194 = vmatpush2.msra.mxu0 0.0
    %195 = vmatprep.subr.mxu0 0.0
    %196 = vmatpush2.msra.mxu0 0.0
    %197 = vmatprep.subr.mxu0 0.0
    %198 = vmatpush2.msra.mxu0 0.0
    %199 = vmatprep.subr.mxu0 0.0
    %200 = vmatpush2.msra.mxu0 0.0
    %201 = vmatprep.subr.mxu0 0.0
    %202 = vmatpush2.msra.mxu0 0.0
    %203 = vmatprep.subr.mxu0 0.0
    %204 = vmatpush2.msra.mxu0 0.0
    %205 = vmatprep.subr.mxu0 0.0
    %206 = vmatpush2.msra.mxu0 0.0
    %207 = vmatprep.mubr.f32.mxu0 0.0
    %208 = vmatmul.mubr.f32.gmra.mxu0 %v141
    %v209 = vpop.f32.mrf.mxu0
    %v210 = vadd.f32 %v138, %v209
    %v211 = vpop.f32.mrf.mxu0
    %212 = vdwg.mxu0
    %v213 = vld [vmem:[%s5] sm:$0xff]
    %v214 = vld [vmem:[%s5 + $0x8] sm:$0xff]
    %v216 = vsel %vm50, %v210, 0
    %v219 = vsel %vm50, %v213, 0
    %v222 = vsel %vm50, %v214, 0
    %224 = vmatprep.subr.mxu0 0.0
    %225 = vmatpush1.xpose.msra.mxu0 0.0
    %226 = vmatprep.subr.mxu0 0.0
    %227 = vmatpush1.xpose.msra.mxu0 0.0
    %228 = vmatprep.subr.mxu0 0.0
    %229 = vmatpush1.xpose.msra.mxu0 0.0
    %230 = vmatprep.subr.mxu0 0.0
    %231 = vmatpush1.xpose.msra.mxu0 0.0
    %232 = vmatprep.subr.mxu0 0.0
    %233 = vmatpush1.xpose.msra.mxu0 0.0
    %234 = vmatprep.subr.mxu0 0.0
    %235 = vmatpush1.xpose.msra.mxu0 0.0
    %236 = vmatprep.subr.mxu0 0.0
    %237 = vmatpush1.xpose.msra.mxu0 0.0
    %238 = vmatprep.subr.mxu0 0.0
    %239 = vmatpush1.xpose.msra.mxu0 0.0
    %240 = vmatprep.subr.mxu0 0.0
    %241 = vmatpush1.xpose.msra.mxu0 0.0
    %242 = vmatprep.subr.mxu0 0.0
    %243 = vmatpush1.xpose.msra.mxu0 0.0
    %244 = vmatprep.subr.mxu0 0.0
    %245 = vmatpush1.xpose.msra.mxu0 0.0
    %246 = vmatprep.subr.mxu0 0.0
    %247 = vmatpush1.xpose.msra.mxu0 0.0
    %248 = vmatprep.subr.mxu0 0.0
    %249 = vmatpush1.xpose.msra.mxu0 0.0
    %250 = vmatprep.subr.mxu0 0.0
    %251 = vmatpush1.xpose.msra.mxu0 0.0
    %252 = vmatprep.subr.mxu0 0.0
    %253 = vmatpush1.xpose.msra.mxu0 %v222
    %254 = vmatprep.subr.mxu0 0.0
    %255 = vmatpush1.xpose.msra.mxu0 %v219
    %256 = vmatprep.subr.mxu0 0.0
    %257 = vmatpush2.xpose.msra.mxu0 0.0
    %258 = vmatprep.subr.mxu0 0.0
    %259 = vmatpush2.xpose.msra.mxu0 0.0
    %260 = vmatprep.subr.mxu0 0.0
    %261 = vmatpush2.xpose.msra.mxu0 0.0
    %262 = vmatprep.subr.mxu0 0.0
    %263 = vmatpush2.xpose.msra.mxu0 0.0
    %264 = vmatprep.subr.mxu0 0.0
    %265 = vmatpush2.xpose.msra.mxu0 0.0
    %266 = vmatprep.subr.mxu0 0.0
    %267 = vmatpush2.xpose.msra.mxu0 0.0
    %268 = vmatprep.subr.mxu0 0.0
    %269 = vmatpush2.xpose.msra.mxu0 0.0
    %270 = vmatprep.subr.mxu0 0.0
    %271 = vmatpush2.xpose.msra.mxu0 0.0
    %272 = vmatprep.subr.mxu0 0.0
    %273 = vmatpush2.xpose.msra.mxu0 0.0
    %274 = vmatprep.subr.mxu0 0.0
    %275 = vmatpush2.xpose.msra.mxu0 0.0
    %276 = vmatprep.subr.mxu0 0.0
    %277 = vmatpush2.xpose.msra.mxu0 0.0
    %278 = vmatprep.subr.mxu0 0.0
    %279 = vmatpush2.xpose.msra.mxu0 0.0
    %280 = vmatprep.subr.mxu0 0.0
    %281 = vmatpush2.xpose.msra.mxu0 0.0
    %282 = vmatprep.subr.mxu0 0.0
    %283 = vmatpush2.xpose.msra.mxu0 0.0
    %284 = vmatprep.subr.mxu0 0.0
    %285 = vmatpush2.xpose.msra.mxu0 0.0
    %286 = vmatprep.subr.mxu0 0.0
    %287 = vmatpush2.xpose.msra.mxu0 0.0
    %288 = vmatprep.mubr.f32.mxu0 0.0
    %289 = vmatmul.mubr.f32.gmra.mxu0 %v216
    %v290 = vpop.f32.mrf.mxu0
    %v291 = vadd.f32 0.0, %v290
    %v292 = vpop.f32.mrf.mxu0
    %293 = vdwg.mxu0
    %vm294 = vcmask 123904
    %v295 = vsel %vm294, %v291, -inf
    %296 = vmax.xlane.f32.xlu0 %v295
    %v297 = vpop.xlane.xlu0 %296
    %v298 = vsub.f32 %v291, %v297
    %v299 = vmul.f32 %v298, 1.442695
    %v300 = vpow.pop %v299
    %v301 = vsel %vm294, %v300, 0.0
    %302 = vadd.xlane.f32.xlu0 %v301
    %v303 = vpop.xlane.xlu0 %302
    %v304 = vrcp.pop %v303
    %v305 = vmul.f32 %v300, %v304
    %306 = vst.msk [vmem:[#allocation5] sm:$0x3] %vm294, %v305
    %vm307 = vcmask 130048
    %v309 = vsel %vm307, %v305, 0
    %311 = vmatprep.subr.mxu0 0.0
    %312 = vmatpush1.msra.mxu0 0.0
    %313 = vmatprep.subr.mxu0 0.0
    %314 = vmatpush1.msra.mxu0 0.0
    %315 = vmatprep.subr.mxu0 0.0
    %316 = vmatpush1.msra.mxu0 0.0
    %317 = vmatprep.subr.mxu0 0.0
    %318 = vmatpush1.msra.mxu0 0.0
    %319 = vmatprep.subr.mxu0 0.0
    %320 = vmatpush1.msra.mxu0 0.0
    %321 = vmatprep.subr.mxu0 0.0
    %322 = vmatpush1.msra.mxu0 0.0
    %323 = vmatprep.subr.mxu0 0.0
    %324 = vmatpush1.msra.mxu0 0.0
    %325 = vmatprep.subr.mxu0 0.0
    %326 = vmatpush1.msra.mxu0 0.0
    %327 = vmatprep.subr.mxu0 0.0
    %328 = vmatpush1.msra.mxu0 0.0
    %329 = vmatprep.subr.mxu0 0.0
    %330 = vmatpush1.msra.mxu0 0.0
    %331 = vmatprep.subr.mxu0 0.0
    %332 = vmatpush1.msra.mxu0 0.0
    %333 = vmatprep.subr.mxu0 0.0
    %334 = vmatpush1.msra.mxu0 0.0
    %335 = vmatprep.subr.mxu0 0.0
    %336 = vmatpush1.msra.mxu0 0.0
    %337 = vmatprep.subr.mxu0 0.0
    %338 = vmatpush1.msra.mxu0 0.0
    %339 = vmatprep.subr.mxu0 0.0
    %340 = vmatpush1.msra.mxu0 %v214
    %341 = vmatprep.subr.mxu0 0.0
    %342 = vmatpush1.msra.mxu0 %v213
    %343 = vmatprep.subr.mxu0 0.0
    %344 = vmatpush2.msra.mxu0 0.0
    %345 = vmatprep.subr.mxu0 0.0
    %346 = vmatpush2.msra.mxu0 0.0
    %347 = vmatprep.subr.mxu0 0.0
    %348 = vmatpush2.msra.mxu0 0.0
    %349 = vmatprep.subr.mxu0 0.0
    %350 = vmatpush2.msra.mxu0 0.0
    %351 = vmatprep.subr.mxu0 0.0
    %352 = vmatpush2.msra.mxu0 0.0
    %353 = vmatprep.subr.mxu0 0.0
    %354 = vmatpush2.msra.mxu0 0.0
    %355 = vmatprep.subr.mxu0 0.0
    %356 = vmatpush2.msra.mxu0 0.0
    %357 = vmatprep.subr.mxu0 0.0
    %358 = vmatpush2.msra.mxu0 0.0
    %359 = vmatprep.subr.mxu0 0.0
    %360 = vmatpush2.msra.mxu0 0.0
    %361 = vmatprep.subr.mxu0 0.0
    %362 = vmatpush2.msra.mxu0 0.0
    %363 = vmatprep.subr.mxu0 0.0
    %364 = vmatpush2.msra.mxu0 0.0
    %365 = vmatprep.subr.mxu0 0.0
    %366 = vmatpush2.msra.mxu0 0.0
    %367 = vmatprep.subr.mxu0 0.0
    %368 = vmatpush2.msra.mxu0 0.0
    %369 = vmatprep.subr.mxu0 0.0
    %370 = vmatpush2.msra.mxu0 0.0
    %371 = vmatprep.subr.mxu0 0.0
    %372 = vmatpush2.msra.mxu0 0.0
    %373 = vmatprep.subr.mxu0 0.0
    %374 = vmatpush2.msra.mxu0 0.0
    %375 = vmatprep.mubr.f32.mxu0 0.0
    %376 = vmatmul.mubr.f32.gmra.mxu0 %v309
    %v377 = vpop.f32.mrf.mxu0
    %v378 = vadd.f32 0.0, %v377
    %v379 = vpop.f32.mrf.mxu0
    %380 = vdwg.mxu0
    %vm381 = vcmask 254976
    %382 = vst.msk [vmem:[%s7] sm:$0x3] %vm381, %v378
    // Predicated region
    $region30: #{knowledge_reasoner_forward.8} parent=1 // pred_check
      _
    $region31: #{knowledge_reasoner_forward.8} parent=1 // pred_check_branch
      %384 = sbr.rel (0) target = $region33
    $region32: #{knowledge_reasoner_forward.8} parent=1 // pred_region
      %s386 = ssub.s32 32, 32
      %387 = vsyncadd [#allocation4], %s386
      %s389 = sshll.u32 [#allocation5], 4
      %s390 = int_to_ptr.vmem [resolvable:$true] %s389
      %392 = dma.vmem_to_hbm [thread:$0]  %s390, 32, %s6, [#allocation4]
    $region33: #{knowledge_reasoner_forward.8} parent=1 // pred_fallthru
      _
    // Predicated region
    $region34: #{knowledge_reasoner_forward.8} parent=1 // pred_check
      _
    $region35: #{knowledge_reasoner_forward.8} parent=1 // pred_check_branch
      %394 = sbr.rel (0) target = $region37
    $region36: #{knowledge_reasoner_forward.8} parent=1 // pred_region
      _
    $region37: #{knowledge_reasoner_forward.8} parent=1 // pred_fallthru
      _
    // Predicated region
    $region38: #{knowledge_reasoner_forward.8} parent=1 // pred_check
      _
    $region39: #{knowledge_reasoner_forward.8} parent=1 // pred_check_branch
      %396 = sbr.rel (0) target = $region41
    $region40: #{knowledge_reasoner_forward.8} parent=1 // pred_region
      %397 = dma.done [#allocation4], 32
    $region41: #{knowledge_reasoner_forward.8} parent=1 // pred_fallthru
      _
    // Predicated region
    $region42: #{knowledge_reasoner_forward.8} parent=1 // pred_check
      _
    $region43: #{knowledge_reasoner_forward.8} parent=1 // pred_check_branch
      %399 = sbr.rel (0) target = $region45
    $region44: #{knowledge_reasoner_forward.8} parent=1 // pred_region
      _
    $region45: #{knowledge_reasoner_forward.8} parent=1 // pred_fallthru
      _
    %400 = vsyncpa [#allocation3], 1
    %401 = vsyncpa [#allocation4], 1

// kernel: knowledge_reasoner_forward.10
$region0: #{knowledge_reasoner_forward.10}
  #allocation0 [shape = 'u32[]', space=smem, size = 0x4, offset = 0x4, fixed_abs, tag = 'smem constant byte address 0x4 - core index']
  #allocation1 [shape = 'u32[144,128]{1,0:T(1,128)}', space=vmem, size = 0x12000, scoped, tag = 'internal scratch']
  %s0 = inlined_call_operand.vmem [shape: f32[2,8,32], index: 0, kind: input, shape index: {}]
  %s1 = inlined_call_operand.vmem [shape: f32[2,1,32], index: 1, kind: input, shape index: {}]
  %s2 = inlined_call_operand.vmem [shape: f32[32,32], index: 2, kind: input, shape index: {}]
  %s3 = inlined_call_operand.vmem [shape: f32[32,32], index: 3, kind: input, shape index: {}]
  %s4 = inlined_call_operand.vmem [shape: f32[1,32], index: 4, kind: input, shape index: {}]
  %s5 = inlined_call_operand.vmem [shape: f32[1,32], index: 5, kind: input, shape index: {}]
  %s6 = inlined_call_operand.vmem [shape: f32[1,32], index: 6, kind: input, shape index: {}]
  %s7 = inlined_call_operand.hbm [shape: f32[32,32], index: 7, kind: input, shape index: {}]
  %s8 = inlined_call_operand.vmem [shape: f32[1,32], index: 8, kind: input, shape index: {}]
  %s9 = inlined_call_operand.vmem [shape: f32[2,8,32], index: 9, kind: output, shape index: {}]
  %s10 = sld [smem:[#allocation0]]
  $region73: #{knowledge_reasoner_forward.10} parent=0
    _
  %s12 = ssub.s32 1, %s10
  %s13 = scalar_select 0, %s12, %s10
  $region1: #{knowledge_reasoner_forward.10} parent=0
    #allocation2 [shape = 'u8[16384]{0}', space=vmem, size = 0x4000, scoped, tag = 'input window, operand 7, single buffered']
    #allocation3 [shape = 's32[2]{0}', space=sflag, size = 0x8, scoped, tag = 'scoped memory for knowledge_reasoner_forward.10']
    %14 = vsyncpa [#allocation3], 0
    loop: start=0, step=1, limit=4
    $region2: #{knowledge_reasoner_forward.10} parent=1 // loop_pre_header
      _
    $region3: #{knowledge_reasoner_forward.10} parent=1 // loop_header
      %s16 = sphi 0, %s20
      %p17 = scmp.ge.s32.totalorder %s16, 4
      %s23 = sphi 0, %s35
      %s24 = sphi 0, %s31
      %s25 = sphi 0, %s23
      %s26 = sphi 0, %s24
      %s27 = sphi 0, %s25
      %s28 = sphi 0, %s26
      %s40 = sphi 0, %s42
      %s43 = sphi 0, %s40
      %s44 = sphi 0, %s43
      %s60 = sphi 0, %s44
      %s66 = sphi 0, %s68
      %s69 = sphi 0, %s66
      %s70 = sphi 0, %s69
      %s86 = sphi 0, %s70
      %s90 = sphi 0, %s90
      %s92 = sphi 0, %s90
      %s93 = sphi 0, %s92
      %s107 = sphi 0, %s93
      %s111 = sphi 0, %s111
      %s113 = sphi 0, %s111
      %s114 = sphi 0, %s113
      %s128 = sphi 0, %s114
      %s132 = sphi 0, %s132
      %s134 = sphi 0, %s132
      %s135 = sphi 0, %s134
      %s149 = sphi 0, %s135
      %s153 = sphi 0, %s153
      %s155 = sphi 0, %s153
      %s156 = sphi 0, %s155
      %s170 = sphi 0, %s156
      %s174 = sphi 0, %s174
      %s176 = sphi 0, %s174
      %s177 = sphi 0, %s176
      %s191 = sphi 0, %s177
      %s195 = sphi 0, %s195
      %s197 = sphi 0, %s195
      %s198 = sphi 0, %s197
      %s212 = sphi 0, %s198
      %s216 = sphi 0, %s216
      %s218 = sphi 0, %s216
      %s219 = sphi 0, %s218
      %s233 = sphi 0, %s219
      %s241 = sphi 0, %s243
      %s244 = sphi 0, %s241
      %s245 = sphi 0, %s244
      %s261 = sphi 0, %s245
    $region4: #{knowledge_reasoner_forward.10} parent=1 // loop_header_branch
      %19 = sbr.rel (%p17) target = $region8
    $region5: #{knowledge_reasoner_forward.10} parent=1 // loop_body
      %s21 = ssub.s32 %s16, 1
      %s22 = ssub.s32 %s16, 2
      %s29 = sadd.s32 1, %s24
      %p30 = scmp.ge.s32.totalorder %s29, 1
      %s31 = scalar_select %p30, 0, %s29
      %s32 = sadd.s32 1, %s23
      %s33 = scalar_select %p30, %s32, %s23
      %p34 = scmp.ge.s32.totalorder %s33, 2
      %s35 = scalar_select %p34, 0, %s33
      %s36 = ssub.s32 %s23, %s35
      %s37 = ssub.s32 %s24, %s31
      %s38 = sor.u32 %s36, %s37
      %p39 = scmp.eq.s32.totalorder %s38, 0
      %s41 = sadd.s32 %s40, 1
      %s42 = scalar_select %p39, %s40, %s41
      %p45 = pneg %p39
      %p46 = scmp.eq.s32.totalorder %s16, 1
      %p47 = por %p45, %p46
      %p48 = scmp.ne.s32.totalorder %s40, %s43
      %p49 = scmp.eq.s32.totalorder %s16, 0
      %p50 = por %p48, %p49
      %p51 = scmp.ne.s32.totalorder %s40, %s43
      %p52 = scmp.eq.s32.totalorder %s21, 1
      %p53 = por %p51, %p52
      %p54 = scmp.ne.s32.totalorder %s43, %s44
      %p55 = scmp.eq.s32.totalorder %s21, 0
      %p56 = por %p54, %p55
      %p57 = scmp.ne.s32.totalorder %s43, %s44
      %p58 = scmp.eq.s32.totalorder %s22, 1
      %p59 = por %p57, %p58
      %p61 = scmp.ne.s32.totalorder %s44, %s60
      %p62 = scmp.eq.s32.totalorder %s22, 0
      %p63 = por %p61, %p62
      %s64 = ssub.s32 %s23, %s35
      %p65 = scmp.eq.s32.totalorder %s64, 0
      %s67 = sadd.s32 %s66, 1
      %s68 = scalar_select %p65, %s66, %s67
      %p71 = pneg %p65
      %p72 = scmp.eq.s32.totalorder %s16, 1
      %p73 = por %p71, %p72
      %p74 = scmp.ne.s32.totalorder %s66, %s69
      %p75 = scmp.eq.s32.totalorder %s16, 0
      %p76 = por %p74, %p75
      %p77 = scmp.ne.s32.totalorder %s66, %s69
      %p78 = scmp.eq.s32.totalorder %s21, 1
      %p79 = por %p77, %p78
      %p80 = scmp.ne.s32.totalorder %s69, %s70
      %p81 = scmp.eq.s32.totalorder %s21, 0
      %p82 = por %p80, %p81
      %p83 = scmp.ne.s32.totalorder %s69, %s70
      %p84 = scmp.eq.s32.totalorder %s22, 1
      %p85 = por %p83, %p84
      %p87 = scmp.ne.s32.totalorder %s70, %s86
      %p88 = scmp.eq.s32.totalorder %s22, 0
      %p89 = por %p87, %p88
      %s91 = sadd.s32 %s90, 1
      %p94 = scmp.eq.s32.totalorder %s16, 1
      %p95 = scmp.ne.s32.totalorder %s90, %s92
      %p96 = scmp.eq.s32.totalorder %s16, 0
      %p97 = por %p95, %p96
      %p98 = scmp.ne.s32.totalorder %s90, %s92
      %p99 = scmp.eq.s32.totalorder %s21, 1
      %p100 = por %p98, %p99
      %p101 = scmp.ne.s32.totalorder %s92, %s93
      %p102 = scmp.eq.s32.totalorder %s21, 0
      %p103 = por %p101, %p102
      %p104 = scmp.ne.s32.totalorder %s92, %s93
      %p105 = scmp.eq.s32.totalorder %s22, 1
      %p106 = por %p104, %p105
      %p108 = scmp.ne.s32.totalorder %s93, %s107
      %p109 = scmp.eq.s32.totalorder %s22, 0
      %p110 = por %p108, %p109
      %s112 = sadd.s32 %s111, 1
      %p115 = scmp.eq.s32.totalorder %s16, 1
      %p116 = scmp.ne.s32.totalorder %s111, %s113
      %p117 = scmp.eq.s32.totalorder %s16, 0
      %p118 = por %p116, %p117
      %p119 = scmp.ne.s32.totalorder %s111, %s113
      %p120 = scmp.eq.s32.totalorder %s21, 1
      %p121 = por %p119, %p120
      %p122 = scmp.ne.s32.totalorder %s113, %s114
      %p123 = scmp.eq.s32.totalorder %s21, 0
      %p124 = por %p122, %p123
      %p125 = scmp.ne.s32.totalorder %s113, %s114
      %p126 = scmp.eq.s32.totalorder %s22, 1
      %p127 = por %p125, %p126
      %p129 = scmp.ne.s32.totalorder %s114, %s128
      %p130 = scmp.eq.s32.totalorder %s22, 0
      %p131 = por %p129, %p130
      %s133 = sadd.s32 %s132, 1
      %p136 = scmp.eq.s32.totalorder %s16, 1
      %p137 = scmp.ne.s32.totalorder %s132, %s134
      %p138 = scmp.eq.s32.totalorder %s16, 0
      %p139 = por %p137, %p138
      %p140 = scmp.ne.s32.totalorder %s132, %s134
      %p141 = scmp.eq.s32.totalorder %s21, 1
      %p142 = por %p140, %p141
      %p143 = scmp.ne.s32.totalorder %s134, %s135
      %p144 = scmp.eq.s32.totalorder %s21, 0
      %p145 = por %p143, %p144
      %p146 = scmp.ne.s32.totalorder %s134, %s135
      %p147 = scmp.eq.s32.totalorder %s22, 1
      %p148 = por %p146, %p147
      %p150 = scmp.ne.s32.totalorder %s135, %s149
      %p151 = scmp.eq.s32.totalorder %s22, 0
      %p152 = por %p150, %p151
      %s154 = sadd.s32 %s153, 1
      %p157 = scmp.eq.s32.totalorder %s16, 1
      %p158 = scmp.ne.s32.totalorder %s153, %s155
      %p159 = scmp.eq.s32.totalorder %s16, 0
      %p160 = por %p158, %p159
      %p161 = scmp.ne.s32.totalorder %s153, %s155
      %p162 = scmp.eq.s32.totalorder %s21, 1
      %p163 = por %p161, %p162
      %p164 = scmp.ne.s32.totalorder %s155, %s156
      %p165 = scmp.eq.s32.totalorder %s21, 0
      %p166 = por %p164, %p165
      %p167 = scmp.ne.s32.totalorder %s155, %s156
      %p168 = scmp.eq.s32.totalorder %s22, 1
      %p169 = por %p167, %p168
      %p171 = scmp.ne.s32.totalorder %s156, %s170
      %p172 = scmp.eq.s32.totalorder %s22, 0
      %p173 = por %p171, %p172
      %s175 = sadd.s32 %s174, 1
      %p178 = scmp.eq.s32.totalorder %s16, 1
      %p179 = scmp.ne.s32.totalorder %s174, %s176
      %p180 = scmp.eq.s32.totalorder %s16, 0
      %p181 = por %p179, %p180
      %p182 = scmp.ne.s32.totalorder %s174, %s176
      %p183 = scmp.eq.s32.totalorder %s21, 1
      %p184 = por %p182, %p183
      %p185 = scmp.ne.s32.totalorder %s176, %s177
      %p186 = scmp.eq.s32.totalorder %s21, 0
      %p187 = por %p185, %p186
      %p188 = scmp.ne.s32.totalorder %s176, %s177
      %p189 = scmp.eq.s32.totalorder %s22, 1
      %p190 = por %p188, %p189
      %p192 = scmp.ne.s32.totalorder %s177, %s191
      %p193 = scmp.eq.s32.totalorder %s22, 0
      %p194 = por %p192, %p193
      %s196 = sadd.s32 %s195, 1
      %p199 = scmp.eq.s32.totalorder %s16, 1
      %p200 = scmp.ne.s32.totalorder %s195, %s197
      %p201 = scmp.eq.s32.totalorder %s16, 0
      %p202 = por %p200, %p201
      %p203 = scmp.ne.s32.totalorder %s195, %s197
      %p204 = scmp.eq.s32.totalorder %s21, 1
      %p205 = por %p203, %p204
      %p206 = scmp.ne.s32.totalorder %s197, %s198
      %p207 = scmp.eq.s32.totalorder %s21, 0
      %p208 = por %p206, %p207
      %p209 = scmp.ne.s32.totalorder %s197, %s198
      %p210 = scmp.eq.s32.totalorder %s22, 1
      %p211 = por %p209, %p210
      %p213 = scmp.ne.s32.totalorder %s198, %s212
      %p214 = scmp.eq.s32.totalorder %s22, 0
      %p215 = por %p213, %p214
      %s217 = sadd.s32 %s216, 1
      %p220 = scmp.eq.s32.totalorder %s16, 1
      %p221 = scmp.ne.s32.totalorder %s216, %s218
      %p222 = scmp.eq.s32.totalorder %s16, 0
      %p223 = por %p221, %p222
      %p224 = scmp.ne.s32.totalorder %s216, %s218
      %p225 = scmp.eq.s32.totalorder %s21, 1
      %p226 = por %p224, %p225
      %p227 = scmp.ne.s32.totalorder %s218, %s219
      %p228 = scmp.eq.s32.totalorder %s21, 0
      %p229 = por %p227, %p228
      %p230 = scmp.ne.s32.totalorder %s218, %s219
      %p231 = scmp.eq.s32.totalorder %s22, 1
      %p232 = por %p230, %p231
      %p234 = scmp.ne.s32.totalorder %s219, %s233
      %p235 = scmp.eq.s32.totalorder %s22, 0
      %p236 = por %p234, %p235
      %s237 = ssub.s32 %s23, %s35
      %s238 = ssub.s32 %s24, %s31
      %s239 = sor.u32 %s237, %s238
      %p240 = scmp.eq.s32.totalorder %s239, 0
      %s242 = sadd.s32 %s241, 1
      %s243 = scalar_select %p240, %s241, %s242
      %p246 = pneg %p240
      %p247 = scmp.eq.s32.totalorder %s16, 1
      %p248 = por %p246, %p247
      %p249 = scmp.ne.s32.totalorder %s241, %s244
      %p250 = scmp.eq.s32.totalorder %s16, 0
      %p251 = por %p249, %p250
      %p252 = scmp.ne.s32.totalorder %s241, %s244
      %p253 = scmp.eq.s32.totalorder %s21, 1
      %p254 = por %p252, %p253
      %p255 = scmp.ne.s32.totalorder %s244, %s245
      %p256 = scmp.eq.s32.totalorder %s21, 0
      %p257 = por %p255, %p256
      %p258 = scmp.ne.s32.totalorder %s244, %s245
      %p259 = scmp.eq.s32.totalorder %s22, 1
      %p260 = por %p258, %p259
      %p262 = scmp.ne.s32.totalorder %s245, %s261
      %p263 = scmp.eq.s32.totalorder %s22, 0
      %p264 = por %p262, %p263
      %p265 = scmp.le.s32.totalorder 1, %s16
      %p266 = scmp.lt.s32.totalorder %s16, 3
      %p267 = pnand %p265, %p266
      %p268 = pneg %p267
      // Predicated region
      $region9: #{knowledge_reasoner_forward.10} parent=5 // pred_check
        _
      $region10: #{knowledge_reasoner_forward.10} parent=5 // pred_check_branch
        %270 = sbr.rel (%p267) target = $region12
      $region11: #{knowledge_reasoner_forward.10} parent=5 // pred_region
        %s271 = ssub.s32 %s16, 1
        // Predicated region
        $region13: #{knowledge_reasoner_forward.10} parent=11 // pred_check
          %p272 = pneg %p103
        $region14: #{knowledge_reasoner_forward.10} parent=11 // pred_check_branch
          %274 = sbr.rel (%p272) target = $region16
        $region15: #{knowledge_reasoner_forward.10} parent=11 // pred_region
          _
        $region16: #{knowledge_reasoner_forward.10} parent=11 // pred_fallthru
          _
        // Predicated region
        $region17: #{knowledge_reasoner_forward.10} parent=11 // pred_check
          %p275 = pneg %p124
        $region18: #{knowledge_reasoner_forward.10} parent=11 // pred_check_branch
          %277 = sbr.rel (%p275) target = $region20
        $region19: #{knowledge_reasoner_forward.10} parent=11 // pred_region
          _
        $region20: #{knowledge_reasoner_forward.10} parent=11 // pred_fallthru
          _
        // Predicated region
        $region21: #{knowledge_reasoner_forward.10} parent=11 // pred_check
          %p278 = pneg %p145
        $region22: #{knowledge_reasoner_forward.10} parent=11 // pred_check_branch
          %280 = sbr.rel (%p278) target = $region24
        $region23: #{knowledge_reasoner_forward.10} parent=11 // pred_region
          _
        $region24: #{knowledge_reasoner_forward.10} parent=11 // pred_fallthru
          _
        // Predicated region
        $region25: #{knowledge_reasoner_forward.10} parent=11 // pred_check
          %p281 = pneg %p166
        $region26: #{knowledge_reasoner_forward.10} parent=11 // pred_check_branch
          %283 = sbr.rel (%p281) target = $region28
        $region27: #{knowledge_reasoner_forward.10} parent=11 // pred_region
          _
        $region28: #{knowledge_reasoner_forward.10} parent=11 // pred_fallthru
          _
        // Predicated region
        $region29: #{knowledge_reasoner_forward.10} parent=11 // pred_check
          %p284 = pneg %p187
        $region30: #{knowledge_reasoner_forward.10} parent=11 // pred_check_branch
          %286 = sbr.rel (%p284) target = $region32
        $region31: #{knowledge_reasoner_forward.10} parent=11 // pred_region
          _
        $region32: #{knowledge_reasoner_forward.10} parent=11 // pred_fallthru
          _
        // Predicated region
        $region33: #{knowledge_reasoner_forward.10} parent=11 // pred_check
          %p287 = pneg %p208
        $region34: #{knowledge_reasoner_forward.10} parent=11 // pred_check_branch
          %289 = sbr.rel (%p287) target = $region36
        $region35: #{knowledge_reasoner_forward.10} parent=11 // pred_region
          %s291 = ssub.s32 512, 512
          %292 = vsyncadd [#allocation3], %s291
          %s293 = sshll.u32 [#allocation2], 4
          %s294 = int_to_ptr.vmem [resolvable:$true] %s293
          %299 = dma.hbm_to_vmem [thread:$0]  %s7, 512, %s294, [#allocation3], 128, 128, 8
        $region36: #{knowledge_reasoner_forward.10} parent=11 // pred_fallthru
          _
        // Predicated region
        $region37: #{knowledge_reasoner_forward.10} parent=11 // pred_check
          %p300 = pneg %p229
        $region38: #{knowledge_reasoner_forward.10} parent=11 // pred_check_branch
          %302 = sbr.rel (%p300) target = $region40
        $region39: #{knowledge_reasoner_forward.10} parent=11 // pred_region
          _
        $region40: #{knowledge_reasoner_forward.10} parent=11 // pred_fallthru
          _
      $region12: #{knowledge_reasoner_forward.10} parent=5 // pred_fallthru
        _
      %p303 = scmp.lt.s32.totalorder %s16, 2
      // Predicated region
      $region41: #{knowledge_reasoner_forward.10} parent=5 // pred_check
        %p304 = pneg %p303
      $region42: #{knowledge_reasoner_forward.10} parent=5 // pred_check_branch
        %306 = sbr.rel (%p304) target = $region44
      $region43: #{knowledge_reasoner_forward.10} parent=5 // pred_region
        // Predicated region
        $region45: #{knowledge_reasoner_forward.10} parent=43 // pred_check
          %p307 = pneg %p50
        $region46: #{knowledge_reasoner_forward.10} parent=43 // pred_check_branch
          %309 = sbr.rel (%p307) target = $region48
        $region47: #{knowledge_reasoner_forward.10} parent=43 // pred_region
          %p310 = scmp.lt.s32.totalorder %s23, 1
          %s311 = scalar_select %p310, %s23, 1
          %p312 = scmp.lt.s32.totalorder %s24, 0
          %s313 = scalar_select %p312, %s24, 0
          %s314 = sadd.s32 %s313, %s311
          %s315 = smul.addr %s314, 8
          %s316 = scalar_lea.vmem %s0, %s315
        $region48: #{knowledge_reasoner_forward.10} parent=43 // pred_fallthru
          _
        // Predicated region
        $region49: #{knowledge_reasoner_forward.10} parent=43 // pred_check
          %p317 = pneg %p76
        $region50: #{knowledge_reasoner_forward.10} parent=43 // pred_check_branch
          %319 = sbr.rel (%p317) target = $region52
        $region51: #{knowledge_reasoner_forward.10} parent=43 // pred_region
          %p320 = scmp.lt.s32.totalorder %s23, 1
          %s321 = scalar_select %p320, %s23, 1
          %s322 = scalar_lea.vmem %s1, %s321
        $region52: #{knowledge_reasoner_forward.10} parent=43 // pred_fallthru
          _
      $region44: #{knowledge_reasoner_forward.10} parent=5 // pred_fallthru
        _
      %p323 = scmp.le.s32.totalorder 1, %s16
      %p324 = scmp.lt.s32.totalorder %s16, 3
      %p325 = pnand %p323, %p324
      %p326 = pneg %p325
      // Predicated region
      $region53: #{knowledge_reasoner_forward.10} parent=5 // pred_check
        _
      $region54: #{knowledge_reasoner_forward.10} parent=5 // pred_check_branch
        %328 = sbr.rel (%p325) target = $region56
      $region55: #{knowledge_reasoner_forward.10} parent=5 // pred_region
        %s329 = ssub.s32 %s16, 1
        // Predicated region
        $region57: #{knowledge_reasoner_forward.10} parent=55 // pred_check
          %p330 = pneg %p208
        $region58: #{knowledge_reasoner_forward.10} parent=55 // pred_check_branch
          %332 = sbr.rel (%p330) target = $region60
        $region59: #{knowledge_reasoner_forward.10} parent=55 // pred_region
          %333 = dma.done [#allocation3], 512
        $region60: #{knowledge_reasoner_forward.10} parent=55 // pred_fallthru
          _
        %p334 = scmp.lt.s32.totalorder %s25, 1
        %s335 = scalar_select %p334, %s25, 1
        %p336 = scmp.lt.s32.totalorder %s26, 0
        %s337 = scalar_select %p336, %s26, 0
        %s338 = sadd.s32 %s337, %s335
        %s339 = smul.addr %s338, 8
        %s340 = scalar_lea.vmem %s0, %s339
        %p341 = pneg %p56
        %p342 = pneg %p53
        %p343 = scmp.lt.s32.totalorder %s25, 1
        %s344 = scalar_select %p343, %s25, 1
        %s345 = scalar_lea.vmem %s1, %s344
        %p346 = pneg %p82
        %p347 = pneg %p79
        %p348 = pneg %p103
        %p349 = pneg %p100
        %p350 = pneg %p124
        %p351 = pneg %p121
        %p352 = pneg %p145
        %p353 = pneg %p142
        %p354 = pneg %p166
        %p355 = pneg %p163
        %p356 = pneg %p187
        %p357 = pneg %p184
        %p358 = pneg %p208
        %p359 = pneg %p205
        %p360 = pneg %p229
        %p361 = pneg %p226
        %p362 = pneg %p257
        %p363 = pneg %p254
        %p364 = scmp.lt.s32.totalorder %s25, 1
        %s365 = scalar_select %p364, %s25, 1
        %p366 = scmp.lt.s32.totalorder %s26, 0
        %s367 = scalar_select %p366, %s26, 0
        %s368 = sadd.s32 %s367, %s365
        %s369 = smul.addr %s368, 8
        %s370 = scalar_lea.vmem %s9, %s369
        %p371 = scmp.lt.s32.totalorder %s25, 1
        %s372 = scalar_select %p371, %s25, 1
        %p373 = scmp.lt.s32.totalorder %s26, 0
        %s374 = scalar_select %p373, %s26, 0
        %s375 = sadd.s32 %s374, %s372
        %s376 = smul.addr %s375, 8
        %s377 = scalar_lea.vmem %s0, %s376
        %p378 = scmp.lt.s32.totalorder %s25, 1
        %s379 = scalar_select %p378, %s25, 1
        %s380 = scalar_lea.vmem %s1, %s379
        %p381 = scmp.lt.s32.totalorder %s25, 1
        %s382 = scalar_select %p381, %s25, 1
        %p383 = scmp.lt.s32.totalorder %s26, 0
        %s384 = scalar_select %p383, %s26, 0
        %s385 = sadd.s32 %s384, %s382
        %s386 = smul.addr %s385, 8
        %s387 = scalar_lea.vmem %s9, %s386
        %v388 = vld [vmem:[%s377] sm:$0xff]
        %v389 = vld [vmem:[%s380] sm:$0x1]
        %v390 = vld [vmem:[%s2] sm:$0xff]
        %v391 = vld [vmem:[%s2 + $0x8] sm:$0xff]
        %v392 = vld [vmem:[%s2 + $0x10] sm:$0xff]
        %v393 = vld [vmem:[%s2 + $0x18] sm:$0xff]
        %v394 = vld [vmem:[%s3] sm:$0xff]
        %v395 = vld [vmem:[%s3 + $0x8] sm:$0xff]
        %v396 = vld [vmem:[%s3 + $0x10] sm:$0xff]
        %v397 = vld [vmem:[%s3 + $0x18] sm:$0xff]
        %vm398 = vcmask 261120
        %v400 = vsel %vm398, %v389, 0
        %402 = vmatprep.subr.mxu0 0.0
        %403 = vmatpush1.msra.mxu0 0.0
        %404 = vmatprep.subr.mxu0 0.0
        %405 = vmatpush1.msra.mxu0 0.0
        %406 = vmatprep.subr.mxu0 0.0
        %407 = vmatpush1.msra.mxu0 0.0
        %408 = vmatprep.subr.mxu0 0.0
        %409 = vmatpush1.msra.mxu0 0.0
        %410 = vmatprep.subr.mxu0 0.0
        %411 = vmatpush1.msra.mxu0 0.0
        %412 = vmatprep.subr.mxu0 0.0
        %413 = vmatpush1.msra.mxu0 0.0
        %414 = vmatprep.subr.mxu0 0.0
        %415 = vmatpush1.msra.mxu0 0.0
        %416 = vmatprep.subr.mxu0 0.0
        %417 = vmatpush1.msra.mxu0 0.0
        %418 = vmatprep.subr.mxu0 0.0
        %419 = vmatpush1.msra.mxu0 0.0
        %420 = vmatprep.subr.mxu0 0.0
        %421 = vmatpush1.msra.mxu0 0.0
        %422 = vmatprep.subr.mxu0 0.0
        %423 = vmatpush1.msra.mxu0 0.0
        %424 = vmatprep.subr.mxu0 0.0
        %425 = vmatpush1.msra.mxu0 0.0
        %426 = vmatprep.subr.mxu0 0.0
        %427 = vmatpush1.msra.mxu0 %v397
        %428 = vmatprep.subr.mxu0 0.0
        %429 = vmatpush1.msra.mxu0 %v396
        %430 = vmatprep.subr.mxu0 0.0
        %431 = vmatpush1.msra.mxu0 %v395
        %432 = vmatprep.subr.mxu0 0.0
        %433 = vmatpush1.msra.mxu0 %v394
        %434 = vmatprep.subr.mxu0 0.0
        %435 = vmatpush2.msra.mxu0 0.0
        %436 = vmatprep.subr.mxu0 0.0
        %437 = vmatpush2.msra.mxu0 0.0
        %438 = vmatprep.subr.mxu0 0.0
        %439 = vmatpush2.msra.mxu0 0.0
        %440 = vmatprep.subr.mxu0 0.0
        %441 = vmatpush2.msra.mxu0 0.0
        %442 = vmatprep.subr.mxu0 0.0
        %443 = vmatpush2.msra.mxu0 0.0
        %444 = vmatprep.subr.mxu0 0.0
        %445 = vmatpush2.msra.mxu0 0.0
        %446 = vmatprep.subr.mxu0 0.0
        %447 = vmatpush2.msra.mxu0 0.0
        %448 = vmatprep.subr.mxu0 0.0
        %449 = vmatpush2.msra.mxu0 0.0
        %450 = vmatprep.subr.mxu0 0.0
        %451 = vmatpush2.msra.mxu0 0.0
        %452 = vmatprep.subr.mxu0 0.0
        %453 = vmatpush2.msra.mxu0 0.0
        %454 = vmatprep.subr.mxu0 0.0
        %455 = vmatpush2.msra.mxu0 0.0
        %456 = vmatprep.subr.mxu0 0.0
        %457 = vmatpush2.msra.mxu0 0.0
        %458 = vmatprep.subr.mxu0 0.0
        %459 = vmatpush2.msra.mxu0 0.0
        %460 = vmatprep.subr.mxu0 0.0
        %461 = vmatpush2.msra.mxu0 0.0
        %462 = vmatprep.subr.mxu0 0.0
        %463 = vmatpush2.msra.mxu0 0.0
        %464 = vmatprep.subr.mxu0 0.0
        %465 = vmatpush2.msra.mxu0 0.0
        %466 = vmatprep.mubr.f32.mxu0 0.0
        %467 = vmatmul.mubr.f32.gmra.mxu0 %v400
        %v468 = vpop.f32.mrf.mxu0
        %v469 = vadd.f32 0.0, %v468
        %v470 = vpop.f32.mrf.mxu0
        %471 = vdwg.mxu0
        %v472 = vlaneseq
        %v473 = vshrl.u32 %v472, 7
        %v474 = vsub.s32 0, %v473
        %v475 = vrot.slane %v469, %v474
        %v477 = vsel %vm398, %v388, 0
        %479 = vmatprep.subr.mxu0 0.0
        %480 = vmatpush1.msra.mxu0 0.0
        %481 = vmatprep.subr.mxu0 0.0
        %482 = vmatpush1.msra.mxu0 0.0
        %483 = vmatprep.subr.mxu0 0.0
        %484 = vmatpush1.msra.mxu0 0.0
        %485 = vmatprep.subr.mxu0 0.0
        %486 = vmatpush1.msra.mxu0 0.0
        %487 = vmatprep.subr.mxu0 0.0
        %488 = vmatpush1.msra.mxu0 0.0
        %489 = vmatprep.subr.mxu0 0.0
        %490 = vmatpush1.msra.mxu0 0.0
        %491 = vmatprep.subr.mxu0 0.0
        %492 = vmatpush1.msra.mxu0 0.0
        %493 = vmatprep.subr.mxu0 0.0
        %494 = vmatpush1.msra.mxu0 0.0
        %495 = vmatprep.subr.mxu0 0.0
        %496 = vmatpush1.msra.mxu0 0.0
        %497 = vmatprep.subr.mxu0 0.0
        %498 = vmatpush1.msra.mxu0 0.0
        %499 = vmatprep.subr.mxu0 0.0
        %500 = vmatpush1.msra.mxu0 0.0
        %501 = vmatprep.subr.mxu0 0.0
        %502 = vmatpush1.msra.mxu0 0.0
        %503 = vmatprep.subr.mxu0 0.0
        %504 = vmatpush1.msra.mxu0 %v393
        %505 = vmatprep.subr.mxu0 0.0
        %506 = vmatpush1.msra.mxu0 %v392
        %507 = vmatprep.subr.mxu0 0.0
        %508 = vmatpush1.msra.mxu0 %v391
        %509 = vmatprep.subr.mxu0 0.0
        %510 = vmatpush1.msra.mxu0 %v390
        %511 = vmatprep.subr.mxu0 0.0
        %512 = vmatpush2.msra.mxu0 0.0
        %513 = vmatprep.subr.mxu0 0.0
        %514 = vmatpush2.msra.mxu0 0.0
        %515 = vmatprep.subr.mxu0 0.0
        %516 = vmatpush2.msra.mxu0 0.0
        %517 = vmatprep.subr.mxu0 0.0
        %518 = vmatpush2.msra.mxu0 0.0
        %519 = vmatprep.subr.mxu0 0.0
        %520 = vmatpush2.msra.mxu0 0.0
        %521 = vmatprep.subr.mxu0 0.0
        %522 = vmatpush2.msra.mxu0 0.0
        %523 = vmatprep.subr.mxu0 0.0
        %524 = vmatpush2.msra.mxu0 0.0
        %525 = vmatprep.subr.mxu0 0.0
        %526 = vmatpush2.msra.mxu0 0.0
        %527 = vmatprep.subr.mxu0 0.0
        %528 = vmatpush2.msra.mxu0 0.0
        %529 = vmatprep.subr.mxu0 0.0
        %530 = vmatpush2.msra.mxu0 0.0
        %531 = vmatprep.subr.mxu0 0.0
        %532 = vmatpush2.msra.mxu0 0.0
        %533 = vmatprep.subr.mxu0 0.0
        %534 = vmatpush2.msra.mxu0 0.0
        %535 = vmatprep.subr.mxu0 0.0
        %536 = vmatpush2.msra.mxu0 0.0
        %537 = vmatprep.subr.mxu0 0.0
        %538 = vmatpush2.msra.mxu0 0.0
        %539 = vmatprep.subr.mxu0 0.0
        %540 = vmatpush2.msra.mxu0 0.0
        %541 = vmatprep.subr.mxu0 0.0
        %542 = vmatpush2.msra.mxu0 0.0
        %543 = vmatprep.mubr.f32.mxu0 0.0
        %544 = vmatmul.mubr.f32.gmra.mxu0 %v477
        %v545 = vpop.f32.mrf.mxu0
        %v546 = vadd.f32 %v475, %v545
        %v547 = vpop.f32.mrf.mxu0
        %548 = vdwg.mxu0
        %v549 = vld [vmem:[%s4] sm:$0x1]
        %v551 = vlaneseq
        %v552 = vshrl.u32 %v551, 7
        %v553 = vsub.s32 0, %v552
        %v554 = vrot.slane %v549, %v553
        %v556 = vadd.f32 %v546, %v554
        %v557 = vld [vmem:[%s5] sm:$0x1]
        %v558 = vld [vmem:[%s6] sm:$0x1]
        %v559 = vsel %vm398, %v556, 0.0
        %560 = vadd.xlane.f32.xlu0 %v559
        %v561 = vpop.xlane.xlu0 %560
        %v562 = vrcp.pop 32.0
        %v563 = vmul.f32 %v561, %v562
        %v564 = vsub.f32 %v556, %v563
        %v565 = vmul.f32 %v564, %v564
        %v566 = vsel %vm398, %v565, 0.0
        %567 = vadd.xlane.f32.xlu0 %v566
        %v568 = vpop.xlane.xlu0 %567
        %v569 = vmul.f32 %v568, %v562
        %v570 = vadd.f32 %v569, 1e-05
        %v571 = vrsqrt.pop %v570
        %v572 = vmul.f32 %v564, %v571
        %v574 = vlaneseq
        %v575 = vshrl.u32 %v574, 7
        %v576 = vsub.s32 0, %v575
        %v577 = vrot.slane %v557, %v576
        %v579 = vmul.f32 %v572, %v577
        %v581 = vlaneseq
        %v582 = vshrl.u32 %v581, 7
        %v583 = vsub.s32 0, %v582
        %v584 = vrot.slane %v558, %v583
        %v586 = vadd.f32 %v579, %v584
        %v587 = vmul.f32 %v586, 0.5
        %v588 = vmul.f32 %v586, 0.70710677
        %v589 = verf.f32.pop %v588
        %v590 = vadd.f32 %v589, 1.0
        %v591 = vmul.f32 %v587, %v590
        %v592 = vld [vmem:[#allocation2] sm:$0xff]
        %v593 = vld [vmem:[#allocation2 + $0x8] sm:$0xff]
        %v594 = vld [vmem:[#allocation2 + $0x10] sm:$0xff]
        %v595 = vld [vmem:[#allocation2 + $0x18] sm:$0xff]
        %v596 = vld [vmem:[%s8] sm:$0x1]
        %v598 = vlaneseq
        %v599 = vshrl.u32 %v598, 7
        %v600 = vsub.s32 0, %v599
        %v601 = vrot.slane %v596, %v600
        %v604 = vsel %vm398, %v591, 0
        %606 = vmatprep.subr.mxu0 0.0
        %607 = vmatpush1.msra.mxu0 0.0
        %608 = vmatprep.subr.mxu0 0.0
        %609 = vmatpush1.msra.mxu0 0.0
        %610 = vmatprep.subr.mxu0 0.0
        %611 = vmatpush1.msra.mxu0 0.0
        %612 = vmatprep.subr.mxu0 0.0
        %613 = vmatpush1.msra.mxu0 0.0
        %614 = vmatprep.subr.mxu0 0.0
        %615 = vmatpush1.msra.mxu0 0.0
        %616 = vmatprep.subr.mxu0 0.0
        %617 = vmatpush1.msra.mxu0 0.0
        %618 = vmatprep.subr.mxu0 0.0
        %619 = vmatpush1.msra.mxu0 0.0
        %620 = vmatprep.subr.mxu0 0.0
        %621 = vmatpush1.msra.mxu0 0.0
        %622 = vmatprep.subr.mxu0 0.0
        %623 = vmatpush1.msra.mxu0 0.0
        %624 = vmatprep.subr.mxu0 0.0
        %625 = vmatpush1.msra.mxu0 0.0
        %626 = vmatprep.subr.mxu0 0.0
        %627 = vmatpush1.msra.mxu0 0.0
        %628 = vmatprep.subr.mxu0 0.0
        %629 = vmatpush1.msra.mxu0 0.0
        %630 = vmatprep.subr.mxu0 0.0
        %631 = vmatpush1.msra.mxu0 %v595
        %632 = vmatprep.subr.mxu0 0.0
        %633 = vmatpush1.msra.mxu0 %v594
        %634 = vmatprep.subr.mxu0 0.0
        %635 = vmatpush1.msra.mxu0 %v593
        %636 = vmatprep.subr.mxu0 0.0
        %637 = vmatpush1.msra.mxu0 %v592
        %638 = vmatprep.subr.mxu0 0.0
        %639 = vmatpush2.msra.mxu0 0.0
        %640 = vmatprep.subr.mxu0 0.0
        %641 = vmatpush2.msra.mxu0 0.0
        %642 = vmatprep.subr.mxu0 0.0
        %643 = vmatpush2.msra.mxu0 0.0
        %644 = vmatprep.subr.mxu0 0.0
        %645 = vmatpush2.msra.mxu0 0.0
        %646 = vmatprep.subr.mxu0 0.0
        %647 = vmatpush2.msra.mxu0 0.0
        %648 = vmatprep.subr.mxu0 0.0
        %649 = vmatpush2.msra.mxu0 0.0
        %650 = vmatprep.subr.mxu0 0.0
        %651 = vmatpush2.msra.mxu0 0.0
        %652 = vmatprep.subr.mxu0 0.0
        %653 = vmatpush2.msra.mxu0 0.0
        %654 = vmatprep.subr.mxu0 0.0
        %655 = vmatpush2.msra.mxu0 0.0
        %656 = vmatprep.subr.mxu0 0.0
        %657 = vmatpush2.msra.mxu0 0.0
        %658 = vmatprep.subr.mxu0 0.0
        %659 = vmatpush2.msra.mxu0 0.0
        %660 = vmatprep.subr.mxu0 0.0
        %661 = vmatpush2.msra.mxu0 0.0
        %662 = vmatprep.subr.mxu0 0.0
        %663 = vmatpush2.msra.mxu0 0.0
        %664 = vmatprep.subr.mxu0 0.0
        %665 = vmatpush2.msra.mxu0 0.0
        %666 = vmatprep.subr.mxu0 0.0
        %667 = vmatpush2.msra.mxu0 0.0
        %668 = vmatprep.subr.mxu0 0.0
        %669 = vmatpush2.msra.mxu0 0.0
        %670 = vmatprep.mubr.f32.mxu0 0.0
        %671 = vmatmul.mubr.f32.gmra.mxu0 %v604
        %v672 = vpop.f32.mrf.mxu0
        %v673 = vadd.f32 %v601, %v672
        %v674 = vpop.f32.mrf.mxu0
        %675 = vdwg.mxu0
        %676 = vst.msk [vmem:[%s387] sm:$0xff] %vm398, %v673
        %p677 = scmp.lt.s32.totalorder %s25, 1
        %s678 = scalar_select %p677, %s25, 1
        %p679 = scmp.lt.s32.totalorder %s26, 0
        %s680 = scalar_select %p679, %s26, 0
        %s681 = sadd.s32 %s680, %s678
        %s682 = smul.addr %s681, 8
        %s683 = scalar_lea.vmem %s9, %s682
        // Predicated region
        $region61: #{knowledge_reasoner_forward.10} parent=55 // pred_check
          %p684 = pneg %p254
        $region62: #{knowledge_reasoner_forward.10} parent=55 // pred_check_branch
          %686 = sbr.rel (%p684) target = $region64
        $region63: #{knowledge_reasoner_forward.10} parent=55 // pred_region
          _
        $region64: #{knowledge_reasoner_forward.10} parent=55 // pred_fallthru
          _
      $region56: #{knowledge_reasoner_forward.10} parent=5 // pred_fallthru
        _
      %p687 = scmp.le.s32.totalorder 2, %s16
      // Predicated region
      $region65: #{knowledge_reasoner_forward.10} parent=5 // pred_check
        %p688 = pneg %p687
      $region66: #{knowledge_reasoner_forward.10} parent=5 // pred_check_branch
        %690 = sbr.rel (%p688) target = $region68
      $region67: #{knowledge_reasoner_forward.10} parent=5 // pred_region
        %s691 = ssub.s32 %s16, 2
        // Predicated region
        $region69: #{knowledge_reasoner_forward.10} parent=67 // pred_check
          %p692 = pneg %p260
        $region70: #{knowledge_reasoner_forward.10} parent=67 // pred_check_branch
          %694 = sbr.rel (%p692) target = $region72
        $region71: #{knowledge_reasoner_forward.10} parent=67 // pred_region
          %p695 = scmp.lt.s32.totalorder %s27, 1
          %s696 = scalar_select %p695, %s27, 1
          %p697 = scmp.lt.s32.totalorder %s28, 0
          %s698 = scalar_select %p697, %s28, 0
          %s699 = sadd.s32 %s698, %s696
          %s700 = smul.addr %s699, 8
          %s701 = scalar_lea.vmem %s9, %s700
        $region72: #{knowledge_reasoner_forward.10} parent=67 // pred_fallthru
          _
      $region68: #{knowledge_reasoner_forward.10} parent=5 // pred_fallthru
        _
    $region6: #{knowledge_reasoner_forward.10} parent=1 // loop_footer
      %s20 = sadd.s32 1, %s16
    $region7: #{knowledge_reasoner_forward.10} parent=1 // loop_footer_branch
      %15 = sbr.rel target = $region3
    $region8: #{knowledge_reasoner_forward.10} parent=1 // loop_exit
      _
    %702 = vsyncpa [#allocation3], 1
    %s703 = scalar_lea.sflag [#allocation3], 1
    %704 = vsyncpa %s703, 1

// kernel: knowledge_reasoner_forward.11
$region0: #{knowledge_reasoner_forward.11}
  #allocation0 [shape = 'u32[]', space=smem, size = 0x4, offset = 0x4, fixed_abs, tag = 'smem constant byte address 0x4 - core index']
  #allocation1 [shape = 'u32[144,128]{1,0:T(1,128)}', space=vmem, size = 0x12000, scoped, tag = 'internal scratch']
  %s0 = inlined_call_operand.vmem [shape: f32[2,8,32], index: 0, kind: input, shape index: {}]
  %s1 = inlined_call_operand.vmem [shape: f32[32,96], index: 1, kind: input, shape index: {}]
  %s2 = inlined_call_operand.vmem [shape: f32[1,96], index: 2, kind: input, shape index: {}]
  %s3 = inlined_call_operand.vmem [shape: f32[32,32], index: 3, kind: input, shape index: {}]
  %s4 = inlined_call_operand.vmem [shape: f32[1,32], index: 4, kind: input, shape index: {}]
  %s5 = inlined_call_operand.vmem [shape: f32[1,32], index: 5, kind: input, shape index: {}]
  %s6 = inlined_call_operand.vmem [shape: f32[1,32], index: 6, kind: input, shape index: {}]
  %s7 = inlined_call_operand.vmem [shape: f32[2,8,32], index: 7, kind: output, shape index: {}]
  %s8 = sld [smem:[#allocation0]]
  $region61: #{knowledge_reasoner_forward.11} parent=0
    _
  %s10 = ssub.s32 1, %s8
  %s11 = scalar_select 0, %s10, %s8
  loop: start=0, step=1, limit=4
  $region2: #{knowledge_reasoner_forward.11} parent=0 // loop_pre_header
    _
  $region3: #{knowledge_reasoner_forward.11} parent=0 // loop_header
    %s13 = sphi 0, %s17
    %p14 = scmp.ge.s32.totalorder %s13, 4
    %s23 = sphi 0, %s25
    %s26 = sphi 0, %s23
    %s27 = sphi 0, %s26
    %s43 = sphi 0, %s27
    %s47 = sphi 0, %s47
    %s49 = sphi 0, %s47
    %s50 = sphi 0, %s49
    %s64 = sphi 0, %s50
    %s68 = sphi 0, %s68
    %s70 = sphi 0, %s68
    %s71 = sphi 0, %s70
    %s85 = sphi 0, %s71
    %s89 = sphi 0, %s89
    %s91 = sphi 0, %s89
    %s92 = sphi 0, %s91
    %s106 = sphi 0, %s92
    %s110 = sphi 0, %s110
    %s112 = sphi 0, %s110
    %s113 = sphi 0, %s112
    %s127 = sphi 0, %s113
    %s131 = sphi 0, %s131
    %s133 = sphi 0, %s131
    %s134 = sphi 0, %s133
    %s148 = sphi 0, %s134
    %s152 = sphi 0, %s152
    %s154 = sphi 0, %s152
    %s155 = sphi 0, %s154
    %s169 = sphi 0, %s155
    %s175 = sphi 0, %s177
    %s178 = sphi 0, %s175
    %s179 = sphi 0, %s178
    %s195 = sphi 0, %s179
  $region4: #{knowledge_reasoner_forward.11} parent=0 // loop_header_branch
    %16 = sbr.rel (%p14) target = $region8
  $region5: #{knowledge_reasoner_forward.11} parent=0 // loop_body
    %s18 = ssub.s32 %s13, 1
    %s19 = ssub.s32 %s13, 2
    %s20 = sadd.s32 %s13, 1
    %s21 = ssub.s32 %s13, %s20
    %p22 = scmp.eq.s32.totalorder %s21, 0
    %s24 = sadd.s32 %s23, 1
    %s25 = scalar_select %p22, %s23, %s24
    %p28 = pneg %p22
    %p29 = scmp.eq.s32.totalorder %s13, 1
    %p30 = por %p28, %p29
    %p31 = scmp.ne.s32.totalorder %s23, %s26
    %p32 = scmp.eq.s32.totalorder %s13, 0
    %p33 = por %p31, %p32
    %p34 = scmp.ne.s32.totalorder %s23, %s26
    %p35 = scmp.eq.s32.totalorder %s18, 1
    %p36 = por %p34, %p35
    %p37 = scmp.ne.s32.totalorder %s26, %s27
    %p38 = scmp.eq.s32.totalorder %s18, 0
    %p39 = por %p37, %p38
    %p40 = scmp.ne.s32.totalorder %s26, %s27
    %p41 = scmp.eq.s32.totalorder %s19, 1
    %p42 = por %p40, %p41
    %p44 = scmp.ne.s32.totalorder %s27, %s43
    %p45 = scmp.eq.s32.totalorder %s19, 0
    %p46 = por %p44, %p45
    %s48 = sadd.s32 %s47, 1
    %p51 = scmp.eq.s32.totalorder %s13, 1
    %p52 = scmp.ne.s32.totalorder %s47, %s49
    %p53 = scmp.eq.s32.totalorder %s13, 0
    %p54 = por %p52, %p53
    %p55 = scmp.ne.s32.totalorder %s47, %s49
    %p56 = scmp.eq.s32.totalorder %s18, 1
    %p57 = por %p55, %p56
    %p58 = scmp.ne.s32.totalorder %s49, %s50
    %p59 = scmp.eq.s32.totalorder %s18, 0
    %p60 = por %p58, %p59
    %p61 = scmp.ne.s32.totalorder %s49, %s50
    %p62 = scmp.eq.s32.totalorder %s19, 1
    %p63 = por %p61, %p62
    %p65 = scmp.ne.s32.totalorder %s50, %s64
    %p66 = scmp.eq.s32.totalorder %s19, 0
    %p67 = por %p65, %p66
    %s69 = sadd.s32 %s68, 1
    %p72 = scmp.eq.s32.totalorder %s13, 1
    %p73 = scmp.ne.s32.totalorder %s68, %s70
    %p74 = scmp.eq.s32.totalorder %s13, 0
    %p75 = por %p73, %p74
    %p76 = scmp.ne.s32.totalorder %s68, %s70
    %p77 = scmp.eq.s32.totalorder %s18, 1
    %p78 = por %p76, %p77
    %p79 = scmp.ne.s32.totalorder %s70, %s71
    %p80 = scmp.eq.s32.totalorder %s18, 0
    %p81 = por %p79, %p80
    %p82 = scmp.ne.s32.totalorder %s70, %s71
    %p83 = scmp.eq.s32.totalorder %s19, 1
    %p84 = por %p82, %p83
    %p86 = scmp.ne.s32.totalorder %s71, %s85
    %p87 = scmp.eq.s32.totalorder %s19, 0
    %p88 = por %p86, %p87
    %s90 = sadd.s32 %s89, 1
    %p93 = scmp.eq.s32.totalorder %s13, 1
    %p94 = scmp.ne.s32.totalorder %s89, %s91
    %p95 = scmp.eq.s32.totalorder %s13, 0
    %p96 = por %p94, %p95
    %p97 = scmp.ne.s32.totalorder %s89, %s91
    %p98 = scmp.eq.s32.totalorder %s18, 1
    %p99 = por %p97, %p98
    %p100 = scmp.ne.s32.totalorder %s91, %s92
    %p101 = scmp.eq.s32.totalorder %s18, 0
    %p102 = por %p100, %p101
    %p103 = scmp.ne.s32.totalorder %s91, %s92
    %p104 = scmp.eq.s32.totalorder %s19, 1
    %p105 = por %p103, %p104
    %p107 = scmp.ne.s32.totalorder %s92, %s106
    %p108 = scmp.eq.s32.totalorder %s19, 0
    %p109 = por %p107, %p108
    %s111 = sadd.s32 %s110, 1
    %p114 = scmp.eq.s32.totalorder %s13, 1
    %p115 = scmp.ne.s32.totalorder %s110, %s112
    %p116 = scmp.eq.s32.totalorder %s13, 0
    %p117 = por %p115, %p116
    %p118 = scmp.ne.s32.totalorder %s110, %s112
    %p119 = scmp.eq.s32.totalorder %s18, 1
    %p120 = por %p118, %p119
    %p121 = scmp.ne.s32.totalorder %s112, %s113
    %p122 = scmp.eq.s32.totalorder %s18, 0
    %p123 = por %p121, %p122
    %p124 = scmp.ne.s32.totalorder %s112, %s113
    %p125 = scmp.eq.s32.totalorder %s19, 1
    %p126 = por %p124, %p125
    %p128 = scmp.ne.s32.totalorder %s113, %s127
    %p129 = scmp.eq.s32.totalorder %s19, 0
    %p130 = por %p128, %p129
    %s132 = sadd.s32 %s131, 1
    %p135 = scmp.eq.s32.totalorder %s13, 1
    %p136 = scmp.ne.s32.totalorder %s131, %s133
    %p137 = scmp.eq.s32.totalorder %s13, 0
    %p138 = por %p136, %p137
    %p139 = scmp.ne.s32.totalorder %s131, %s133
    %p140 = scmp.eq.s32.totalorder %s18, 1
    %p141 = por %p139, %p140
    %p142 = scmp.ne.s32.totalorder %s133, %s134
    %p143 = scmp.eq.s32.totalorder %s18, 0
    %p144 = por %p142, %p143
    %p145 = scmp.ne.s32.totalorder %s133, %s134
    %p146 = scmp.eq.s32.totalorder %s19, 1
    %p147 = por %p145, %p146
    %p149 = scmp.ne.s32.totalorder %s134, %s148
    %p150 = scmp.eq.s32.totalorder %s19, 0
    %p151 = por %p149, %p150
    %s153 = sadd.s32 %s152, 1
    %p156 = scmp.eq.s32.totalorder %s13, 1
    %p157 = scmp.ne.s32.totalorder %s152, %s154
    %p158 = scmp.eq.s32.totalorder %s13, 0
    %p159 = por %p157, %p158
    %p160 = scmp.ne.s32.totalorder %s152, %s154
    %p161 = scmp.eq.s32.totalorder %s18, 1
    %p162 = por %p160, %p161
    %p163 = scmp.ne.s32.totalorder %s154, %s155
    %p164 = scmp.eq.s32.totalorder %s18, 0
    %p165 = por %p163, %p164
    %p166 = scmp.ne.s32.totalorder %s154, %s155
    %p167 = scmp.eq.s32.totalorder %s19, 1
    %p168 = por %p166, %p167
    %p170 = scmp.ne.s32.totalorder %s155, %s169
    %p171 = scmp.eq.s32.totalorder %s19, 0
    %p172 = por %p170, %p171
    %s173 = ssub.s32 %s13, %s20
    %p174 = scmp.eq.s32.totalorder %s173, 0
    %s176 = sadd.s32 %s175, 1
    %s177 = scalar_select %p174, %s175, %s176
    %p180 = pneg %p174
    %p181 = scmp.eq.s32.totalorder %s13, 1
    %p182 = por %p180, %p181
    %p183 = scmp.ne.s32.totalorder %s175, %s178
    %p184 = scmp.eq.s32.totalorder %s13, 0
    %p185 = por %p183, %p184
    %p186 = scmp.ne.s32.totalorder %s175, %s178
    %p187 = scmp.eq.s32.totalorder %s18, 1
    %p188 = por %p186, %p187
    %p189 = scmp.ne.s32.totalorder %s178, %s179
    %p190 = scmp.eq.s32.totalorder %s18, 0
    %p191 = por %p189, %p190
    %p192 = scmp.ne.s32.totalorder %s178, %s179
    %p193 = scmp.eq.s32.totalorder %s19, 1
    %p194 = por %p192, %p193
    %p196 = scmp.ne.s32.totalorder %s179, %s195
    %p197 = scmp.eq.s32.totalorder %s19, 0
    %p198 = por %p196, %p197
    %p199 = scmp.le.s32.totalorder 1, %s13
    %p200 = scmp.lt.s32.totalorder %s13, 3
    %p201 = pnand %p199, %p200
    %p202 = pneg %p201
    // Predicated region
    $region9: #{knowledge_reasoner_forward.11} parent=5 // pred_check
      _
    $region10: #{knowledge_reasoner_forward.11} parent=5 // pred_check_branch
      %204 = sbr.rel (%p201) target = $region12
    $region11: #{knowledge_reasoner_forward.11} parent=5 // pred_region
      %s205 = ssub.s32 %s13, 1
      // Predicated region
      $region13: #{knowledge_reasoner_forward.11} parent=11 // pred_check
        %p206 = pneg %p60
      $region14: #{knowledge_reasoner_forward.11} parent=11 // pred_check_branch
        %208 = sbr.rel (%p206) target = $region16
      $region15: #{knowledge_reasoner_forward.11} parent=11 // pred_region
        _
      $region16: #{knowledge_reasoner_forward.11} parent=11 // pred_fallthru
        _
      // Predicated region
      $region17: #{knowledge_reasoner_forward.11} parent=11 // pred_check
        %p209 = pneg %p81
      $region18: #{knowledge_reasoner_forward.11} parent=11 // pred_check_branch
        %211 = sbr.rel (%p209) target = $region20
      $region19: #{knowledge_reasoner_forward.11} parent=11 // pred_region
        _
      $region20: #{knowledge_reasoner_forward.11} parent=11 // pred_fallthru
        _
      // Predicated region
      $region21: #{knowledge_reasoner_forward.11} parent=11 // pred_check
        %p212 = pneg %p102
      $region22: #{knowledge_reasoner_forward.11} parent=11 // pred_check_branch
        %214 = sbr.rel (%p212) target = $region24
      $region23: #{knowledge_reasoner_forward.11} parent=11 // pred_region
        _
      $region24: #{knowledge_reasoner_forward.11} parent=11 // pred_fallthru
        _
      // Predicated region
      $region25: #{knowledge_reasoner_forward.11} parent=11 // pred_check
        %p215 = pneg %p123
      $region26: #{knowledge_reasoner_forward.11} parent=11 // pred_check_branch
        %217 = sbr.rel (%p215) target = $region28
      $region27: #{knowledge_reasoner_forward.11} parent=11 // pred_region
        _
      $region28: #{knowledge_reasoner_forward.11} parent=11 // pred_fallthru
        _
      // Predicated region
      $region29: #{knowledge_reasoner_forward.11} parent=11 // pred_check
        %p218 = pneg %p144
      $region30: #{knowledge_reasoner_forward.11} parent=11 // pred_check_branch
        %220 = sbr.rel (%p218) target = $region32
      $region31: #{knowledge_reasoner_forward.11} parent=11 // pred_region
        _
      $region32: #{knowledge_reasoner_forward.11} parent=11 // pred_fallthru
        _
      // Predicated region
      $region33: #{knowledge_reasoner_forward.11} parent=11 // pred_check
        %p221 = pneg %p165
      $region34: #{knowledge_reasoner_forward.11} parent=11 // pred_check_branch
        %223 = sbr.rel (%p221) target = $region36
      $region35: #{knowledge_reasoner_forward.11} parent=11 // pred_region
        _
      $region36: #{knowledge_reasoner_forward.11} parent=11 // pred_fallthru
        _
    $region12: #{knowledge_reasoner_forward.11} parent=5 // pred_fallthru
      _
    %p224 = scmp.lt.s32.totalorder %s13, 2
    // Predicated region
    $region37: #{knowledge_reasoner_forward.11} parent=5 // pred_check
      %p225 = pneg %p224
    $region38: #{knowledge_reasoner_forward.11} parent=5 // pred_check_branch
      %227 = sbr.rel (%p225) target = $region40
    $region39: #{knowledge_reasoner_forward.11} parent=5 // pred_region
      // Predicated region
      $region41: #{knowledge_reasoner_forward.11} parent=39 // pred_check
        %p228 = pneg %p33
      $region42: #{knowledge_reasoner_forward.11} parent=39 // pred_check_branch
        %230 = sbr.rel (%p228) target = $region44
      $region43: #{knowledge_reasoner_forward.11} parent=39 // pred_region
        %p231 = scmp.lt.s32.totalorder %s13, 1
        %s232 = scalar_select %p231, %s13, 1
        %s233 = smul.addr %s232, 8
        %s234 = scalar_lea.vmem %s0, %s233
      $region44: #{knowledge_reasoner_forward.11} parent=39 // pred_fallthru
        _
    $region40: #{knowledge_reasoner_forward.11} parent=5 // pred_fallthru
      _
    %p235 = scmp.le.s32.totalorder 1, %s13
    %p236 = scmp.lt.s32.totalorder %s13, 3
    %p237 = pnand %p235, %p236
    %p238 = pneg %p237
    // Predicated region
    $region45: #{knowledge_reasoner_forward.11} parent=5 // pred_check
      _
    $region46: #{knowledge_reasoner_forward.11} parent=5 // pred_check_branch
      %240 = sbr.rel (%p237) target = $region48
    $region47: #{knowledge_reasoner_forward.11} parent=5 // pred_region
      %s241 = ssub.s32 %s13, 1
      %p242 = scmp.lt.s32.totalorder %s18, 1
      %s243 = scalar_select %p242, %s18, 1
      %s244 = smul.addr %s243, 8
      %s245 = scalar_lea.vmem %s0, %s244
      %p246 = pneg %p39
      %p247 = pneg %p36
      %p248 = pneg %p60
      %p249 = pneg %p57
      %p250 = pneg %p81
      %p251 = pneg %p78
      %p252 = pneg %p102
      %p253 = pneg %p99
      %p254 = pneg %p123
      %p255 = pneg %p120
      %p256 = pneg %p144
      %p257 = pneg %p141
      %p258 = pneg %p165
      %p259 = pneg %p162
      %p260 = pneg %p191
      %p261 = pneg %p188
      %p262 = scmp.lt.s32.totalorder %s18, 1
      %s263 = scalar_select %p262, %s18, 1
      %s264 = smul.addr %s263, 8
      %s265 = scalar_lea.vmem %s7, %s264
      %p266 = scmp.lt.s32.totalorder %s18, 1
      %s267 = scalar_select %p266, %s18, 1
      %s268 = smul.addr %s267, 8
      %s269 = scalar_lea.vmem %s0, %s268
      %p270 = scmp.lt.s32.totalorder %s18, 1
      %s271 = scalar_select %p270, %s18, 1
      %s272 = smul.addr %s271, 8
      %s273 = scalar_lea.vmem %s7, %s272
      %v274 = vld [vmem:[%s269] sm:$0xff]
      %v275 = vld [vmem:[%s1] sm:$0xff]
      %v276 = vld [vmem:[%s1 + $0x8] sm:$0xff]
      %v277 = vld [vmem:[%s1 + $0x10] sm:$0xff]
      %v278 = vld [vmem:[%s1 + $0x18] sm:$0xff]
      %v279 = vld [vmem:[%s2] sm:$0x1]
      %v281 = vlaneseq
      %v282 = vshrl.u32 %v281, 7
      %v283 = vsub.s32 0, %v282
      %v284 = vrot.slane %v279, %v283
      %vm286 = vcmask 261120
      %v288 = vsel %vm286, %v274, 0
      %290 = vmatprep.subr.mxu0 0.0
      %291 = vmatpush1.msra.mxu0 0.0
      %292 = vmatprep.subr.mxu0 0.0
      %293 = vmatpush1.msra.mxu0 0.0
      %294 = vmatprep.subr.mxu0 0.0
      %295 = vmatpush1.msra.mxu0 0.0
      %296 = vmatprep.subr.mxu0 0.0
      %297 = vmatpush1.msra.mxu0 0.0
      %298 = vmatprep.subr.mxu0 0.0
      %299 = vmatpush1.msra.mxu0 0.0
      %300 = vmatprep.subr.mxu0 0.0
      %301 = vmatpush1.msra.mxu0 0.0
      %302 = vmatprep.subr.mxu0 0.0
      %303 = vmatpush1.msra.mxu0 0.0
      %304 = vmatprep.subr.mxu0 0.0
      %305 = vmatpush1.msra.mxu0 0.0
      %306 = vmatprep.subr.mxu0 0.0
      %307 = vmatpush1.msra.mxu0 0.0
      %308 = vmatprep.subr.mxu0 0.0
      %309 = vmatpush1.msra.mxu0 0.0
      %310 = vmatprep.subr.mxu0 0.0
      %311 = vmatpush1.msra.mxu0 0.0
      %312 = vmatprep.subr.mxu0 0.0
      %313 = vmatpush1.msra.mxu0 0.0
      %314 = vmatprep.subr.mxu0 0.0
      %315 = vmatpush1.msra.mxu0 %v278
      %316 = vmatprep.subr.mxu0 0.0
      %317 = vmatpush1.msra.mxu0 %v277
      %318 = vmatprep.subr.mxu0 0.0
      %319 = vmatpush1.msra.mxu0 %v276
      %320 = vmatprep.subr.mxu0 0.0
      %321 = vmatpush1.msra.mxu0 %v275
      %322 = vmatprep.subr.mxu0 0.0
      %323 = vmatpush2.msra.mxu0 0.0
      %324 = vmatprep.subr.mxu0 0.0
      %325 = vmatpush2.msra.mxu0 0.0
      %326 = vmatprep.subr.mxu0 0.0
      %327 = vmatpush2.msra.mxu0 0.0
      %328 = vmatprep.subr.mxu0 0.0
      %329 = vmatpush2.msra.mxu0 0.0
      %330 = vmatprep.subr.mxu0 0.0
      %331 = vmatpush2.msra.mxu0 0.0
      %332 = vmatprep.subr.mxu0 0.0
      %333 = vmatpush2.msra.mxu0 0.0
      %334 = vmatprep.subr.mxu0 0.0
      %335 = vmatpush2.msra.mxu0 0.0
      %336 = vmatprep.subr.mxu0 0.0
      %337 = vmatpush2.msra.mxu0 0.0
      %338 = vmatprep.subr.mxu0 0.0
      %339 = vmatpush2.msra.mxu0 0.0
      %340 = vmatprep.subr.mxu0 0.0
      %341 = vmatpush2.msra.mxu0 0.0
      %342 = vmatprep.subr.mxu0 0.0
      %343 = vmatpush2.msra.mxu0 0.0
      %344 = vmatprep.subr.mxu0 0.0
      %345 = vmatpush2.msra.mxu0 0.0
      %346 = vmatprep.subr.mxu0 0.0
      %347 = vmatpush2.msra.mxu0 0.0
      %348 = vmatprep.subr.mxu0 0.0
      %349 = vmatpush2.msra.mxu0 0.0
      %350 = vmatprep.subr.mxu0 0.0
      %351 = vmatpush2.msra.mxu0 0.0
      %352 = vmatprep.subr.mxu0 0.0
      %353 = vmatpush2.msra.mxu0 0.0
      %354 = vmatprep.mubr.f32.mxu0 0.0
      %355 = vmatmul.mubr.f32.gmra.mxu0 %v288
      %v356 = vpop.f32.mrf.mxu0
      %v357 = vadd.f32 %v284, %v356
      %v358 = vpop.f32.mrf.mxu0
      %359 = vdwg.mxu0
      %v360 = vld [vmem:[%s3] sm:$0xff]
      %v361 = vld [vmem:[%s3 + $0x8] sm:$0xff]
      %v362 = vld [vmem:[%s3 + $0x10] sm:$0xff]
      %v363 = vld [vmem:[%s3 + $0x18] sm:$0xff]
      %365 = vrot.lane.b32.xlu0 %v357, 96
      %v366 = vpop.permute.xlu0 %365
      %vm367 = vcmask 64512
      %v368 = vsel %vm367, %v357, 0
      %v370 = vsel %vm367, %v366, 0
      %372 = vmatprep.subr.mxu0 0.0
      %373 = vmatpush1.xpose.msra.mxu0 0.0
      %374 = vmatprep.subr.mxu0 0.0
      %375 = vmatpush1.xpose.msra.mxu0 0.0
      %376 = vmatprep.subr.mxu0 0.0
      %377 = vmatpush1.xpose.msra.mxu0 0.0
      %378 = vmatprep.subr.mxu0 0.0
      %379 = vmatpush1.xpose.msra.mxu0 0.0
      %380 = vmatprep.subr.mxu0 0.0
      %381 = vmatpush1.xpose.msra.mxu0 0.0
      %382 = vmatprep.subr.mxu0 0.0
      %383 = vmatpush1.xpose.msra.mxu0 0.0
      %384 = vmatprep.subr.mxu0 0.0
      %385 = vmatpush1.xpose.msra.mxu0 0.0
      %386 = vmatprep.subr.mxu0 0.0
      %387 = vmatpush1.xpose.msra.mxu0 0.0
      %388 = vmatprep.subr.mxu0 0.0
      %389 = vmatpush1.xpose.msra.mxu0 0.0
      %390 = vmatprep.subr.mxu0 0.0
      %391 = vmatpush1.xpose.msra.mxu0 0.0
      %392 = vmatprep.subr.mxu0 0.0
      %393 = vmatpush1.xpose.msra.mxu0 0.0
      %394 = vmatprep.subr.mxu0 0.0
      %395 = vmatpush1.xpose.msra.mxu0 0.0
      %396 = vmatprep.subr.mxu0 0.0
      %397 = vmatpush1.xpose.msra.mxu0 0.0
      %398 = vmatprep.subr.mxu0 0.0
      %399 = vmatpush1.xpose.msra.mxu0 0.0
      %400 = vmatprep.subr.mxu0 0.0
      %401 = vmatpush1.xpose.msra.mxu0 0.0
      %402 = vmatprep.subr.mxu0 0.0
      %403 = vmatpush1.xpose.msra.mxu0 %v370
      %404 = vmatprep.subr.mxu0 0.0
      %405 = vmatpush2.xpose.msra.mxu0 0.0
      %406 = vmatprep.subr.mxu0 0.0
      %407 = vmatpush2.xpose.msra.mxu0 0.0
      %408 = vmatprep.subr.mxu0 0.0
      %409 = vmatpush2.xpose.msra.mxu0 0.0
      %410 = vmatprep.subr.mxu0 0.0
      %411 = vmatpush2.xpose.msra.mxu0 0.0
      %412 = vmatprep.subr.mxu0 0.0
      %413 = vmatpush2.xpose.msra.mxu0 0.0
      %414 = vmatprep.subr.mxu0 0.0
      %415 = vmatpush2.xpose.msra.mxu0 0.0
      %416 = vmatprep.subr.mxu0 0.0
      %417 = vmatpush2.xpose.msra.mxu0 0.0
      %418 = vmatprep.subr.mxu0 0.0
      %419 = vmatpush2.xpose.msra.mxu0 0.0
      %420 = vmatprep.subr.mxu0 0.0
      %421 = vmatpush2.xpose.msra.mxu0 0.0
      %422 = vmatprep.subr.mxu0 0.0
      %423 = vmatpush2.xpose.msra.mxu0 0.0
      %424 = vmatprep.subr.mxu0 0.0
      %425 = vmatpush2.xpose.msra.mxu0 0.0
      %426 = vmatprep.subr.mxu0 0.0
      %427 = vmatpush2.xpose.msra.mxu0 0.0
      %428 = vmatprep.subr.mxu0 0.0
      %429 = vmatpush2.xpose.msra.mxu0 0.0
      %430 = vmatprep.subr.mxu0 0.0
      %431 = vmatpush2.xpose.msra.mxu0 0.0
      %432 = vmatprep.subr.mxu0 0.0
      %433 = vmatpush2.xpose.msra.mxu0 0.0
      %434 = vmatprep.subr.mxu0 0.0
      %435 = vmatpush2.xpose.msra.mxu0 0.0
      %436 = vmatprep.mubr.f32.mxu0 0.0
      %437 = vmatmul.mubr.f32.gmra.mxu0 %v368
      %v438 = vpop.f32.mrf.mxu0
      %v439 = vadd.f32 0.0, %v438
      %v440 = vpop.f32.mrf.mxu0
      %441 = vdwg.mxu0
      %v442 = vmul.f32 %v439, 0.35355338
      %v443 = vsel %vm367, %v442, -inf
      %444 = vmax.xlane.f32.xlu0 %v443
      %v445 = vpop.xlane.xlu0 %444
      %v446 = vsub.f32 %v442, %v445
      %v447 = vmul.f32 %v446, 1.442695
      %v448 = vpow.pop %v447
      %v449 = vsel %vm367, %v448, 0.0
      %450 = vadd.xlane.f32.xlu0 %v449
      %v451 = vpop.xlane.xlu0 %450
      %v452 = vrcp.pop %v451
      %v453 = vmul.f32 %v448, %v452
      %454 = vrot.lane.b32.xlu0 %v357, 64
      %v455 = vpop.permute.xlu0 %454
      %v458 = vsel %vm367, %v453, 0
      %460 = vmatprep.subr.mxu0 0.0
      %461 = vmatpush1.msra.mxu0 0.0
      %462 = vmatprep.subr.mxu0 0.0
      %463 = vmatpush1.msra.mxu0 0.0
      %464 = vmatprep.subr.mxu0 0.0
      %465 = vmatpush1.msra.mxu0 0.0
      %466 = vmatprep.subr.mxu0 0.0
      %467 = vmatpush1.msra.mxu0 0.0
      %468 = vmatprep.subr.mxu0 0.0
      %469 = vmatpush1.msra.mxu0 0.0
      %470 = vmatprep.subr.mxu0 0.0
      %471 = vmatpush1.msra.mxu0 0.0
      %472 = vmatprep.subr.mxu0 0.0
      %473 = vmatpush1.msra.mxu0 0.0
      %474 = vmatprep.subr.mxu0 0.0
      %475 = vmatpush1.msra.mxu0 0.0
      %476 = vmatprep.subr.mxu0 0.0
      %477 = vmatpush1.msra.mxu0 0.0
      %478 = vmatprep.subr.mxu0 0.0
      %479 = vmatpush1.msra.mxu0 0.0
      %480 = vmatprep.subr.mxu0 0.0
      %481 = vmatpush1.msra.mxu0 0.0
      %482 = vmatprep.subr.mxu0 0.0
      %483 = vmatpush1.msra.mxu0 0.0
      %484 = vmatprep.subr.mxu0 0.0
      %485 = vmatpush1.msra.mxu0 0.0
      %486 = vmatprep.subr.mxu0 0.0
      %487 = vmatpush1.msra.mxu0 0.0
      %488 = vmatprep.subr.mxu0 0.0
      %489 = vmatpush1.msra.mxu0 0.0
      %490 = vmatprep.subr.mxu0 0.0
      %491 = vmatpush1.msra.mxu0 %v455
      %492 = vmatprep.subr.mxu0 0.0
      %493 = vmatpush2.msra.mxu0 0.0
      %494 = vmatprep.subr.mxu0 0.0
      %495 = vmatpush2.msra.mxu0 0.0
      %496 = vmatprep.subr.mxu0 0.0
      %497 = vmatpush2.msra.mxu0 0.0
      %498 = vmatprep.subr.mxu0 0.0
      %499 = vmatpush2.msra.mxu0 0.0
      %500 = vmatprep.subr.mxu0 0.0
      %501 = vmatpush2.msra.mxu0 0.0
      %502 = vmatprep.subr.mxu0 0.0
      %503 = vmatpush2.msra.mxu0 0.0
      %504 = vmatprep.subr.mxu0 0.0
      %505 = vmatpush2.msra.mxu0 0.0
      %506 = vmatprep.subr.mxu0 0.0
      %507 = vmatpush2.msra.mxu0 0.0
      %508 = vmatprep.subr.mxu0 0.0
      %509 = vmatpush2.msra.mxu0 0.0
      %510 = vmatprep.subr.mxu0 0.0
      %511 = vmatpush2.msra.mxu0 0.0
      %512 = vmatprep.subr.mxu0 0.0
      %513 = vmatpush2.msra.mxu0 0.0
      %514 = vmatprep.subr.mxu0 0.0
      %515 = vmatpush2.msra.mxu0 0.0
      %516 = vmatprep.subr.mxu0 0.0
      %517 = vmatpush2.msra.mxu0 0.0
      %518 = vmatprep.subr.mxu0 0.0
      %519 = vmatpush2.msra.mxu0 0.0
      %520 = vmatprep.subr.mxu0 0.0
      %521 = vmatpush2.msra.mxu0 0.0
      %522 = vmatprep.subr.mxu0 0.0
      %523 = vmatpush2.msra.mxu0 0.0
      %524 = vmatprep.mubr.f32.mxu0 0.0
      %525 = vmatmul.mubr.f32.gmra.mxu0 %v458
      %v526 = vpop.f32.mrf.mxu0
      %v527 = vadd.f32 0.0, %v526
      %v528 = vpop.f32.mrf.mxu0
      %529 = vdwg.mxu0
      %530 = vrot.lane.b32.xlu0 %v357, 120
      %v531 = vpop.permute.xlu0 %530
      %532 = vrot.lane.b32.xlu0 %v357, 88
      %v533 = vpop.permute.xlu0 %532
      %v534 = vsel %vm367, %v531, 0
      %v536 = vsel %vm367, %v533, 0
      %538 = vmatprep.subr.mxu0 0.0
      %539 = vmatpush1.xpose.msra.mxu0 0.0
      %540 = vmatprep.subr.mxu0 0.0
      %541 = vmatpush1.xpose.msra.mxu0 0.0
      %542 = vmatprep.subr.mxu0 0.0
      %543 = vmatpush1.xpose.msra.mxu0 0.0
      %544 = vmatprep.subr.mxu0 0.0
      %545 = vmatpush1.xpose.msra.mxu0 0.0
      %546 = vmatprep.subr.mxu0 0.0
      %547 = vmatpush1.xpose.msra.mxu0 0.0
      %548 = vmatprep.subr.mxu0 0.0
      %549 = vmatpush1.xpose.msra.mxu0 0.0
      %550 = vmatprep.subr.mxu0 0.0
      %551 = vmatpush1.xpose.msra.mxu0 0.0
      %552 = vmatprep.subr.mxu0 0.0
      %553 = vmatpush1.xpose.msra.mxu0 0.0
      %554 = vmatprep.subr.mxu0 0.0
      %555 = vmatpush1.xpose.msra.mxu0 0.0
      %556 = vmatprep.subr.mxu0 0.0
      %557 = vmatpush1.xpose.msra.mxu0 0.0
      %558 = vmatprep.subr.mxu0 0.0
      %559 = vmatpush1.xpose.msra.mxu0 0.0
      %560 = vmatprep.subr.mxu0 0.0
      %561 = vmatpush1.xpose.msra.mxu0 0.0
      %562 = vmatprep.subr.mxu0 0.0
      %563 = vmatpush1.xpose.msra.mxu0 0.0
      %564 = vmatprep.subr.mxu0 0.0
      %565 = vmatpush1.xpose.msra.mxu0 0.0
      %566 = vmatprep.subr.mxu0 0.0
      %567 = vmatpush1.xpose.msra.mxu0 0.0
      %568 = vmatprep.subr.mxu0 0.0
      %569 = vmatpush1.xpose.msra.mxu0 %v536
      %570 = vmatprep.subr.mxu0 0.0
      %571 = vmatpush2.xpose.msra.mxu0 0.0
      %572 = vmatprep.subr.mxu0 0.0
      %573 = vmatpush2.xpose.msra.mxu0 0.0
      %574 = vmatprep.subr.mxu0 0.0
      %575 = vmatpush2.xpose.msra.mxu0 0.0
      %576 = vmatprep.subr.mxu0 0.0
      %577 = vmatpush2.xpose.msra.mxu0 0.0
      %578 = vmatprep.subr.mxu0 0.0
      %579 = vmatpush2.xpose.msra.mxu0 0.0
      %580 = vmatprep.subr.mxu0 0.0
      %581 = vmatpush2.xpose.msra.mxu0 0.0
      %582 = vmatprep.subr.mxu0 0.0
      %583 = vmatpush2.xpose.msra.mxu0 0.0
      %584 = vmatprep.subr.mxu0 0.0
      %585 = vmatpush2.xpose.msra.mxu0 0.0
      %586 = vmatprep.subr.mxu0 0.0
      %587 = vmatpush2.xpose.msra.mxu0 0.0
      %588 = vmatprep.subr.mxu0 0.0
      %589 = vmatpush2.xpose.msra.mxu0 0.0
      %590 = vmatprep.subr.mxu0 0.0
      %591 = vmatpush2.xpose.msra.mxu0 0.0
      %592 = vmatprep.subr.mxu0 0.0
      %593 = vmatpush2.xpose.msra.mxu0 0.0
      %594 = vmatprep.subr.mxu0 0.0
      %595 = vmatpush2.xpose.msra.mxu0 0.0
      %596 = vmatprep.subr.mxu0 0.0
      %597 = vmatpush2.xpose.msra.mxu0 0.0
      %598 = vmatprep.subr.mxu0 0.0
      %599 = vmatpush2.xpose.msra.mxu0 0.0
      %600 = vmatprep.subr.mxu0 0.0
      %601 = vmatpush2.xpose.msra.mxu0 0.0
      %602 = vmatprep.mubr.f32.mxu0 0.0
      %603 = vmatmul.mubr.f32.gmra.mxu0 %v534
      %v604 = vpop.f32.mrf.mxu0
      %v605 = vadd.f32 0.0, %v604
      %v606 = vpop.f32.mrf.mxu0
      %607 = vdwg.mxu0
      %v608 = vmul.f32 %v605, 0.35355338
      %v609 = vsel %vm367, %v608, -inf
      %610 = vmax.xlane.f32.xlu0 %v609
      %v611 = vpop.xlane.xlu0 %610
      %v612 = vsub.f32 %v608, %v611
      %v613 = vmul.f32 %v612, 1.442695
      %v614 = vpow.pop %v613
      %v615 = vsel %vm367, %v614, 0.0
      %616 = vadd.xlane.f32.xlu0 %v615
      %v617 = vpop.xlane.xlu0 %616
      %v618 = vrcp.pop %v617
      %v619 = vmul.f32 %v614, %v618
      %620 = vrot.lane.b32.xlu0 %v357, 56
      %v621 = vpop.permute.xlu0 %620
      %v624 = vsel %vm367, %v619, 0
      %626 = vmatprep.subr.mxu0 0.0
      %627 = vmatpush1.msra.mxu0 0.0
      %628 = vmatprep.subr.mxu0 0.0
      %629 = vmatpush1.msra.mxu0 0.0
      %630 = vmatprep.subr.mxu0 0.0
      %631 = vmatpush1.msra.mxu0 0.0
      %632 = vmatprep.subr.mxu0 0.0
      %633 = vmatpush1.msra.mxu0 0.0
      %634 = vmatprep.subr.mxu0 0.0
      %635 = vmatpush1.msra.mxu0 0.0
      %636 = vmatprep.subr.mxu0 0.0
      %637 = vmatpush1.msra.mxu0 0.0
      %638 = vmatprep.subr.mxu0 0.0
      %639 = vmatpush1.msra.mxu0 0.0
      %640 = vmatprep.subr.mxu0 0.0
      %641 = vmatpush1.msra.mxu0 0.0
      %642 = vmatprep.subr.mxu0 0.0
      %643 = vmatpush1.msra.mxu0 0.0
      %644 = vmatprep.subr.mxu0 0.0
      %645 = vmatpush1.msra.mxu0 0.0
      %646 = vmatprep.subr.mxu0 0.0
      %647 = vmatpush1.msra.mxu0 0.0
      %648 = vmatprep.subr.mxu0 0.0
      %649 = vmatpush1.msra.mxu0 0.0
      %650 = vmatprep.subr.mxu0 0.0
      %651 = vmatpush1.msra.mxu0 0.0
      %652 = vmatprep.subr.mxu0 0.0
      %653 = vmatpush1.msra.mxu0 0.0
      %654 = vmatprep.subr.mxu0 0.0
      %655 = vmatpush1.msra.mxu0 0.0
      %656 = vmatprep.subr.mxu0 0.0
      %657 = vmatpush1.msra.mxu0 %v621
      %658 = vmatprep.subr.mxu0 0.0
      %659 = vmatpush2.msra.mxu0 0.0
      %660 = vmatprep.subr.mxu0 0.0
      %661 = vmatpush2.msra.mxu0 0.0
      %662 = vmatprep.subr.mxu0 0.0
      %663 = vmatpush2.msra.mxu0 0.0
      %664 = vmatprep.subr.mxu0 0.0
      %665 = vmatpush2.msra.mxu0 0.0
      %666 = vmatprep.subr.mxu0 0.0
      %667 = vmatpush2.msra.mxu0 0.0
      %668 = vmatprep.subr.mxu0 0.0
      %669 = vmatpush2.msra.mxu0 0.0
      %670 = vmatprep.subr.mxu0 0.0
      %671 = vmatpush2.msra.mxu0 0.0
      %672 = vmatprep.subr.mxu0 0.0
      %673 = vmatpush2.msra.mxu0 0.0
      %674 = vmatprep.subr.mxu0 0.0
      %675 = vmatpush2.msra.mxu0 0.0
      %676 = vmatprep.subr.mxu0 0.0
      %677 = vmatpush2.msra.mxu0 0.0
      %678 = vmatprep.subr.mxu0 0.0
      %679 = vmatpush2.msra.mxu0 0.0
      %680 = vmatprep.subr.mxu0 0.0
      %681 = vmatpush2.msra.mxu0 0.0
      %682 = vmatprep.subr.mxu0 0.0
      %683 = vmatpush2.msra.mxu0 0.0
      %684 = vmatprep.subr.mxu0 0.0
      %685 = vmatpush2.msra.mxu0 0.0
      %686 = vmatprep.subr.mxu0 0.0
      %687 = vmatpush2.msra.mxu0 0.0
      %688 = vmatprep.subr.mxu0 0.0
      %689 = vmatpush2.msra.mxu0 0.0
      %690 = vmatprep.mubr.f32.mxu0 0.0
      %691 = vmatmul.mubr.f32.gmra.mxu0 %v624
      %v692 = vpop.f32.mrf.mxu0
      %v693 = vadd.f32 0.0, %v692
      %v694 = vpop.f32.mrf.mxu0
      %695 = vdwg.mxu0
      %v697 = vsel %vm367, %v693, 0
      %699 = vmatprep.subr.mxu0 0.0
      %700 = vmatpush1.msra.mxu0 0.0
      %701 = vmatprep.subr.mxu0 0.0
      %702 = vmatpush1.msra.mxu0 0.0
      %703 = vmatprep.subr.mxu0 0.0
      %704 = vmatpush1.msra.mxu0 0.0
      %705 = vmatprep.subr.mxu0 0.0
      %706 = vmatpush1.msra.mxu0 0.0
      %707 = vmatprep.subr.mxu0 0.0
      %708 = vmatpush1.msra.mxu0 0.0
      %709 = vmatprep.subr.mxu0 0.0
      %710 = vmatpush1.msra.mxu0 0.0
      %711 = vmatprep.subr.mxu0 0.0
      %712 = vmatpush1.msra.mxu0 0.0
      %713 = vmatprep.subr.mxu0 0.0
      %714 = vmatpush1.msra.mxu0 0.0
      %715 = vmatprep.subr.mxu0 0.0
      %716 = vmatpush1.msra.mxu0 0.0
      %717 = vmatprep.subr.mxu0 0.0
      %718 = vmatpush1.msra.mxu0 0.0
      %719 = vmatprep.subr.mxu0 0.0
      %720 = vmatpush1.msra.mxu0 0.0
      %721 = vmatprep.subr.mxu0 0.0
      %722 = vmatpush1.msra.mxu0 0.0
      %723 = vmatprep.subr.mxu0 0.0
      %724 = vmatpush1.msra.mxu0 0.0
      %725 = vmatprep.subr.mxu0 0.0
      %726 = vmatpush1.msra.mxu0 0.0
      %727 = vmatprep.subr.mxu0 0.0
      %728 = vmatpush1.msra.mxu0 0.0
      %729 = vmatprep.subr.mxu0 0.0
      %730 = vmatpush1.msra.mxu0 %v361
      %731 = vmatprep.subr.mxu0 0.0
      %732 = vmatpush2.msra.mxu0 0.0
      %733 = vmatprep.subr.mxu0 0.0
      %734 = vmatpush2.msra.mxu0 0.0
      %735 = vmatprep.subr.mxu0 0.0
      %736 = vmatpush2.msra.mxu0 0.0
      %737 = vmatprep.subr.mxu0 0.0
      %738 = vmatpush2.msra.mxu0 0.0
      %739 = vmatprep.subr.mxu0 0.0
      %740 = vmatpush2.msra.mxu0 0.0
      %741 = vmatprep.subr.mxu0 0.0
      %742 = vmatpush2.msra.mxu0 0.0
      %743 = vmatprep.subr.mxu0 0.0
      %744 = vmatpush2.msra.mxu0 0.0
      %745 = vmatprep.subr.mxu0 0.0
      %746 = vmatpush2.msra.mxu0 0.0
      %747 = vmatprep.subr.mxu0 0.0
      %748 = vmatpush2.msra.mxu0 0.0
      %749 = vmatprep.subr.mxu0 0.0
      %750 = vmatpush2.msra.mxu0 0.0
      %751 = vmatprep.subr.mxu0 0.0
      %752 = vmatpush2.msra.mxu0 0.0
      %753 = vmatprep.subr.mxu0 0.0
      %754 = vmatpush2.msra.mxu0 0.0
      %755 = vmatprep.subr.mxu0 0.0
      %756 = vmatpush2.msra.mxu0 0.0
      %757 = vmatprep.subr.mxu0 0.0
      %758 = vmatpush2.msra.mxu0 0.0
      %759 = vmatprep.subr.mxu0 0.0
      %760 = vmatpush2.msra.mxu0 0.0
      %761 = vmatprep.subr.mxu0 0.0
      %762 = vmatpush2.msra.mxu0 0.0
      %763 = vmatprep.mubr.f32.mxu0 0.0
      %764 = vmatmul.mubr.f32.gmra.mxu0 %v697
      %v765 = vpop.f32.mrf.mxu0
      %v766 = vadd.f32 0.0, %v765
      %v767 = vpop.f32.mrf.mxu0
      %768 = vdwg.mxu0
      %v770 = vsel %vm367, %v527, 0
      %772 = vmatprep.subr.mxu0 0.0
      %773 = vmatpush1.msra.mxu0 0.0
      %774 = vmatprep.subr.mxu0 0.0
      %775 = vmatpush1.msra.mxu0 0.0
      %776 = vmatprep.subr.mxu0 0.0
      %777 = vmatpush1.msra.mxu0 0.0
      %778 = vmatprep.subr.mxu0 0.0
      %779 = vmatpush1.msra.mxu0 0.0
      %780 = vmatprep.subr.mxu0 0.0
      %781 = vmatpush1.msra.mxu0 0.0
      %782 = vmatprep.subr.mxu0 0.0
      %783 = vmatpush1.msra.mxu0 0.0
      %784 = vmatprep.subr.mxu0 0.0
      %785 = vmatpush1.msra.mxu0 0.0
      %786 = vmatprep.subr.mxu0 0.0
      %787 = vmatpush1.msra.mxu0 0.0
      %788 = vmatprep.subr.mxu0 0.0
      %789 = vmatpush1.msra.mxu0 0.0
      %790 = vmatprep.subr.mxu0 0.0
      %791 = vmatpush1.msra.mxu0 0.0
      %792 = vmatprep.subr.mxu0 0.0
      %793 = vmatpush1.msra.mxu0 0.0
      %794 = vmatprep.subr.mxu0 0.0
      %795 = vmatpush1.msra.mxu0 0.0
      %796 = vmatprep.subr.mxu0 0.0
      %797 = vmatpush1.msra.mxu0 0.0
      %798 = vmatprep.subr.mxu0 0.0
      %799 = vmatpush1.msra.mxu0 0.0
      %800 = vmatprep.subr.mxu0 0.0
      %801 = vmatpush1.msra.mxu0 0.0
      %802 = vmatprep.subr.mxu0 0.0
      %803 = vmatpush1.msra.mxu0 %v360
      %804 = vmatprep.subr.mxu0 0.0
      %805 = vmatpush2.msra.mxu0 0.0
      %806 = vmatprep.subr.mxu0 0.0
      %807 = vmatpush2.msra.mxu0 0.0
      %808 = vmatprep.subr.mxu0 0.0
      %809 = vmatpush2.msra.mxu0 0.0
      %810 = vmatprep.subr.mxu0 0.0
      %811 = vmatpush2.msra.mxu0 0.0
      %812 = vmatprep.subr.mxu0 0.0
      %813 = vmatpush2.msra.mxu0 0.0
      %814 = vmatprep.subr.mxu0 0.0
      %815 = vmatpush2.msra.mxu0 0.0
      %816 = vmatprep.subr.mxu0 0.0
      %817 = vmatpush2.msra.mxu0 0.0
      %818 = vmatprep.subr.mxu0 0.0
      %819 = vmatpush2.msra.mxu0 0.0
      %820 = vmatprep.subr.mxu0 0.0
      %821 = vmatpush2.msra.mxu0 0.0
      %822 = vmatprep.subr.mxu0 0.0
      %823 = vmatpush2.msra.mxu0 0.0
      %824 = vmatprep.subr.mxu0 0.0
      %825 = vmatpush2.msra.mxu0 0.0
      %826 = vmatprep.subr.mxu0 0.0
      %827 = vmatpush2.msra.mxu0 0.0
      %828 = vmatprep.subr.mxu0 0.0
      %829 = vmatpush2.msra.mxu0 0.0
      %830 = vmatprep.subr.mxu0 0.0
      %831 = vmatpush2.msra.mxu0 0.0
      %832 = vmatprep.subr.mxu0 0.0
      %833 = vmatpush2.msra.mxu0 0.0
      %834 = vmatprep.subr.mxu0 0.0
      %835 = vmatpush2.msra.mxu0 0.0
      %836 = vmatprep.mubr.f32.mxu0 0.0
      %837 = vmatmul.mubr.f32.gmra.mxu0 %v770
      %v838 = vpop.f32.mrf.mxu0
      %v839 = vadd.f32 %v766, %v838
      %v840 = vpop.f32.mrf.mxu0
      %841 = vdwg.mxu0
      %842 = vrot.lane.b32.xlu0 %v357, 112
      %v843 = vpop.permute.xlu0 %842
      %844 = vrot.lane.b32.xlu0 %v357, 80
      %v845 = vpop.permute.xlu0 %844
      %v846 = vsel %vm367, %v843, 0
      %v848 = vsel %vm367, %v845, 0
      %850 = vmatprep.subr.mxu0 0.0
      %851 = vmatpush1.xpose.msra.mxu0 0.0
      %852 = vmatprep.subr.mxu0 0.0
      %853 = vmatpush1.xpose.msra.mxu0 0.0
      %854 = vmatprep.subr.mxu0 0.0
      %855 = vmatpush1.xpose.msra.mxu0 0.0
      %856 = vmatprep.subr.mxu0 0.0
      %857 = vmatpush1.xpose.msra.mxu0 0.0
      %858 = vmatprep.subr.mxu0 0.0
      %859 = vmatpush1.xpose.msra.mxu0 0.0
      %860 = vmatprep.subr.mxu0 0.0
      %861 = vmatpush1.xpose.msra.mxu0 0.0
      %862 = vmatprep.subr.mxu0 0.0
      %863 = vmatpush1.xpose.msra.mxu0 0.0
      %864 = vmatprep.subr.mxu0 0.0
      %865 = vmatpush1.xpose.msra.mxu0 0.0
      %866 = vmatprep.subr.mxu0 0.0
      %867 = vmatpush1.xpose.msra.mxu0 0.0
      %868 = vmatprep.subr.mxu0 0.0
      %869 = vmatpush1.xpose.msra.mxu0 0.0
      %870 = vmatprep.subr.mxu0 0.0
      %871 = vmatpush1.xpose.msra.mxu0 0.0
      %872 = vmatprep.subr.mxu0 0.0
      %873 = vmatpush1.xpose.msra.mxu0 0.0
      %874 = vmatprep.subr.mxu0 0.0
      %875 = vmatpush1.xpose.msra.mxu0 0.0
      %876 = vmatprep.subr.mxu0 0.0
      %877 = vmatpush1.xpose.msra.mxu0 0.0
      %878 = vmatprep.subr.mxu0 0.0
      %879 = vmatpush1.xpose.msra.mxu0 0.0
      %880 = vmatprep.subr.mxu0 0.0
      %881 = vmatpush1.xpose.msra.mxu0 %v848
      %882 = vmatprep.subr.mxu0 0.0
      %883 = vmatpush2.xpose.msra.mxu0 0.0
      %884 = vmatprep.subr.mxu0 0.0
      %885 = vmatpush2.xpose.msra.mxu0 0.0
      %886 = vmatprep.subr.mxu0 0.0
      %887 = vmatpush2.xpose.msra.mxu0 0.0
      %888 = vmatprep.subr.mxu0 0.0
      %889 = vmatpush2.xpose.msra.mxu0 0.0
      %890 = vmatprep.subr.mxu0 0.0
      %891 = vmatpush2.xpose.msra.mxu0 0.0
      %892 = vmatprep.subr.mxu0 0.0
      %893 = vmatpush2.xpose.msra.mxu0 0.0
      %894 = vmatprep.subr.mxu0 0.0
      %895 = vmatpush2.xpose.msra.mxu0 0.0
      %896 = vmatprep.subr.mxu0 0.0
      %897 = vmatpush2.xpose.msra.mxu0 0.0
      %898 = vmatprep.subr.mxu0 0.0
      %899 = vmatpush2.xpose.msra.mxu0 0.0
      %900 = vmatprep.subr.mxu0 0.0
      %901 = vmatpush2.xpose.msra.mxu0 0.0
      %902 = vmatprep.subr.mxu0 0.0
      %903 = vmatpush2.xpose.msra.mxu0 0.0
      %904 = vmatprep.subr.mxu0 0.0
      %905 = vmatpush2.xpose.msra.mxu0 0.0
      %906 = vmatprep.subr.mxu0 0.0
      %907 = vmatpush2.xpose.msra.mxu0 0.0
      %908 = vmatprep.subr.mxu0 0.0
      %909 = vmatpush2.xpose.msra.mxu0 0.0
      %910 = vmatprep.subr.mxu0 0.0
      %911 = vmatpush2.xpose.msra.mxu0 0.0
      %912 = vmatprep.subr.mxu0 0.0
      %913 = vmatpush2.xpose.msra.mxu0 0.0
      %914 = vmatprep.mubr.f32.mxu0 0.0
      %915 = vmatmul.mubr.f32.gmra.mxu0 %v846
      %v916 = vpop.f32.mrf.mxu0
      %v917 = vadd.f32 0.0, %v916
      %v918 = vpop.f32.mrf.mxu0
      %919 = vdwg.mxu0
      %v920 = vmul.f32 %v917, 0.35355338
      %v921 = vsel %vm367, %v920, -inf
      %922 = vmax.xlane.f32.xlu0 %v921
      %v923 = vpop.xlane.xlu0 %922
      %v924 = vsub.f32 %v920, %v923
      %v925 = vmul.f32 %v924, 1.442695
      %v926 = vpow.pop %v925
      %v927 = vsel %vm367, %v926, 0.0
      %928 = vadd.xlane.f32.xlu0 %v927
      %v929 = vpop.xlane.xlu0 %928
      %v930 = vrcp.pop %v929
      %v931 = vmul.f32 %v926, %v930
      %932 = vrot.lane.b32.xlu0 %v357, 48
      %v933 = vpop.permute.xlu0 %932
      %v936 = vsel %vm367, %v931, 0
      %938 = vmatprep.subr.mxu0 0.0
      %939 = vmatpush1.msra.mxu0 0.0
      %940 = vmatprep.subr.mxu0 0.0
      %941 = vmatpush1.msra.mxu0 0.0
      %942 = vmatprep.subr.mxu0 0.0
      %943 = vmatpush1.msra.mxu0 0.0
      %944 = vmatprep.subr.mxu0 0.0
      %945 = vmatpush1.msra.mxu0 0.0
      %946 = vmatprep.subr.mxu0 0.0
      %947 = vmatpush1.msra.mxu0 0.0
      %948 = vmatprep.subr.mxu0 0.0
      %949 = vmatpush1.msra.mxu0 0.0
      %950 = vmatprep.subr.mxu0 0.0
      %951 = vmatpush1.msra.mxu0 0.0
      %952 = vmatprep.subr.mxu0 0.0
      %953 = vmatpush1.msra.mxu0 0.0
      %954 = vmatprep.subr.mxu0 0.0
      %955 = vmatpush1.msra.mxu0 0.0
      %956 = vmatprep.subr.mxu0 0.0
      %957 = vmatpush1.msra.mxu0 0.0
      %958 = vmatprep.subr.mxu0 0.0
      %959 = vmatpush1.msra.mxu0 0.0
      %960 = vmatprep.subr.mxu0 0.0
      %961 = vmatpush1.msra.mxu0 0.0
      %962 = vmatprep.subr.mxu0 0.0
      %963 = vmatpush1.msra.mxu0 0.0
      %964 = vmatprep.subr.mxu0 0.0
      %965 = vmatpush1.msra.mxu0 0.0
      %966 = vmatprep.subr.mxu0 0.0
      %967 = vmatpush1.msra.mxu0 0.0
      %968 = vmatprep.subr.mxu0 0.0
      %969 = vmatpush1.msra.mxu0 %v933
      %970 = vmatprep.subr.mxu0 0.0
      %971 = vmatpush2.msra.mxu0 0.0
      %972 = vmatprep.subr.mxu0 0.0
      %973 = vmatpush2.msra.mxu0 0.0
      %974 = vmatprep.subr.mxu0 0.0
      %975 = vmatpush2.msra.mxu0 0.0
      %976 = vmatprep.subr.mxu0 0.0
      %977 = vmatpush2.msra.mxu0 0.0
      %978 = vmatprep.subr.mxu0 0.0
      %979 = vmatpush2.msra.mxu0 0.0
      %980 = vmatprep.subr.mxu0 0.0
      %981 = vmatpush2.msra.mxu0 0.0
      %982 = vmatprep.subr.mxu0 0.0
      %983 = vmatpush2.msra.mxu0 0.0
      %984 = vmatprep.subr.mxu0 0.0
      %985 = vmatpush2.msra.mxu0 0.0
      %986 = vmatprep.subr.mxu0 0.0
      %987 = vmatpush2.msra.mxu0 0.0
      %988 = vmatprep.subr.mxu0 0.0
      %989 = vmatpush2.msra.mxu0 0.0
      %990 = vmatprep.subr.mxu0 0.0
      %991 = vmatpush2.msra.mxu0 0.0
      %992 = vmatprep.subr.mxu0 0.0
      %993 = vmatpush2.msra.mxu0 0.0
      %994 = vmatprep.subr.mxu0 0.0
      %995 = vmatpush2.msra.mxu0 0.0
      %996 = vmatprep.subr.mxu0 0.0
      %997 = vmatpush2.msra.mxu0 0.0
      %998 = vmatprep.subr.mxu0 0.0
      %999 = vmatpush2.msra.mxu0 0.0
      %1000 = vmatprep.subr.mxu0 0.0
      %1001 = vmatpush2.msra.mxu0 0.0
      %1002 = vmatprep.mubr.f32.mxu0 0.0
      %1003 = vmatmul.mubr.f32.gmra.mxu0 %v936
      %v1004 = vpop.f32.mrf.mxu0
      %v1005 = vadd.f32 0.0, %v1004
      %v1006 = vpop.f32.mrf.mxu0
      %1007 = vdwg.mxu0
      %v1009 = vsel %vm367, %v1005, 0
      %1011 = vmatprep.subr.mxu0 0.0
      %1012 = vmatpush1.msra.mxu0 0.0
      %1013 = vmatprep.subr.mxu0 0.0
      %1014 = vmatpush1.msra.mxu0 0.0
      %1015 = vmatprep.subr.mxu0 0.0
      %1016 = vmatpush1.msra.mxu0 0.0
      %1017 = vmatprep.subr.mxu0 0.0
      %1018 = vmatpush1.msra.mxu0 0.0
      %1019 = vmatprep.subr.mxu0 0.0
      %1020 = vmatpush1.msra.mxu0 0.0
      %1021 = vmatprep.subr.mxu0 0.0
      %1022 = vmatpush1.msra.mxu0 0.0
      %1023 = vmatprep.subr.mxu0 0.0
      %1024 = vmatpush1.msra.mxu0 0.0
      %1025 = vmatprep.subr.mxu0 0.0
      %1026 = vmatpush1.msra.mxu0 0.0
      %1027 = vmatprep.subr.mxu0 0.0
      %1028 = vmatpush1.msra.mxu0 0.0
      %1029 = vmatprep.subr.mxu0 0.0
      %1030 = vmatpush1.msra.mxu0 0.0
      %1031 = vmatprep.subr.mxu0 0.0
      %1032 = vmatpush1.msra.mxu0 0.0
      %1033 = vmatprep.subr.mxu0 0.0
      %1034 = vmatpush1.msra.mxu0 0.0
      %1035 = vmatprep.subr.mxu0 0.0
      %1036 = vmatpush1.msra.mxu0 0.0
      %1037 = vmatprep.subr.mxu0 0.0
      %1038 = vmatpush1.msra.mxu0 0.0
      %1039 = vmatprep.subr.mxu0 0.0
      %1040 = vmatpush1.msra.mxu0 0.0
      %1041 = vmatprep.subr.mxu0 0.0
      %1042 = vmatpush1.msra.mxu0 %v362
      %1043 = vmatprep.subr.mxu0 0.0
      %1044 = vmatpush2.msra.mxu0 0.0
      %1045 = vmatprep.subr.mxu0 0.0
      %1046 = vmatpush2.msra.mxu0 0.0
      %1047 = vmatprep.subr.mxu0 0.0
      %1048 = vmatpush2.msra.mxu0 0.0
      %1049 = vmatprep.subr.mxu0 0.0
      %1050 = vmatpush2.msra.mxu0 0.0
      %1051 = vmatprep.subr.mxu0 0.0
      %1052 = vmatpush2.msra.mxu0 0.0
      %1053 = vmatprep.subr.mxu0 0.0
      %1054 = vmatpush2.msra.mxu0 0.0
      %1055 = vmatprep.subr.mxu0 0.0
      %1056 = vmatpush2.msra.mxu0 0.0
      %1057 = vmatprep.subr.mxu0 0.0
      %1058 = vmatpush2.msra.mxu0 0.0
      %1059 = vmatprep.subr.mxu0 0.0
      %1060 = vmatpush2.msra.mxu0 0.0
      %1061 = vmatprep.subr.mxu0 0.0
      %1062 = vmatpush2.msra.mxu0 0.0
      %1063 = vmatprep.subr.mxu0 0.0
      %1064 = vmatpush2.msra.mxu0 0.0
      %1065 = vmatprep.subr.mxu0 0.0
      %1066 = vmatpush2.msra.mxu0 0.0
      %1067 = vmatprep.subr.mxu0 0.0
      %1068 = vmatpush2.msra.mxu0 0.0
      %1069 = vmatprep.subr.mxu0 0.0
      %1070 = vmatpush2.msra.mxu0 0.0
      %1071 = vmatprep.subr.mxu0 0.0
      %1072 = vmatpush2.msra.mxu0 0.0
      %1073 = vmatprep.subr.mxu0 0.0
      %1074 = vmatpush2.msra.mxu0 0.0
      %1075 = vmatprep.mubr.f32.mxu0 0.0
      %1076 = vmatmul.mubr.f32.gmra.mxu0 %v1009
      %v1077 = vpop.f32.mrf.mxu0
      %v1078 = vadd.f32 0.0, %v1077
      %v1079 = vpop.f32.mrf.mxu0
      %1080 = vdwg.mxu0
      %v1081 = vadd.f32 %v839, %v1078
      %1082 = vrot.lane.b32.xlu0 %v357, 104
      %v1083 = vpop.permute.xlu0 %1082
      %1084 = vrot.lane.b32.xlu0 %v357, 72
      %v1085 = vpop.permute.xlu0 %1084
      %v1086 = vsel %vm367, %v1083, 0
      %v1088 = vsel %vm367, %v1085, 0
      %1090 = vmatprep.subr.mxu0 0.0
      %1091 = vmatpush1.xpose.msra.mxu0 0.0
      %1092 = vmatprep.subr.mxu0 0.0
      %1093 = vmatpush1.xpose.msra.mxu0 0.0
      %1094 = vmatprep.subr.mxu0 0.0
      %1095 = vmatpush1.xpose.msra.mxu0 0.0
      %1096 = vmatprep.subr.mxu0 0.0
      %1097 = vmatpush1.xpose.msra.mxu0 0.0
      %1098 = vmatprep.subr.mxu0 0.0
      %1099 = vmatpush1.xpose.msra.mxu0 0.0
      %1100 = vmatprep.subr.mxu0 0.0
      %1101 = vmatpush1.xpose.msra.mxu0 0.0
      %1102 = vmatprep.subr.mxu0 0.0
      %1103 = vmatpush1.xpose.msra.mxu0 0.0
      %1104 = vmatprep.subr.mxu0 0.0
      %1105 = vmatpush1.xpose.msra.mxu0 0.0
      %1106 = vmatprep.subr.mxu0 0.0
      %1107 = vmatpush1.xpose.msra.mxu0 0.0
      %1108 = vmatprep.subr.mxu0 0.0
      %1109 = vmatpush1.xpose.msra.mxu0 0.0
      %1110 = vmatprep.subr.mxu0 0.0
      %1111 = vmatpush1.xpose.msra.mxu0 0.0
      %1112 = vmatprep.subr.mxu0 0.0
      %1113 = vmatpush1.xpose.msra.mxu0 0.0
      %1114 = vmatprep.subr.mxu0 0.0
      %1115 = vmatpush1.xpose.msra.mxu0 0.0
      %1116 = vmatprep.subr.mxu0 0.0
      %1117 = vmatpush1.xpose.msra.mxu0 0.0
      %1118 = vmatprep.subr.mxu0 0.0
      %1119 = vmatpush1.xpose.msra.mxu0 0.0
      %1120 = vmatprep.subr.mxu0 0.0
      %1121 = vmatpush1.xpose.msra.mxu0 %v1088
      %1122 = vmatprep.subr.mxu0 0.0
      %1123 = vmatpush2.xpose.msra.mxu0 0.0
      %1124 = vmatprep.subr.mxu0 0.0
      %1125 = vmatpush2.xpose.msra.mxu0 0.0
      %1126 = vmatprep.subr.mxu0 0.0
      %1127 = vmatpush2.xpose.msra.mxu0 0.0
      %1128 = vmatprep.subr.mxu0 0.0
      %1129 = vmatpush2.xpose.msra.mxu0 0.0
      %1130 = vmatprep.subr.mxu0 0.0
      %1131 = vmatpush2.xpose.msra.mxu0 0.0
      %1132 = vmatprep.subr.mxu0 0.0
      %1133 = vmatpush2.xpose.msra.mxu0 0.0
      %1134 = vmatprep.subr.mxu0 0.0
      %1135 = vmatpush2.xpose.msra.mxu0 0.0
      %1136 = vmatprep.subr.mxu0 0.0
      %1137 = vmatpush2.xpose.msra.mxu0 0.0
      %1138 = vmatprep.subr.mxu0 0.0
      %1139 = vmatpush2.xpose.msra.mxu0 0.0
      %1140 = vmatprep.subr.mxu0 0.0
      %1141 = vmatpush2.xpose.msra.mxu0 0.0
      %1142 = vmatprep.subr.mxu0 0.0
      %1143 = vmatpush2.xpose.msra.mxu0 0.0
      %1144 = vmatprep.subr.mxu0 0.0
      %1145 = vmatpush2.xpose.msra.mxu0 0.0
      %1146 = vmatprep.subr.mxu0 0.0
      %1147 = vmatpush2.xpose.msra.mxu0 0.0
      %1148 = vmatprep.subr.mxu0 0.0
      %1149 = vmatpush2.xpose.msra.mxu0 0.0
      %1150 = vmatprep.subr.mxu0 0.0
      %1151 = vmatpush2.xpose.msra.mxu0 0.0
      %1152 = vmatprep.subr.mxu0 0.0
      %1153 = vmatpush2.xpose.msra.mxu0 0.0
      %1154 = vmatprep.mubr.f32.mxu0 0.0
      %1155 = vmatmul.mubr.f32.gmra.mxu0 %v1086
      %v1156 = vpop.f32.mrf.mxu0
      %v1157 = vadd.f32 0.0, %v1156
      %v1158 = vpop.f32.mrf.mxu0
      %1159 = vdwg.mxu0
      %v1160 = vmul.f32 %v1157, 0.35355338
      %v1161 = vsel %vm367, %v1160, -inf
      %1162 = vmax.xlane.f32.xlu0 %v1161
      %v1163 = vpop.xlane.xlu0 %1162
      %v1164 = vsub.f32 %v1160, %v1163
      %v1165 = vmul.f32 %v1164, 1.442695
      %v1166 = vpow.pop %v1165
      %v1167 = vsel %vm367, %v1166, 0.0
      %1168 = vadd.xlane.f32.xlu0 %v1167
      %v1169 = vpop.xlane.xlu0 %1168
      %v1170 = vrcp.pop %v1169
      %v1171 = vmul.f32 %v1166, %v1170
      %1172 = vrot.lane.b32.xlu0 %v357, 40
      %v1173 = vpop.permute.xlu0 %1172
      %v1176 = vsel %vm367, %v1171, 0
      %1178 = vmatprep.subr.mxu0 0.0
      %1179 = vmatpush1.msra.mxu0 0.0
      %1180 = vmatprep.subr.mxu0 0.0
      %1181 = vmatpush1.msra.mxu0 0.0
      %1182 = vmatprep.subr.mxu0 0.0
      %1183 = vmatpush1.msra.mxu0 0.0
      %1184 = vmatprep.subr.mxu0 0.0
      %1185 = vmatpush1.msra.mxu0 0.0
      %1186 = vmatprep.subr.mxu0 0.0
      %1187 = vmatpush1.msra.mxu0 0.0
      %1188 = vmatprep.subr.mxu0 0.0
      %1189 = vmatpush1.msra.mxu0 0.0
      %1190 = vmatprep.subr.mxu0 0.0
      %1191 = vmatpush1.msra.mxu0 0.0
      %1192 = vmatprep.subr.mxu0 0.0
      %1193 = vmatpush1.msra.mxu0 0.0
      %1194 = vmatprep.subr.mxu0 0.0
      %1195 = vmatpush1.msra.mxu0 0.0
      %1196 = vmatprep.subr.mxu0 0.0
      %1197 = vmatpush1.msra.mxu0 0.0
      %1198 = vmatprep.subr.mxu0 0.0
      %1199 = vmatpush1.msra.mxu0 0.0
      %1200 = vmatprep.subr.mxu0 0.0
      %1201 = vmatpush1.msra.mxu0 0.0
      %1202 = vmatprep.subr.mxu0 0.0
      %1203 = vmatpush1.msra.mxu0 0.0
      %1204 = vmatprep.subr.mxu0 0.0
      %1205 = vmatpush1.msra.mxu0 0.0
      %1206 = vmatprep.subr.mxu0 0.0
      %1207 = vmatpush1.msra.mxu0 0.0
      %1208 = vmatprep.subr.mxu0 0.0
      %1209 = vmatpush1.msra.mxu0 %v1173
      %1210 = vmatprep.subr.mxu0 0.0
      %1211 = vmatpush2.msra.mxu0 0.0
      %1212 = vmatprep.subr.mxu0 0.0
      %1213 = vmatpush2.msra.mxu0 0.0
      %1214 = vmatprep.subr.mxu0 0.0
      %1215 = vmatpush2.msra.mxu0 0.0
      %1216 = vmatprep.subr.mxu0 0.0
      %1217 = vmatpush2.msra.mxu0 0.0
      %1218 = vmatprep.subr.mxu0 0.0
      %1219 = vmatpush2.msra.mxu0 0.0
      %1220 = vmatprep.subr.mxu0 0.0
      %1221 = vmatpush2.msra.mxu0 0.0
      %1222 = vmatprep.subr.mxu0 0.0
      %1223 = vmatpush2.msra.mxu0 0.0
      %1224 = vmatprep.subr.mxu0 0.0
      %1225 = vmatpush2.msra.mxu0 0.0
      %1226 = vmatprep.subr.mxu0 0.0
      %1227 = vmatpush2.msra.mxu0 0.0
      %1228 = vmatprep.subr.mxu0 0.0
      %1229 = vmatpush2.msra.mxu0 0.0
      %1230 = vmatprep.subr.mxu0 0.0
      %1231 = vmatpush2.msra.mxu0 0.0
      %1232 = vmatprep.subr.mxu0 0.0
      %1233 = vmatpush2.msra.mxu0 0.0
      %1234 = vmatprep.subr.mxu0 0.0
      %1235 = vmatpush2.msra.mxu0 0.0
      %1236 = vmatprep.subr.mxu0 0.0
      %1237 = vmatpush2.msra.mxu0 0.0
      %1238 = vmatprep.subr.mxu0 0.0
      %1239 = vmatpush2.msra.mxu0 0.0
      %1240 = vmatprep.subr.mxu0 0.0
      %1241 = vmatpush2.msra.mxu0 0.0
      %1242 = vmatprep.mubr.f32.mxu0 0.0
      %1243 = vmatmul.mubr.f32.gmra.mxu0 %v1176
      %v1244 = vpop.f32.mrf.mxu0
      %v1245 = vadd.f32 0.0, %v1244
      %v1246 = vpop.f32.mrf.mxu0
      %1247 = vdwg.mxu0
      %v1249 = vsel %vm367, %v1245, 0
      %1251 = vmatprep.subr.mxu0 0.0
      %1252 = vmatpush1.msra.mxu0 0.0
      %1253 = vmatprep.subr.mxu0 0.0
      %1254 = vmatpush1.msra.mxu0 0.0
      %1255 = vmatprep.subr.mxu0 0.0
      %1256 = vmatpush1.msra.mxu0 0.0
      %1257 = vmatprep.subr.mxu0 0.0
      %1258 = vmatpush1.msra.mxu0 0.0
      %1259 = vmatprep.subr.mxu0 0.0
      %1260 = vmatpush1.msra.mxu0 0.0
      %1261 = vmatprep.subr.mxu0 0.0
      %1262 = vmatpush1.msra.mxu0 0.0
      %1263 = vmatprep.subr.mxu0 0.0
      %1264 = vmatpush1.msra.mxu0 0.0
      %1265 = vmatprep.subr.mxu0 0.0
      %1266 = vmatpush1.msra.mxu0 0.0
      %1267 = vmatprep.subr.mxu0 0.0
      %1268 = vmatpush1.msra.mxu0 0.0
      %1269 = vmatprep.subr.mxu0 0.0
      %1270 = vmatpush1.msra.mxu0 0.0
      %1271 = vmatprep.subr.mxu0 0.0
      %1272 = vmatpush1.msra.mxu0 0.0
      %1273 = vmatprep.subr.mxu0 0.0
      %1274 = vmatpush1.msra.mxu0 0.0
      %1275 = vmatprep.subr.mxu0 0.0
      %1276 = vmatpush1.msra.mxu0 0.0
      %1277 = vmatprep.subr.mxu0 0.0
      %1278 = vmatpush1.msra.mxu0 0.0
      %1279 = vmatprep.subr.mxu0 0.0
      %1280 = vmatpush1.msra.mxu0 0.0
      %1281 = vmatprep.subr.mxu0 0.0
      %1282 = vmatpush1.msra.mxu0 %v363
      %1283 = vmatprep.subr.mxu0 0.0
      %1284 = vmatpush2.msra.mxu0 0.0
      %1285 = vmatprep.subr.mxu0 0.0
      %1286 = vmatpush2.msra.mxu0 0.0
      %1287 = vmatprep.subr.mxu0 0.0
      %1288 = vmatpush2.msra.mxu0 0.0
      %1289 = vmatprep.subr.mxu0 0.0
      %1290 = vmatpush2.msra.mxu0 0.0
      %1291 = vmatprep.subr.mxu0 0.0
      %1292 = vmatpush2.msra.mxu0 0.0
      %1293 = vmatprep.subr.mxu0 0.0
      %1294 = vmatpush2.msra.mxu0 0.0
      %1295 = vmatprep.subr.mxu0 0.0
      %1296 = vmatpush2.msra.mxu0 0.0
      %1297 = vmatprep.subr.mxu0 0.0
      %1298 = vmatpush2.msra.mxu0 0.0
      %1299 = vmatprep.subr.mxu0 0.0
      %1300 = vmatpush2.msra.mxu0 0.0
      %1301 = vmatprep.subr.mxu0 0.0
      %1302 = vmatpush2.msra.mxu0 0.0
      %1303 = vmatprep.subr.mxu0 0.0
      %1304 = vmatpush2.msra.mxu0 0.0
      %1305 = vmatprep.subr.mxu0 0.0
      %1306 = vmatpush2.msra.mxu0 0.0
      %1307 = vmatprep.subr.mxu0 0.0
      %1308 = vmatpush2.msra.mxu0 0.0
      %1309 = vmatprep.subr.mxu0 0.0
      %1310 = vmatpush2.msra.mxu0 0.0
      %1311 = vmatprep.subr.mxu0 0.0
      %1312 = vmatpush2.msra.mxu0 0.0
      %1313 = vmatprep.subr.mxu0 0.0
      %1314 = vmatpush2.msra.mxu0 0.0
      %1315 = vmatprep.mubr.f32.mxu0 0.0
      %1316 = vmatmul.mubr.f32.gmra.mxu0 %v1249
      %v1317 = vpop.f32.mrf.mxu0
      %v1318 = vadd.f32 0.0, %v1317
      %v1319 = vpop.f32.mrf.mxu0
      %1320 = vdwg.mxu0
      %v1321 = vadd.f32 %v1081, %v1318
      %v1322 = vld [vmem:[%s4] sm:$0x1]
      %v1324 = vlaneseq
      %v1325 = vshrl.u32 %v1324, 7
      %v1326 = vsub.s32 0, %v1325
      %v1327 = vrot.slane %v1322, %v1326
      %v1329 = vadd.f32 %v1321, %v1327
      %v1330 = vadd.f32 %v274, %v1329
      %v1331 = vld [vmem:[%s5] sm:$0x1]
      %v1332 = vld [vmem:[%s6] sm:$0x1]
      %v1333 = vsel %vm286, %v1330, 0.0
      %1334 = vadd.xlane.f32.xlu0 %v1333
      %v1335 = vpop.xlane.xlu0 %1334
      %v1336 = vrcp.pop 32.0
      %v1337 = vmul.f32 %v1335, %v1336
      %v1338 = vsub.f32 %v1330, %v1337
      %v1339 = vmul.f32 %v1338, %v1338
      %v1340 = vsel %vm286, %v1339, 0.0
      %1341 = vadd.xlane.f32.xlu0 %v1340
      %v1342 = vpop.xlane.xlu0 %1341
      %v1343 = vmul.f32 %v1342, %v1336
      %v1344 = vadd.f32 %v1343, 1e-05
      %v1345 = vrsqrt.pop %v1344
      %v1346 = vmul.f32 %v1338, %v1345
      %v1348 = vlaneseq
      %v1349 = vshrl.u32 %v1348, 7
      %v1350 = vsub.s32 0, %v1349
      %v1351 = vrot.slane %v1331, %v1350
      %v1353 = vmul.f32 %v1346, %v1351
      %v1355 = vlaneseq
      %v1356 = vshrl.u32 %v1355, 7
      %v1357 = vsub.s32 0, %v1356
      %v1358 = vrot.slane %v1332, %v1357
      %v1360 = vadd.f32 %v1353, %v1358
      %1361 = vst.msk [vmem:[%s273] sm:$0xff] %vm286, %v1360
      %p1362 = scmp.lt.s32.totalorder %s18, 1
      %s1363 = scalar_select %p1362, %s18, 1
      %s1364 = smul.addr %s1363, 8
      %s1365 = scalar_lea.vmem %s7, %s1364
      // Predicated region
      $region49: #{knowledge_reasoner_forward.11} parent=47 // pred_check
        %p1366 = pneg %p188
      $region50: #{knowledge_reasoner_forward.11} parent=47 // pred_check_branch
        %1368 = sbr.rel (%p1366) target = $region52
      $region51: #{knowledge_reasoner_forward.11} parent=47 // pred_region
        _
      $region52: #{knowledge_reasoner_forward.11} parent=47 // pred_fallthru
        _
    $region48: #{knowledge_reasoner_forward.11} parent=5 // pred_fallthru
      _
    %p1369 = scmp.le.s32.totalorder 2, %s13
    // Predicated region
    $region53: #{knowledge_reasoner_forward.11} parent=5 // pred_check
      %p1370 = pneg %p1369
    $region54: #{knowledge_reasoner_forward.11} parent=5 // pred_check_branch
      %1372 = sbr.rel (%p1370) target = $region56
    $region55: #{knowledge_reasoner_forward.11} parent=5 // pred_region
      %s1373 = ssub.s32 %s13, 2
      // Predicated region
      $region57: #{knowledge_reasoner_forward.11} parent=55 // pred_check
        %p1374 = pneg %p194
      $region58: #{knowledge_reasoner_forward.11} parent=55 // pred_check_branch
        %1376 = sbr.rel (%p1374) target = $region60
      $region59: #{knowledge_reasoner_forward.11} parent=55 // pred_region
        %p1377 = scmp.lt.s32.totalorder %s19, 1
        %s1378 = scalar_select %p1377, %s19, 1
        %s1379 = smul.addr %s1378, 8
        %s1380 = scalar_lea.vmem %s7, %s1379
      $region60: #{knowledge_reasoner_forward.11} parent=55 // pred_fallthru
        _
    $region56: #{knowledge_reasoner_forward.11} parent=5 // pred_fallthru
      _
  $region6: #{knowledge_reasoner_forward.11} parent=0 // loop_footer
    %s17 = sadd.s32 1, %s13
  $region7: #{knowledge_reasoner_forward.11} parent=0 // loop_footer_branch
    %12 = sbr.rel target = $region3
  $region8: #{knowledge_reasoner_forward.11} parent=0 // loop_exit
    _

// kernel: knowledge_reasoner_forward.15
$region0: #{knowledge_reasoner_forward.15}
  #allocation0 [shape = 'u32[]', space=smem, size = 0x4, offset = 0x4, fixed_abs, tag = 'smem constant byte address 0x4 - core index']
  #allocation1 [shape = 'u32[144,128]{1,0:T(1,128)}', space=vmem, size = 0x12000, scoped, tag = 'internal scratch']
  %s0 = inlined_call_operand.vmem [shape: f32[16,32], index: 0, kind: input, shape index: {}]
  %s1 = inlined_call_operand.vmem [shape: f32[32,32], index: 1, kind: input, shape index: {}]
  %s2 = inlined_call_operand.vmem [shape: f32[1,32], index: 2, kind: input, shape index: {}]
  %s3 = inlined_call_operand.vmem [shape: f32[1,32], index: 3, kind: input, shape index: {}]
  %s4 = inlined_call_operand.vmem [shape: f32[1,32], index: 4, kind: input, shape index: {}]
  %s5 = inlined_call_operand.hbm [shape: f32[16,32], index: 5, kind: output, shape index: {}]
  %s6 = sld [smem:[#allocation0]]
  $region30: #{knowledge_reasoner_forward.15} parent=0
    _
  %s8 = ssub.s32 1, %s6
  %s9 = scalar_select 0, %s8, %s6
  $region1: #{knowledge_reasoner_forward.15} parent=0
    #allocation2 [shape = 'u8[8192]{0}', space=vmem, size = 0x2000, scoped, tag = 'output window, operand 0, single buffered']
    #allocation3 [shape = 's32[1]{0}', space=sflag, size = 0x4, scoped, tag = 'scoped memory for knowledge_reasoner_forward.15']
    %10 = vsyncpa [#allocation3], 0
    // Predicated region
    $region2: #{knowledge_reasoner_forward.15} parent=1 // pred_check
      _
    $region3: #{knowledge_reasoner_forward.15} parent=1 // pred_check_branch
      %12 = sbr.rel (0) target = $region5
    $region4: #{knowledge_reasoner_forward.15} parent=1 // pred_region
      _
    $region5: #{knowledge_reasoner_forward.15} parent=1 // pred_fallthru
      _
    // Predicated region
    $region6: #{knowledge_reasoner_forward.15} parent=1 // pred_check
      _
    $region7: #{knowledge_reasoner_forward.15} parent=1 // pred_check_branch
      %14 = sbr.rel (0) target = $region9
    $region8: #{knowledge_reasoner_forward.15} parent=1 // pred_region
      _
    $region9: #{knowledge_reasoner_forward.15} parent=1 // pred_fallthru
      _
    // Predicated region
    $region10: #{knowledge_reasoner_forward.15} parent=1 // pred_check
      _
    $region11: #{knowledge_reasoner_forward.15} parent=1 // pred_check_branch
      %16 = sbr.rel (0) target = $region13
    $region12: #{knowledge_reasoner_forward.15} parent=1 // pred_region
      _
    $region13: #{knowledge_reasoner_forward.15} parent=1 // pred_fallthru
      _
    // Predicated region
    $region14: #{knowledge_reasoner_forward.15} parent=1 // pred_check
      _
    $region15: #{knowledge_reasoner_forward.15} parent=1 // pred_check_branch
      %18 = sbr.rel (0) target = $region17
    $region16: #{knowledge_reasoner_forward.15} parent=1 // pred_region
      _
    $region17: #{knowledge_reasoner_forward.15} parent=1 // pred_fallthru
      _
    // Predicated region
    $region18: #{knowledge_reasoner_forward.15} parent=1 // pred_check
      _
    $region19: #{knowledge_reasoner_forward.15} parent=1 // pred_check_branch
      %20 = sbr.rel (0) target = $region21
    $region20: #{knowledge_reasoner_forward.15} parent=1 // pred_region
      _
    $region21: #{knowledge_reasoner_forward.15} parent=1 // pred_fallthru
      _
    %v21 = vld [vmem:[%s0] sm:$0xff]
    %v22 = vld [vmem:[%s0 + $0x8] sm:$0xff]
    %v23 = vld [vmem:[%s1] sm:$0xff]
    %v24 = vld [vmem:[%s1 + $0x8] sm:$0xff]
    %v25 = vld [vmem:[%s1 + $0x10] sm:$0xff]
    %v26 = vld [vmem:[%s1 + $0x18] sm:$0xff]
    %v27 = vld [vmem:[%s2] sm:$0x1]
    %v29 = vlaneseq
    %v30 = vshrl.u32 %v29, 7
    %v31 = vsub.s32 0, %v30
    %v32 = vrot.slane %v27, %v31
    %vm34 = vcmask 261120
    %v36 = vsel %vm34, %v21, 0
    %v39 = vsel %vm34, %v22, 0
    %41 = vmatprep.subr.mxu0 0.0
    %42 = vmatpush1.msra.mxu0 0.0
    %43 = vmatprep.subr.mxu0 0.0
    %44 = vmatpush1.msra.mxu0 0.0
    %45 = vmatprep.subr.mxu0 0.0
    %46 = vmatpush1.msra.mxu0 0.0
    %47 = vmatprep.subr.mxu0 0.0
    %48 = vmatpush1.msra.mxu0 0.0
    %49 = vmatprep.subr.mxu0 0.0
    %50 = vmatpush1.msra.mxu0 0.0
    %51 = vmatprep.subr.mxu0 0.0
    %52 = vmatpush1.msra.mxu0 0.0
    %53 = vmatprep.subr.mxu0 0.0
    %54 = vmatpush1.msra.mxu0 0.0
    %55 = vmatprep.subr.mxu0 0.0
    %56 = vmatpush1.msra.mxu0 0.0
    %57 = vmatprep.subr.mxu0 0.0
    %58 = vmatpush1.msra.mxu0 0.0
    %59 = vmatprep.subr.mxu0 0.0
    %60 = vmatpush1.msra.mxu0 0.0
    %61 = vmatprep.subr.mxu0 0.0
    %62 = vmatpush1.msra.mxu0 0.0
    %63 = vmatprep.subr.mxu0 0.0
    %64 = vmatpush1.msra.mxu0 0.0
    %65 = vmatprep.subr.mxu0 0.0
    %66 = vmatpush1.msra.mxu0 %v26
    %67 = vmatprep.subr.mxu0 0.0
    %68 = vmatpush1.msra.mxu0 %v25
    %69 = vmatprep.subr.mxu0 0.0
    %70 = vmatpush1.msra.mxu0 %v24
    %71 = vmatprep.subr.mxu0 0.0
    %72 = vmatpush1.msra.mxu0 %v23
    %73 = vmatprep.subr.mxu0 0.0
    %74 = vmatpush2.msra.mxu0 0.0
    %75 = vmatprep.subr.mxu0 0.0
    %76 = vmatpush2.msra.mxu0 0.0
    %77 = vmatprep.subr.mxu0 0.0
    %78 = vmatpush2.msra.mxu0 0.0
    %79 = vmatprep.subr.mxu0 0.0
    %80 = vmatpush2.msra.mxu0 0.0
    %81 = vmatprep.subr.mxu0 0.0
    %82 = vmatpush2.msra.mxu0 0.0
    %83 = vmatprep.subr.mxu0 0.0
    %84 = vmatpush2.msra.mxu0 0.0
    %85 = vmatprep.subr.mxu0 0.0
    %86 = vmatpush2.msra.mxu0 0.0
    %87 = vmatprep.subr.mxu0 0.0
    %88 = vmatpush2.msra.mxu0 0.0
    %89 = vmatprep.subr.mxu0 0.0
    %90 = vmatpush2.msra.mxu0 0.0
    %91 = vmatprep.subr.mxu0 0.0
    %92 = vmatpush2.msra.mxu0 0.0
    %93 = vmatprep.subr.mxu0 0.0
    %94 = vmatpush2.msra.mxu0 0.0
    %95 = vmatprep.subr.mxu0 0.0
    %96 = vmatpush2.msra.mxu0 0.0
    %97 = vmatprep.subr.mxu0 0.0
    %98 = vmatpush2.msra.mxu0 0.0
    %99 = vmatprep.subr.mxu0 0.0
    %100 = vmatpush2.msra.mxu0 0.0
    %101 = vmatprep.subr.mxu0 0.0
    %102 = vmatpush2.msra.mxu0 0.0
    %103 = vmatprep.subr.mxu0 0.0
    %104 = vmatpush2.msra.mxu0 0.0
    %105 = vmatprep.mubr.f32.mxu0 0.0
    %106 = vmatmul.mubr.f32.gmra.mxu0 %v36
    %v107 = vpop.f32.mrf.mxu0
    %v108 = vadd.f32 %v32, %v107
    %v109 = vpop.f32.mrf.mxu0
    %110 = vmatprep.mubr.f32.mxu0 0.0
    %111 = vmatmul.mubr.f32.gmra.mxu0 %v39
    %v112 = vpop.f32.mrf.mxu0
    %v113 = vadd.f32 %v32, %v112
    %v114 = vpop.f32.mrf.mxu0
    %115 = vdwg.mxu0
    %v116 = vld [vmem:[%s3] sm:$0x1]
    %v117 = vld [vmem:[%s4] sm:$0x1]
    %v118 = vsel %vm34, %v108, 0.0
    %119 = vadd.xlane.f32.xlu0 %v118
    %v120 = vpop.xlane.xlu0 %119
    %v121 = vsel %vm34, %v113, 0.0
    %122 = vadd.xlane.f32.xlu0 %v121
    %v123 = vpop.xlane.xlu0 %122
    %v124 = vrcp.pop 32.0
    %v125 = vmul.f32 %v120, %v124
    %v126 = vmul.f32 %v123, %v124
    %v127 = vsub.f32 %v108, %v125
    %v128 = vsub.f32 %v113, %v126
    %v129 = vmul.f32 %v127, %v127
    %v130 = vmul.f32 %v128, %v128
    %v131 = vsel %vm34, %v129, 0.0
    %132 = vadd.xlane.f32.xlu0 %v131
    %v133 = vpop.xlane.xlu0 %132
    %v134 = vsel %vm34, %v130, 0.0
    %135 = vadd.xlane.f32.xlu0 %v134
    %v136 = vpop.xlane.xlu0 %135
    %v137 = vmul.f32 %v133, %v124
    %v138 = vmul.f32 %v136, %v124
    %v139 = vadd.f32 %v137, 1e-05
    %v140 = vadd.f32 %v138, 1e-05
    %v141 = vrsqrt.pop %v139
    %v142 = vrsqrt.pop %v140
    %v143 = vmul.f32 %v127, %v141
    %v144 = vmul.f32 %v128, %v142
    %v146 = vlaneseq
    %v147 = vshrl.u32 %v146, 7
    %v148 = vsub.s32 0, %v147
    %v149 = vrot.slane %v116, %v148
    %v151 = vmul.f32 %v143, %v149
    %v152 = vmul.f32 %v144, %v149
    %v154 = vlaneseq
    %v155 = vshrl.u32 %v154, 7
    %v156 = vsub.s32 0, %v155
    %v157 = vrot.slane %v117, %v156
    %v159 = vadd.f32 %v151, %v157
    %v160 = vadd.f32 %v152, %v157
    %161 = vst.msk [vmem:[#allocation2] sm:$0xff] %vm34, %v159
    %162 = vst.msk [vmem:[#allocation2 + $0x8] sm:$0xff] %vm34, %v160
    // Predicated region
    $region22: #{knowledge_reasoner_forward.15} parent=1 // pred_check
      _
    $region23: #{knowledge_reasoner_forward.15} parent=1 // pred_check_branch
      %164 = sbr.rel (0) target = $region25
    $region24: #{knowledge_reasoner_forward.15} parent=1 // pred_region
      %s166 = ssub.s32 256, 256
      %167 = vsyncadd [#allocation3], %s166
      %s168 = sshll.u32 [#allocation2], 4
      %s169 = int_to_ptr.vmem [resolvable:$true] %s168
      %174 = dma.vmem_to_hbm [thread:$0]  %s169, 256, %s5, [#allocation3], 128, 128, 8
    $region25: #{knowledge_reasoner_forward.15} parent=1 // pred_fallthru
      _
    // Predicated region
    $region26: #{knowledge_reasoner_forward.15} parent=1 // pred_check
      _
    $region27: #{knowledge_reasoner_forward.15} parent=1 // pred_check_branch
      %176 = sbr.rel (0) target = $region29
    $region28: #{knowledge_reasoner_forward.15} parent=1 // pred_region
      %177 = dma.done [#allocation3], 256
    $region29: #{knowledge_reasoner_forward.15} parent=1 // pred_fallthru
      _
    %178 = vsyncpa [#allocation3], 1

// kernel: knowledge_reasoner_forward.12
$region0: #{knowledge_reasoner_forward.12}
  #allocation0 [shape = 'u32[]', space=smem, size = 0x4, offset = 0x4, fixed_abs, tag = 'smem constant byte address 0x4 - core index']
  #allocation1 [shape = 'u32[144,128]{1,0:T(1,128)}', space=vmem, size = 0x12000, scoped, tag = 'internal scratch']
  #allocation2 [shape = 'f32[16,32]{1,0:T(8,128)}', space=vmem, size = 0x2000, scoped, tag = 'scratch operand']
  %s0 = inlined_call_operand.vmem [shape: f32[16,32], index: 0, kind: input, shape index: {}]
  %s1 = inlined_call_operand.vmem [shape: f32[32,128], index: 1, kind: input, shape index: {}]
  %s2 = inlined_call_operand.vmem [shape: f32[1,128], index: 2, kind: input, shape index: {}]
  %s3 = inlined_call_operand.vmem [shape: f32[128,32], index: 3, kind: input, shape index: {}]
  %s4 = inlined_call_operand.vmem [shape: f32[1,32], index: 4, kind: input, shape index: {}]
  %s5 = inlined_call_operand.vmem [shape: f32[1,32], index: 5, kind: input, shape index: {}]
  %s6 = inlined_call_operand.vmem [shape: f32[1,32], index: 6, kind: input, shape index: {}]
  %s7 = inlined_call_operand.vmem [shape: f32[16,32], index: 7, kind: output, shape index: {}]
  %s8 = sld [smem:[#allocation0]]
  $region46: #{knowledge_reasoner_forward.12} parent=0
    _
  %s10 = ssub.s32 1, %s8
  %s11 = scalar_select 0, %s10, %s8
  // Predicated region
  $region2: #{knowledge_reasoner_forward.12} parent=0 // pred_check
    _
  $region3: #{knowledge_reasoner_forward.12} parent=0 // pred_check_branch
    %13 = sbr.rel (0) target = $region5
  $region4: #{knowledge_reasoner_forward.12} parent=0 // pred_region
    _
  $region5: #{knowledge_reasoner_forward.12} parent=0 // pred_fallthru
    _
  // Predicated region
  $region6: #{knowledge_reasoner_forward.12} parent=0 // pred_check
    _
  $region7: #{knowledge_reasoner_forward.12} parent=0 // pred_check_branch
    %15 = sbr.rel (0) target = $region9
  $region8: #{knowledge_reasoner_forward.12} parent=0 // pred_region
    _
  $region9: #{knowledge_reasoner_forward.12} parent=0 // pred_fallthru
    _
  // Predicated region
  $region10: #{knowledge_reasoner_forward.12} parent=0 // pred_check
    _
  $region11: #{knowledge_reasoner_forward.12} parent=0 // pred_check_branch
    %17 = sbr.rel (0) target = $region13
  $region12: #{knowledge_reasoner_forward.12} parent=0 // pred_region
    _
  $region13: #{knowledge_reasoner_forward.12} parent=0 // pred_fallthru
    _
  // Predicated region
  $region14: #{knowledge_reasoner_forward.12} parent=0 // pred_check
    _
  $region15: #{knowledge_reasoner_forward.12} parent=0 // pred_check_branch
    %19 = sbr.rel (0) target = $region17
  $region16: #{knowledge_reasoner_forward.12} parent=0 // pred_region
    _
  $region17: #{knowledge_reasoner_forward.12} parent=0 // pred_fallthru
    _
  // Predicated region
  $region18: #{knowledge_reasoner_forward.12} parent=0 // pred_check
    _
  $region19: #{knowledge_reasoner_forward.12} parent=0 // pred_check_branch
    %21 = sbr.rel (0) target = $region21
  $region20: #{knowledge_reasoner_forward.12} parent=0 // pred_region
    _
  $region21: #{knowledge_reasoner_forward.12} parent=0 // pred_fallthru
    _
  // Predicated region
  $region22: #{knowledge_reasoner_forward.12} parent=0 // pred_check
    _
  $region23: #{knowledge_reasoner_forward.12} parent=0 // pred_check_branch
    %23 = sbr.rel (0) target = $region25
  $region24: #{knowledge_reasoner_forward.12} parent=0 // pred_region
    _
  $region25: #{knowledge_reasoner_forward.12} parent=0 // pred_fallthru
    _
  // Predicated region
  $region26: #{knowledge_reasoner_forward.12} parent=0 // pred_check
    _
  $region27: #{knowledge_reasoner_forward.12} parent=0 // pred_check_branch
    %25 = sbr.rel (0) target = $region29
  $region28: #{knowledge_reasoner_forward.12} parent=0 // pred_region
    _
  $region29: #{knowledge_reasoner_forward.12} parent=0 // pred_fallthru
    _
  %p26 = scmp.eq.s32.totalorder 0, 0
  // Predicated region
  $region30: #{knowledge_reasoner_forward.12} parent=0 // pred_check
    %p27 = pneg %p26
  $region31: #{knowledge_reasoner_forward.12} parent=0 // pred_check_branch
    %29 = sbr.rel (%p27) target = $region33
  $region32: #{knowledge_reasoner_forward.12} parent=0 // pred_region
    %vm30 = vcmask 261120
    %31 = vst.msk [vmem:[#allocation2] sm:$0xff] %vm30, 0.0
    %32 = vst.msk [vmem:[#allocation2 + $0x8] sm:$0xff] %vm30, 0.0
  $region33: #{knowledge_reasoner_forward.12} parent=0 // pred_fallthru
    _
  %v33 = vld [vmem:[%s0] sm:$0xff]
  %v34 = vld [vmem:[%s0 + $0x8] sm:$0xff]
  %v35 = vld [vmem:[%s1] sm:$0xff]
  %v36 = vld [vmem:[%s1 + $0x8] sm:$0xff]
  %v37 = vld [vmem:[%s1 + $0x10] sm:$0xff]
  %v38 = vld [vmem:[%s1 + $0x18] sm:$0xff]
  %v39 = vld [vmem:[%s2] sm:$0x1]
  %v41 = vlaneseq
  %v42 = vshrl.u32 %v41, 7
  %v43 = vsub.s32 0, %v42
  %v44 = vrot.slane %v39, %v43
  %vm46 = vcmask 261120
  %v48 = vsel %vm46, %v33, 0
  %v51 = vsel %vm46, %v34, 0
  %53 = vmatprep.subr.mxu0 0.0
  %54 = vmatpush1.msra.mxu0 0.0
  %55 = vmatprep.subr.mxu0 0.0
  %56 = vmatpush1.msra.mxu0 0.0
  %57 = vmatprep.subr.mxu0 0.0
  %58 = vmatpush1.msra.mxu0 0.0
  %59 = vmatprep.subr.mxu0 0.0
  %60 = vmatpush1.msra.mxu0 0.0
  %61 = vmatprep.subr.mxu0 0.0
  %62 = vmatpush1.msra.mxu0 0.0
  %63 = vmatprep.subr.mxu0 0.0
  %64 = vmatpush1.msra.mxu0 0.0
  %65 = vmatprep.subr.mxu0 0.0
  %66 = vmatpush1.msra.mxu0 0.0
  %67 = vmatprep.subr.mxu0 0.0
  %68 = vmatpush1.msra.mxu0 0.0
  %69 = vmatprep.subr.mxu0 0.0
  %70 = vmatpush1.msra.mxu0 0.0
  %71 = vmatprep.subr.mxu0 0.0
  %72 = vmatpush1.msra.mxu0 0.0
  %73 = vmatprep.subr.mxu0 0.0
  %74 = vmatpush1.msra.mxu0 0.0
  %75 = vmatprep.subr.mxu0 0.0
  %76 = vmatpush1.msra.mxu0 0.0
  %77 = vmatprep.subr.mxu0 0.0
  %78 = vmatpush1.msra.mxu0 %v38
  %79 = vmatprep.subr.mxu0 0.0
  %80 = vmatpush1.msra.mxu0 %v37
  %81 = vmatprep.subr.mxu0 0.0
  %82 = vmatpush1.msra.mxu0 %v36
  %83 = vmatprep.subr.mxu0 0.0
  %84 = vmatpush1.msra.mxu0 %v35
  %85 = vmatprep.subr.mxu0 0.0
  %86 = vmatpush2.msra.mxu0 0.0
  %87 = vmatprep.subr.mxu0 0.0
  %88 = vmatpush2.msra.mxu0 0.0
  %89 = vmatprep.subr.mxu0 0.0
  %90 = vmatpush2.msra.mxu0 0.0
  %91 = vmatprep.subr.mxu0 0.0
  %92 = vmatpush2.msra.mxu0 0.0
  %93 = vmatprep.subr.mxu0 0.0
  %94 = vmatpush2.msra.mxu0 0.0
  %95 = vmatprep.subr.mxu0 0.0
  %96 = vmatpush2.msra.mxu0 0.0
  %97 = vmatprep.subr.mxu0 0.0
  %98 = vmatpush2.msra.mxu0 0.0
  %99 = vmatprep.subr.mxu0 0.0
  %100 = vmatpush2.msra.mxu0 0.0
  %101 = vmatprep.subr.mxu0 0.0
  %102 = vmatpush2.msra.mxu0 0.0
  %103 = vmatprep.subr.mxu0 0.0
  %104 = vmatpush2.msra.mxu0 0.0
  %105 = vmatprep.subr.mxu0 0.0
  %106 = vmatpush2.msra.mxu0 0.0
  %107 = vmatprep.subr.mxu0 0.0
  %108 = vmatpush2.msra.mxu0 0.0
  %109 = vmatprep.subr.mxu0 0.0
  %110 = vmatpush2.msra.mxu0 0.0
  %111 = vmatprep.subr.mxu0 0.0
  %112 = vmatpush2.msra.mxu0 0.0
  %113 = vmatprep.subr.mxu0 0.0
  %114 = vmatpush2.msra.mxu0 0.0
  %115 = vmatprep.subr.mxu0 0.0
  %116 = vmatpush2.msra.mxu0 0.0
  %117 = vmatprep.mubr.f32.mxu0 0.0
  %118 = vmatmul.mubr.f32.gmra.mxu0 %v48
  %v119 = vpop.f32.mrf.mxu0
  %v120 = vadd.f32 %v44, %v119
  %v121 = vpop.f32.mrf.mxu0
  %122 = vmatprep.mubr.f32.mxu0 0.0
  %123 = vmatmul.mubr.f32.gmra.mxu0 %v51
  %v124 = vpop.f32.mrf.mxu0
  %v125 = vadd.f32 %v44, %v124
  %v126 = vpop.f32.mrf.mxu0
  %127 = vdwg.mxu0
  %v128 = vmul.f32 %v120, 0.5
  %v129 = vmul.f32 %v125, 0.5
  %v130 = vmul.f32 %v120, 0.70710677
  %v131 = vmul.f32 %v125, 0.70710677
  %v132 = verf.f32.pop %v130
  %v133 = verf.f32.pop %v131
  %v134 = vadd.f32 %v132, 1.0
  %v135 = vadd.f32 %v133, 1.0
  %v136 = vmul.f32 %v128, %v134
  %v137 = vmul.f32 %v129, %v135
  %v138 = vld [vmem:[#allocation2] sm:$0xff]
  %v139 = vld [vmem:[#allocation2 + $0x8] sm:$0xff]
  %v140 = vld [vmem:[%s3] sm:$0xff]
  %v141 = vld [vmem:[%s3 + $0x8] sm:$0xff]
  %v142 = vld [vmem:[%s3 + $0x10] sm:$0xff]
  %v143 = vld [vmem:[%s3 + $0x18] sm:$0xff]
  %v144 = vld [vmem:[%s3 + $0x20] sm:$0xff]
  %v145 = vld [vmem:[%s3 + $0x28] sm:$0xff]
  %v146 = vld [vmem:[%s3 + $0x30] sm:$0xff]
  %v147 = vld [vmem:[%s3 + $0x38] sm:$0xff]
  %v148 = vld [vmem:[%s3 + $0x40] sm:$0xff]
  %v149 = vld [vmem:[%s3 + $0x48] sm:$0xff]
  %v150 = vld [vmem:[%s3 + $0x50] sm:$0xff]
  %v151 = vld [vmem:[%s3 + $0x58] sm:$0xff]
  %v152 = vld [vmem:[%s3 + $0x60] sm:$0xff]
  %v153 = vld [vmem:[%s3 + $0x68] sm:$0xff]
  %v154 = vld [vmem:[%s3 + $0x70] sm:$0xff]
  %v155 = vld [vmem:[%s3 + $0x78] sm:$0xff]
  %156 = vmatprep.subr.mxu0 0.0
  %157 = vmatpush1.msra.mxu0 %v155
  %158 = vmatprep.subr.mxu0 0.0
  %159 = vmatpush1.msra.mxu0 %v154
  %160 = vmatprep.subr.mxu0 0.0
  %161 = vmatpush1.msra.mxu0 %v153
  %162 = vmatprep.subr.mxu0 0.0
  %163 = vmatpush1.msra.mxu0 %v152
  %164 = vmatprep.subr.mxu0 0.0
  %165 = vmatpush1.msra.mxu0 %v151
  %166 = vmatprep.subr.mxu0 0.0
  %167 = vmatpush1.msra.mxu0 %v150
  %168 = vmatprep.subr.mxu0 0.0
  %169 = vmatpush1.msra.mxu0 %v149
  %170 = vmatprep.subr.mxu0 0.0
  %171 = vmatpush1.msra.mxu0 %v148
  %172 = vmatprep.subr.mxu0 0.0
  %173 = vmatpush1.msra.mxu0 %v147
  %174 = vmatprep.subr.mxu0 0.0
  %175 = vmatpush1.msra.mxu0 %v146
  %176 = vmatprep.subr.mxu0 0.0
  %177 = vmatpush1.msra.mxu0 %v145
  %178 = vmatprep.subr.mxu0 0.0
  %179 = vmatpush1.msra.mxu0 %v144
  %180 = vmatprep.subr.mxu0 0.0
  %181 = vmatpush1.msra.mxu0 %v143
  %182 = vmatprep.subr.mxu0 0.0
  %183 = vmatpush1.msra.mxu0 %v142
  %184 = vmatprep.subr.mxu0 0.0
  %185 = vmatpush1.msra.mxu0 %v141
  %186 = vmatprep.subr.mxu0 0.0
  %187 = vmatpush1.msra.mxu0 %v140
  %188 = vmatprep.subr.mxu0 0.0
  %189 = vmatpush2.msra.mxu0 0.0
  %190 = vmatprep.subr.mxu0 0.0
  %191 = vmatpush2.msra.mxu0 0.0
  %192 = vmatprep.subr.mxu0 0.0
  %193 = vmatpush2.msra.mxu0 0.0
  %194 = vmatprep.subr.mxu0 0.0
  %195 = vmatpush2.msra.mxu0 0.0
  %196 = vmatprep.subr.mxu0 0.0
  %197 = vmatpush2.msra.mxu0 0.0
  %198 = vmatprep.subr.mxu0 0.0
  %199 = vmatpush2.msra.mxu0 0.0
  %200 = vmatprep.subr.mxu0 0.0
  %201 = vmatpush2.msra.mxu0 0.0
  %202 = vmatprep.subr.mxu0 0.0
  %203 = vmatpush2.msra.mxu0 0.0
  %204 = vmatprep.subr.mxu0 0.0
  %205 = vmatpush2.msra.mxu0 0.0
  %206 = vmatprep.subr.mxu0 0.0
  %207 = vmatpush2.msra.mxu0 0.0
  %208 = vmatprep.subr.mxu0 0.0
  %209 = vmatpush2.msra.mxu0 0.0
  %210 = vmatprep.subr.mxu0 0.0
  %211 = vmatpush2.msra.mxu0 0.0
  %212 = vmatprep.subr.mxu0 0.0
  %213 = vmatpush2.msra.mxu0 0.0
  %214 = vmatprep.subr.mxu0 0.0
  %215 = vmatpush2.msra.mxu0 0.0
  %216 = vmatprep.subr.mxu0 0.0
  %217 = vmatpush2.msra.mxu0 0.0
  %218 = vmatprep.subr.mxu0 0.0
  %219 = vmatpush2.msra.mxu0 0.0
  %220 = vmatprep.mubr.f32.mxu0 0.0
  %221 = vmatmul.mubr.f32.gmra.mxu0 %v136
  %v222 = vpop.f32.mrf.mxu0
  %v223 = vadd.f32 0.0, %v222
  %v224 = vpop.f32.mrf.mxu0
  %225 = vmatprep.mubr.f32.mxu0 0.0
  %226 = vmatmul.mubr.f32.gmra.mxu0 %v137
  %v227 = vpop.f32.mrf.mxu0
  %v228 = vadd.f32 0.0, %v227
  %v229 = vpop.f32.mrf.mxu0
  %230 = vdwg.mxu0
  %v231 = vadd.f32 %v138, %v223
  %v232 = vadd.f32 %v139, %v228
  %233 = vst.msk [vmem:[#allocation2] sm:$0xff] %vm46, %v231
  %234 = vst.msk [vmem:[#allocation2 + $0x8] sm:$0xff] %vm46, %v232
  // Predicated region
  $region34: #{knowledge_reasoner_forward.12} parent=0 // pred_check
    %p235 = pneg %p26
  $region35: #{knowledge_reasoner_forward.12} parent=0 // pred_check_branch
    %237 = sbr.rel (%p235) target = $region37
  $region36: #{knowledge_reasoner_forward.12} parent=0 // pred_region
    %v238 = vld [vmem:[#allocation2] sm:$0xff]
    %v239 = vld [vmem:[#allocation2 + $0x8] sm:$0xff]
    %v240 = vld [vmem:[%s4] sm:$0x1]
    %v242 = vlaneseq
    %v243 = vshrl.u32 %v242, 7
    %v244 = vsub.s32 0, %v243
    %v245 = vrot.slane %v240, %v244
    %v247 = vadd.f32 %v238, %v245
    %v248 = vadd.f32 %v239, %v245
    %v249 = vadd.f32 %v247, %v33
    %v250 = vadd.f32 %v248, %v34
    %v251 = vld [vmem:[%s5] sm:$0x1]
    %v252 = vld [vmem:[%s6] sm:$0x1]
    %v253 = vsel %vm46, %v249, 0.0
    %254 = vadd.xlane.f32.xlu0 %v253
    %v255 = vpop.xlane.xlu0 %254
    %v256 = vsel %vm46, %v250, 0.0
    %257 = vadd.xlane.f32.xlu0 %v256
    %v258 = vpop.xlane.xlu0 %257
    %v259 = vrcp.pop 32.0
    %v260 = vmul.f32 %v255, %v259
    %v261 = vmul.f32 %v258, %v259
    %v262 = vsub.f32 %v249, %v260
    %v263 = vsub.f32 %v250, %v261
    %v264 = vmul.f32 %v262, %v262
    %v265 = vmul.f32 %v263, %v263
    %v266 = vsel %vm46, %v264, 0.0
    %267 = vadd.xlane.f32.xlu0 %v266
    %v268 = vpop.xlane.xlu0 %267
    %v269 = vsel %vm46, %v265, 0.0
    %270 = vadd.xlane.f32.xlu0 %v269
    %v271 = vpop.xlane.xlu0 %270
    %v272 = vmul.f32 %v268, %v259
    %v273 = vmul.f32 %v271, %v259
    %v274 = vadd.f32 %v272, 1e-05
    %v275 = vadd.f32 %v273, 1e-05
    %v276 = vrsqrt.pop %v274
    %v277 = vrsqrt.pop %v275
    %v278 = vmul.f32 %v262, %v276
    %v279 = vmul.f32 %v263, %v277
    %v281 = vlaneseq
    %v282 = vshrl.u32 %v281, 7
    %v283 = vsub.s32 0, %v282
    %v284 = vrot.slane %v251, %v283
    %v286 = vmul.f32 %v278, %v284
    %v287 = vmul.f32 %v279, %v284
    %v289 = vlaneseq
    %v290 = vshrl.u32 %v289, 7
    %v291 = vsub.s32 0, %v290
    %v292 = vrot.slane %v252, %v291
    %v294 = vadd.f32 %v286, %v292
    %v295 = vadd.f32 %v287, %v292
    %296 = vst.msk [vmem:[%s7] sm:$0xff] %vm46, %v294
    %297 = vst.msk [vmem:[%s7 + $0x8] sm:$0xff] %vm46, %v295
  $region37: #{knowledge_reasoner_forward.12} parent=0 // pred_fallthru
    _
  // Predicated region
  $region38: #{knowledge_reasoner_forward.12} parent=0 // pred_check
    _
  $region39: #{knowledge_reasoner_forward.12} parent=0 // pred_check_branch
    %299 = sbr.rel (0) target = $region41
  $region40: #{knowledge_reasoner_forward.12} parent=0 // pred_region
    _
  $region41: #{knowledge_reasoner_forward.12} parent=0 // pred_fallthru
    _
  // Predicated region
  $region42: #{knowledge_reasoner_forward.12} parent=0 // pred_check
    _
  $region43: #{knowledge_reasoner_forward.12} parent=0 // pred_check_branch
    %301 = sbr.rel (0) target = $region45
  $region44: #{knowledge_reasoner_forward.12} parent=0 // pred_region
    _
  $region45: #{knowledge_reasoner_forward.12} parent=0 // pred_fallthru
    _

// kernel: knowledge_reasoner_forward.8
$region0: #{knowledge_reasoner_forward.8}
  #allocation0 [shape = 'u32[]', space=smem, size = 0x4, offset = 0x4, fixed_abs, tag = 'smem constant byte address 0x4 - core index']
  #allocation1 [shape = 'u32[144,128]{1,0:T(1,128)}', space=vmem, size = 0x12000, scoped, tag = 'internal scratch']
  %s0 = inlined_call_operand.vmem [shape: f32[2,32], index: 0, kind: input, shape index: {}]
  %s1 = inlined_call_operand.vmem [shape: f32[32,32], index: 1, kind: input, shape index: {}]
  %s2 = inlined_call_operand.vmem [shape: f32[1,32], index: 2, kind: input, shape index: {}]
  %s3 = inlined_call_operand.vmem [shape: f32[32,32], index: 3, kind: input, shape index: {}]
  %s4 = inlined_call_operand.hbm [shape: f32[1,32], index: 4, kind: input, shape index: {}]
  %s5 = inlined_call_operand.vmem [shape: f32[16,32], index: 5, kind: input, shape index: {}]
  %s6 = inlined_call_operand.hbm [shape: f32[2,16], index: 6, kind: output, shape index: {0}]
  %s7 = inlined_call_operand.vmem [shape: f32[2,32], index: 7, kind: output, shape index: {1}]
  %8 = xla_tuple %s6, %s7
  %s9 = sld [smem:[#allocation0]]
  $region46: #{knowledge_reasoner_forward.8} parent=0
    _
  %s11 = ssub.s32 1, %s9
  %s12 = scalar_select 0, %s11, %s9
  $region1: #{knowledge_reasoner_forward.8} parent=0
    #allocation2 [shape = 'u8[512]{0}', space=vmem, size = 0x400, scoped, tag = 'input window, operand 4, single buffered']
    #allocation3 [shape = 's32[1]{0}', space=sflag, size = 0x4, scoped, tag = 'scoped memory for knowledge_reasoner_forward.8']
    #allocation4 [shape = 's32[1]{0}', space=sflag, size = 0x4, scoped, tag = 'scoped memory for knowledge_reasoner_forward.8']
    #allocation5 [shape = 'u8[1024]{0}', space=vmem, size = 0x400, scoped, tag = 'output window, operand 0, single buffered']
    %13 = vsyncpa [#allocation3], 0
    %14 = vsyncpa [#allocation4], 0
    // Predicated region
    $region2: #{knowledge_reasoner_forward.8} parent=1 // pred_check
      _
    $region3: #{knowledge_reasoner_forward.8} parent=1 // pred_check_branch
      %16 = sbr.rel (0) target = $region5
    $region4: #{knowledge_reasoner_forward.8} parent=1 // pred_region
      _
    $region5: #{knowledge_reasoner_forward.8} parent=1 // pred_fallthru
      _
    // Predicated region
    $region6: #{knowledge_reasoner_forward.8} parent=1 // pred_check
      _
    $region7: #{knowledge_reasoner_forward.8} parent=1 // pred_check_branch
      %18 = sbr.rel (0) target = $region9
    $region8: #{knowledge_reasoner_forward.8} parent=1 // pred_region
      _
    $region9: #{knowledge_reasoner_forward.8} parent=1 // pred_fallthru
      _
    // Predicated region
    $region10: #{knowledge_reasoner_forward.8} parent=1 // pred_check
      _
    $region11: #{knowledge_reasoner_forward.8} parent=1 // pred_check_branch
      %20 = sbr.rel (0) target = $region13
    $region12: #{knowledge_reasoner_forward.8} parent=1 // pred_region
      _
    $region13: #{knowledge_reasoner_forward.8} parent=1 // pred_fallthru
      _
    // Predicated region
    $region14: #{knowledge_reasoner_forward.8} parent=1 // pred_check
      _
    $region15: #{knowledge_reasoner_forward.8} parent=1 // pred_check_branch
      %22 = sbr.rel (0) target = $region17
    $region16: #{knowledge_reasoner_forward.8} parent=1 // pred_region
      _
    $region17: #{knowledge_reasoner_forward.8} parent=1 // pred_fallthru
      _
    // Predicated region
    $region18: #{knowledge_reasoner_forward.8} parent=1 // pred_check
      _
    $region19: #{knowledge_reasoner_forward.8} parent=1 // pred_check_branch
      %24 = sbr.rel (0) target = $region21
    $region20: #{knowledge_reasoner_forward.8} parent=1 // pred_region
      %s26 = ssub.s32 16, 16
      %27 = vsyncadd [#allocation3], %s26
      %s29 = sshll.u32 [#allocation2], 4
      %s30 = int_to_ptr.vmem [resolvable:$true] %s29
      %32 = dma.hbm_to_vmem [thread:$0]  %s4, 16, %s30, [#allocation3]
    $region21: #{knowledge_reasoner_forward.8} parent=1 // pred_fallthru
      _
    // Predicated region
    $region22: #{knowledge_reasoner_forward.8} parent=1 // pred_check
      _
    $region23: #{knowledge_reasoner_forward.8} parent=1 // pred_check_branch
      %34 = sbr.rel (0) target = $region25
    $region24: #{knowledge_reasoner_forward.8} parent=1 // pred_region
      _
    $region25: #{knowledge_reasoner_forward.8} parent=1 // pred_fallthru
      _
    // Predicated region
    $region26: #{knowledge_reasoner_forward.8} parent=1 // pred_check
      _
    $region27: #{knowledge_reasoner_forward.8} parent=1 // pred_check_branch
      %36 = sbr.rel (0) target = $region29
    $region28: #{knowledge_reasoner_forward.8} parent=1 // pred_region
      %37 = dma.done [#allocation3], 16
    $region29: #{knowledge_reasoner_forward.8} parent=1 // pred_fallthru
      _
    %v38 = vld [vmem:[%s0] sm:$0x3]
    %v39 = vld [vmem:[%s1] sm:$0xff]
    %v40 = vld [vmem:[%s1 + $0x8] sm:$0xff]
    %v41 = vld [vmem:[%s1 + $0x10] sm:$0xff]
    %v42 = vld [vmem:[%s1 + $0x18] sm:$0xff]
    %v43 = vld [vmem:[%s2] sm:$0x1]
    %v45 = vlaneseq
    %v46 = vshrl.u32 %v45, 7
    %v47 = vsub.s32 0, %v46
    %v48 = vrot.slane %v43, %v47
    %vm50 = vcmask 261120
    %v52 = vsel %vm50, %v38, 0
    %54 = vmatprep.subr.mxu0 0.0
    %55 = vmatpush1.msra.mxu0 0.0
    %56 = vmatprep.subr.mxu0 0.0
    %57 = vmatpush1.msra.mxu0 0.0
    %58 = vmatprep.subr.mxu0 0.0
    %59 = vmatpush1.msra.mxu0 0.0
    %60 = vmatprep.subr.mxu0 0.0
    %61 = vmatpush1.msra.mxu0 0.0
    %62 = vmatprep.subr.mxu0 0.0
    %63 = vmatpush1.msra.mxu0 0.0
    %64 = vmatprep.subr.mxu0 0.0
    %65 = vmatpush1.msra.mxu0 0.0
    %66 = vmatprep.subr.mxu0 0.0
    %67 = vmatpush1.msra.mxu0 0.0
    %68 = vmatprep.subr.mxu0 0.0
    %69 = vmatpush1.msra.mxu0 0.0
    %70 = vmatprep.subr.mxu0 0.0
    %71 = vmatpush1.msra.mxu0 0.0
    %72 = vmatprep.subr.mxu0 0.0
    %73 = vmatpush1.msra.mxu0 0.0
    %74 = vmatprep.subr.mxu0 0.0
    %75 = vmatpush1.msra.mxu0 0.0
    %76 = vmatprep.subr.mxu0 0.0
    %77 = vmatpush1.msra.mxu0 0.0
    %78 = vmatprep.subr.mxu0 0.0
    %79 = vmatpush1.msra.mxu0 %v42
    %80 = vmatprep.subr.mxu0 0.0
    %81 = vmatpush1.msra.mxu0 %v41
    %82 = vmatprep.subr.mxu0 0.0
    %83 = vmatpush1.msra.mxu0 %v40
    %84 = vmatprep.subr.mxu0 0.0
    %85 = vmatpush1.msra.mxu0 %v39
    %86 = vmatprep.subr.mxu0 0.0
    %87 = vmatpush2.msra.mxu0 0.0
    %88 = vmatprep.subr.mxu0 0.0
    %89 = vmatpush2.msra.mxu0 0.0
    %90 = vmatprep.subr.mxu0 0.0
    %91 = vmatpush2.msra.mxu0 0.0
    %92 = vmatprep.subr.mxu0 0.0
    %93 = vmatpush2.msra.mxu0 0.0
    %94 = vmatprep.subr.mxu0 0.0
    %95 = vmatpush2.msra.mxu0 0.0
    %96 = vmatprep.subr.mxu0 0.0
    %97 = vmatpush2.msra.mxu0 0.0
    %98 = vmatprep.subr.mxu0 0.0
    %99 = vmatpush2.msra.mxu0 0.0
    %100 = vmatprep.subr.mxu0 0.0
    %101 = vmatpush2.msra.mxu0 0.0
    %102 = vmatprep.subr.mxu0 0.0
    %103 = vmatpush2.msra.mxu0 0.0
    %104 = vmatprep.subr.mxu0 0.0
    %105 = vmatpush2.msra.mxu0 0.0
    %106 = vmatprep.subr.mxu0 0.0
    %107 = vmatpush2.msra.mxu0 0.0
    %108 = vmatprep.subr.mxu0 0.0
    %109 = vmatpush2.msra.mxu0 0.0
    %110 = vmatprep.subr.mxu0 0.0
    %111 = vmatpush2.msra.mxu0 0.0
    %112 = vmatprep.subr.mxu0 0.0
    %113 = vmatpush2.msra.mxu0 0.0
    %114 = vmatprep.subr.mxu0 0.0
    %115 = vmatpush2.msra.mxu0 0.0
    %116 = vmatprep.subr.mxu0 0.0
    %117 = vmatpush2.msra.mxu0 0.0
    %118 = vmatprep.mubr.f32.mxu0 0.0
    %119 = vmatmul.mubr.f32.gmra.mxu0 %v52
    %v120 = vpop.f32.mrf.mxu0
    %v121 = vadd.f32 %v48, %v120
    %v122 = vpop.f32.mrf.mxu0
    %123 = vdwg.mxu0
    %v124 = vmul.f32 %v121, 0.5
    %v125 = vmul.f32 %v121, 0.70710677
    %v126 = verf.f32.pop %v125
    %v127 = vadd.f32 %v126, 1.0
    %v128 = vmul.f32 %v124, %v127
    %v129 = vld [vmem:[%s3] sm:$0xff]
    %v130 = vld [vmem:[%s3 + $0x8] sm:$0xff]
    %v131 = vld [vmem:[%s3 + $0x10] sm:$0xff]
    %v132 = vld [vmem:[%s3 + $0x18] sm:$0xff]
    %v133 = vld [vmem:[#allocation2] sm:$0x1]
    %v135 = vlaneseq
    %v136 = vshrl.u32 %v135, 7
    %v137 = vsub.s32 0, %v136
    %v138 = vrot.slane %v133, %v137
    %v141 = vsel %vm50, %v128, 0
    %143 = vmatprep.subr.mxu0 0.0
    %144 = vmatpush1.msra.mxu0 0.0
    %145 = vmatprep.subr.mxu0 0.0
    %146 = vmatpush1.msra.mxu0 0.0
    %147 = vmatprep.subr.mxu0 0.0
    %148 = vmatpush1.msra.mxu0 0.0
    %149 = vmatprep.subr.mxu0 0.0
    %150 = vmatpush1.msra.mxu0 0.0
    %151 = vmatprep.subr.mxu0 0.0
    %152 = vmatpush1.msra.mxu0 0.0
    %153 = vmatprep.subr.mxu0 0.0
    %154 = vmatpush1.msra.mxu0 0.0
    %155 = vmatprep.subr.mxu0 0.0
    %156 = vmatpush1.msra.mxu0 0.0
    %157 = vmatprep.subr.mxu0 0.0
    %158 = vmatpush1.msra.mxu0 0.0
    %159 = vmatprep.subr.mxu0 0.0
    %160 = vmatpush1.msra.mxu0 0.0
    %161 = vmatprep.subr.mxu0 0.0
    %162 = vmatpush1.msra.mxu0 0.0
    %163 = vmatprep.subr.mxu0 0.0
    %164 = vmatpush1.msra.mxu0 0.0
    %165 = vmatprep.subr.mxu0 0.0
    %166 = vmatpush1.msra.mxu0 0.0
    %167 = vmatprep.subr.mxu0 0.0
    %168 = vmatpush1.msra.mxu0 %v132
    %169 = vmatprep.subr.mxu0 0.0
    %170 = vmatpush1.msra.mxu0 %v131
    %171 = vmatprep.subr.mxu0 0.0
    %172 = vmatpush1.msra.mxu0 %v130
    %173 = vmatprep.subr.mxu0 0.0
    %174 = vmatpush1.msra.mxu0 %v129
    %175 = vmatprep.subr.mxu0 0.0
    %176 = vmatpush2.msra.mxu0 0.0
    %177 = vmatprep.subr.mxu0 0.0
    %178 = vmatpush2.msra.mxu0 0.0
    %179 = vmatprep.subr.mxu0 0.0
    %180 = vmatpush2.msra.mxu0 0.0
    %181 = vmatprep.subr.mxu0 0.0
    %182 = vmatpush2.msra.mxu0 0.0
    %183 = vmatprep.subr.mxu0 0.0
    %184 = vmatpush2.msra.mxu0 0.0
    %185 = vmatprep.subr.mxu0 0.0
    %186 = vmatpush2.msra.mxu0 0.0
    %187 = vmatprep.subr.mxu0 0.0
    %188 = vmatpush2.msra.mxu0 0.0
    %189 = vmatprep.subr.mxu0 0.0
    %190 = vmatpush2.msra.mxu0 0.0
    %191 = vmatprep.subr.mxu0 0.0
    %192 = vmatpush2.msra.mxu0 0.0
    %193 = vmatprep.subr.mxu0 0.0
    %194 = vmatpush2.msra.mxu0 0.0
    %195 = vmatprep.subr.mxu0 0.0
    %196 = vmatpush2.msra.mxu0 0.0
    %197 = vmatprep.subr.mxu0 0.0
    %198 = vmatpush2.msra.mxu0 0.0
    %199 = vmatprep.subr.mxu0 0.0
    %200 = vmatpush2.msra.mxu0 0.0
    %201 = vmatprep.subr.mxu0 0.0
    %202 = vmatpush2.msra.mxu0 0.0
    %203 = vmatprep.subr.mxu0 0.0
    %204 = vmatpush2.msra.mxu0 0.0
    %205 = vmatprep.subr.mxu0 0.0
    %206 = vmatpush2.msra.mxu0 0.0
    %207 = vmatprep.mubr.f32.mxu0 0.0
    %208 = vmatmul.mubr.f32.gmra.mxu0 %v141
    %v209 = vpop.f32.mrf.mxu0
    %v210 = vadd.f32 %v138, %v209
    %v211 = vpop.f32.mrf.mxu0
    %212 = vdwg.mxu0
    %v213 = vld [vmem:[%s5] sm:$0xff]
    %v214 = vld [vmem:[%s5 + $0x8] sm:$0xff]
    %v216 = vsel %vm50, %v210, 0
    %v219 = vsel %vm50, %v213, 0
    %v222 = vsel %vm50, %v214, 0
    %224 = vmatprep.subr.mxu0 0.0
    %225 = vmatpush1.xpose.msra.mxu0 0.0
    %226 = vmatprep.subr.mxu0 0.0
    %227 = vmatpush1.xpose.msra.mxu0 0.0
    %228 = vmatprep.subr.mxu0 0.0
    %229 = vmatpush1.xpose.msra.mxu0 0.0
    %230 = vmatprep.subr.mxu0 0.0
    %231 = vmatpush1.xpose.msra.mxu0 0.0
    %232 = vmatprep.subr.mxu0 0.0
    %233 = vmatpush1.xpose.msra.mxu0 0.0
    %234 = vmatprep.subr.mxu0 0.0
    %235 = vmatpush1.xpose.msra.mxu0 0.0
    %236 = vmatprep.subr.mxu0 0.0
    %237 = vmatpush1.xpose.msra.mxu0 0.0
    %238 = vmatprep.subr.mxu0 0.0
    %239 = vmatpush1.xpose.msra.mxu0 0.0
    %240 = vmatprep.subr.mxu0 0.0
    %241 = vmatpush1.xpose.msra.mxu0 0.0
    %242 = vmatprep.subr.mxu0 0.0
    %243 = vmatpush1.xpose.msra.mxu0 0.0
    %244 = vmatprep.subr.mxu0 0.0
    %245 = vmatpush1.xpose.msra.mxu0 0.0
    %246 = vmatprep.subr.mxu0 0.0
    %247 = vmatpush1.xpose.msra.mxu0 0.0
    %248 = vmatprep.subr.mxu0 0.0
    %249 = vmatpush1.xpose.msra.mxu0 0.0
    %250 = vmatprep.subr.mxu0 0.0
    %251 = vmatpush1.xpose.msra.mxu0 0.0
    %252 = vmatprep.subr.mxu0 0.0
    %253 = vmatpush1.xpose.msra.mxu0 %v222
    %254 = vmatprep.subr.mxu0 0.0
    %255 = vmatpush1.xpose.msra.mxu0 %v219
    %256 = vmatprep.subr.mxu0 0.0
    %257 = vmatpush2.xpose.msra.mxu0 0.0
    %258 = vmatprep.subr.mxu0 0.0
    %259 = vmatpush2.xpose.msra.mxu0 0.0
    %260 = vmatprep.subr.mxu0 0.0
    %261 = vmatpush2.xpose.msra.mxu0 0.0
    %262 = vmatprep.subr.mxu0 0.0
    %263 = vmatpush2.xpose.msra.mxu0 0.0
    %264 = vmatprep.subr.mxu0 0.0
    %265 = vmatpush2.xpose.msra.mxu0 0.0
    %266 = vmatprep.subr.mxu0 0.0
    %267 = vmatpush2.xpose.msra.mxu0 0.0
    %268 = vmatprep.subr.mxu0 0.0
    %269 = vmatpush2.xpose.msra.mxu0 0.0
    %270 = vmatprep.subr.mxu0 0.0
    %271 = vmatpush2.xpose.msra.mxu0 0.0
    %272 = vmatprep.subr.mxu0 0.0
    %273 = vmatpush2.xpose.msra.mxu0 0.0
    %274 = vmatprep.subr.mxu0 0.0
    %275 = vmatpush2.xpose.msra.mxu0 0.0
    %276 = vmatprep.subr.mxu0 0.0
    %277 = vmatpush2.xpose.msra.mxu0 0.0
    %278 = vmatprep.subr.mxu0 0.0
    %279 = vmatpush2.xpose.msra.mxu0 0.0
    %280 = vmatprep.subr.mxu0 0.0
    %281 = vmatpush2.xpose.msra.mxu0 0.0
    %282 = vmatprep.subr.mxu0 0.0
    %283 = vmatpush2.xpose.msra.mxu0 0.0
    %284 = vmatprep.subr.mxu0 0.0
    %285 = vmatpush2.xpose.msra.mxu0 0.0
    %286 = vmatprep.subr.mxu0 0.0
    %287 = vmatpush2.xpose.msra.mxu0 0.0
    %288 = vmatprep.mubr.f32.mxu0 0.0
    %289 = vmatmul.mubr.f32.gmra.mxu0 %v216
    %v290 = vpop.f32.mrf.mxu0
    %v291 = vadd.f32 0.0, %v290
    %v292 = vpop.f32.mrf.mxu0
    %293 = vdwg.mxu0
    %vm294 = vcmask 123904
    %v295 = vsel %vm294, %v291, -inf
    %296 = vmax.xlane.f32.xlu0 %v295
    %v297 = vpop.xlane.xlu0 %296
    %v298 = vsub.f32 %v291, %v297
    %v299 = vmul.f32 %v298, 1.442695
    %v300 = vpow.pop %v299
    %v301 = vsel %vm294, %v300, 0.0
    %302 = vadd.xlane.f32.xlu0 %v301
    %v303 = vpop.xlane.xlu0 %302
    %v304 = vrcp.pop %v303
    %v305 = vmul.f32 %v300, %v304
    %306 = vst.msk [vmem:[#allocation5] sm:$0x3] %vm294, %v305
    %vm307 = vcmask 130048
    %v309 = vsel %vm307, %v305, 0
    %311 = vmatprep.subr.mxu0 0.0
    %312 = vmatpush1.msra.mxu0 0.0
    %313 = vmatprep.subr.mxu0 0.0
    %314 = vmatpush1.msra.mxu0 0.0
    %315 = vmatprep.subr.mxu0 0.0
    %316 = vmatpush1.msra.mxu0 0.0
    %317 = vmatprep.subr.mxu0 0.0
    %318 = vmatpush1.msra.mxu0 0.0
    %319 = vmatprep.subr.mxu0 0.0
    %320 = vmatpush1.msra.mxu0 0.0
    %321 = vmatprep.subr.mxu0 0.0
    %322 = vmatpush1.msra.mxu0 0.0
    %323 = vmatprep.subr.mxu0 0.0
    %324 = vmatpush1.msra.mxu0 0.0
    %325 = vmatprep.subr.mxu0 0.0
    %326 = vmatpush1.msra.mxu0 0.0
    %327 = vmatprep.subr.mxu0 0.0
    %328 = vmatpush1.msra.mxu0 0.0
    %329 = vmatprep.subr.mxu0 0.0
    %330 = vmatpush1.msra.mxu0 0.0
    %331 = vmatprep.subr.mxu0 0.0
    %332 = vmatpush1.msra.mxu0 0.0
    %333 = vmatprep.subr.mxu0 0.0
    %334 = vmatpush1.msra.mxu0 0.0
    %335 = vmatprep.subr.mxu0 0.0
    %336 = vmatpush1.msra.mxu0 0.0
    %337 = vmatprep.subr.mxu0 0.0
    %338 = vmatpush1.msra.mxu0 0.0
    %339 = vmatprep.subr.mxu0 0.0
    %340 = vmatpush1.msra.mxu0 %v214
    %341 = vmatprep.subr.mxu0 0.0
    %342 = vmatpush1.msra.mxu0 %v213
    %343 = vmatprep.subr.mxu0 0.0
    %344 = vmatpush2.msra.mxu0 0.0
    %345 = vmatprep.subr.mxu0 0.0
    %346 = vmatpush2.msra.mxu0 0.0
    %347 = vmatprep.subr.mxu0 0.0
    %348 = vmatpush2.msra.mxu0 0.0
    %349 = vmatprep.subr.mxu0 0.0
    %350 = vmatpush2.msra.mxu0 0.0
    %351 = vmatprep.subr.mxu0 0.0
    %352 = vmatpush2.msra.mxu0 0.0
    %353 = vmatprep.subr.mxu0 0.0
    %354 = vmatpush2.msra.mxu0 0.0
    %355 = vmatprep.subr.mxu0 0.0
    %356 = vmatpush2.msra.mxu0 0.0
    %357 = vmatprep.subr.mxu0 0.0
    %358 = vmatpush2.msra.mxu0 0.0
    %359 = vmatprep.subr.mxu0 0.0
    %360 = vmatpush2.msra.mxu0 0.0
    %361 = vmatprep.subr.mxu0 0.0
    %362 = vmatpush2.msra.mxu0 0.0
    %363 = vmatprep.subr.mxu0 0.0
    %364 = vmatpush2.msra.mxu0 0.0
    %365 = vmatprep.subr.mxu0 0.0
    %366 = vmatpush2.msra.mxu0 0.0
    %367 = vmatprep.subr.mxu0 0.0
    %368 = vmatpush2.msra.mxu0 0.0
    %369 = vmatprep.subr.mxu0 0.0
    %370 = vmatpush2.msra.mxu0 0.0
    %371 = vmatprep.subr.mxu0 0.0
    %372 = vmatpush2.msra.mxu0 0.0
    %373 = vmatprep.subr.mxu0 0.0
    %374 = vmatpush2.msra.mxu0 0.0
    %375 = vmatprep.mubr.f32.mxu0 0.0
    %376 = vmatmul.mubr.f32.gmra.mxu0 %v309
    %v377 = vpop.f32.mrf.mxu0
    %v378 = vadd.f32 0.0, %v377
    %v379 = vpop.f32.mrf.mxu0
    %380 = vdwg.mxu0
    %vm381 = vcmask 254976
    %382 = vst.msk [vmem:[%s7] sm:$0x3] %vm381, %v378
    // Predicated region
    $region30: #{knowledge_reasoner_forward.8} parent=1 // pred_check
      _
    $region31: #{knowledge_reasoner_forward.8} parent=1 // pred_check_branch
      %384 = sbr.rel (0) target = $region33
    $region32: #{knowledge_reasoner_forward.8} parent=1 // pred_region
      %s386 = ssub.s32 32, 32
      %387 = vsyncadd [#allocation4], %s386
      %s389 = sshll.u32 [#allocation5], 4
      %s390 = int_to_ptr.vmem [resolvable:$true] %s389
      %392 = dma.vmem_to_hbm [thread:$0]  %s390, 32, %s6, [#allocation4]
    $region33: #{knowledge_reasoner_forward.8} parent=1 // pred_fallthru
      _
    // Predicated region
    $region34: #{knowledge_reasoner_forward.8} parent=1 // pred_check
      _
    $region35: #{knowledge_reasoner_forward.8} parent=1 // pred_check_branch
      %394 = sbr.rel (0) target = $region37
    $region36: #{knowledge_reasoner_forward.8} parent=1 // pred_region
      _
    $region37: #{knowledge_reasoner_forward.8} parent=1 // pred_fallthru
      _
    // Predicated region
    $region38: #{knowledge_reasoner_forward.8} parent=1 // pred_check
      _
    $region39: #{knowledge_reasoner_forward.8} parent=1 // pred_check_branch
      %396 = sbr.rel (0) target = $region41
    $region40: #{knowledge_reasoner_forward.8} parent=1 // pred_region
      %397 = dma.done [#allocation4], 32
    $region41: #{knowledge_reasoner_forward.8} parent=1 // pred_fallthru
      _
    // Predicated region
    $region42: #{knowledge_reasoner_forward.8} parent=1 // pred_check
      _
    $region43: #{knowledge_reasoner_forward.8} parent=1 // pred_check_branch
      %399 = sbr.rel (0) target = $region45
    $region44: #{knowledge_reasoner_forward.8} parent=1 // pred_region
      _
    $region45: #{knowledge_reasoner_forward.8} parent=1 // pred_fallthru
      _
    %400 = vsyncpa [#allocation3], 1
    %401 = vsyncpa [#allocation4], 1

// kernel: knowledge_reasoner_forward.9
$region0: #{knowledge_reasoner_forward.9}
  #allocation0 [shape = 'u32[]', space=smem, size = 0x4, offset = 0x4, fixed_abs, tag = 'smem constant byte address 0x4 - core index']
  #allocation1 [shape = 'u32[144,128]{1,0:T(1,128)}', space=vmem, size = 0x12000, scoped, tag = 'internal scratch']
  %s0 = inlined_call_operand.vmem [shape: f32[2,32], index: 0, kind: input, shape index: {}]
  %s1 = inlined_call_operand.vmem [shape: f32[32,32], index: 1, kind: input, shape index: {}]
  %s2 = inlined_call_operand.vmem [shape: f32[1,32], index: 2, kind: input, shape index: {}]
  %s3 = inlined_call_operand.vmem [shape: f32[32,32], index: 3, kind: input, shape index: {}]
  %s4 = inlined_call_operand.vmem [shape: f32[1,32], index: 4, kind: input, shape index: {}]
  %s5 = inlined_call_operand.vmem [shape: f32[2,32], index: 5, kind: output, shape index: {}]
  %s6 = sld [smem:[#allocation0]]
  $region30: #{knowledge_reasoner_forward.9} parent=0
    _
  %s8 = ssub.s32 1, %s6
  %s9 = scalar_select 0, %s8, %s6
  // Predicated region
  $region2: #{knowledge_reasoner_forward.9} parent=0 // pred_check
    _
  $region3: #{knowledge_reasoner_forward.9} parent=0 // pred_check_branch
    %11 = sbr.rel (0) target = $region5
  $region4: #{knowledge_reasoner_forward.9} parent=0 // pred_region
    _
  $region5: #{knowledge_reasoner_forward.9} parent=0 // pred_fallthru
    _
  // Predicated region
  $region6: #{knowledge_reasoner_forward.9} parent=0 // pred_check
    _
  $region7: #{knowledge_reasoner_forward.9} parent=0 // pred_check_branch
    %13 = sbr.rel (0) target = $region9
  $region8: #{knowledge_reasoner_forward.9} parent=0 // pred_region
    _
  $region9: #{knowledge_reasoner_forward.9} parent=0 // pred_fallthru
    _
  // Predicated region
  $region10: #{knowledge_reasoner_forward.9} parent=0 // pred_check
    _
  $region11: #{knowledge_reasoner_forward.9} parent=0 // pred_check_branch
    %15 = sbr.rel (0) target = $region13
  $region12: #{knowledge_reasoner_forward.9} parent=0 // pred_region
    _
  $region13: #{knowledge_reasoner_forward.9} parent=0 // pred_fallthru
    _
  // Predicated region
  $region14: #{knowledge_reasoner_forward.9} parent=0 // pred_check
    _
  $region15: #{knowledge_reasoner_forward.9} parent=0 // pred_check_branch
    %17 = sbr.rel (0) target = $region17
  $region16: #{knowledge_reasoner_forward.9} parent=0 // pred_region
    _
  $region17: #{knowledge_reasoner_forward.9} parent=0 // pred_fallthru
    _
  // Predicated region
  $region18: #{knowledge_reasoner_forward.9} parent=0 // pred_check
    _
  $region19: #{knowledge_reasoner_forward.9} parent=0 // pred_check_branch
    %19 = sbr.rel (0) target = $region21
  $region20: #{knowledge_reasoner_forward.9} parent=0 // pred_region
    _
  $region21: #{knowledge_reasoner_forward.9} parent=0 // pred_fallthru
    _
  %v20 = vld [vmem:[%s0] sm:$0x3]
  %v21 = vld [vmem:[%s1] sm:$0xff]
  %v22 = vld [vmem:[%s1 + $0x8] sm:$0xff]
  %v23 = vld [vmem:[%s1 + $0x10] sm:$0xff]
  %v24 = vld [vmem:[%s1 + $0x18] sm:$0xff]
  %v25 = vld [vmem:[%s2] sm:$0x1]
  %v27 = vlaneseq
  %v28 = vshrl.u32 %v27, 7
  %v29 = vsub.s32 0, %v28
  %v30 = vrot.slane %v25, %v29
  %vm32 = vcmask 261120
  %v34 = vsel %vm32, %v20, 0
  %36 = vmatprep.subr.mxu0 0.0
  %37 = vmatpush1.msra.mxu0 0.0
  %38 = vmatprep.subr.mxu0 0.0
  %39 = vmatpush1.msra.mxu0 0.0
  %40 = vmatprep.subr.mxu0 0.0
  %41 = vmatpush1.msra.mxu0 0.0
  %42 = vmatprep.subr.mxu0 0.0
  %43 = vmatpush1.msra.mxu0 0.0
  %44 = vmatprep.subr.mxu0 0.0
  %45 = vmatpush1.msra.mxu0 0.0
  %46 = vmatprep.subr.mxu0 0.0
  %47 = vmatpush1.msra.mxu0 0.0
  %48 = vmatprep.subr.mxu0 0.0
  %49 = vmatpush1.msra.mxu0 0.0
  %50 = vmatprep.subr.mxu0 0.0
  %51 = vmatpush1.msra.mxu0 0.0
  %52 = vmatprep.subr.mxu0 0.0
  %53 = vmatpush1.msra.mxu0 0.0
  %54 = vmatprep.subr.mxu0 0.0
  %55 = vmatpush1.msra.mxu0 0.0
  %56 = vmatprep.subr.mxu0 0.0
  %57 = vmatpush1.msra.mxu0 0.0
  %58 = vmatprep.subr.mxu0 0.0
  %59 = vmatpush1.msra.mxu0 0.0
  %60 = vmatprep.subr.mxu0 0.0
  %61 = vmatpush1.msra.mxu0 %v24
  %62 = vmatprep.subr.mxu0 0.0
  %63 = vmatpush1.msra.mxu0 %v23
  %64 = vmatprep.subr.mxu0 0.0
  %65 = vmatpush1.msra.mxu0 %v22
  %66 = vmatprep.subr.mxu0 0.0
  %67 = vmatpush1.msra.mxu0 %v21
  %68 = vmatprep.subr.mxu0 0.0
  %69 = vmatpush2.msra.mxu0 0.0
  %70 = vmatprep.subr.mxu0 0.0
  %71 = vmatpush2.msra.mxu0 0.0
  %72 = vmatprep.subr.mxu0 0.0
  %73 = vmatpush2.msra.mxu0 0.0
  %74 = vmatprep.subr.mxu0 0.0
  %75 = vmatpush2.msra.mxu0 0.0
  %76 = vmatprep.subr.mxu0 0.0
  %77 = vmatpush2.msra.mxu0 0.0
  %78 = vmatprep.subr.mxu0 0.0
  %79 = vmatpush2.msra.mxu0 0.0
  %80 = vmatprep.subr.mxu0 0.0
  %81 = vmatpush2.msra.mxu0 0.0
  %82 = vmatprep.subr.mxu0 0.0
  %83 = vmatpush2.msra.mxu0 0.0
  %84 = vmatprep.subr.mxu0 0.0
  %85 = vmatpush2.msra.mxu0 0.0
  %86 = vmatprep.subr.mxu0 0.0
  %87 = vmatpush2.msra.mxu0 0.0
  %88 = vmatprep.subr.mxu0 0.0
  %89 = vmatpush2.msra.mxu0 0.0
  %90 = vmatprep.subr.mxu0 0.0
  %91 = vmatpush2.msra.mxu0 0.0
  %92 = vmatprep.subr.mxu0 0.0
  %93 = vmatpush2.msra.mxu0 0.0
  %94 = vmatprep.subr.mxu0 0.0
  %95 = vmatpush2.msra.mxu0 0.0
  %96 = vmatprep.subr.mxu0 0.0
  %97 = vmatpush2.msra.mxu0 0.0
  %98 = vmatprep.subr.mxu0 0.0
  %99 = vmatpush2.msra.mxu0 0.0
  %100 = vmatprep.mubr.f32.mxu0 0.0
  %101 = vmatmul.mubr.f32.gmra.mxu0 %v34
  %v102 = vpop.f32.mrf.mxu0
  %v103 = vadd.f32 %v30, %v102
  %v104 = vpop.f32.mrf.mxu0
  %105 = vdwg.mxu0
  %v106 = vld [vmem:[%s3] sm:$0xff]
  %v107 = vld [vmem:[%s3 + $0x8] sm:$0xff]
  %v108 = vld [vmem:[%s3 + $0x10] sm:$0xff]
  %v109 = vld [vmem:[%s3 + $0x18] sm:$0xff]
  %v110 = vld [vmem:[%s4] sm:$0x1]
  %v112 = vlaneseq
  %v113 = vshrl.u32 %v112, 7
  %v114 = vsub.s32 0, %v113
  %v115 = vrot.slane %v110, %v114
  %v118 = vsel %vm32, %v103, 0
  %120 = vmatprep.subr.mxu0 0.0
  %121 = vmatpush1.msra.mxu0 0.0
  %122 = vmatprep.subr.mxu0 0.0
  %123 = vmatpush1.msra.mxu0 0.0
  %124 = vmatprep.subr.mxu0 0.0
  %125 = vmatpush1.msra.mxu0 0.0
  %126 = vmatprep.subr.mxu0 0.0
  %127 = vmatpush1.msra.mxu0 0.0
  %128 = vmatprep.subr.mxu0 0.0
  %129 = vmatpush1.msra.mxu0 0.0
  %130 = vmatprep.subr.mxu0 0.0
  %131 = vmatpush1.msra.mxu0 0.0
  %132 = vmatprep.subr.mxu0 0.0
  %133 = vmatpush1.msra.mxu0 0.0
  %134 = vmatprep.subr.mxu0 0.0
  %135 = vmatpush1.msra.mxu0 0.0
  %136 = vmatprep.subr.mxu0 0.0
  %137 = vmatpush1.msra.mxu0 0.0
  %138 = vmatprep.subr.mxu0 0.0
  %139 = vmatpush1.msra.mxu0 0.0
  %140 = vmatprep.subr.mxu0 0.0
  %141 = vmatpush1.msra.mxu0 0.0
  %142 = vmatprep.subr.mxu0 0.0
  %143 = vmatpush1.msra.mxu0 0.0
  %144 = vmatprep.subr.mxu0 0.0
  %145 = vmatpush1.msra.mxu0 %v109
  %146 = vmatprep.subr.mxu0 0.0
  %147 = vmatpush1.msra.mxu0 %v108
  %148 = vmatprep.subr.mxu0 0.0
  %149 = vmatpush1.msra.mxu0 %v107
  %150 = vmatprep.subr.mxu0 0.0
  %151 = vmatpush1.msra.mxu0 %v106
  %152 = vmatprep.subr.mxu0 0.0
  %153 = vmatpush2.msra.mxu0 0.0
  %154 = vmatprep.subr.mxu0 0.0
  %155 = vmatpush2.msra.mxu0 0.0
  %156 = vmatprep.subr.mxu0 0.0
  %157 = vmatpush2.msra.mxu0 0.0
  %158 = vmatprep.subr.mxu0 0.0
  %159 = vmatpush2.msra.mxu0 0.0
  %160 = vmatprep.subr.mxu0 0.0
  %161 = vmatpush2.msra.mxu0 0.0
  %162 = vmatprep.subr.mxu0 0.0
  %163 = vmatpush2.msra.mxu0 0.0
  %164 = vmatprep.subr.mxu0 0.0
  %165 = vmatpush2.msra.mxu0 0.0
  %166 = vmatprep.subr.mxu0 0.0
  %167 = vmatpush2.msra.mxu0 0.0
  %168 = vmatprep.subr.mxu0 0.0
  %169 = vmatpush2.msra.mxu0 0.0
  %170 = vmatprep.subr.mxu0 0.0
  %171 = vmatpush2.msra.mxu0 0.0
  %172 = vmatprep.subr.mxu0 0.0
  %173 = vmatpush2.msra.mxu0 0.0
  %174 = vmatprep.subr.mxu0 0.0
  %175 = vmatpush2.msra.mxu0 0.0
  %176 = vmatprep.subr.mxu0 0.0
  %177 = vmatpush2.msra.mxu0 0.0
  %178 = vmatprep.subr.mxu0 0.0
  %179 = vmatpush2.msra.mxu0 0.0
  %180 = vmatprep.subr.mxu0 0.0
  %181 = vmatpush2.msra.mxu0 0.0
  %182 = vmatprep.subr.mxu0 0.0
  %183 = vmatpush2.msra.mxu0 0.0
  %184 = vmatprep.mubr.f32.mxu0 0.0
  %185 = vmatmul.mubr.f32.gmra.mxu0 %v118
  %v186 = vpop.f32.mrf.mxu0
  %v187 = vadd.f32 %v115, %v186
  %v188 = vpop.f32.mrf.mxu0
  %189 = vdwg.mxu0
  %vm190 = vcmask 254976
  %191 = vst.msk [vmem:[%s5] sm:$0x3] %vm190, %v187
  // Predicated region
  $region22: #{knowledge_reasoner_forward.9} parent=0 // pred_check
    _
  $region23: #{knowledge_reasoner_forward.9} parent=0 // pred_check_branch
    %193 = sbr.rel (0) target = $region25
  $region24: #{knowledge_reasoner_forward.9} parent=0 // pred_region
    _
  $region25: #{knowledge_reasoner_forward.9} parent=0 // pred_fallthru
    _
  // Predicated region
  $region26: #{knowledge_reasoner_forward.9} parent=0 // pred_check
    _
  $region27: #{knowledge_reasoner_forward.9} parent=0 // pred_check_branch
    %195 = sbr.rel (0) target = $region29
  $region28: #{knowledge_reasoner_forward.9} parent=0 // pred_region
    _
  $region29: #{knowledge_reasoner_forward.9} parent=0 // pred_fallthru
    _

// kernel: knowledge_reasoner_forward.10
$region0: #{knowledge_reasoner_forward.10}
  #allocation0 [shape = 'u32[]', space=smem, size = 0x4, offset = 0x4, fixed_abs, tag = 'smem constant byte address 0x4 - core index']
  #allocation1 [shape = 'u32[144,128]{1,0:T(1,128)}', space=vmem, size = 0x12000, scoped, tag = 'internal scratch']
  %s0 = inlined_call_operand.vmem [shape: f32[2,8,32], index: 0, kind: input, shape index: {}]
  %s1 = inlined_call_operand.vmem [shape: f32[2,1,32], index: 1, kind: input, shape index: {}]
  %s2 = inlined_call_operand.vmem [shape: f32[32,32], index: 2, kind: input, shape index: {}]
  %s3 = inlined_call_operand.vmem [shape: f32[32,32], index: 3, kind: input, shape index: {}]
  %s4 = inlined_call_operand.vmem [shape: f32[1,32], index: 4, kind: input, shape index: {}]
  %s5 = inlined_call_operand.vmem [shape: f32[1,32], index: 5, kind: input, shape index: {}]
  %s6 = inlined_call_operand.vmem [shape: f32[1,32], index: 6, kind: input, shape index: {}]
  %s7 = inlined_call_operand.hbm [shape: f32[32,32], index: 7, kind: input, shape index: {}]
  %s8 = inlined_call_operand.vmem [shape: f32[1,32], index: 8, kind: input, shape index: {}]
  %s9 = inlined_call_operand.vmem [shape: f32[2,8,32], index: 9, kind: output, shape index: {}]
  %s10 = sld [smem:[#allocation0]]
  $region73: #{knowledge_reasoner_forward.10} parent=0
    _
  %s12 = ssub.s32 1, %s10
  %s13 = scalar_select 0, %s12, %s10
  $region1: #{knowledge_reasoner_forward.10} parent=0
    #allocation2 [shape = 'u8[16384]{0}', space=vmem, size = 0x4000, scoped, tag = 'input window, operand 7, single buffered']
    #allocation3 [shape = 's32[2]{0}', space=sflag, size = 0x8, scoped, tag = 'scoped memory for knowledge_reasoner_forward.10']
    %14 = vsyncpa [#allocation3], 0
    loop: start=0, step=1, limit=4
    $region2: #{knowledge_reasoner_forward.10} parent=1 // loop_pre_header
      _
    $region3: #{knowledge_reasoner_forward.10} parent=1 // loop_header
      %s16 = sphi 0, %s20
      %p17 = scmp.ge.s32.totalorder %s16, 4
      %s23 = sphi 0, %s35
      %s24 = sphi 0, %s31
      %s25 = sphi 0, %s23
      %s26 = sphi 0, %s24
      %s27 = sphi 0, %s25
      %s28 = sphi 0, %s26
      %s40 = sphi 0, %s42
      %s43 = sphi 0, %s40
      %s44 = sphi 0, %s43
      %s60 = sphi 0, %s44
      %s66 = sphi 0, %s68
      %s69 = sphi 0, %s66
      %s70 = sphi 0, %s69
      %s86 = sphi 0, %s70
      %s90 = sphi 0, %s90
      %s92 = sphi 0, %s90
      %s93 = sphi 0, %s92
      %s107 = sphi 0, %s93
      %s111 = sphi 0, %s111
      %s113 = sphi 0, %s111
      %s114 = sphi 0, %s113
      %s128 = sphi 0, %s114
      %s132 = sphi 0, %s132
      %s134 = sphi 0, %s132
      %s135 = sphi 0, %s134
      %s149 = sphi 0, %s135
      %s153 = sphi 0, %s153
      %s155 = sphi 0, %s153
      %s156 = sphi 0, %s155
      %s170 = sphi 0, %s156
      %s174 = sphi 0, %s174
      %s176 = sphi 0, %s174
      %s177 = sphi 0, %s176
      %s191 = sphi 0, %s177
      %s195 = sphi 0, %s195
      %s197 = sphi 0, %s195
      %s198 = sphi 0, %s197
      %s212 = sphi 0, %s198
      %s216 = sphi 0, %s216
      %s218 = sphi 0, %s216
      %s219 = sphi 0, %s218
      %s233 = sphi 0, %s219
      %s241 = sphi 0, %s243
      %s244 = sphi 0, %s241
      %s245 = sphi 0, %s244
      %s261 = sphi 0, %s245
    $region4: #{knowledge_reasoner_forward.10} parent=1 // loop_header_branch
      %19 = sbr.rel (%p17) target = $region8
    $region5: #{knowledge_reasoner_forward.10} parent=1 // loop_body
      %s21 = ssub.s32 %s16, 1
      %s22 = ssub.s32 %s16, 2
      %s29 = sadd.s32 1, %s24
      %p30 = scmp.ge.s32.totalorder %s29, 1
      %s31 = scalar_select %p30, 0, %s29
      %s32 = sadd.s32 1, %s23
      %s33 = scalar_select %p30, %s32, %s23
      %p34 = scmp.ge.s32.totalorder %s33, 2
      %s35 = scalar_select %p34, 0, %s33
      %s36 = ssub.s32 %s23, %s35
      %s37 = ssub.s32 %s24, %s31
      %s38 = sor.u32 %s36, %s37
      %p39 = scmp.eq.s32.totalorder %s38, 0
      %s41 = sadd.s32 %s40, 1
      %s42 = scalar_select %p39, %s40, %s41
      %p45 = pneg %p39
      %p46 = scmp.eq.s32.totalorder %s16, 1
      %p47 = por %p45, %p46
      %p48 = scmp.ne.s32.totalorder %s40, %s43
      %p49 = scmp.eq.s32.totalorder %s16, 0
      %p50 = por %p48, %p49
      %p51 = scmp.ne.s32.totalorder %s40, %s43
      %p52 = scmp.eq.s32.totalorder %s21, 1
      %p53 = por %p51, %p52
      %p54 = scmp.ne.s32.totalorder %s43, %s44
      %p55 = scmp.eq.s32.totalorder %s21, 0
      %p56 = por %p54, %p55
      %p57 = scmp.ne.s32.totalorder %s43, %s44
      %p58 = scmp.eq.s32.totalorder %s22, 1
      %p59 = por %p57, %p58
      %p61 = scmp.ne.s32.totalorder %s44, %s60
      %p62 = scmp.eq.s32.totalorder %s22, 0
      %p63 = por %p61, %p62
      %s64 = ssub.s32 %s23, %s35
      %p65 = scmp.eq.s32.totalorder %s64, 0
      %s67 = sadd.s32 %s66, 1
      %s68 = scalar_select %p65, %s66, %s67
      %p71 = pneg %p65
      %p72 = scmp.eq.s32.totalorder %s16, 1
      %p73 = por %p71, %p72
      %p74 = scmp.ne.s32.totalorder %s66, %s69
      %p75 = scmp.eq.s32.totalorder %s16, 0
      %p76 = por %p74, %p75
      %p77 = scmp.ne.s32.totalorder %s66, %s69
      %p78 = scmp.eq.s32.totalorder %s21, 1
      %p79 = por %p77, %p78
      %p80 = scmp.ne.s32.totalorder %s69, %s70
      %p81 = scmp.eq.s32.totalorder %s21, 0
      %p82 = por %p80, %p81
      %p83 = scmp.ne.s32.totalorder %s69, %s70
      %p84 = scmp.eq.s32.totalorder %s22, 1
      %p85 = por %p83, %p84
      %p87 = scmp.ne.s32.totalorder %s70, %s86
      %p88 = scmp.eq.s32.totalorder %s22, 0
      %p89 = por %p87, %p88
      %s91 = sadd.s32 %s90, 1
      %p94 = scmp.eq.s32.totalorder %s16, 1
      %p95 = scmp.ne.s32.totalorder %s90, %s92
      %p96 = scmp.eq.s32.totalorder %s16, 0
      %p97 = por %p95, %p96
      %p98 = scmp.ne.s32.totalorder %s90, %s92
      %p99 = scmp.eq.s32.totalorder %s21, 1
      %p100 = por %p98, %p99
      %p101 = scmp.ne.s32.totalorder %s92, %s93
      %p102 = scmp.eq.s32.totalorder %s21, 0
      %p103 = por %p101, %p102
      %p104 = scmp.ne.s32.totalorder %s92, %s93
      %p105 = scmp.eq.s32.totalorder %s22, 1
      %p106 = por %p104, %p105
      %p108 = scmp.ne.s32.totalorder %s93, %s107
      %p109 = scmp.eq.s32.totalorder %s22, 0
      %p110 = por %p108, %p109
      %s112 = sadd.s32 %s111, 1
      %p115 = scmp.eq.s32.totalorder %s16, 1
      %p116 = scmp.ne.s32.totalorder %s111, %s113
      %p117 = scmp.eq.s32.totalorder %s16, 0
      %p118 = por %p116, %p117
      %p119 = scmp.ne.s32.totalorder %s111, %s113
      %p120 = scmp.eq.s32.totalorder %s21, 1
      %p121 = por %p119, %p120
      %p122 = scmp.ne.s32.totalorder %s113, %s114
      %p123 = scmp.eq.s32.totalorder %s21, 0
      %p124 = por %p122, %p123
      %p125 = scmp.ne.s32.totalorder %s113, %s114
      %p126 = scmp.eq.s32.totalorder %s22, 1
      %p127 = por %p125, %p126
      %p129 = scmp.ne.s32.totalorder %s114, %s128
      %p130 = scmp.eq.s32.totalorder %s22, 0
      %p131 = por %p129, %p130
      %s133 = sadd.s32 %s132, 1
      %p136 = scmp.eq.s32.totalorder %s16, 1
      %p137 = scmp.ne.s32.totalorder %s132, %s134
      %p138 = scmp.eq.s32.totalorder %s16, 0
      %p139 = por %p137, %p138
      %p140 = scmp.ne.s32.totalorder %s132, %s134
      %p141 = scmp.eq.s32.totalorder %s21, 1
      %p142 = por %p140, %p141
      %p143 = scmp.ne.s32.totalorder %s134, %s135
      %p144 = scmp.eq.s32.totalorder %s21, 0
      %p145 = por %p143, %p144
      %p146 = scmp.ne.s32.totalorder %s134, %s135
      %p147 = scmp.eq.s32.totalorder %s22, 1
      %p148 = por %p146, %p147
      %p150 = scmp.ne.s32.totalorder %s135, %s149
      %p151 = scmp.eq.s32.totalorder %s22, 0
      %p152 = por %p150, %p151
      %s154 = sadd.s32 %s153, 1
      %p157 = scmp.eq.s32.totalorder %s16, 1
      %p158 = scmp.ne.s32.totalorder %s153, %s155
      %p159 = scmp.eq.s32.totalorder %s16, 0
      %p160 = por %p158, %p159
      %p161 = scmp.ne.s32.totalorder %s153, %s155
      %p162 = scmp.eq.s32.totalorder %s21, 1
      %p163 = por %p161, %p162
      %p164 = scmp.ne.s32.totalorder %s155, %s156
      %p165 = scmp.eq.s32.totalorder %s21, 0
      %p166 = por %p164, %p165
      %p167 = scmp.ne.s32.totalorder %s155, %s156
      %p168 = scmp.eq.s32.totalorder %s22, 1
      %p169 = por %p167, %p168
      %p171 = scmp.ne.s32.totalorder %s156, %s170
      %p172 = scmp.eq.s32.totalorder %s22, 0
      %p173 = por %p171, %p172
      %s175 = sadd.s32 %s174, 1
      %p178 = scmp.eq.s32.totalorder %s16, 1
      %p179 = scmp.ne.s32.totalorder %s174, %s176
      %p180 = scmp.eq.s32.totalorder %s16, 0
      %p181 = por %p179, %p180
      %p182 = scmp.ne.s32.totalorder %s174, %s176
      %p183 = scmp.eq.s32.totalorder %s21, 1
      %p184 = por %p182, %p183
      %p185 = scmp.ne.s32.totalorder %s176, %s177
      %p186 = scmp.eq.s32.totalorder %s21, 0
      %p187 = por %p185, %p186
      %p188 = scmp.ne.s32.totalorder %s176, %s177
      %p189 = scmp.eq.s32.totalorder %s22, 1
      %p190 = por %p188, %p189
      %p192 = scmp.ne.s32.totalorder %s177, %s191
      %p193 = scmp.eq.s32.totalorder %s22, 0
      %p194 = por %p192, %p193
      %s196 = sadd.s32 %s195, 1
      %p199 = scmp.eq.s32.totalorder %s16, 1
      %p200 = scmp.ne.s32.totalorder %s195, %s197
      %p201 = scmp.eq.s32.totalorder %s16, 0
      %p202 = por %p200, %p201
      %p203 = scmp.ne.s32.totalorder %s195, %s197
      %p204 = scmp.eq.s32.totalorder %s21, 1
      %p205 = por %p203, %p204
      %p206 = scmp.ne.s32.totalorder %s197, %s198
      %p207 = scmp.eq.s32.totalorder %s21, 0
      %p208 = por %p206, %p207
      %p209 = scmp.ne.s32.totalorder %s197, %s198
      %p210 = scmp.eq.s32.totalorder %s22, 1
      %p211 = por %p209, %p210
      %p213 = scmp.ne.s32.totalorder %s198, %s212
      %p214 = scmp.eq.s32.totalorder %s22, 0
      %p215 = por %p213, %p214
      %s217 = sadd.s32 %s216, 1
      %p220 = scmp.eq.s32.totalorder %s16, 1
      %p221 = scmp.ne.s32.totalorder %s216, %s218
      %p222 = scmp.eq.s32.totalorder %s16, 0
      %p223 = por %p221, %p222
      %p224 = scmp.ne.s32.totalorder %s216, %s218
      %p225 = scmp.eq.s32.totalorder %s21, 1
      %p226 = por %p224, %p225
      %p227 = scmp.ne.s32.totalorder %s218, %s219
      %p228 = scmp.eq.s32.totalorder %s21, 0
      %p229 = por %p227, %p228
      %p230 = scmp.ne.s32.totalorder %s218, %s219
      %p231 = scmp.eq.s32.totalorder %s22, 1
      %p232 = por %p230, %p231
      %p234 = scmp.ne.s32.totalorder %s219, %s233
      %p235 = scmp.eq.s32.totalorder %s22, 0
      %p236 = por %p234, %p235
      %s237 = ssub.s32 %s23, %s35
      %s238 = ssub.s32 %s24, %s31
      %s239 = sor.u32 %s237, %s238
      %p240 = scmp.eq.s32.totalorder %s239, 0
      %s242 = sadd.s32 %s241, 1
      %s243 = scalar_select %p240, %s241, %s242
      %p246 = pneg %p240
      %p247 = scmp.eq.s32.totalorder %s16, 1
      %p248 = por %p246, %p247
      %p249 = scmp.ne.s32.totalorder %s241, %s244
      %p250 = scmp.eq.s32.totalorder %s16, 0
      %p251 = por %p249, %p250
      %p252 = scmp.ne.s32.totalorder %s241, %s244
      %p253 = scmp.eq.s32.totalorder %s21, 1
      %p254 = por %p252, %p253
      %p255 = scmp.ne.s32.totalorder %s244, %s245
      %p256 = scmp.eq.s32.totalorder %s21, 0
      %p257 = por %p255, %p256
      %p258 = scmp.ne.s32.totalorder %s244, %s245
      %p259 = scmp.eq.s32.totalorder %s22, 1
      %p260 = por %p258, %p259
      %p262 = scmp.ne.s32.totalorder %s245, %s261
      %p263 = scmp.eq.s32.totalorder %s22, 0
      %p264 = por %p262, %p263
      %p265 = scmp.le.s32.totalorder 1, %s16
      %p266 = scmp.lt.s32.totalorder %s16, 3
      %p267 = pnand %p265, %p266
      %p268 = pneg %p267
      // Predicated region
      $region9: #{knowledge_reasoner_forward.10} parent=5 // pred_check
        _
      $region10: #{knowledge_reasoner_forward.10} parent=5 // pred_check_branch
        %270 = sbr.rel (%p267) target = $region12
      $region11: #{knowledge_reasoner_forward.10} parent=5 // pred_region
        %s271 = ssub.s32 %s16, 1
        // Predicated region
        $region13: #{knowledge_reasoner_forward.10} parent=11 // pred_check
          %p272 = pneg %p103
        $region14: #{knowledge_reasoner_forward.10} parent=11 // pred_check_branch
          %274 = sbr.rel (%p272) target = $region16
        $region15: #{knowledge_reasoner_forward.10} parent=11 // pred_region
          _
        $region16: #{knowledge_reasoner_forward.10} parent=11 // pred_fallthru
          _
        // Predicated region
        $region17: #{knowledge_reasoner_forward.10} parent=11 // pred_check
          %p275 = pneg %p124
        $region18: #{knowledge_reasoner_forward.10} parent=11 // pred_check_branch
          %277 = sbr.rel (%p275) target = $region20
        $region19: #{knowledge_reasoner_forward.10} parent=11 // pred_region
          _
        $region20: #{knowledge_reasoner_forward.10} parent=11 // pred_fallthru
          _
        // Predicated region
        $region21: #{knowledge_reasoner_forward.10} parent=11 // pred_check
          %p278 = pneg %p145
        $region22: #{knowledge_reasoner_forward.10} parent=11 // pred_check_branch
          %280 = sbr.rel (%p278) target = $region24
        $region23: #{knowledge_reasoner_forward.10} parent=11 // pred_region
          _
        $region24: #{knowledge_reasoner_forward.10} parent=11 // pred_fallthru
          _
        // Predicated region
        $region25: #{knowledge_reasoner_forward.10} parent=11 // pred_check
          %p281 = pneg %p166
        $region26: #{knowledge_reasoner_forward.10} parent=11 // pred_check_branch
          %283 = sbr.rel (%p281) target = $region28
        $region27: #{knowledge_reasoner_forward.10} parent=11 // pred_region
          _
        $region28: #{knowledge_reasoner_forward.10} parent=11 // pred_fallthru
          _
        // Predicated region
        $region29: #{knowledge_reasoner_forward.10} parent=11 // pred_check
          %p284 = pneg %p187
        $region30: #{knowledge_reasoner_forward.10} parent=11 // pred_check_branch
          %286 = sbr.rel (%p284) target = $region32
        $region31: #{knowledge_reasoner_forward.10} parent=11 // pred_region
          _
        $region32: #{knowledge_reasoner_forward.10} parent=11 // pred_fallthru
          _
        // Predicated region
        $region33: #{knowledge_reasoner_forward.10} parent=11 // pred_check
          %p287 = pneg %p208
        $region34: #{knowledge_reasoner_forward.10} parent=11 // pred_check_branch
          %289 = sbr.rel (%p287) target = $region36
        $region35: #{knowledge_reasoner_forward.10} parent=11 // pred_region
          %s291 = ssub.s32 512, 512
          %292 = vsyncadd [#allocation3], %s291
          %s293 = sshll.u32 [#allocation2], 4
          %s294 = int_to_ptr.vmem [resolvable:$true] %s293
          %299 = dma.hbm_to_vmem [thread:$0]  %s7, 512, %s294, [#allocation3], 128, 128, 8
        $region36: #{knowledge_reasoner_forward.10} parent=11 // pred_fallthru
          _
        // Predicated region
        $region37: #{knowledge_reasoner_forward.10} parent=11 // pred_check
          %p300 = pneg %p229
        $region38: #{knowledge_reasoner_forward.10} parent=11 // pred_check_branch
          %302 = sbr.rel (%p300) target = $region40
        $region39: #{knowledge_reasoner_forward.10} parent=11 // pred_region
          _
        $region40: #{knowledge_reasoner_forward.10} parent=11 // pred_fallthru
          _
      $region12: #{knowledge_reasoner_forward.10} parent=5 // pred_fallthru
        _
      %p303 = scmp.lt.s32.totalorder %s16, 2
      // Predicated region
      $region41: #{knowledge_reasoner_forward.10} parent=5 // pred_check
        %p304 = pneg %p303
      $region42: #{knowledge_reasoner_forward.10} parent=5 // pred_check_branch
        %306 = sbr.rel (%p304) target = $region44
      $region43: #{knowledge_reasoner_forward.10} parent=5 // pred_region
        // Predicated region
        $region45: #{knowledge_reasoner_forward.10} parent=43 // pred_check
          %p307 = pneg %p50
        $region46: #{knowledge_reasoner_forward.10} parent=43 // pred_check_branch
          %309 = sbr.rel (%p307) target = $region48
        $region47: #{knowledge_reasoner_forward.10} parent=43 // pred_region
          %p310 = scmp.lt.s32.totalorder %s23, 1
          %s311 = scalar_select %p310, %s23, 1
          %p312 = scmp.lt.s32.totalorder %s24, 0
          %s313 = scalar_select %p312, %s24, 0
          %s314 = sadd.s32 %s313, %s311
          %s315 = smul.addr %s314, 8
          %s316 = scalar_lea.vmem %s0, %s315
        $region48: #{knowledge_reasoner_forward.10} parent=43 // pred_fallthru
          _
        // Predicated region
        $region49: #{knowledge_reasoner_forward.10} parent=43 // pred_check
          %p317 = pneg %p76
        $region50: #{knowledge_reasoner_forward.10} parent=43 // pred_check_branch
          %319 = sbr.rel (%p317) target = $region52
        $region51: #{knowledge_reasoner_forward.10} parent=43 // pred_region
          %p320 = scmp.lt.s32.totalorder %s23, 1
          %s321 = scalar_select %p320, %s23, 1
          %s322 = scalar_lea.vmem %s1, %s321
        $region52: #{knowledge_reasoner_forward.10} parent=43 // pred_fallthru
          _
      $region44: #{knowledge_reasoner_forward.10} parent=5 // pred_fallthru
        _
      %p323 = scmp.le.s32.totalorder 1, %s16
      %p324 = scmp.lt.s32.totalorder %s16, 3
      %p325 = pnand %p323, %p324
      %p326 = pneg %p325
      // Predicated region
      $region53: #{knowledge_reasoner_forward.10} parent=5 // pred_check
        _
      $region54: #{knowledge_reasoner_forward.10} parent=5 // pred_check_branch
        %328 = sbr.rel (%p325) target = $region56
      $region55: #{knowledge_reasoner_forward.10} parent=5 // pred_region
        %s329 = ssub.s32 %s16, 1
        // Predicated region
        $region57: #{knowledge_reasoner_forward.10} parent=55 // pred_check
          %p330 = pneg %p208
        $region58: #{knowledge_reasoner_forward.10} parent=55 // pred_check_branch
          %332 = sbr.rel (%p330) target = $region60
        $region59: #{knowledge_reasoner_forward.10} parent=55 // pred_region
          %333 = dma.done [#allocation3], 512
        $region60: #{knowledge_reasoner_forward.10} parent=55 // pred_fallthru
          _
        %p334 = scmp.lt.s32.totalorder %s25, 1
        %s335 = scalar_select %p334, %s25, 1
        %p336 = scmp.lt.s32.totalorder %s26, 0
        %s337 = scalar_select %p336, %s26, 0
        %s338 = sadd.s32 %s337, %s335
        %s339 = smul.addr %s338, 8
        %s340 = scalar_lea.vmem %s0, %s339
        %p341 = pneg %p56
        %p342 = pneg %p53
        %p343 = scmp.lt.s32.totalorder %s25, 1
        %s344 = scalar_select %p343, %s25, 1
        %s345 = scalar_lea.vmem %s1, %s344
        %p346 = pneg %p82
        %p347 = pneg %p79
        %p348 = pneg %p103
        %p349 = pneg %p100
        %p350 = pneg %p124
        %p351 = pneg %p121
        %p352 = pneg %p145
        %p353 = pneg %p142
        %p354 = pneg %p166
        %p355 = pneg %p163
        %p356 = pneg %p187
        %p357 = pneg %p184
        %p358 = pneg %p208
        %p359 = pneg %p205
        %p360 = pneg %p229
        %p361 = pneg %p226
        %p362 = pneg %p257
        %p363 = pneg %p254
        %p364 = scmp.lt.s32.totalorder %s25, 1
        %s365 = scalar_select %p364, %s25, 1
        %p366 = scmp.lt.s32.totalorder %s26, 0
        %s367 = scalar_select %p366, %s26, 0
        %s368 = sadd.s32 %s367, %s365
        %s369 = smul.addr %s368, 8
        %s370 = scalar_lea.vmem %s9, %s369
        %p371 = scmp.lt.s32.totalorder %s25, 1
        %s372 = scalar_select %p371, %s25, 1
        %p373 = scmp.lt.s32.totalorder %s26, 0
        %s374 = scalar_select %p373, %s26, 0
        %s375 = sadd.s32 %s374, %s372
        %s376 = smul.addr %s375, 8
        %s377 = scalar_lea.vmem %s0, %s376
        %p378 = scmp.lt.s32.totalorder %s25, 1
        %s379 = scalar_select %p378, %s25, 1
        %s380 = scalar_lea.vmem %s1, %s379
        %p381 = scmp.lt.s32.totalorder %s25, 1
        %s382 = scalar_select %p381, %s25, 1
        %p383 = scmp.lt.s32.totalorder %s26, 0
        %s384 = scalar_select %p383, %s26, 0
        %s385 = sadd.s32 %s384, %s382
        %s386 = smul.addr %s385, 8
        %s387 = scalar_lea.vmem %s9, %s386
        %v388 = vld [vmem:[%s377] sm:$0xff]
        %v389 = vld [vmem:[%s380] sm:$0x1]
        %v390 = vld [vmem:[%s2] sm:$0xff]
        %v391 = vld [vmem:[%s2 + $0x8] sm:$0xff]
        %v392 = vld [vmem:[%s2 + $0x10] sm:$0xff]
        %v393 = vld [vmem:[%s2 + $0x18] sm:$0xff]
        %v394 = vld [vmem:[%s3] sm:$0xff]
        %v395 = vld [vmem:[%s3 + $0x8] sm:$0xff]
        %v396 = vld [vmem:[%s3 + $0x10] sm:$0xff]
        %v397 = vld [vmem:[%s3 + $0x18] sm:$0xff]
        %vm398 = vcmask 261120
        %v400 = vsel %vm398, %v389, 0
        %402 = vmatprep.subr.mxu0 0.0
        %403 = vmatpush1.msra.mxu0 0.0
        %404 = vmatprep.subr.mxu0 0.0
        %405 = vmatpush1.msra.mxu0 0.0
        %406 = vmatprep.subr.mxu0 0.0
        %407 = vmatpush1.msra.mxu0 0.0
        %408 = vmatprep.subr.mxu0 0.0
        %409 = vmatpush1.msra.mxu0 0.0
        %410 = vmatprep.subr.mxu0 0.0
        %411 = vmatpush1.msra.mxu0 0.0
        %412 = vmatprep.subr.mxu0 0.0
        %413 = vmatpush1.msra.mxu0 0.0
        %414 = vmatprep.subr.mxu0 0.0
        %415 = vmatpush1.msra.mxu0 0.0
        %416 = vmatprep.subr.mxu0 0.0
        %417 = vmatpush1.msra.mxu0 0.0
        %418 = vmatprep.subr.mxu0 0.0
        %419 = vmatpush1.msra.mxu0 0.0
        %420 = vmatprep.subr.mxu0 0.0
        %421 = vmatpush1.msra.mxu0 0.0
        %422 = vmatprep.subr.mxu0 0.0
        %423 = vmatpush1.msra.mxu0 0.0
        %424 = vmatprep.subr.mxu0 0.0
        %425 = vmatpush1.msra.mxu0 0.0
        %426 = vmatprep.subr.mxu0 0.0
        %427 = vmatpush1.msra.mxu0 %v397
        %428 = vmatprep.subr.mxu0 0.0
        %429 = vmatpush1.msra.mxu0 %v396
        %430 = vmatprep.subr.mxu0 0.0
        %431 = vmatpush1.msra.mxu0 %v395
        %432 = vmatprep.subr.mxu0 0.0
        %433 = vmatpush1.msra.mxu0 %v394
        %434 = vmatprep.subr.mxu0 0.0
        %435 = vmatpush2.msra.mxu0 0.0
        %436 = vmatprep.subr.mxu0 0.0
        %437 = vmatpush2.msra.mxu0 0.0
        %438 = vmatprep.subr.mxu0 0.0
        %439 = vmatpush2.msra.mxu0 0.0
        %440 = vmatprep.subr.mxu0 0.0
        %441 = vmatpush2.msra.mxu0 0.0
        %442 = vmatprep.subr.mxu0 0.0
        %443 = vmatpush2.msra.mxu0 0.0
        %444 = vmatprep.subr.mxu0 0.0
        %445 = vmatpush2.msra.mxu0 0.0
        %446 = vmatprep.subr.mxu0 0.0
        %447 = vmatpush2.msra.mxu0 0.0
        %448 = vmatprep.subr.mxu0 0.0
        %449 = vmatpush2.msra.mxu0 0.0
        %450 = vmatprep.subr.mxu0 0.0
        %451 = vmatpush2.msra.mxu0 0.0
        %452 = vmatprep.subr.mxu0 0.0
        %453 = vmatpush2.msra.mxu0 0.0
        %454 = vmatprep.subr.mxu0 0.0
        %455 = vmatpush2.msra.mxu0 0.0
        %456 = vmatprep.subr.mxu0 0.0
        %457 = vmatpush2.msra.mxu0 0.0
        %458 = vmatprep.subr.mxu0 0.0
        %459 = vmatpush2.msra.mxu0 0.0
        %460 = vmatprep.subr.mxu0 0.0
        %461 = vmatpush2.msra.mxu0 0.0
        %462 = vmatprep.subr.mxu0 0.0
        %463 = vmatpush2.msra.mxu0 0.0
        %464 = vmatprep.subr.mxu0 0.0
        %465 = vmatpush2.msra.mxu0 0.0
        %466 = vmatprep.mubr.f32.mxu0 0.0
        %467 = vmatmul.mubr.f32.gmra.mxu0 %v400
        %v468 = vpop.f32.mrf.mxu0
        %v469 = vadd.f32 0.0, %v468
        %v470 = vpop.f32.mrf.mxu0
        %471 = vdwg.mxu0
        %v472 = vlaneseq
        %v473 = vshrl.u32 %v472, 7
        %v474 = vsub.s32 0, %v473
        %v475 = vrot.slane %v469, %v474
        %v477 = vsel %vm398, %v388, 0
        %479 = vmatprep.subr.mxu0 0.0
        %480 = vmatpush1.msra.mxu0 0.0
        %481 = vmatprep.subr.mxu0 0.0
        %482 = vmatpush1.msra.mxu0 0.0
        %483 = vmatprep.subr.mxu0 0.0
        %484 = vmatpush1.msra.mxu0 0.0
        %485 = vmatprep.subr.mxu0 0.0
        %486 = vmatpush1.msra.mxu0 0.0
        %487 = vmatprep.subr.mxu0 0.0
        %488 = vmatpush1.msra.mxu0 0.0
        %489 = vmatprep.subr.mxu0 0.0
        %490 = vmatpush1.msra.mxu0 0.0
        %491 = vmatprep.subr.mxu0 0.0
        %492 = vmatpush1.msra.mxu0 0.0
        %493 = vmatprep.subr.mxu0 0.0
        %494 = vmatpush1.msra.mxu0 0.0
        %495 = vmatprep.subr.mxu0 0.0
        %496 = vmatpush1.msra.mxu0 0.0
        %497 = vmatprep.subr.mxu0 0.0
        %498 = vmatpush1.msra.mxu0 0.0
        %499 = vmatprep.subr.mxu0 0.0
        %500 = vmatpush1.msra.mxu0 0.0
        %501 = vmatprep.subr.mxu0 0.0
        %502 = vmatpush1.msra.mxu0 0.0
        %503 = vmatprep.subr.mxu0 0.0
        %504 = vmatpush1.msra.mxu0 %v393
        %505 = vmatprep.subr.mxu0 0.0
        %506 = vmatpush1.msra.mxu0 %v392
        %507 = vmatprep.subr.mxu0 0.0
        %508 = vmatpush1.msra.mxu0 %v391
        %509 = vmatprep.subr.mxu0 0.0
        %510 = vmatpush1.msra.mxu0 %v390
        %511 = vmatprep.subr.mxu0 0.0
        %512 = vmatpush2.msra.mxu0 0.0
        %513 = vmatprep.subr.mxu0 0.0
        %514 = vmatpush2.msra.mxu0 0.0
        %515 = vmatprep.subr.mxu0 0.0
        %516 = vmatpush2.msra.mxu0 0.0
        %517 = vmatprep.subr.mxu0 0.0
        %518 = vmatpush2.msra.mxu0 0.0
        %519 = vmatprep.subr.mxu0 0.0
        %520 = vmatpush2.msra.mxu0 0.0
        %521 = vmatprep.subr.mxu0 0.0
        %522 = vmatpush2.msra.mxu0 0.0
        %523 = vmatprep.subr.mxu0 0.0
        %524 = vmatpush2.msra.mxu0 0.0
        %525 = vmatprep.subr.mxu0 0.0
        %526 = vmatpush2.msra.mxu0 0.0
        %527 = vmatprep.subr.mxu0 0.0
        %528 = vmatpush2.msra.mxu0 0.0
        %529 = vmatprep.subr.mxu0 0.0
        %530 = vmatpush2.msra.mxu0 0.0
        %531 = vmatprep.subr.mxu0 0.0
        %532 = vmatpush2.msra.mxu0 0.0
        %533 = vmatprep.subr.mxu0 0.0
        %534 = vmatpush2.msra.mxu0 0.0
        %535 = vmatprep.subr.mxu0 0.0
        %536 = vmatpush2.msra.mxu0 0.0
        %537 = vmatprep.subr.mxu0 0.0
        %538 = vmatpush2.msra.mxu0 0.0
        %539 = vmatprep.subr.mxu0 0.0
        %540 = vmatpush2.msra.mxu0 0.0
        %541 = vmatprep.subr.mxu0 0.0
        %542 = vmatpush2.msra.mxu0 0.0
        %543 = vmatprep.mubr.f32.mxu0 0.0
        %544 = vmatmul.mubr.f32.gmra.mxu0 %v477
        %v545 = vpop.f32.mrf.mxu0
        %v546 = vadd.f32 %v475, %v545
        %v547 = vpop.f32.mrf.mxu0
        %548 = vdwg.mxu0
        %v549 = vld [vmem:[%s4] sm:$0x1]
        %v551 = vlaneseq
        %v552 = vshrl.u32 %v551, 7
        %v553 = vsub.s32 0, %v552
        %v554 = vrot.slane %v549, %v553
        %v556 = vadd.f32 %v546, %v554
        %v557 = vld [vmem:[%s5] sm:$0x1]
        %v558 = vld [vmem:[%s6] sm:$0x1]
        %v559 = vsel %vm398, %v556, 0.0
        %560 = vadd.xlane.f32.xlu0 %v559
        %v561 = vpop.xlane.xlu0 %560
        %v562 = vrcp.pop 32.0
        %v563 = vmul.f32 %v561, %v562
        %v564 = vsub.f32 %v556, %v563
        %v565 = vmul.f32 %v564, %v564
        %v566 = vsel %vm398, %v565, 0.0
        %567 = vadd.xlane.f32.xlu0 %v566
        %v568 = vpop.xlane.xlu0 %567
        %v569 = vmul.f32 %v568, %v562
        %v570 = vadd.f32 %v569, 1e-05
        %v571 = vrsqrt.pop %v570
        %v572 = vmul.f32 %v564, %v571
        %v574 = vlaneseq
        %v575 = vshrl.u32 %v574, 7
        %v576 = vsub.s32 0, %v575
        %v577 = vrot.slane %v557, %v576
        %v579 = vmul.f32 %v572, %v577
        %v581 = vlaneseq
        %v582 = vshrl.u32 %v581, 7
        %v583 = vsub.s32 0, %v582
        %v584 = vrot.slane %v558, %v583
        %v586 = vadd.f32 %v579, %v584
        %v587 = vmul.f32 %v586, 0.5
        %v588 = vmul.f32 %v586, 0.70710677
        %v589 = verf.f32.pop %v588
        %v590 = vadd.f32 %v589, 1.0
        %v591 = vmul.f32 %v587, %v590
        %v592 = vld [vmem:[#allocation2] sm:$0xff]
        %v593 = vld [vmem:[#allocation2 + $0x8] sm:$0xff]
        %v594 = vld [vmem:[#allocation2 + $0x10] sm:$0xff]
        %v595 = vld [vmem:[#allocation2 + $0x18] sm:$0xff]
        %v596 = vld [vmem:[%s8] sm:$0x1]
        %v598 = vlaneseq
        %v599 = vshrl.u32 %v598, 7
        %v600 = vsub.s32 0, %v599
        %v601 = vrot.slane %v596, %v600
        %v604 = vsel %vm398, %v591, 0
        %606 = vmatprep.subr.mxu0 0.0
        %607 = vmatpush1.msra.mxu0 0.0
        %608 = vmatprep.subr.mxu0 0.0
        %609 = vmatpush1.msra.mxu0 0.0
        %610 = vmatprep.subr.mxu0 0.0
        %611 = vmatpush1.msra.mxu0 0.0
        %612 = vmatprep.subr.mxu0 0.0
        %613 = vmatpush1.msra.mxu0 0.0
        %614 = vmatprep.subr.mxu0 0.0
        %615 = vmatpush1.msra.mxu0 0.0
        %616 = vmatprep.subr.mxu0 0.0
        %617 = vmatpush1.msra.mxu0 0.0
        %618 = vmatprep.subr.mxu0 0.0
        %619 = vmatpush1.msra.mxu0 0.0
        %620 = vmatprep.subr.mxu0 0.0
        %621 = vmatpush1.msra.mxu0 0.0
        %622 = vmatprep.subr.mxu0 0.0
        %623 = vmatpush1.msra.mxu0 0.0
        %624 = vmatprep.subr.mxu0 0.0
        %625 = vmatpush1.msra.mxu0 0.0
        %626 = vmatprep.subr.mxu0 0.0
        %627 = vmatpush1.msra.mxu0 0.0
        %628 = vmatprep.subr.mxu0 0.0
        %629 = vmatpush1.msra.mxu0 0.0
        %630 = vmatprep.subr.mxu0 0.0
        %631 = vmatpush1.msra.mxu0 %v595
        %632 = vmatprep.subr.mxu0 0.0
        %633 = vmatpush1.msra.mxu0 %v594
        %634 = vmatprep.subr.mxu0 0.0
        %635 = vmatpush1.msra.mxu0 %v593
        %636 = vmatprep.subr.mxu0 0.0
        %637 = vmatpush1.msra.mxu0 %v592
        %638 = vmatprep.subr.mxu0 0.0
        %639 = vmatpush2.msra.mxu0 0.0
        %640 = vmatprep.subr.mxu0 0.0
        %641 = vmatpush2.msra.mxu0 0.0
        %642 = vmatprep.subr.mxu0 0.0
        %643 = vmatpush2.msra.mxu0 0.0
        %644 = vmatprep.subr.mxu0 0.0
        %645 = vmatpush2.msra.mxu0 0.0
        %646 = vmatprep.subr.mxu0 0.0
        %647 = vmatpush2.msra.mxu0 0.0
        %648 = vmatprep.subr.mxu0 0.0
        %649 = vmatpush2.msra.mxu0 0.0
        %650 = vmatprep.subr.mxu0 0.0
        %651 = vmatpush2.msra.mxu0 0.0
        %652 = vmatprep.subr.mxu0 0.0
        %653 = vmatpush2.msra.mxu0 0.0
        %654 = vmatprep.subr.mxu0 0.0
        %655 = vmatpush2.msra.mxu0 0.0
        %656 = vmatprep.subr.mxu0 0.0
        %657 = vmatpush2.msra.mxu0 0.0
        %658 = vmatprep.subr.mxu0 0.0
        %659 = vmatpush2.msra.mxu0 0.0
        %660 = vmatprep.subr.mxu0 0.0
        %661 = vmatpush2.msra.mxu0 0.0
        %662 = vmatprep.subr.mxu0 0.0
        %663 = vmatpush2.msra.mxu0 0.0
        %664 = vmatprep.subr.mxu0 0.0
        %665 = vmatpush2.msra.mxu0 0.0
        %666 = vmatprep.subr.mxu0 0.0
        %667 = vmatpush2.msra.mxu0 0.0
        %668 = vmatprep.subr.mxu0 0.0
        %669 = vmatpush2.msra.mxu0 0.0
        %670 = vmatprep.mubr.f32.mxu0 0.0
        %671 = vmatmul.mubr.f32.gmra.mxu0 %v604
        %v672 = vpop.f32.mrf.mxu0
        %v673 = vadd.f32 %v601, %v672
        %v674 = vpop.f32.mrf.mxu0
        %675 = vdwg.mxu0
        %676 = vst.msk [vmem:[%s387] sm:$0xff] %vm398, %v673
        %p677 = scmp.lt.s32.totalorder %s25, 1
        %s678 = scalar_select %p677, %s25, 1
        %p679 = scmp.lt.s32.totalorder %s26, 0
        %s680 = scalar_select %p679, %s26, 0
        %s681 = sadd.s32 %s680, %s678
        %s682 = smul.addr %s681, 8
        %s683 = scalar_lea.vmem %s9, %s682
        // Predicated region
        $region61: #{knowledge_reasoner_forward.10} parent=55 // pred_check
          %p684 = pneg %p254
        $region62: #{knowledge_reasoner_forward.10} parent=55 // pred_check_branch
          %686 = sbr.rel (%p684) target = $region64
        $region63: #{knowledge_reasoner_forward.10} parent=55 // pred_region
          _
        $region64: #{knowledge_reasoner_forward.10} parent=55 // pred_fallthru
          _
      $region56: #{knowledge_reasoner_forward.10} parent=5 // pred_fallthru
        _
      %p687 = scmp.le.s32.totalorder 2, %s16
      // Predicated region
      $region65: #{knowledge_reasoner_forward.10} parent=5 // pred_check
        %p688 = pneg %p687
      $region66: #{knowledge_reasoner_forward.10} parent=5 // pred_check_branch
        %690 = sbr.rel (%p688) target = $region68
      $region67: #{knowledge_reasoner_forward.10} parent=5 // pred_region
        %s691 = ssub.s32 %s16, 2
        // Predicated region
        $region69: #{knowledge_reasoner_forward.10} parent=67 // pred_check
          %p692 = pneg %p260
        $region70: #{knowledge_reasoner_forward.10} parent=67 // pred_check_branch
          %694 = sbr.rel (%p692) target = $region72
        $region71: #{knowledge_reasoner_forward.10} parent=67 // pred_region
          %p695 = scmp.lt.s32.totalorder %s27, 1
          %s696 = scalar_select %p695, %s27, 1
          %p697 = scmp.lt.s32.totalorder %s28, 0
          %s698 = scalar_select %p697, %s28, 0
          %s699 = sadd.s32 %s698, %s696
          %s700 = smul.addr %s699, 8
          %s701 = scalar_lea.vmem %s9, %s700
        $region72: #{knowledge_reasoner_forward.10} parent=67 // pred_fallthru
          _
      $region68: #{knowledge_reasoner_forward.10} parent=5 // pred_fallthru
        _
    $region6: #{knowledge_reasoner_forward.10} parent=1 // loop_footer
      %s20 = sadd.s32 1, %s16
    $region7: #{knowledge_reasoner_forward.10} parent=1 // loop_footer_branch
      %15 = sbr.rel target = $region3
    $region8: #{knowledge_reasoner_forward.10} parent=1 // loop_exit
      _
    %702 = vsyncpa [#allocation3], 1
    %s703 = scalar_lea.sflag [#allocation3], 1
    %704 = vsyncpa %s703, 1

// kernel: knowledge_reasoner_forward.15
$region0: #{knowledge_reasoner_forward.15}
  #allocation0 [shape = 'u32[]', space=smem, size = 0x4, offset = 0x4, fixed_abs, tag = 'smem constant byte address 0x4 - core index']
  #allocation1 [shape = 'u32[144,128]{1,0:T(1,128)}', space=vmem, size = 0x12000, scoped, tag = 'internal scratch']
  %s0 = inlined_call_operand.vmem [shape: f32[16,32], index: 0, kind: input, shape index: {}]
  %s1 = inlined_call_operand.vmem [shape: f32[32,32], index: 1, kind: input, shape index: {}]
  %s2 = inlined_call_operand.vmem [shape: f32[1,32], index: 2, kind: input, shape index: {}]
  %s3 = inlined_call_operand.vmem [shape: f32[1,32], index: 3, kind: input, shape index: {}]
  %s4 = inlined_call_operand.vmem [shape: f32[1,32], index: 4, kind: input, shape index: {}]
  %s5 = inlined_call_operand.hbm [shape: f32[16,32], index: 5, kind: output, shape index: {}]
  %s6 = sld [smem:[#allocation0]]
  $region30: #{knowledge_reasoner_forward.15} parent=0
    _
  %s8 = ssub.s32 1, %s6
  %s9 = scalar_select 0, %s8, %s6
  $region1: #{knowledge_reasoner_forward.15} parent=0
    #allocation2 [shape = 'u8[8192]{0}', space=vmem, size = 0x2000, scoped, tag = 'output window, operand 0, single buffered']
    #allocation3 [shape = 's32[1]{0}', space=sflag, size = 0x4, scoped, tag = 'scoped memory for knowledge_reasoner_forward.15']
    %10 = vsyncpa [#allocation3], 0
    // Predicated region
    $region2: #{knowledge_reasoner_forward.15} parent=1 // pred_check
      _
    $region3: #{knowledge_reasoner_forward.15} parent=1 // pred_check_branch
      %12 = sbr.rel (0) target = $region5
    $region4: #{knowledge_reasoner_forward.15} parent=1 // pred_region
      _
    $region5: #{knowledge_reasoner_forward.15} parent=1 // pred_fallthru
      _
    // Predicated region
    $region6: #{knowledge_reasoner_forward.15} parent=1 // pred_check
      _
    $region7: #{knowledge_reasoner_forward.15} parent=1 // pred_check_branch
      %14 = sbr.rel (0) target = $region9
    $region8: #{knowledge_reasoner_forward.15} parent=1 // pred_region
      _
    $region9: #{knowledge_reasoner_forward.15} parent=1 // pred_fallthru
      _
    // Predicated region
    $region10: #{knowledge_reasoner_forward.15} parent=1 // pred_check
      _
    $region11: #{knowledge_reasoner_forward.15} parent=1 // pred_check_branch
      %16 = sbr.rel (0) target = $region13
    $region12: #{knowledge_reasoner_forward.15} parent=1 // pred_region
      _
    $region13: #{knowledge_reasoner_forward.15} parent=1 // pred_fallthru
      _
    // Predicated region
    $region14: #{knowledge_reasoner_forward.15} parent=1 // pred_check
      _
    $region15: #{knowledge_reasoner_forward.15} parent=1 // pred_check_branch
      %18 = sbr.rel (0) target = $region17
    $region16: #{knowledge_reasoner_forward.15} parent=1 // pred_region
      _
    $region17: #{knowledge_reasoner_forward.15} parent=1 // pred_fallthru
      _
    // Predicated region
    $region18: #{knowledge_reasoner_forward.15} parent=1 // pred_check
      _
    $region19: #{knowledge_reasoner_forward.15} parent=1 // pred_check_branch
      %20 = sbr.rel (0) target = $region21
    $region20: #{knowledge_reasoner_forward.15} parent=1 // pred_region
      _
    $region21: #{knowledge_reasoner_forward.15} parent=1 // pred_fallthru
      _
    %v21 = vld [vmem:[%s0] sm:$0xff]
    %v22 = vld [vmem:[%s0 + $0x8] sm:$0xff]
    %v23 = vld [vmem:[%s1] sm:$0xff]
    %v24 = vld [vmem:[%s1 + $0x8] sm:$0xff]
    %v25 = vld [vmem:[%s1 + $0x10] sm:$0xff]
    %v26 = vld [vmem:[%s1 + $0x18] sm:$0xff]
    %v27 = vld [vmem:[%s2] sm:$0x1]
    %v29 = vlaneseq
    %v30 = vshrl.u32 %v29, 7
    %v31 = vsub.s32 0, %v30
    %v32 = vrot.slane %v27, %v31
    %vm34 = vcmask 261120
    %v36 = vsel %vm34, %v21, 0
    %v39 = vsel %vm34, %v22, 0
    %41 = vmatprep.subr.mxu0 0.0
    %42 = vmatpush1.msra.mxu0 0.0
    %43 = vmatprep.subr.mxu0 0.0
    %44 = vmatpush1.msra.mxu0 0.0
    %45 = vmatprep.subr.mxu0 0.0
    %46 = vmatpush1.msra.mxu0 0.0
    %47 = vmatprep.subr.mxu0 0.0
    %48 = vmatpush1.msra.mxu0 0.0
    %49 = vmatprep.subr.mxu0 0.0
    %50 = vmatpush1.msra.mxu0 0.0
    %51 = vmatprep.subr.mxu0 0.0
    %52 = vmatpush1.msra.mxu0 0.0
    %53 = vmatprep.subr.mxu0 0.0
    %54 = vmatpush1.msra.mxu0 0.0
    %55 = vmatprep.subr.mxu0 0.0
    %56 = vmatpush1.msra.mxu0 0.0
    %57 = vmatprep.subr.mxu0 0.0
    %58 = vmatpush1.msra.mxu0 0.0
    %59 = vmatprep.subr.mxu0 0.0
    %60 = vmatpush1.msra.mxu0 0.0
    %61 = vmatprep.subr.mxu0 0.0
    %62 = vmatpush1.msra.mxu0 0.0
    %63 = vmatprep.subr.mxu0 0.0
    %64 = vmatpush1.msra.mxu0 0.0
    %65 = vmatprep.subr.mxu0 0.0
    %66 = vmatpush1.msra.mxu0 %v26
    %67 = vmatprep.subr.mxu0 0.0
    %68 = vmatpush1.msra.mxu0 %v25
    %69 = vmatprep.subr.mxu0 0.0
    %70 = vmatpush1.msra.mxu0 %v24
    %71 = vmatprep.subr.mxu0 0.0
    %72 = vmatpush1.msra.mxu0 %v23
    %73 = vmatprep.subr.mxu0 0.0
    %74 = vmatpush2.msra.mxu0 0.0
    %75 = vmatprep.subr.mxu0 0.0
    %76 = vmatpush2.msra.mxu0 0.0
    %77 = vmatprep.subr.mxu0 0.0
    %78 = vmatpush2.msra.mxu0 0.0
    %79 = vmatprep.subr.mxu0 0.0
    %80 = vmatpush2.msra.mxu0 0.0
    %81 = vmatprep.subr.mxu0 0.0
    %82 = vmatpush2.msra.mxu0 0.0
    %83 = vmatprep.subr.mxu0 0.0
    %84 = vmatpush2.msra.mxu0 0.0
    %85 = vmatprep.subr.mxu0 0.0
    %86 = vmatpush2.msra.mxu0 0.0
    %87 = vmatprep.subr.mxu0 0.0
    %88 = vmatpush2.msra.mxu0 0.0
    %89 = vmatprep.subr.mxu0 0.0
    %90 = vmatpush2.msra.mxu0 0.0
    %91 = vmatprep.subr.mxu0 0.0
    %92 = vmatpush2.msra.mxu0 0.0
    %93 = vmatprep.subr.mxu0 0.0
    %94 = vmatpush2.msra.mxu0 0.0
    %95 = vmatprep.subr.mxu0 0.0
    %96 = vmatpush2.msra.mxu0 0.0
    %97 = vmatprep.subr.mxu0 0.0
    %98 = vmatpush2.msra.mxu0 0.0
    %99 = vmatprep.subr.mxu0 0.0
    %100 = vmatpush2.msra.mxu0 0.0
    %101 = vmatprep.subr.mxu0 0.0
    %102 = vmatpush2.msra.mxu0 0.0
    %103 = vmatprep.subr.mxu0 0.0
    %104 = vmatpush2.msra.mxu0 0.0
    %105 = vmatprep.mubr.f32.mxu0 0.0
    %106 = vmatmul.mubr.f32.gmra.mxu0 %v36
    %v107 = vpop.f32.mrf.mxu0
    %v108 = vadd.f32 %v32, %v107
    %v109 = vpop.f32.mrf.mxu0
    %110 = vmatprep.mubr.f32.mxu0 0.0
    %111 = vmatmul.mubr.f32.gmra.mxu0 %v39
    %v112 = vpop.f32.mrf.mxu0
    %v113 = vadd.f32 %v32, %v112
    %v114 = vpop.f32.mrf.mxu0
    %115 = vdwg.mxu0
    %v116 = vld [vmem:[%s3] sm:$0x1]
    %v117 = vld [vmem:[%s4] sm:$0x1]
    %v118 = vsel %vm34, %v108, 0.0
    %119 = vadd.xlane.f32.xlu0 %v118
    %v120 = vpop.xlane.xlu0 %119
    %v121 = vsel %vm34, %v113, 0.0
    %122 = vadd.xlane.f32.xlu0 %v121
    %v123 = vpop.xlane.xlu0 %122
    %v124 = vrcp.pop 32.0
    %v125 = vmul.f32 %v120, %v124
    %v126 = vmul.f32 %v123, %v124
    %v127 = vsub.f32 %v108, %v125
    %v128 = vsub.f32 %v113, %v126
    %v129 = vmul.f32 %v127, %v127
    %v130 = vmul.f32 %v128, %v128
    %v131 = vsel %vm34, %v129, 0.0
    %132 = vadd.xlane.f32.xlu0 %v131
    %v133 = vpop.xlane.xlu0 %132
    %v134 = vsel %vm34, %v130, 0.0
    %135 = vadd.xlane.f32.xlu0 %v134
    %v136 = vpop.xlane.xlu0 %135
    %v137 = vmul.f32 %v133, %v124
    %v138 = vmul.f32 %v136, %v124
    %v139 = vadd.f32 %v137, 1e-05
    %v140 = vadd.f32 %v138, 1e-05
    %v141 = vrsqrt.pop %v139
    %v142 = vrsqrt.pop %v140
    %v143 = vmul.f32 %v127, %v141
    %v144 = vmul.f32 %v128, %v142
    %v146 = vlaneseq
    %v147 = vshrl.u32 %v146, 7
    %v148 = vsub.s32 0, %v147
    %v149 = vrot.slane %v116, %v148
    %v151 = vmul.f32 %v143, %v149
    %v152 = vmul.f32 %v144, %v149
    %v154 = vlaneseq
    %v155 = vshrl.u32 %v154, 7
    %v156 = vsub.s32 0, %v155
    %v157 = vrot.slane %v117, %v156
    %v159 = vadd.f32 %v151, %v157
    %v160 = vadd.f32 %v152, %v157
    %161 = vst.msk [vmem:[#allocation2] sm:$0xff] %vm34, %v159
    %162 = vst.msk [vmem:[#allocation2 + $0x8] sm:$0xff] %vm34, %v160
    // Predicated region
    $region22: #{knowledge_reasoner_forward.15} parent=1 // pred_check
      _
    $region23: #{knowledge_reasoner_forward.15} parent=1 // pred_check_branch
      %164 = sbr.rel (0) target = $region25
    $region24: #{knowledge_reasoner_forward.15} parent=1 // pred_region
      %s166 = ssub.s32 256, 256
      %167 = vsyncadd [#allocation3], %s166
      %s168 = sshll.u32 [#allocation2], 4
      %s169 = int_to_ptr.vmem [resolvable:$true] %s168
      %174 = dma.vmem_to_hbm [thread:$0]  %s169, 256, %s5, [#allocation3], 128, 128, 8
    $region25: #{knowledge_reasoner_forward.15} parent=1 // pred_fallthru
      _
    // Predicated region
    $region26: #{knowledge_reasoner_forward.15} parent=1 // pred_check
      _
    $region27: #{knowledge_reasoner_forward.15} parent=1 // pred_check_branch
      %176 = sbr.rel (0) target = $region29
    $region28: #{knowledge_reasoner_forward.15} parent=1 // pred_region
      %177 = dma.done [#allocation3], 256
    $region29: #{knowledge_reasoner_forward.15} parent=1 // pred_fallthru
      _
    %178 = vsyncpa [#allocation3], 1

// kernel: knowledge_reasoner_forward.11
$region0: #{knowledge_reasoner_forward.11}
  #allocation0 [shape = 'u32[]', space=smem, size = 0x4, offset = 0x4, fixed_abs, tag = 'smem constant byte address 0x4 - core index']
  #allocation1 [shape = 'u32[144,128]{1,0:T(1,128)}', space=vmem, size = 0x12000, scoped, tag = 'internal scratch']
  %s0 = inlined_call_operand.vmem [shape: f32[2,8,32], index: 0, kind: input, shape index: {}]
  %s1 = inlined_call_operand.vmem [shape: f32[32,96], index: 1, kind: input, shape index: {}]
  %s2 = inlined_call_operand.vmem [shape: f32[1,96], index: 2, kind: input, shape index: {}]
  %s3 = inlined_call_operand.vmem [shape: f32[32,32], index: 3, kind: input, shape index: {}]
  %s4 = inlined_call_operand.vmem [shape: f32[1,32], index: 4, kind: input, shape index: {}]
  %s5 = inlined_call_operand.vmem [shape: f32[1,32], index: 5, kind: input, shape index: {}]
  %s6 = inlined_call_operand.vmem [shape: f32[1,32], index: 6, kind: input, shape index: {}]
  %s7 = inlined_call_operand.vmem [shape: f32[2,8,32], index: 7, kind: output, shape index: {}]
  %s8 = sld [smem:[#allocation0]]
  $region61: #{knowledge_reasoner_forward.11} parent=0
    _
  %s10 = ssub.s32 1, %s8
  %s11 = scalar_select 0, %s10, %s8
  loop: start=0, step=1, limit=4
  $region2: #{knowledge_reasoner_forward.11} parent=0 // loop_pre_header
    _
  $region3: #{knowledge_reasoner_forward.11} parent=0 // loop_header
    %s13 = sphi 0, %s17
    %p14 = scmp.ge.s32.totalorder %s13, 4
    %s23 = sphi 0, %s25
    %s26 = sphi 0, %s23
    %s27 = sphi 0, %s26
    %s43 = sphi 0, %s27
    %s47 = sphi 0, %s47
    %s49 = sphi 0, %s47
    %s50 = sphi 0, %s49
    %s64 = sphi 0, %s50
    %s68 = sphi 0, %s68
    %s70 = sphi 0, %s68
    %s71 = sphi 0, %s70
    %s85 = sphi 0, %s71
    %s89 = sphi 0, %s89
    %s91 = sphi 0, %s89
    %s92 = sphi 0, %s91
    %s106 = sphi 0, %s92
    %s110 = sphi 0, %s110
    %s112 = sphi 0, %s110
    %s113 = sphi 0, %s112
    %s127 = sphi 0, %s113
    %s131 = sphi 0, %s131
    %s133 = sphi 0, %s131
    %s134 = sphi 0, %s133
    %s148 = sphi 0, %s134
    %s152 = sphi 0, %s152
    %s154 = sphi 0, %s152
    %s155 = sphi 0, %s154
    %s169 = sphi 0, %s155
    %s175 = sphi 0, %s177
    %s178 = sphi 0, %s175
    %s179 = sphi 0, %s178
    %s195 = sphi 0, %s179
  $region4: #{knowledge_reasoner_forward.11} parent=0 // loop_header_branch
    %16 = sbr.rel (%p14) target = $region8
  $region5: #{knowledge_reasoner_forward.11} parent=0 // loop_body
    %s18 = ssub.s32 %s13, 1
    %s19 = ssub.s32 %s13, 2
    %s20 = sadd.s32 %s13, 1
    %s21 = ssub.s32 %s13, %s20
    %p22 = scmp.eq.s32.totalorder %s21, 0
    %s24 = sadd.s32 %s23, 1
    %s25 = scalar_select %p22, %s23, %s24
    %p28 = pneg %p22
    %p29 = scmp.eq.s32.totalorder %s13, 1
    %p30 = por %p28, %p29
    %p31 = scmp.ne.s32.totalorder %s23, %s26
    %p32 = scmp.eq.s32.totalorder %s13, 0
    %p33 = por %p31, %p32
    %p34 = scmp.ne.s32.totalorder %s23, %s26
    %p35 = scmp.eq.s32.totalorder %s18, 1
    %p36 = por %p34, %p35
    %p37 = scmp.ne.s32.totalorder %s26, %s27
    %p38 = scmp.eq.s32.totalorder %s18, 0
    %p39 = por %p37, %p38
    %p40 = scmp.ne.s32.totalorder %s26, %s27
    %p41 = scmp.eq.s32.totalorder %s19, 1
    %p42 = por %p40, %p41
    %p44 = scmp.ne.s32.totalorder %s27, %s43
    %p45 = scmp.eq.s32.totalorder %s19, 0
    %p46 = por %p44, %p45
    %s48 = sadd.s32 %s47, 1
    %p51 = scmp.eq.s32.totalorder %s13, 1
    %p52 = scmp.ne.s32.totalorder %s47, %s49
    %p53 = scmp.eq.s32.totalorder %s13, 0
    %p54 = por %p52, %p53
    %p55 = scmp.ne.s32.totalorder %s47, %s49
    %p56 = scmp.eq.s32.totalorder %s18, 1
    %p57 = por %p55, %p56
    %p58 = scmp.ne.s32.totalorder %s49, %s50
    %p59 = scmp.eq.s32.totalorder %s18, 0
    %p60 = por %p58, %p59
    %p61 = scmp.ne.s32.totalorder %s49, %s50
    %p62 = scmp.eq.s32.totalorder %s19, 1
    %p63 = por %p61, %p62
    %p65 = scmp.ne.s32.totalorder %s50, %s64
    %p66 = scmp.eq.s32.totalorder %s19, 0
    %p67 = por %p65, %p66
    %s69 = sadd.s32 %s68, 1
    %p72 = scmp.eq.s32.totalorder %s13, 1
    %p73 = scmp.ne.s32.totalorder %s68, %s70
    %p74 = scmp.eq.s32.totalorder %s13, 0
    %p75 = por %p73, %p74
    %p76 = scmp.ne.s32.totalorder %s68, %s70
    %p77 = scmp.eq.s32.totalorder %s18, 1
    %p78 = por %p76, %p77
    %p79 = scmp.ne.s32.totalorder %s70, %s71
    %p80 = scmp.eq.s32.totalorder %s18, 0
    %p81 = por %p79, %p80
    %p82 = scmp.ne.s32.totalorder %s70, %s71
    %p83 = scmp.eq.s32.totalorder %s19, 1
    %p84 = por %p82, %p83
    %p86 = scmp.ne.s32.totalorder %s71, %s85
    %p87 = scmp.eq.s32.totalorder %s19, 0
    %p88 = por %p86, %p87
    %s90 = sadd.s32 %s89, 1
    %p93 = scmp.eq.s32.totalorder %s13, 1
    %p94 = scmp.ne.s32.totalorder %s89, %s91
    %p95 = scmp.eq.s32.totalorder %s13, 0
    %p96 = por %p94, %p95
    %p97 = scmp.ne.s32.totalorder %s89, %s91
    %p98 = scmp.eq.s32.totalorder %s18, 1
    %p99 = por %p97, %p98
    %p100 = scmp.ne.s32.totalorder %s91, %s92
    %p101 = scmp.eq.s32.totalorder %s18, 0
    %p102 = por %p100, %p101
    %p103 = scmp.ne.s32.totalorder %s91, %s92
    %p104 = scmp.eq.s32.totalorder %s19, 1
    %p105 = por %p103, %p104
    %p107 = scmp.ne.s32.totalorder %s92, %s106
    %p108 = scmp.eq.s32.totalorder %s19, 0
    %p109 = por %p107, %p108
    %s111 = sadd.s32 %s110, 1
    %p114 = scmp.eq.s32.totalorder %s13, 1
    %p115 = scmp.ne.s32.totalorder %s110, %s112
    %p116 = scmp.eq.s32.totalorder %s13, 0
    %p117 = por %p115, %p116
    %p118 = scmp.ne.s32.totalorder %s110, %s112
    %p119 = scmp.eq.s32.totalorder %s18, 1
    %p120 = por %p118, %p119
    %p121 = scmp.ne.s32.totalorder %s112, %s113
    %p122 = scmp.eq.s32.totalorder %s18, 0
    %p123 = por %p121, %p122
    %p124 = scmp.ne.s32.totalorder %s112, %s113
    %p125 = scmp.eq.s32.totalorder %s19, 1
    %p126 = por %p124, %p125
    %p128 = scmp.ne.s32.totalorder %s113, %s127
    %p129 = scmp.eq.s32.totalorder %s19, 0
    %p130 = por %p128, %p129
    %s132 = sadd.s32 %s131, 1
    %p135 = scmp.eq.s32.totalorder %s13, 1
    %p136 = scmp.ne.s32.totalorder %s131, %s133
    %p137 = scmp.eq.s32.totalorder %s13, 0
    %p138 = por %p136, %p137
    %p139 = scmp.ne.s32.totalorder %s131, %s133
    %p140 = scmp.eq.s32.totalorder %s18, 1
    %p141 = por %p139, %p140
    %p142 = scmp.ne.s32.totalorder %s133, %s134
    %p143 = scmp.eq.s32.totalorder %s18, 0
    %p144 = por %p142, %p143
    %p145 = scmp.ne.s32.totalorder %s133, %s134
    %p146 = scmp.eq.s32.totalorder %s19, 1
    %p147 = por %p145, %p146
    %p149 = scmp.ne.s32.totalorder %s134, %s148
    %p150 = scmp.eq.s32.totalorder %s19, 0
    %p151 = por %p149, %p150
    %s153 = sadd.s32 %s152, 1
    %p156 = scmp.eq.s32.totalorder %s13, 1
    %p157 = scmp.ne.s32.totalorder %s152, %s154
    %p158 = scmp.eq.s32.totalorder %s13, 0
    %p159 = por %p157, %p158
    %p160 = scmp.ne.s32.totalorder %s152, %s154
    %p161 = scmp.eq.s32.totalorder %s18, 1
    %p162 = por %p160, %p161
    %p163 = scmp.ne.s32.totalorder %s154, %s155
    %p164 = scmp.eq.s32.totalorder %s18, 0
    %p165 = por %p163, %p164
    %p166 = scmp.ne.s32.totalorder %s154, %s155
    %p167 = scmp.eq.s32.totalorder %s19, 1
    %p168 = por %p166, %p167
    %p170 = scmp.ne.s32.totalorder %s155, %s169
    %p171 = scmp.eq.s32.totalorder %s19, 0
    %p172 = por %p170, %p171
    %s173 = ssub.s32 %s13, %s20
    %p174 = scmp.eq.s32.totalorder %s173, 0
    %s176 = sadd.s32 %s175, 1
    %s177 = scalar_select %p174, %s175, %s176
    %p180 = pneg %p174
    %p181 = scmp.eq.s32.totalorder %s13, 1
    %p182 = por %p180, %p181
    %p183 = scmp.ne.s32.totalorder %s175, %s178
    %p184 = scmp.eq.s32.totalorder %s13, 0
    %p185 = por %p183, %p184
    %p186 = scmp.ne.s32.totalorder %s175, %s178
    %p187 = scmp.eq.s32.totalorder %s18, 1
    %p188 = por %p186, %p187
    %p189 = scmp.ne.s32.totalorder %s178, %s179
    %p190 = scmp.eq.s32.totalorder %s18, 0
    %p191 = por %p189, %p190
    %p192 = scmp.ne.s32.totalorder %s178, %s179
    %p193 = scmp.eq.s32.totalorder %s19, 1
    %p194 = por %p192, %p193
    %p196 = scmp.ne.s32.totalorder %s179, %s195
    %p197 = scmp.eq.s32.totalorder %s19, 0
    %p198 = por %p196, %p197
    %p199 = scmp.le.s32.totalorder 1, %s13
    %p200 = scmp.lt.s32.totalorder %s13, 3
    %p201 = pnand %p199, %p200
    %p202 = pneg %p201
    // Predicated region
    $region9: #{knowledge_reasoner_forward.11} parent=5 // pred_check
      _
    $region10: #{knowledge_reasoner_forward.11} parent=5 // pred_check_branch
      %204 = sbr.rel (%p201) target = $region12
    $region11: #{knowledge_reasoner_forward.11} parent=5 // pred_region
      %s205 = ssub.s32 %s13, 1
      // Predicated region
      $region13: #{knowledge_reasoner_forward.11} parent=11 // pred_check
        %p206 = pneg %p60
      $region14: #{knowledge_reasoner_forward.11} parent=11 // pred_check_branch
        %208 = sbr.rel (%p206) target = $region16
      $region15: #{knowledge_reasoner_forward.11} parent=11 // pred_region
        _
      $region16: #{knowledge_reasoner_forward.11} parent=11 // pred_fallthru
        _
      // Predicated region
      $region17: #{knowledge_reasoner_forward.11} parent=11 // pred_check
        %p209 = pneg %p81
      $region18: #{knowledge_reasoner_forward.11} parent=11 // pred_check_branch
        %211 = sbr.rel (%p209) target = $region20
      $region19: #{knowledge_reasoner_forward.11} parent=11 // pred_region
        _
      $region20: #{knowledge_reasoner_forward.11} parent=11 // pred_fallthru
        _
      // Predicated region
      $region21: #{knowledge_reasoner_forward.11} parent=11 // pred_check
        %p212 = pneg %p102
      $region22: #{knowledge_reasoner_forward.11} parent=11 // pred_check_branch
        %214 = sbr.rel (%p212) target = $region24
      $region23: #{knowledge_reasoner_forward.11} parent=11 // pred_region
        _
      $region24: #{knowledge_reasoner_forward.11} parent=11 // pred_fallthru
        _
      // Predicated region
      $region25: #{knowledge_reasoner_forward.11} parent=11 // pred_check
        %p215 = pneg %p123
      $region26: #{knowledge_reasoner_forward.11} parent=11 // pred_check_branch
        %217 = sbr.rel (%p215) target = $region28
      $region27: #{knowledge_reasoner_forward.11} parent=11 // pred_region
        _
      $region28: #{knowledge_reasoner_forward.11} parent=11 // pred_fallthru
        _
      // Predicated region
      $region29: #{knowledge_reasoner_forward.11} parent=11 // pred_check
        %p218 = pneg %p144
      $region30: #{knowledge_reasoner_forward.11} parent=11 // pred_check_branch
        %220 = sbr.rel (%p218) target = $region32
      $region31: #{knowledge_reasoner_forward.11} parent=11 // pred_region
        _
      $region32: #{knowledge_reasoner_forward.11} parent=11 // pred_fallthru
        _
      // Predicated region
      $region33: #{knowledge_reasoner_forward.11} parent=11 // pred_check
        %p221 = pneg %p165
      $region34: #{knowledge_reasoner_forward.11} parent=11 // pred_check_branch
        %223 = sbr.rel (%p221) target = $region36
      $region35: #{knowledge_reasoner_forward.11} parent=11 // pred_region
        _
      $region36: #{knowledge_reasoner_forward.11} parent=11 // pred_fallthru
        _
    $region12: #{knowledge_reasoner_forward.11} parent=5 // pred_fallthru
      _
    %p224 = scmp.lt.s32.totalorder %s13, 2
    // Predicated region
    $region37: #{knowledge_reasoner_forward.11} parent=5 // pred_check
      %p225 = pneg %p224
    $region38: #{knowledge_reasoner_forward.11} parent=5 // pred_check_branch
      %227 = sbr.rel (%p225) target = $region40
    $region39: #{knowledge_reasoner_forward.11} parent=5 // pred_region
      // Predicated region
      $region41: #{knowledge_reasoner_forward.11} parent=39 // pred_check
        %p228 = pneg %p33
      $region42: #{knowledge_reasoner_forward.11} parent=39 // pred_check_branch
        %230 = sbr.rel (%p228) target = $region44
      $region43: #{knowledge_reasoner_forward.11} parent=39 // pred_region
        %p231 = scmp.lt.s32.totalorder %s13, 1
        %s232 = scalar_select %p231, %s13, 1
        %s233 = smul.addr %s232, 8
        %s234 = scalar_lea.vmem %s0, %s233
      $region44: #{knowledge_reasoner_forward.11} parent=39 // pred_fallthru
        _
    $region40: #{knowledge_reasoner_forward.11} parent=5 // pred_fallthru
      _
    %p235 = scmp.le.s32.totalorder 1, %s13
    %p236 = scmp.lt.s32.totalorder %s13, 3
    %p237 = pnand %p235, %p236
    %p238 = pneg %p237
    // Predicated region
    $region45: #{knowledge_reasoner_forward.11} parent=5 // pred_check
      _
    $region46: #{knowledge_reasoner_forward.11} parent=5 // pred_check_branch
      %240 = sbr.rel (%p237) target = $region48
    $region47: #{knowledge_reasoner_forward.11} parent=5 // pred_region
      %s241 = ssub.s32 %s13, 1
      %p242 = scmp.lt.s32.totalorder %s18, 1
      %s243 = scalar_select %p242, %s18, 1
      %s244 = smul.addr %s243, 8
      %s245 = scalar_lea.vmem %s0, %s244
      %p246 = pneg %p39
      %p247 = pneg %p36
      %p248 = pneg %p60
      %p249 = pneg %p57
      %p250 = pneg %p81
      %p251 = pneg %p78
      %p252 = pneg %p102
      %p253 = pneg %p99
      %p254 = pneg %p123
      %p255 = pneg %p120
      %p256 = pneg %p144
      %p257 = pneg %p141
      %p258 = pneg %p165
      %p259 = pneg %p162
      %p260 = pneg %p191
      %p261 = pneg %p188
      %p262 = scmp.lt.s32.totalorder %s18, 1
      %s263 = scalar_select %p262, %s18, 1
      %s264 = smul.addr %s263, 8
      %s265 = scalar_lea.vmem %s7, %s264
      %p266 = scmp.lt.s32.totalorder %s18, 1
      %s267 = scalar_select %p266, %s18, 1
      %s268 = smul.addr %s267, 8
      %s269 = scalar_lea.vmem %s0, %s268
      %p270 = scmp.lt.s32.totalorder %s18, 1
      %s271 = scalar_select %p270, %s18, 1
      %s272 = smul.addr %s271, 8
      %s273 = scalar_lea.vmem %s7, %s272
      %v274 = vld [vmem:[%s269] sm:$0xff]
      %v275 = vld [vmem:[%s1] sm:$0xff]
      %v276 = vld [vmem:[%s1 + $0x8] sm:$0xff]
      %v277 = vld [vmem:[%s1 + $0x10] sm:$0xff]
      %v278 = vld [vmem:[%s1 + $0x18] sm:$0xff]
      %v279 = vld [vmem:[%s2] sm:$0x1]
      %v281 = vlaneseq
      %v282 = vshrl.u32 %v281, 7
      %v283 = vsub.s32 0, %v282
      %v284 = vrot.slane %v279, %v283
      %vm286 = vcmask 261120
      %v288 = vsel %vm286, %v274, 0
      %290 = vmatprep.subr.mxu0 0.0
      %291 = vmatpush1.msra.mxu0 0.0
      %292 = vmatprep.subr.mxu0 0.0
      %293 = vmatpush1.msra.mxu0 0.0
      %294 = vmatprep.subr.mxu0 0.0
      %295 = vmatpush1.msra.mxu0 0.0
      %296 = vmatprep.subr.mxu0 0.0
      %297 = vmatpush1.msra.mxu0 0.0
      %298 = vmatprep.subr.mxu0 0.0
      %299 = vmatpush1.msra.mxu0 0.0
      %300 = vmatprep.subr.mxu0 0.0
      %301 = vmatpush1.msra.mxu0 0.0
      %302 = vmatprep.subr.mxu0 0.0
      %303 = vmatpush1.msra.mxu0 0.0
      %304 = vmatprep.subr.mxu0 0.0
      %305 = vmatpush1.msra.mxu0 0.0
      %306 = vmatprep.subr.mxu0 0.0
      %307 = vmatpush1.msra.mxu0 0.0
      %308 = vmatprep.subr.mxu0 0.0
      %309 = vmatpush1.msra.mxu0 0.0
      %310 = vmatprep.subr.mxu0 0.0
      %311 = vmatpush1.msra.mxu0 0.0
      %312 = vmatprep.subr.mxu0 0.0
      %313 = vmatpush1.msra.mxu0 0.0
      %314 = vmatprep.subr.mxu0 0.0
      %315 = vmatpush1.msra.mxu0 %v278
      %316 = vmatprep.subr.mxu0 0.0
      %317 = vmatpush1.msra.mxu0 %v277
      %318 = vmatprep.subr.mxu0 0.0
      %319 = vmatpush1.msra.mxu0 %v276
      %320 = vmatprep.subr.mxu0 0.0
      %321 = vmatpush1.msra.mxu0 %v275
      %322 = vmatprep.subr.mxu0 0.0
      %323 = vmatpush2.msra.mxu0 0.0
      %324 = vmatprep.subr.mxu0 0.0
      %325 = vmatpush2.msra.mxu0 0.0
      %326 = vmatprep.subr.mxu0 0.0
      %327 = vmatpush2.msra.mxu0 0.0
      %328 = vmatprep.subr.mxu0 0.0
      %329 = vmatpush2.msra.mxu0 0.0
      %330 = vmatprep.subr.mxu0 0.0
      %331 = vmatpush2.msra.mxu0 0.0
      %332 = vmatprep.subr.mxu0 0.0
      %333 = vmatpush2.msra.mxu0 0.0
      %334 = vmatprep.subr.mxu0 0.0
      %335 = vmatpush2.msra.mxu0 0.0
      %336 = vmatprep.subr.mxu0 0.0
      %337 = vmatpush2.msra.mxu0 0.0
      %338 = vmatprep.subr.mxu0 0.0
      %339 = vmatpush2.msra.mxu0 0.0
      %340 = vmatprep.subr.mxu0 0.0
      %341 = vmatpush2.msra.mxu0 0.0
      %342 = vmatprep.subr.mxu0 0.0
      %343 = vmatpush2.msra.mxu0 0.0
      %344 = vmatprep.subr.mxu0 0.0
      %345 = vmatpush2.msra.mxu0 0.0
      %346 = vmatprep.subr.mxu0 0.0
      %347 = vmatpush2.msra.mxu0 0.0
      %348 = vmatprep.subr.mxu0 0.0
      %349 = vmatpush2.msra.mxu0 0.0
      %350 = vmatprep.subr.mxu0 0.0
      %351 = vmatpush2.msra.mxu0 0.0
      %352 = vmatprep.subr.mxu0 0.0
      %353 = vmatpush2.msra.mxu0 0.0
      %354 = vmatprep.mubr.f32.mxu0 0.0
      %355 = vmatmul.mubr.f32.gmra.mxu0 %v288
      %v356 = vpop.f32.mrf.mxu0
      %v357 = vadd.f32 %v284, %v356
      %v358 = vpop.f32.mrf.mxu0
      %359 = vdwg.mxu0
      %v360 = vld [vmem:[%s3] sm:$0xff]
      %v361 = vld [vmem:[%s3 + $0x8] sm:$0xff]
      %v362 = vld [vmem:[%s3 + $0x10] sm:$0xff]
      %v363 = vld [vmem:[%s3 + $0x18] sm:$0xff]
      %365 = vrot.lane.b32.xlu0 %v357, 96
      %v366 = vpop.permute.xlu0 %365
      %vm367 = vcmask 64512
      %v368 = vsel %vm367, %v357, 0
      %v370 = vsel %vm367, %v366, 0
      %372 = vmatprep.subr.mxu0 0.0
      %373 = vmatpush1.xpose.msra.mxu0 0.0
      %374 = vmatprep.subr.mxu0 0.0
      %375 = vmatpush1.xpose.msra.mxu0 0.0
      %376 = vmatprep.subr.mxu0 0.0
      %377 = vmatpush1.xpose.msra.mxu0 0.0
      %378 = vmatprep.subr.mxu0 0.0
      %379 = vmatpush1.xpose.msra.mxu0 0.0
      %380 = vmatprep.subr.mxu0 0.0
      %381 = vmatpush1.xpose.msra.mxu0 0.0
      %382 = vmatprep.subr.mxu0 0.0
      %383 = vmatpush1.xpose.msra.mxu0 0.0
      %384 = vmatprep.subr.mxu0 0.0
      %385 = vmatpush1.xpose.msra.mxu0 0.0
      %386 = vmatprep.subr.mxu0 0.0
      %387 = vmatpush1.xpose.msra.mxu0 0.0
      %388 = vmatprep.subr.mxu0 0.0
      %389 = vmatpush1.xpose.msra.mxu0 0.0
      %390 = vmatprep.subr.mxu0 0.0
      %391 = vmatpush1.xpose.msra.mxu0 0.0
      %392 = vmatprep.subr.mxu0 0.0
      %393 = vmatpush1.xpose.msra.mxu0 0.0
      %394 = vmatprep.subr.mxu0 0.0
      %395 = vmatpush1.xpose.msra.mxu0 0.0
      %396 = vmatprep.subr.mxu0 0.0
      %397 = vmatpush1.xpose.msra.mxu0 0.0
      %398 = vmatprep.subr.mxu0 0.0
      %399 = vmatpush1.xpose.msra.mxu0 0.0
      %400 = vmatprep.subr.mxu0 0.0
      %401 = vmatpush1.xpose.msra.mxu0 0.0
      %402 = vmatprep.subr.mxu0 0.0
      %403 = vmatpush1.xpose.msra.mxu0 %v370
      %404 = vmatprep.subr.mxu0 0.0
      %405 = vmatpush2.xpose.msra.mxu0 0.0
      %406 = vmatprep.subr.mxu0 0.0
      %407 = vmatpush2.xpose.msra.mxu0 0.0
      %408 = vmatprep.subr.mxu0 0.0
      %409 = vmatpush2.xpose.msra.mxu0 0.0
      %410 = vmatprep.subr.mxu0 0.0
      %411 = vmatpush2.xpose.msra.mxu0 0.0
      %412 = vmatprep.subr.mxu0 0.0
      %413 = vmatpush2.xpose.msra.mxu0 0.0
      %414 = vmatprep.subr.mxu0 0.0
      %415 = vmatpush2.xpose.msra.mxu0 0.0
      %416 = vmatprep.subr.mxu0 0.0
      %417 = vmatpush2.xpose.msra.mxu0 0.0
      %418 = vmatprep.subr.mxu0 0.0
      %419 = vmatpush2.xpose.msra.mxu0 0.0
      %420 = vmatprep.subr.mxu0 0.0
      %421 = vmatpush2.xpose.msra.mxu0 0.0
      %422 = vmatprep.subr.mxu0 0.0
      %423 = vmatpush2.xpose.msra.mxu0 0.0
      %424 = vmatprep.subr.mxu0 0.0
      %425 = vmatpush2.xpose.msra.mxu0 0.0
      %426 = vmatprep.subr.mxu0 0.0
      %427 = vmatpush2.xpose.msra.mxu0 0.0
      %428 = vmatprep.subr.mxu0 0.0
      %429 = vmatpush2.xpose.msra.mxu0 0.0
      %430 = vmatprep.subr.mxu0 0.0
      %431 = vmatpush2.xpose.msra.mxu0 0.0
      %432 = vmatprep.subr.mxu0 0.0
      %433 = vmatpush2.xpose.msra.mxu0 0.0
      %434 = vmatprep.subr.mxu0 0.0
      %435 = vmatpush2.xpose.msra.mxu0 0.0
      %436 = vmatprep.mubr.f32.mxu0 0.0
      %437 = vmatmul.mubr.f32.gmra.mxu0 %v368
      %v438 = vpop.f32.mrf.mxu0
      %v439 = vadd.f32 0.0, %v438
      %v440 = vpop.f32.mrf.mxu0
      %441 = vdwg.mxu0
      %v442 = vmul.f32 %v439, 0.35355338
      %v443 = vsel %vm367, %v442, -inf
      %444 = vmax.xlane.f32.xlu0 %v443
      %v445 = vpop.xlane.xlu0 %444
      %v446 = vsub.f32 %v442, %v445
      %v447 = vmul.f32 %v446, 1.442695
      %v448 = vpow.pop %v447
      %v449 = vsel %vm367, %v448, 0.0
      %450 = vadd.xlane.f32.xlu0 %v449
      %v451 = vpop.xlane.xlu0 %450
      %v452 = vrcp.pop %v451
      %v453 = vmul.f32 %v448, %v452
      %454 = vrot.lane.b32.xlu0 %v357, 64
      %v455 = vpop.permute.xlu0 %454
      %v458 = vsel %vm367, %v453, 0
      %460 = vmatprep.subr.mxu0 0.0
      %461 = vmatpush1.msra.mxu0 0.0
      %462 = vmatprep.subr.mxu0 0.0
      %463 = vmatpush1.msra.mxu0 0.0
      %464 = vmatprep.subr.mxu0 0.0
      %465 = vmatpush1.msra.mxu0 0.0
      %466 = vmatprep.subr.mxu0 0.0
      %467 = vmatpush1.msra.mxu0 0.0
      %468 = vmatprep.subr.mxu0 0.0
      %469 = vmatpush1.msra.mxu0 0.0
      %470 = vmatprep.subr.mxu0 0.0
      %471 = vmatpush1.msra.mxu0 0.0
      %472 = vmatprep.subr.mxu0 0.0
      %473 = vmatpush1.msra.mxu0 0.0
      %474 = vmatprep.subr.mxu0 0.0
      %475 = vmatpush1.msra.mxu0 0.0
      %476 = vmatprep.subr.mxu0 0.0
      %477 = vmatpush1.msra.mxu0 0.0
      %478 = vmatprep.subr.mxu0 0.0
      %479 = vmatpush1.msra.mxu0 0.0
      %480 = vmatprep.subr.mxu0 0.0
      %481 = vmatpush1.msra.mxu0 0.0
      %482 = vmatprep.subr.mxu0 0.0
      %483 = vmatpush1.msra.mxu0 0.0
      %484 = vmatprep.subr.mxu0 0.0
      %485 = vmatpush1.msra.mxu0 0.0
      %486 = vmatprep.subr.mxu0 0.0
      %487 = vmatpush1.msra.mxu0 0.0
      %488 = vmatprep.subr.mxu0 0.0
      %489 = vmatpush1.msra.mxu0 0.0
      %490 = vmatprep.subr.mxu0 0.0
      %491 = vmatpush1.msra.mxu0 %v455
      %492 = vmatprep.subr.mxu0 0.0
      %493 = vmatpush2.msra.mxu0 0.0
      %494 = vmatprep.subr.mxu0 0.0
      %495 = vmatpush2.msra.mxu0 0.0
      %496 = vmatprep.subr.mxu0 0.0
      %497 = vmatpush2.msra.mxu0 0.0
      %498 = vmatprep.subr.mxu0 0.0
      %499 = vmatpush2.msra.mxu0 0.0
      %500 = vmatprep.subr.mxu0 0.0
      %501 = vmatpush2.msra.mxu0 0.0
      %502 = vmatprep.subr.mxu0 0.0
      %503 = vmatpush2.msra.mxu0 0.0
      %504 = vmatprep.subr.mxu0 0.0
      %505 = vmatpush2.msra.mxu0 0.0
      %506 = vmatprep.subr.mxu0 0.0
      %507 = vmatpush2.msra.mxu0 0.0
      %508 = vmatprep.subr.mxu0 0.0
      %509 = vmatpush2.msra.mxu0 0.0
      %510 = vmatprep.subr.mxu0 0.0
      %511 = vmatpush2.msra.mxu0 0.0
      %512 = vmatprep.subr.mxu0 0.0
      %513 = vmatpush2.msra.mxu0 0.0
      %514 = vmatprep.subr.mxu0 0.0
      %515 = vmatpush2.msra.mxu0 0.0
      %516 = vmatprep.subr.mxu0 0.0
      %517 = vmatpush2.msra.mxu0 0.0
      %518 = vmatprep.subr.mxu0 0.0
      %519 = vmatpush2.msra.mxu0 0.0
      %520 = vmatprep.subr.mxu0 0.0
      %521 = vmatpush2.msra.mxu0 0.0
      %522 = vmatprep.subr.mxu0 0.0
      %523 = vmatpush2.msra.mxu0 0.0
      %524 = vmatprep.mubr.f32.mxu0 0.0
      %525 = vmatmul.mubr.f32.gmra.mxu0 %v458
      %v526 = vpop.f32.mrf.mxu0
      %v527 = vadd.f32 0.0, %v526
      %v528 = vpop.f32.mrf.mxu0
      %529 = vdwg.mxu0
      %530 = vrot.lane.b32.xlu0 %v357, 120
      %v531 = vpop.permute.xlu0 %530
      %532 = vrot.lane.b32.xlu0 %v357, 88
      %v533 = vpop.permute.xlu0 %532
      %v534 = vsel %vm367, %v531, 0
      %v536 = vsel %vm367, %v533, 0
      %538 = vmatprep.subr.mxu0 0.0
      %539 = vmatpush1.xpose.msra.mxu0 0.0
      %540 = vmatprep.subr.mxu0 0.0
      %541 = vmatpush1.xpose.msra.mxu0 0.0
      %542 = vmatprep.subr.mxu0 0.0
      %543 = vmatpush1.xpose.msra.mxu0 0.0
      %544 = vmatprep.subr.mxu0 0.0
      %545 = vmatpush1.xpose.msra.mxu0 0.0
      %546 = vmatprep.subr.mxu0 0.0
      %547 = vmatpush1.xpose.msra.mxu0 0.0
      %548 = vmatprep.subr.mxu0 0.0
      %549 = vmatpush1.xpose.msra.mxu0 0.0
      %550 = vmatprep.subr.mxu0 0.0
      %551 = vmatpush1.xpose.msra.mxu0 0.0
      %552 = vmatprep.subr.mxu0 0.0
      %553 = vmatpush1.xpose.msra.mxu0 0.0
      %554 = vmatprep.subr.mxu0 0.0
      %555 = vmatpush1.xpose.msra.mxu0 0.0
      %556 = vmatprep.subr.mxu0 0.0
      %557 = vmatpush1.xpose.msra.mxu0 0.0
      %558 = vmatprep.subr.mxu0 0.0
      %559 = vmatpush1.xpose.msra.mxu0 0.0
      %560 = vmatprep.subr.mxu0 0.0
      %561 = vmatpush1.xpose.msra.mxu0 0.0
      %562 = vmatprep.subr.mxu0 0.0
      %563 = vmatpush1.xpose.msra.mxu0 0.0
      %564 = vmatprep.subr.mxu0 0.0
      %565 = vmatpush1.xpose.msra.mxu0 0.0
      %566 = vmatprep.subr.mxu0 0.0
      %567 = vmatpush1.xpose.msra.mxu0 0.0
      %568 = vmatprep.subr.mxu0 0.0
      %569 = vmatpush1.xpose.msra.mxu0 %v536
      %570 = vmatprep.subr.mxu0 0.0
      %571 = vmatpush2.xpose.msra.mxu0 0.0
      %572 = vmatprep.subr.mxu0 0.0
      %573 = vmatpush2.xpose.msra.mxu0 0.0
      %574 = vmatprep.subr.mxu0 0.0
      %575 = vmatpush2.xpose.msra.mxu0 0.0
      %576 = vmatprep.subr.mxu0 0.0
      %577 = vmatpush2.xpose.msra.mxu0 0.0
      %578 = vmatprep.subr.mxu0 0.0
      %579 = vmatpush2.xpose.msra.mxu0 0.0
      %580 = vmatprep.subr.mxu0 0.0
      %581 = vmatpush2.xpose.msra.mxu0 0.0
      %582 = vmatprep.subr.mxu0 0.0
      %583 = vmatpush2.xpose.msra.mxu0 0.0
      %584 = vmatprep.subr.mxu0 0.0
      %585 = vmatpush2.xpose.msra.mxu0 0.0
      %586 = vmatprep.subr.mxu0 0.0
      %587 = vmatpush2.xpose.msra.mxu0 0.0
      %588 = vmatprep.subr.mxu0 0.0
      %589 = vmatpush2.xpose.msra.mxu0 0.0
      %590 = vmatprep.subr.mxu0 0.0
      %591 = vmatpush2.xpose.msra.mxu0 0.0
      %592 = vmatprep.subr.mxu0 0.0
      %593 = vmatpush2.xpose.msra.mxu0 0.0
      %594 = vmatprep.subr.mxu0 0.0
      %595 = vmatpush2.xpose.msra.mxu0 0.0
      %596 = vmatprep.subr.mxu0 0.0
      %597 = vmatpush2.xpose.msra.mxu0 0.0
      %598 = vmatprep.subr.mxu0 0.0
      %599 = vmatpush2.xpose.msra.mxu0 0.0
      %600 = vmatprep.subr.mxu0 0.0
      %601 = vmatpush2.xpose.msra.mxu0 0.0
      %602 = vmatprep.mubr.f32.mxu0 0.0
      %603 = vmatmul.mubr.f32.gmra.mxu0 %v534
      %v604 = vpop.f32.mrf.mxu0
      %v605 = vadd.f32 0.0, %v604
      %v606 = vpop.f32.mrf.mxu0
      %607 = vdwg.mxu0
      %v608 = vmul.f32 %v605, 0.35355338
      %v609 = vsel %vm367, %v608, -inf
      %610 = vmax.xlane.f32.xlu0 %v609
      %v611 = vpop.xlane.xlu0 %610
      %v612 = vsub.f32 %v608, %v611
      %v613 = vmul.f32 %v612, 1.442695
      %v614 = vpow.pop %v613
      %v615 = vsel %vm367, %v614, 0.0
      %616 = vadd.xlane.f32.xlu0 %v615
      %v617 = vpop.xlane.xlu0 %616
      %v618 = vrcp.pop %v617
      %v619 = vmul.f32 %v614, %v618
      %620 = vrot.lane.b32.xlu0 %v357, 56
      %v621 = vpop.permute.xlu0 %620
      %v624 = vsel %vm367, %v619, 0
      %626 = vmatprep.subr.mxu0 0.0
      %627 = vmatpush1.msra.mxu0 0.0
      %628 = vmatprep.subr.mxu0 0.0
      %629 = vmatpush1.msra.mxu0 0.0
      %630 = vmatprep.subr.mxu0 0.0
      %631 = vmatpush1.msra.mxu0 0.0
      %632 = vmatprep.subr.mxu0 0.0
      %633 = vmatpush1.msra.mxu0 0.0
      %634 = vmatprep.subr.mxu0 0.0
      %635 = vmatpush1.msra.mxu0 0.0
      %636 = vmatprep.subr.mxu0 0.0
      %637 = vmatpush1.msra.mxu0 0.0
      %638 = vmatprep.subr.mxu0 0.0
      %639 = vmatpush1.msra.mxu0 0.0
      %640 = vmatprep.subr.mxu0 0.0
      %641 = vmatpush1.msra.mxu0 0.0
      %642 = vmatprep.subr.mxu0 0.0
      %643 = vmatpush1.msra.mxu0 0.0
      %644 = vmatprep.subr.mxu0 0.0
      %645 = vmatpush1.msra.mxu0 0.0
      %646 = vmatprep.subr.mxu0 0.0
      %647 = vmatpush1.msra.mxu0 0.0
      %648 = vmatprep.subr.mxu0 0.0
      %649 = vmatpush1.msra.mxu0 0.0
      %650 = vmatprep.subr.mxu0 0.0
      %651 = vmatpush1.msra.mxu0 0.0
      %652 = vmatprep.subr.mxu0 0.0
      %653 = vmatpush1.msra.mxu0 0.0
      %654 = vmatprep.subr.mxu0 0.0
      %655 = vmatpush1.msra.mxu0 0.0
      %656 = vmatprep.subr.mxu0 0.0
      %657 = vmatpush1.msra.mxu0 %v621
      %658 = vmatprep.subr.mxu0 0.0
      %659 = vmatpush2.msra.mxu0 0.0
      %660 = vmatprep.subr.mxu0 0.0
      %661 = vmatpush2.msra.mxu0 0.0
      %662 = vmatprep.subr.mxu0 0.0
      %663 = vmatpush2.msra.mxu0 0.0
      %664 = vmatprep.subr.mxu0 0.0
      %665 = vmatpush2.msra.mxu0 0.0
      %666 = vmatprep.subr.mxu0 0.0
      %667 = vmatpush2.msra.mxu0 0.0
      %668 = vmatprep.subr.mxu0 0.0
      %669 = vmatpush2.msra.mxu0 0.0
      %670 = vmatprep.subr.mxu0 0.0
      %671 = vmatpush2.msra.mxu0 0.0
      %672 = vmatprep.subr.mxu0 0.0
      %673 = vmatpush2.msra.mxu0 0.0
      %674 = vmatprep.subr.mxu0 0.0
      %675 = vmatpush2.msra.mxu0 0.0
      %676 = vmatprep.subr.mxu0 0.0
      %677 = vmatpush2.msra.mxu0 0.0
      %678 = vmatprep.subr.mxu0 0.0
      %679 = vmatpush2.msra.mxu0 0.0
      %680 = vmatprep.subr.mxu0 0.0
      %681 = vmatpush2.msra.mxu0 0.0
      %682 = vmatprep.subr.mxu0 0.0
      %683 = vmatpush2.msra.mxu0 0.0
      %684 = vmatprep.subr.mxu0 0.0
      %685 = vmatpush2.msra.mxu0 0.0
      %686 = vmatprep.subr.mxu0 0.0
      %687 = vmatpush2.msra.mxu0 0.0
      %688 = vmatprep.subr.mxu0 0.0
      %689 = vmatpush2.msra.mxu0 0.0
      %690 = vmatprep.mubr.f32.mxu0 0.0
      %691 = vmatmul.mubr.f32.gmra.mxu0 %v624
      %v692 = vpop.f32.mrf.mxu0
      %v693 = vadd.f32 0.0, %v692
      %v694 = vpop.f32.mrf.mxu0
      %695 = vdwg.mxu0
      %v697 = vsel %vm367, %v693, 0
      %699 = vmatprep.subr.mxu0 0.0
      %700 = vmatpush1.msra.mxu0 0.0
      %701 = vmatprep.subr.mxu0 0.0
      %702 = vmatpush1.msra.mxu0 0.0
      %703 = vmatprep.subr.mxu0 0.0
      %704 = vmatpush1.msra.mxu0 0.0
      %705 = vmatprep.subr.mxu0 0.0
      %706 = vmatpush1.msra.mxu0 0.0
      %707 = vmatprep.subr.mxu0 0.0
      %708 = vmatpush1.msra.mxu0 0.0
      %709 = vmatprep.subr.mxu0 0.0
      %710 = vmatpush1.msra.mxu0 0.0
      %711 = vmatprep.subr.mxu0 0.0
      %712 = vmatpush1.msra.mxu0 0.0
      %713 = vmatprep.subr.mxu0 0.0
      %714 = vmatpush1.msra.mxu0 0.0
      %715 = vmatprep.subr.mxu0 0.0
      %716 = vmatpush1.msra.mxu0 0.0
      %717 = vmatprep.subr.mxu0 0.0
      %718 = vmatpush1.msra.mxu0 0.0
      %719 = vmatprep.subr.mxu0 0.0
      %720 = vmatpush1.msra.mxu0 0.0
      %721 = vmatprep.subr.mxu0 0.0
      %722 = vmatpush1.msra.mxu0 0.0
      %723 = vmatprep.subr.mxu0 0.0
      %724 = vmatpush1.msra.mxu0 0.0
      %725 = vmatprep.subr.mxu0 0.0
      %726 = vmatpush1.msra.mxu0 0.0
      %727 = vmatprep.subr.mxu0 0.0
      %728 = vmatpush1.msra.mxu0 0.0
      %729 = vmatprep.subr.mxu0 0.0
      %730 = vmatpush1.msra.mxu0 %v361
      %731 = vmatprep.subr.mxu0 0.0
      %732 = vmatpush2.msra.mxu0 0.0
      %733 = vmatprep.subr.mxu0 0.0
      %734 = vmatpush2.msra.mxu0 0.0
      %735 = vmatprep.subr.mxu0 0.0
      %736 = vmatpush2.msra.mxu0 0.0
      %737 = vmatprep.subr.mxu0 0.0
      %738 = vmatpush2.msra.mxu0 0.0
      %739 = vmatprep.subr.mxu0 0.0
      %740 = vmatpush2.msra.mxu0 0.0
      %741 = vmatprep.subr.mxu0 0.0
      %742 = vmatpush2.msra.mxu0 0.0
      %743 = vmatprep.subr.mxu0 0.0
      %744 = vmatpush2.msra.mxu0 0.0
      %745 = vmatprep.subr.mxu0 0.0
      %746 = vmatpush2.msra.mxu0 0.0
      %747 = vmatprep.subr.mxu0 0.0
      %748 = vmatpush2.msra.mxu0 0.0
      %749 = vmatprep.subr.mxu0 0.0
      %750 = vmatpush2.msra.mxu0 0.0
      %751 = vmatprep.subr.mxu0 0.0
      %752 = vmatpush2.msra.mxu0 0.0
      %753 = vmatprep.subr.mxu0 0.0
      %754 = vmatpush2.msra.mxu0 0.0
      %755 = vmatprep.subr.mxu0 0.0
      %756 = vmatpush2.msra.mxu0 0.0
      %757 = vmatprep.subr.mxu0 0.0
      %758 = vmatpush2.msra.mxu0 0.0
      %759 = vmatprep.subr.mxu0 0.0
      %760 = vmatpush2.msra.mxu0 0.0
      %761 = vmatprep.subr.mxu0 0.0
      %762 = vmatpush2.msra.mxu0 0.0
      %763 = vmatprep.mubr.f32.mxu0 0.0
      %764 = vmatmul.mubr.f32.gmra.mxu0 %v697
      %v765 = vpop.f32.mrf.mxu0
      %v766 = vadd.f32 0.0, %v765
      %v767 = vpop.f32.mrf.mxu0
      %768 = vdwg.mxu0
      %v770 = vsel %vm367, %v527, 0
      %772 = vmatprep.subr.mxu0 0.0
      %773 = vmatpush1.msra.mxu0 0.0
      %774 = vmatprep.subr.mxu0 0.0
      %775 = vmatpush1.msra.mxu0 0.0
      %776 = vmatprep.subr.mxu0 0.0
      %777 = vmatpush1.msra.mxu0 0.0
      %778 = vmatprep.subr.mxu0 0.0
      %779 = vmatpush1.msra.mxu0 0.0
      %780 = vmatprep.subr.mxu0 0.0
      %781 = vmatpush1.msra.mxu0 0.0
      %782 = vmatprep.subr.mxu0 0.0
      %783 = vmatpush1.msra.mxu0 0.0
      %784 = vmatprep.subr.mxu0 0.0
      %785 = vmatpush1.msra.mxu0 0.0
      %786 = vmatprep.subr.mxu0 0.0
      %787 = vmatpush1.msra.mxu0 0.0
      %788 = vmatprep.subr.mxu0 0.0
      %789 = vmatpush1.msra.mxu0 0.0
      %790 = vmatprep.subr.mxu0 0.0
      %791 = vmatpush1.msra.mxu0 0.0
      %792 = vmatprep.subr.mxu0 0.0
      %793 = vmatpush1.msra.mxu0 0.0
      %794 = vmatprep.subr.mxu0 0.0
      %795 = vmatpush1.msra.mxu0 0.0
      %796 = vmatprep.subr.mxu0 0.0
      %797 = vmatpush1.msra.mxu0 0.0
      %798 = vmatprep.subr.mxu0 0.0
      %799 = vmatpush1.msra.mxu0 0.0
      %800 = vmatprep.subr.mxu0 0.0
      %801 = vmatpush1.msra.mxu0 0.0
      %802 = vmatprep.subr.mxu0 0.0
      %803 = vmatpush1.msra.mxu0 %v360
      %804 = vmatprep.subr.mxu0 0.0
      %805 = vmatpush2.msra.mxu0 0.0
      %806 = vmatprep.subr.mxu0 0.0
      %807 = vmatpush2.msra.mxu0 0.0
      %808 = vmatprep.subr.mxu0 0.0
      %809 = vmatpush2.msra.mxu0 0.0
      %810 = vmatprep.subr.mxu0 0.0
      %811 = vmatpush2.msra.mxu0 0.0
      %812 = vmatprep.subr.mxu0 0.0
      %813 = vmatpush2.msra.mxu0 0.0
      %814 = vmatprep.subr.mxu0 0.0
      %815 = vmatpush2.msra.mxu0 0.0
      %816 = vmatprep.subr.mxu0 0.0
      %817 = vmatpush2.msra.mxu0 0.0
      %818 = vmatprep.subr.mxu0 0.0
      %819 = vmatpush2.msra.mxu0 0.0
      %820 = vmatprep.subr.mxu0 0.0
      %821 = vmatpush2.msra.mxu0 0.0
      %822 = vmatprep.subr.mxu0 0.0
      %823 = vmatpush2.msra.mxu0 0.0
      %824 = vmatprep.subr.mxu0 0.0
      %825 = vmatpush2.msra.mxu0 0.0
      %826 = vmatprep.subr.mxu0 0.0
      %827 = vmatpush2.msra.mxu0 0.0
      %828 = vmatprep.subr.mxu0 0.0
      %829 = vmatpush2.msra.mxu0 0.0
      %830 = vmatprep.subr.mxu0 0.0
      %831 = vmatpush2.msra.mxu0 0.0
      %832 = vmatprep.subr.mxu0 0.0
      %833 = vmatpush2.msra.mxu0 0.0
      %834 = vmatprep.subr.mxu0 0.0
      %835 = vmatpush2.msra.mxu0 0.0
      %836 = vmatprep.mubr.f32.mxu0 0.0
      %837 = vmatmul.mubr.f32.gmra.mxu0 %v770
      %v838 = vpop.f32.mrf.mxu0
      %v839 = vadd.f32 %v766, %v838
      %v840 = vpop.f32.mrf.mxu0
      %841 = vdwg.mxu0
      %842 = vrot.lane.b32.xlu0 %v357, 112
      %v843 = vpop.permute.xlu0 %842
      %844 = vrot.lane.b32.xlu0 %v357, 80
      %v845 = vpop.permute.xlu0 %844
      %v846 = vsel %vm367, %v843, 0
      %v848 = vsel %vm367, %v845, 0
      %850 = vmatprep.subr.mxu0 0.0
      %851 = vmatpush1.xpose.msra.mxu0 0.0
      %852 = vmatprep.subr.mxu0 0.0
      %853 = vmatpush1.xpose.msra.mxu0 0.0
      %854 = vmatprep.subr.mxu0 0.0
      %855 = vmatpush1.xpose.msra.mxu0 0.0
      %856 = vmatprep.subr.mxu0 0.0
      %857 = vmatpush1.xpose.msra.mxu0 0.0
      %858 = vmatprep.subr.mxu0 0.0
      %859 = vmatpush1.xpose.msra.mxu0 0.0
      %860 = vmatprep.subr.mxu0 0.0
      %861 = vmatpush1.xpose.msra.mxu0 0.0
      %862 = vmatprep.subr.mxu0 0.0
      %863 = vmatpush1.xpose.msra.mxu0 0.0
      %864 = vmatprep.subr.mxu0 0.0
      %865 = vmatpush1.xpose.msra.mxu0 0.0
      %866 = vmatprep.subr.mxu0 0.0
      %867 = vmatpush1.xpose.msra.mxu0 0.0
      %868 = vmatprep.subr.mxu0 0.0
      %869 = vmatpush1.xpose.msra.mxu0 0.0
      %870 = vmatprep.subr.mxu0 0.0
      %871 = vmatpush1.xpose.msra.mxu0 0.0
      %872 = vmatprep.subr.mxu0 0.0
      %873 = vmatpush1.xpose.msra.mxu0 0.0
      %874 = vmatprep.subr.mxu0 0.0
      %875 = vmatpush1.xpose.msra.mxu0 0.0
      %876 = vmatprep.subr.mxu0 0.0
      %877 = vmatpush1.xpose.msra.mxu0 0.0
      %878 = vmatprep.subr.mxu0 0.0
      %879 = vmatpush1.xpose.msra.mxu0 0.0
      %880 = vmatprep.subr.mxu0 0.0
      %881 = vmatpush1.xpose.msra.mxu0 %v848
      %882 = vmatprep.subr.mxu0 0.0
      %883 = vmatpush2.xpose.msra.mxu0 0.0
      %884 = vmatprep.subr.mxu0 0.0
      %885 = vmatpush2.xpose.msra.mxu0 0.0
      %886 = vmatprep.subr.mxu0 0.0
      %887 = vmatpush2.xpose.msra.mxu0 0.0
      %888 = vmatprep.subr.mxu0 0.0
      %889 = vmatpush2.xpose.msra.mxu0 0.0
      %890 = vmatprep.subr.mxu0 0.0
      %891 = vmatpush2.xpose.msra.mxu0 0.0
      %892 = vmatprep.subr.mxu0 0.0
      %893 = vmatpush2.xpose.msra.mxu0 0.0
      %894 = vmatprep.subr.mxu0 0.0
      %895 = vmatpush2.xpose.msra.mxu0 0.0
      %896 = vmatprep.subr.mxu0 0.0
      %897 = vmatpush2.xpose.msra.mxu0 0.0
      %898 = vmatprep.subr.mxu0 0.0
      %899 = vmatpush2.xpose.msra.mxu0 0.0
      %900 = vmatprep.subr.mxu0 0.0
      %901 = vmatpush2.xpose.msra.mxu0 0.0
      %902 = vmatprep.subr.mxu0 0.0
      %903 = vmatpush2.xpose.msra.mxu0 0.0
      %904 = vmatprep.subr.mxu0 0.0
      %905 = vmatpush2.xpose.msra.mxu0 0.0
      %906 = vmatprep.subr.mxu0 0.0
      %907 = vmatpush2.xpose.msra.mxu0 0.0
      %908 = vmatprep.subr.mxu0 0.0
      %909 = vmatpush2.xpose.msra.mxu0 0.0
      %910 = vmatprep.subr.mxu0 0.0
      %911 = vmatpush2.xpose.msra.mxu0 0.0
      %912 = vmatprep.subr.mxu0 0.0
      %913 = vmatpush2.xpose.msra.mxu0 0.0
      %914 = vmatprep.mubr.f32.mxu0 0.0
      %915 = vmatmul.mubr.f32.gmra.mxu0 %v846
      %v916 = vpop.f32.mrf.mxu0
      %v917 = vadd.f32 0.0, %v916
      %v918 = vpop.f32.mrf.mxu0
      %919 = vdwg.mxu0
      %v920 = vmul.f32 %v917, 0.35355338
      %v921 = vsel %vm367, %v920, -inf
      %922 = vmax.xlane.f32.xlu0 %v921
      %v923 = vpop.xlane.xlu0 %922
      %v924 = vsub.f32 %v920, %v923
      %v925 = vmul.f32 %v924, 1.442695
      %v926 = vpow.pop %v925
      %v927 = vsel %vm367, %v926, 0.0
      %928 = vadd.xlane.f32.xlu0 %v927
      %v929 = vpop.xlane.xlu0 %928
      %v930 = vrcp.pop %v929
      %v931 = vmul.f32 %v926, %v930
      %932 = vrot.lane.b32.xlu0 %v357, 48
      %v933 = vpop.permute.xlu0 %932
      %v936 = vsel %vm367, %v931, 0
      %938 = vmatprep.subr.mxu0 0.0
      %939 = vmatpush1.msra.mxu0 0.0
      %940 = vmatprep.subr.mxu0 0.0
      %941 = vmatpush1.msra.mxu0 0.0
      %942 = vmatprep.subr.mxu0 0.0
      %943 = vmatpush1.msra.mxu0 0.0
      %944 = vmatprep.subr.mxu0 0.0
      %945 = vmatpush1.msra.mxu0 0.0
      %946 = vmatprep.subr.mxu0 0.0
      %947 = vmatpush1.msra.mxu0 0.0
      %948 = vmatprep.subr.mxu0 0.0
      %949 = vmatpush1.msra.mxu0 0.0
      %950 = vmatprep.subr.mxu0 0.0
      %951 = vmatpush1.msra.mxu0 0.0
      %952 = vmatprep.subr.mxu0 0.0
      %953 = vmatpush1.msra.mxu0 0.0
      %954 = vmatprep.subr.mxu0 0.0
      %955 = vmatpush1.msra.mxu0 0.0
      %956 = vmatprep.subr.mxu0 0.0
      %957 = vmatpush1.msra.mxu0 0.0
      %958 = vmatprep.subr.mxu0 0.0
      %959 = vmatpush1.msra.mxu0 0.0
      %960 = vmatprep.subr.mxu0 0.0
      %961 = vmatpush1.msra.mxu0 0.0
      %962 = vmatprep.subr.mxu0 0.0
      %963 = vmatpush1.msra.mxu0 0.0
      %964 = vmatprep.subr.mxu0 0.0
      %965 = vmatpush1.msra.mxu0 0.0
      %966 = vmatprep.subr.mxu0 0.0
      %967 = vmatpush1.msra.mxu0 0.0
      %968 = vmatprep.subr.mxu0 0.0
      %969 = vmatpush1.msra.mxu0 %v933
      %970 = vmatprep.subr.mxu0 0.0
      %971 = vmatpush2.msra.mxu0 0.0
      %972 = vmatprep.subr.mxu0 0.0
      %973 = vmatpush2.msra.mxu0 0.0
      %974 = vmatprep.subr.mxu0 0.0
      %975 = vmatpush2.msra.mxu0 0.0
      %976 = vmatprep.subr.mxu0 0.0
      %977 = vmatpush2.msra.mxu0 0.0
      %978 = vmatprep.subr.mxu0 0.0
      %979 = vmatpush2.msra.mxu0 0.0
      %980 = vmatprep.subr.mxu0 0.0
      %981 = vmatpush2.msra.mxu0 0.0
      %982 = vmatprep.subr.mxu0 0.0
      %983 = vmatpush2.msra.mxu0 0.0
      %984 = vmatprep.subr.mxu0 0.0
      %985 = vmatpush2.msra.mxu0 0.0
      %986 = vmatprep.subr.mxu0 0.0
      %987 = vmatpush2.msra.mxu0 0.0
      %988 = vmatprep.subr.mxu0 0.0
      %989 = vmatpush2.msra.mxu0 0.0
      %990 = vmatprep.subr.mxu0 0.0
      %991 = vmatpush2.msra.mxu0 0.0
      %992 = vmatprep.subr.mxu0 0.0
      %993 = vmatpush2.msra.mxu0 0.0
      %994 = vmatprep.subr.mxu0 0.0
      %995 = vmatpush2.msra.mxu0 0.0
      %996 = vmatprep.subr.mxu0 0.0
      %997 = vmatpush2.msra.mxu0 0.0
      %998 = vmatprep.subr.mxu0 0.0
      %999 = vmatpush2.msra.mxu0 0.0
      %1000 = vmatprep.subr.mxu0 0.0
      %1001 = vmatpush2.msra.mxu0 0.0
      %1002 = vmatprep.mubr.f32.mxu0 0.0
      %1003 = vmatmul.mubr.f32.gmra.mxu0 %v936
      %v1004 = vpop.f32.mrf.mxu0
      %v1005 = vadd.f32 0.0, %v1004
      %v1006 = vpop.f32.mrf.mxu0
      %1007 = vdwg.mxu0
      %v1009 = vsel %vm367, %v1005, 0
      %1011 = vmatprep.subr.mxu0 0.0
      %1012 = vmatpush1.msra.mxu0 0.0
      %1013 = vmatprep.subr.mxu0 0.0
      %1014 = vmatpush1.msra.mxu0 0.0
      %1015 = vmatprep.subr.mxu0 0.0
      %1016 = vmatpush1.msra.mxu0 0.0
      %1017 = vmatprep.subr.mxu0 0.0
      %1018 = vmatpush1.msra.mxu0 0.0
      %1019 = vmatprep.subr.mxu0 0.0
      %1020 = vmatpush1.msra.mxu0 0.0
      %1021 = vmatprep.subr.mxu0 0.0
      %1022 = vmatpush1.msra.mxu0 0.0
      %1023 = vmatprep.subr.mxu0 0.0
      %1024 = vmatpush1.msra.mxu0 0.0
      %1025 = vmatprep.subr.mxu0 0.0
      %1026 = vmatpush1.msra.mxu0 0.0
      %1027 = vmatprep.subr.mxu0 0.0
      %1028 = vmatpush1.msra.mxu0 0.0
      %1029 = vmatprep.subr.mxu0 0.0
      %1030 = vmatpush1.msra.mxu0 0.0
      %1031 = vmatprep.subr.mxu0 0.0
      %1032 = vmatpush1.msra.mxu0 0.0
      %1033 = vmatprep.subr.mxu0 0.0
      %1034 = vmatpush1.msra.mxu0 0.0
      %1035 = vmatprep.subr.mxu0 0.0
      %1036 = vmatpush1.msra.mxu0 0.0
      %1037 = vmatprep.subr.mxu0 0.0
      %1038 = vmatpush1.msra.mxu0 0.0
      %1039 = vmatprep.subr.mxu0 0.0
      %1040 = vmatpush1.msra.mxu0 0.0
      %1041 = vmatprep.subr.mxu0 0.0
      %1042 = vmatpush1.msra.mxu0 %v362
      %1043 = vmatprep.subr.mxu0 0.0
      %1044 = vmatpush2.msra.mxu0 0.0
      %1045 = vmatprep.subr.mxu0 0.0
      %1046 = vmatpush2.msra.mxu0 0.0
      %1047 = vmatprep.subr.mxu0 0.0
      %1048 = vmatpush2.msra.mxu0 0.0
      %1049 = vmatprep.subr.mxu0 0.0
      %1050 = vmatpush2.msra.mxu0 0.0
      %1051 = vmatprep.subr.mxu0 0.0
      %1052 = vmatpush2.msra.mxu0 0.0
      %1053 = vmatprep.subr.mxu0 0.0
      %1054 = vmatpush2.msra.mxu0 0.0
      %1055 = vmatprep.subr.mxu0 0.0
      %1056 = vmatpush2.msra.mxu0 0.0
      %1057 = vmatprep.subr.mxu0 0.0
      %1058 = vmatpush2.msra.mxu0 0.0
      %1059 = vmatprep.subr.mxu0 0.0
      %1060 = vmatpush2.msra.mxu0 0.0
      %1061 = vmatprep.subr.mxu0 0.0
      %1062 = vmatpush2.msra.mxu0 0.0
      %1063 = vmatprep.subr.mxu0 0.0
      %1064 = vmatpush2.msra.mxu0 0.0
      %1065 = vmatprep.subr.mxu0 0.0
      %1066 = vmatpush2.msra.mxu0 0.0
      %1067 = vmatprep.subr.mxu0 0.0
      %1068 = vmatpush2.msra.mxu0 0.0
      %1069 = vmatprep.subr.mxu0 0.0
      %1070 = vmatpush2.msra.mxu0 0.0
      %1071 = vmatprep.subr.mxu0 0.0
      %1072 = vmatpush2.msra.mxu0 0.0
      %1073 = vmatprep.subr.mxu0 0.0
      %1074 = vmatpush2.msra.mxu0 0.0
      %1075 = vmatprep.mubr.f32.mxu0 0.0
      %1076 = vmatmul.mubr.f32.gmra.mxu0 %v1009
      %v1077 = vpop.f32.mrf.mxu0
      %v1078 = vadd.f32 0.0, %v1077
      %v1079 = vpop.f32.mrf.mxu0
      %1080 = vdwg.mxu0
      %v1081 = vadd.f32 %v839, %v1078
      %1082 = vrot.lane.b32.xlu0 %v357, 104
      %v1083 = vpop.permute.xlu0 %1082
      %1084 = vrot.lane.b32.xlu0 %v357, 72
      %v1085 = vpop.permute.xlu0 %1084
      %v1086 = vsel %vm367, %v1083, 0
      %v1088 = vsel %vm367, %v1085, 0
      %1090 = vmatprep.subr.mxu0 0.0
      %1091 = vmatpush1.xpose.msra.mxu0 0.0
      %1092 = vmatprep.subr.mxu0 0.0
      %1093 = vmatpush1.xpose.msra.mxu0 0.0
      %1094 = vmatprep.subr.mxu0 0.0
      %1095 = vmatpush1.xpose.msra.mxu0 0.0
      %1096 = vmatprep.subr.mxu0 0.0
      %1097 = vmatpush1.xpose.msra.mxu0 0.0
      %1098 = vmatprep.subr.mxu0 0.0
      %1099 = vmatpush1.xpose.msra.mxu0 0.0
      %1100 = vmatprep.subr.mxu0 0.0
      %1101 = vmatpush1.xpose.msra.mxu0 0.0
      %1102 = vmatprep.subr.mxu0 0.0
      %1103 = vmatpush1.xpose.msra.mxu0 0.0
      %1104 = vmatprep.subr.mxu0 0.0
      %1105 = vmatpush1.xpose.msra.mxu0 0.0
      %1106 = vmatprep.subr.mxu0 0.0
      %1107 = vmatpush1.xpose.msra.mxu0 0.0
      %1108 = vmatprep.subr.mxu0 0.0
      %1109 = vmatpush1.xpose.msra.mxu0 0.0
      %1110 = vmatprep.subr.mxu0 0.0
      %1111 = vmatpush1.xpose.msra.mxu0 0.0
      %1112 = vmatprep.subr.mxu0 0.0
      %1113 = vmatpush1.xpose.msra.mxu0 0.0
      %1114 = vmatprep.subr.mxu0 0.0
      %1115 = vmatpush1.xpose.msra.mxu0 0.0
      %1116 = vmatprep.subr.mxu0 0.0
      %1117 = vmatpush1.xpose.msra.mxu0 0.0
      %1118 = vmatprep.subr.mxu0 0.0
      %1119 = vmatpush1.xpose.msra.mxu0 0.0
      %1120 = vmatprep.subr.mxu0 0.0
      %1121 = vmatpush1.xpose.msra.mxu0 %v1088
      %1122 = vmatprep.subr.mxu0 0.0
      %1123 = vmatpush2.xpose.msra.mxu0 0.0
      %1124 = vmatprep.subr.mxu0 0.0
      %1125 = vmatpush2.xpose.msra.mxu0 0.0
      %1126 = vmatprep.subr.mxu0 0.0
      %1127 = vmatpush2.xpose.msra.mxu0 0.0
      %1128 = vmatprep.subr.mxu0 0.0
      %1129 = vmatpush2.xpose.msra.mxu0 0.0
      %1130 = vmatprep.subr.mxu0 0.0
      %1131 = vmatpush2.xpose.msra.mxu0 0.0
      %1132 = vmatprep.subr.mxu0 0.0
      %1133 = vmatpush2.xpose.msra.mxu0 0.0
      %1134 = vmatprep.subr.mxu0 0.0
      %1135 = vmatpush2.xpose.msra.mxu0 0.0
      %1136 = vmatprep.subr.mxu0 0.0
      %1137 = vmatpush2.xpose.msra.mxu0 0.0
      %1138 = vmatprep.subr.mxu0 0.0
      %1139 = vmatpush2.xpose.msra.mxu0 0.0
      %1140 = vmatprep.subr.mxu0 0.0
      %1141 = vmatpush2.xpose.msra.mxu0 0.0
      %1142 = vmatprep.subr.mxu0 0.0
      %1143 = vmatpush2.xpose.msra.mxu0 0.0
      %1144 = vmatprep.subr.mxu0 0.0
      %1145 = vmatpush2.xpose.msra.mxu0 0.0
      %1146 = vmatprep.subr.mxu0 0.0
      %1147 = vmatpush2.xpose.msra.mxu0 0.0
      %1148 = vmatprep.subr.mxu0 0.0
      %1149 = vmatpush2.xpose.msra.mxu0 0.0
      %1150 = vmatprep.subr.mxu0 0.0
      %1151 = vmatpush2.xpose.msra.mxu0 0.0
      %1152 = vmatprep.subr.mxu0 0.0
      %1153 = vmatpush2.xpose.msra.mxu0 0.0
      %1154 = vmatprep.mubr.f32.mxu0 0.0
      %1155 = vmatmul.mubr.f32.gmra.mxu0 %v1086
      %v1156 = vpop.f32.mrf.mxu0
      %v1157 = vadd.f32 0.0, %v1156
      %v1158 = vpop.f32.mrf.mxu0
      %1159 = vdwg.mxu0
      %v1160 = vmul.f32 %v1157, 0.35355338
      %v1161 = vsel %vm367, %v1160, -inf
      %1162 = vmax.xlane.f32.xlu0 %v1161
      %v1163 = vpop.xlane.xlu0 %1162
      %v1164 = vsub.f32 %v1160, %v1163
      %v1165 = vmul.f32 %v1164, 1.442695
      %v1166 = vpow.pop %v1165
      %v1167 = vsel %vm367, %v1166, 0.0
      %1168 = vadd.xlane.f32.xlu0 %v1167
      %v1169 = vpop.xlane.xlu0 %1168
      %v1170 = vrcp.pop %v1169
      %v1171 = vmul.f32 %v1166, %v1170
      %1172 = vrot.lane.b32.xlu0 %v357, 40
      %v1173 = vpop.permute.xlu0 %1172
      %v1176 = vsel %vm367, %v1171, 0
      %1178 = vmatprep.subr.mxu0 0.0
      %1179 = vmatpush1.msra.mxu0 0.0
      %1180 = vmatprep.subr.mxu0 0.0
      %1181 = vmatpush1.msra.mxu0 0.0
      %1182 = vmatprep.subr.mxu0 0.0
      %1183 = vmatpush1.msra.mxu0 0.0
      %1184 = vmatprep.subr.mxu0 0.0
      %1185 = vmatpush1.msra.mxu0 0.0
      %1186 = vmatprep.subr.mxu0 0.0
      %1187 = vmatpush1.msra.mxu0 0.0
      %1188 = vmatprep.subr.mxu0 0.0
      %1189 = vmatpush1.msra.mxu0 0.0
      %1190 = vmatprep.subr.mxu0 0.0
      %1191 = vmatpush1.msra.mxu0 0.0
      %1192 = vmatprep.subr.mxu0 0.0
      %1193 = vmatpush1.msra.mxu0 0.0
      %1194 = vmatprep.subr.mxu0 0.0
      %1195 = vmatpush1.msra.mxu0 0.0
      %1196 = vmatprep.subr.mxu0 0.0
      %1197 = vmatpush1.msra.mxu0 0.0
      %1198 = vmatprep.subr.mxu0 0.0
      %1199 = vmatpush1.msra.mxu0 0.0
      %1200 = vmatprep.subr.mxu0 0.0
      %1201 = vmatpush1.msra.mxu0 0.0
      %1202 = vmatprep.subr.mxu0 0.0
      %1203 = vmatpush1.msra.mxu0 0.0
      %1204 = vmatprep.subr.mxu0 0.0
      %1205 = vmatpush1.msra.mxu0 0.0
      %1206 = vmatprep.subr.mxu0 0.0
      %1207 = vmatpush1.msra.mxu0 0.0
      %1208 = vmatprep.subr.mxu0 0.0
      %1209 = vmatpush1.msra.mxu0 %v1173
      %1210 = vmatprep.subr.mxu0 0.0
      %1211 = vmatpush2.msra.mxu0 0.0
      %1212 = vmatprep.subr.mxu0 0.0
      %1213 = vmatpush2.msra.mxu0 0.0
      %1214 = vmatprep.subr.mxu0 0.0
      %1215 = vmatpush2.msra.mxu0 0.0
      %1216 = vmatprep.subr.mxu0 0.0
      %1217 = vmatpush2.msra.mxu0 0.0
      %1218 = vmatprep.subr.mxu0 0.0
      %1219 = vmatpush2.msra.mxu0 0.0
      %1220 = vmatprep.subr.mxu0 0.0
      %1221 = vmatpush2.msra.mxu0 0.0
      %1222 = vmatprep.subr.mxu0 0.0
      %1223 = vmatpush2.msra.mxu0 0.0
      %1224 = vmatprep.subr.mxu0 0.0
      %1225 = vmatpush2.msra.mxu0 0.0
      %1226 = vmatprep.subr.mxu0 0.0
      %1227 = vmatpush2.msra.mxu0 0.0
      %1228 = vmatprep.subr.mxu0 0.0
      %1229 = vmatpush2.msra.mxu0 0.0
      %1230 = vmatprep.subr.mxu0 0.0
      %1231 = vmatpush2.msra.mxu0 0.0
      %1232 = vmatprep.subr.mxu0 0.0
      %1233 = vmatpush2.msra.mxu0 0.0
      %1234 = vmatprep.subr.mxu0 0.0
      %1235 = vmatpush2.msra.mxu0 0.0
      %1236 = vmatprep.subr.mxu0 0.0
      %1237 = vmatpush2.msra.mxu0 0.0
      %1238 = vmatprep.subr.mxu0 0.0
      %1239 = vmatpush2.msra.mxu0 0.0
      %1240 = vmatprep.subr.mxu0 0.0
      %1241 = vmatpush2.msra.mxu0 0.0
      %1242 = vmatprep.mubr.f32.mxu0 0.0
      %1243 = vmatmul.mubr.f32.gmra.mxu0 %v1176
      %v1244 = vpop.f32.mrf.mxu0
      %v1245 = vadd.f32 0.0, %v1244
      %v1246 = vpop.f32.mrf.mxu0
      %1247 = vdwg.mxu0
      %v1249 = vsel %vm367, %v1245, 0
      %1251 = vmatprep.subr.mxu0 0.0
      %1252 = vmatpush1.msra.mxu0 0.0
      %1253 = vmatprep.subr.mxu0 0.0
      %1254 = vmatpush1.msra.mxu0 0.0
      %1255 = vmatprep.subr.mxu0 0.0
      %1256 = vmatpush1.msra.mxu0 0.0
      %1257 = vmatprep.subr.mxu0 0.0
      %1258 = vmatpush1.msra.mxu0 0.0
      %1259 = vmatprep.subr.mxu0 0.0
      %1260 = vmatpush1.msra.mxu0 0.0
      %1261 = vmatprep.subr.mxu0 0.0
      %1262 = vmatpush1.msra.mxu0 0.0
      %1263 = vmatprep.subr.mxu0 0.0
      %1264 = vmatpush1.msra.mxu0 0.0
      %1265 = vmatprep.subr.mxu0 0.0
      %1266 = vmatpush1.msra.mxu0 0.0
      %1267 = vmatprep.subr.mxu0 0.0
      %1268 = vmatpush1.msra.mxu0 0.0
      %1269 = vmatprep.subr.mxu0 0.0
      %1270 = vmatpush1.msra.mxu0 0.0
      %1271 = vmatprep.subr.mxu0 0.0
      %1272 = vmatpush1.msra.mxu0 0.0
      %1273 = vmatprep.subr.mxu0 0.0
      %1274 = vmatpush1.msra.mxu0 0.0
      %1275 = vmatprep.subr.mxu0 0.0
      %1276 = vmatpush1.msra.mxu0 0.0
      %1277 = vmatprep.subr.mxu0 0.0
      %1278 = vmatpush1.msra.mxu0 0.0
      %1279 = vmatprep.subr.mxu0 0.0
      %1280 = vmatpush1.msra.mxu0 0.0
      %1281 = vmatprep.subr.mxu0 0.0
      %1282 = vmatpush1.msra.mxu0 %v363
      %1283 = vmatprep.subr.mxu0 0.0
      %1284 = vmatpush2.msra.mxu0 0.0
      %1285 = vmatprep.subr.mxu0 0.0
      %1286 = vmatpush2.msra.mxu0 0.0
      %1287 = vmatprep.subr.mxu0 0.0
      %1288 = vmatpush2.msra.mxu0 0.0
      %1289 = vmatprep.subr.mxu0 0.0
      %1290 = vmatpush2.msra.mxu0 0.0
      %1291 = vmatprep.subr.mxu0 0.0
      %1292 = vmatpush2.msra.mxu0 0.0
      %1293 = vmatprep.subr.mxu0 0.0
      %1294 = vmatpush2.msra.mxu0 0.0
      %1295 = vmatprep.subr.mxu0 0.0
      %1296 = vmatpush2.msra.mxu0 0.0
      %1297 = vmatprep.subr.mxu0 0.0
      %1298 = vmatpush2.msra.mxu0 0.0
      %1299 = vmatprep.subr.mxu0 0.0
      %1300 = vmatpush2.msra.mxu0 0.0
      %1301 = vmatprep.subr.mxu0 0.0
      %1302 = vmatpush2.msra.mxu0 0.0
      %1303 = vmatprep.subr.mxu0 0.0
      %1304 = vmatpush2.msra.mxu0 0.0
      %1305 = vmatprep.subr.mxu0 0.0
      %1306 = vmatpush2.msra.mxu0 0.0
      %1307 = vmatprep.subr.mxu0 0.0
      %1308 = vmatpush2.msra.mxu0 0.0
      %1309 = vmatprep.subr.mxu0 0.0
      %1310 = vmatpush2.msra.mxu0 0.0
      %1311 = vmatprep.subr.mxu0 0.0
      %1312 = vmatpush2.msra.mxu0 0.0
      %1313 = vmatprep.subr.mxu0 0.0
      %1314 = vmatpush2.msra.mxu0 0.0
      %1315 = vmatprep.mubr.f32.mxu0 0.0
      %1316 = vmatmul.mubr.f32.gmra.mxu0 %v1249
      %v1317 = vpop.f32.mrf.mxu0
      %v1318 = vadd.f32 0.0, %v1317
      %v1319 = vpop.f32.mrf.mxu0
      %1320 = vdwg.mxu0
      %v1321 = vadd.f32 %v1081, %v1318
      %v1322 = vld [vmem:[%s4] sm:$0x1]
      %v1324 = vlaneseq
      %v1325 = vshrl.u32 %v1324, 7
      %v1326 = vsub.s32 0, %v1325
      %v1327 = vrot.slane %v1322, %v1326
      %v1329 = vadd.f32 %v1321, %v1327
      %v1330 = vadd.f32 %v274, %v1329
      %v1331 = vld [vmem:[%s5] sm:$0x1]
      %v1332 = vld [vmem:[%s6] sm:$0x1]
      %v1333 = vsel %vm286, %v1330, 0.0
      %1334 = vadd.xlane.f32.xlu0 %v1333
      %v1335 = vpop.xlane.xlu0 %1334
      %v1336 = vrcp.pop 32.0
      %v1337 = vmul.f32 %v1335, %v1336
      %v1338 = vsub.f32 %v1330, %v1337
      %v1339 = vmul.f32 %v1338, %v1338
      %v1340 = vsel %vm286, %v1339, 0.0
      %1341 = vadd.xlane.f32.xlu0 %v1340
      %v1342 = vpop.xlane.xlu0 %1341
      %v1343 = vmul.f32 %v1342, %v1336
      %v1344 = vadd.f32 %v1343, 1e-05
      %v1345 = vrsqrt.pop %v1344
      %v1346 = vmul.f32 %v1338, %v1345
      %v1348 = vlaneseq
      %v1349 = vshrl.u32 %v1348, 7
      %v1350 = vsub.s32 0, %v1349
      %v1351 = vrot.slane %v1331, %v1350
      %v1353 = vmul.f32 %v1346, %v1351
      %v1355 = vlaneseq
      %v1356 = vshrl.u32 %v1355, 7
      %v1357 = vsub.s32 0, %v1356
      %v1358 = vrot.slane %v1332, %v1357
      %v1360 = vadd.f32 %v1353, %v1358
      %1361 = vst.msk [vmem:[%s273] sm:$0xff] %vm286, %v1360
      %p1362 = scmp.lt.s32.totalorder %s18, 1
      %s1363 = scalar_select %p1362, %s18, 1
      %s1364 = smul.addr %s1363, 8
      %s1365 = scalar_lea.vmem %s7, %s1364
      // Predicated region
      $region49: #{knowledge_reasoner_forward.11} parent=47 // pred_check
        %p1366 = pneg %p188
      $region50: #{knowledge_reasoner_forward.11} parent=47 // pred_check_branch
        %1368 = sbr.rel (%p1366) target = $region52
      $region51: #{knowledge_reasoner_forward.11} parent=47 // pred_region
        _
      $region52: #{knowledge_reasoner_forward.11} parent=47 // pred_fallthru
        _
    $region48: #{knowledge_reasoner_forward.11} parent=5 // pred_fallthru
      _
    %p1369 = scmp.le.s32.totalorder 2, %s13
    // Predicated region
    $region53: #{knowledge_reasoner_forward.11} parent=5 // pred_check
      %p1370 = pneg %p1369
    $region54: #{knowledge_reasoner_forward.11} parent=5 // pred_check_branch
      %1372 = sbr.rel (%p1370) target = $region56
    $region55: #{knowledge_reasoner_forward.11} parent=5 // pred_region
      %s1373 = ssub.s32 %s13, 2
      // Predicated region
      $region57: #{knowledge_reasoner_forward.11} parent=55 // pred_check
        %p1374 = pneg %p194
      $region58: #{knowledge_reasoner_forward.11} parent=55 // pred_check_branch
        %1376 = sbr.rel (%p1374) target = $region60
      $region59: #{knowledge_reasoner_forward.11} parent=55 // pred_region
        %p1377 = scmp.lt.s32.totalorder %s19, 1
        %s1378 = scalar_select %p1377, %s19, 1
        %s1379 = smul.addr %s1378, 8
        %s1380 = scalar_lea.vmem %s7, %s1379
      $region60: #{knowledge_reasoner_forward.11} parent=55 // pred_fallthru
        _
    $region56: #{knowledge_reasoner_forward.11} parent=5 // pred_fallthru
      _
  $region6: #{knowledge_reasoner_forward.11} parent=0 // loop_footer
    %s17 = sadd.s32 1, %s13
  $region7: #{knowledge_reasoner_forward.11} parent=0 // loop_footer_branch
    %12 = sbr.rel target = $region3
  $region8: #{knowledge_reasoner_forward.11} parent=0 // loop_exit
    _

// kernel: knowledge_reasoner_forward.12
$region0: #{knowledge_reasoner_forward.12}
  #allocation0 [shape = 'u32[]', space=smem, size = 0x4, offset = 0x4, fixed_abs, tag = 'smem constant byte address 0x4 - core index']
  #allocation1 [shape = 'u32[144,128]{1,0:T(1,128)}', space=vmem, size = 0x12000, scoped, tag = 'internal scratch']
  #allocation2 [shape = 'f32[16,32]{1,0:T(8,128)}', space=vmem, size = 0x2000, scoped, tag = 'scratch operand']
  %s0 = inlined_call_operand.vmem [shape: f32[16,32], index: 0, kind: input, shape index: {}]
  %s1 = inlined_call_operand.vmem [shape: f32[32,128], index: 1, kind: input, shape index: {}]
  %s2 = inlined_call_operand.vmem [shape: f32[1,128], index: 2, kind: input, shape index: {}]
  %s3 = inlined_call_operand.vmem [shape: f32[128,32], index: 3, kind: input, shape index: {}]
  %s4 = inlined_call_operand.vmem [shape: f32[1,32], index: 4, kind: input, shape index: {}]
  %s5 = inlined_call_operand.vmem [shape: f32[1,32], index: 5, kind: input, shape index: {}]
  %s6 = inlined_call_operand.vmem [shape: f32[1,32], index: 6, kind: input, shape index: {}]
  %s7 = inlined_call_operand.vmem [shape: f32[16,32], index: 7, kind: output, shape index: {}]
  %s8 = sld [smem:[#allocation0]]
  $region46: #{knowledge_reasoner_forward.12} parent=0
    _
  %s10 = ssub.s32 1, %s8
  %s11 = scalar_select 0, %s10, %s8
  // Predicated region
  $region2: #{knowledge_reasoner_forward.12} parent=0 // pred_check
    _
  $region3: #{knowledge_reasoner_forward.12} parent=0 // pred_check_branch
    %13 = sbr.rel (0) target = $region5
  $region4: #{knowledge_reasoner_forward.12} parent=0 // pred_region
    _
  $region5: #{knowledge_reasoner_forward.12} parent=0 // pred_fallthru
    _
  // Predicated region
  $region6: #{knowledge_reasoner_forward.12} parent=0 // pred_check
    _
  $region7: #{knowledge_reasoner_forward.12} parent=0 // pred_check_branch
    %15 = sbr.rel (0) target = $region9
  $region8: #{knowledge_reasoner_forward.12} parent=0 // pred_region
    _
  $region9: #{knowledge_reasoner_forward.12} parent=0 // pred_fallthru
    _
  // Predicated region
  $region10: #{knowledge_reasoner_forward.12} parent=0 // pred_check
    _
  $region11: #{knowledge_reasoner_forward.12} parent=0 // pred_check_branch
    %17 = sbr.rel (0) target = $region13
  $region12: #{knowledge_reasoner_forward.12} parent=0 // pred_region
    _
  $region13: #{knowledge_reasoner_forward.12} parent=0 // pred_fallthru
    _
  // Predicated region
  $region14: #{knowledge_reasoner_forward.12} parent=0 // pred_check
    _
  $region15: #{knowledge_reasoner_forward.12} parent=0 // pred_check_branch
    %19 = sbr.rel (0) target = $region17
  $region16: #{knowledge_reasoner_forward.12} parent=0 // pred_region
    _
  $region17: #{knowledge_reasoner_forward.12} parent=0 // pred_fallthru
    _
  // Predicated region
  $region18: #{knowledge_reasoner_forward.12} parent=0 // pred_check
    _
  $region19: #{knowledge_reasoner_forward.12} parent=0 // pred_check_branch
    %21 = sbr.rel (0) target = $region21
  $region20: #{knowledge_reasoner_forward.12} parent=0 // pred_region
    _
  $region21: #{knowledge_reasoner_forward.12} parent=0 // pred_fallthru
    _
  // Predicated region
  $region22: #{knowledge_reasoner_forward.12} parent=0 // pred_check
    _
  $region23: #{knowledge_reasoner_forward.12} parent=0 // pred_check_branch
    %23 = sbr.rel (0) target = $region25
  $region24: #{knowledge_reasoner_forward.12} parent=0 // pred_region
    _
  $region25: #{knowledge_reasoner_forward.12} parent=0 // pred_fallthru
    _
  // Predicated region
  $region26: #{knowledge_reasoner_forward.12} parent=0 // pred_check
    _
  $region27: #{knowledge_reasoner_forward.12} parent=0 // pred_check_branch
    %25 = sbr.rel (0) target = $region29
  $region28: #{knowledge_reasoner_forward.12} parent=0 // pred_region
    _
  $region29: #{knowledge_reasoner_forward.12} parent=0 // pred_fallthru
    _
  %p26 = scmp.eq.s32.totalorder 0, 0
  // Predicated region
  $region30: #{knowledge_reasoner_forward.12} parent=0 // pred_check
    %p27 = pneg %p26
  $region31: #{knowledge_reasoner_forward.12} parent=0 // pred_check_branch
    %29 = sbr.rel (%p27) target = $region33
  $region32: #{knowledge_reasoner_forward.12} parent=0 // pred_region
    %vm30 = vcmask 261120
    %31 = vst.msk [vmem:[#allocation2] sm:$0xff] %vm30, 0.0
    %32 = vst.msk [vmem:[#allocation2 + $0x8] sm:$0xff] %vm30, 0.0
  $region33: #{knowledge_reasoner_forward.12} parent=0 // pred_fallthru
    _
  %v33 = vld [vmem:[%s0] sm:$0xff]
  %v34 = vld [vmem:[%s0 + $0x8] sm:$0xff]
  %v35 = vld [vmem:[%s1] sm:$0xff]
  %v36 = vld [vmem:[%s1 + $0x8] sm:$0xff]
  %v37 = vld [vmem:[%s1 + $0x10] sm:$0xff]
  %v38 = vld [vmem:[%s1 + $0x18] sm:$0xff]
  %v39 = vld [vmem:[%s2] sm:$0x1]
  %v41 = vlaneseq
  %v42 = vshrl.u32 %v41, 7
  %v43 = vsub.s32 0, %v42
  %v44 = vrot.slane %v39, %v43
  %vm46 = vcmask 261120
  %v48 = vsel %vm46, %v33, 0
  %v51 = vsel %vm46, %v34, 0
  %53 = vmatprep.subr.mxu0 0.0
  %54 = vmatpush1.msra.mxu0 0.0
  %55 = vmatprep.subr.mxu0 0.0
  %56 = vmatpush1.msra.mxu0 0.0
  %57 = vmatprep.subr.mxu0 0.0
  %58 = vmatpush1.msra.mxu0 0.0
  %59 = vmatprep.subr.mxu0 0.0
  %60 = vmatpush1.msra.mxu0 0.0
  %61 = vmatprep.subr.mxu0 0.0
  %62 = vmatpush1.msra.mxu0 0.0
  %63 = vmatprep.subr.mxu0 0.0
  %64 = vmatpush1.msra.mxu0 0.0
  %65 = vmatprep.subr.mxu0 0.0
  %66 = vmatpush1.msra.mxu0 0.0
  %67 = vmatprep.subr.mxu0 0.0
  %68 = vmatpush1.msra.mxu0 0.0
  %69 = vmatprep.subr.mxu0 0.0
  %70 = vmatpush1.msra.mxu0 0.0
  %71 = vmatprep.subr.mxu0 0.0
  %72 = vmatpush1.msra.mxu0 0.0
  %73 = vmatprep.subr.mxu0 0.0
  %74 = vmatpush1.msra.mxu0 0.0
  %75 = vmatprep.subr.mxu0 0.0
  %76 = vmatpush1.msra.mxu0 0.0
  %77 = vmatprep.subr.mxu0 0.0
  %78 = vmatpush1.msra.mxu0 %v38
  %79 = vmatprep.subr.mxu0 0.0
  %80 = vmatpush1.msra.mxu0 %v37
  %81 = vmatprep.subr.mxu0 0.0
  %82 = vmatpush1.msra.mxu0 %v36
  %83 = vmatprep.subr.mxu0 0.0
  %84 = vmatpush1.msra.mxu0 %v35
  %85 = vmatprep.subr.mxu0 0.0
  %86 = vmatpush2.msra.mxu0 0.0
  %87 = vmatprep.subr.mxu0 0.0
  %88 = vmatpush2.msra.mxu0 0.0
  %89 = vmatprep.subr.mxu0 0.0
  %90 = vmatpush2.msra.mxu0 0.0
  %91 = vmatprep.subr.mxu0 0.0
  %92 = vmatpush2.msra.mxu0 0.0
  %93 = vmatprep.subr.mxu0 0.0
  %94 = vmatpush2.msra.mxu0 0.0
  %95 = vmatprep.subr.mxu0 0.0
  %96 = vmatpush2.msra.mxu0 0.0
  %97 = vmatprep.subr.mxu0 0.0
  %98 = vmatpush2.msra.mxu0 0.0
  %99 = vmatprep.subr.mxu0 0.0
  %100 = vmatpush2.msra.mxu0 0.0
  %101 = vmatprep.subr.mxu0 0.0
  %102 = vmatpush2.msra.mxu0 0.0
  %103 = vmatprep.subr.mxu0 0.0
  %104 = vmatpush2.msra.mxu0 0.0
  %105 = vmatprep.subr.mxu0 0.0
  %106 = vmatpush2.msra.mxu0 0.0
  %107 = vmatprep.subr.mxu0 0.0
  %108 = vmatpush2.msra.mxu0 0.0
  %109 = vmatprep.subr.mxu0 0.0
  %110 = vmatpush2.msra.mxu0 0.0
  %111 = vmatprep.subr.mxu0 0.0
  %112 = vmatpush2.msra.mxu0 0.0
  %113 = vmatprep.subr.mxu0 0.0
  %114 = vmatpush2.msra.mxu0 0.0
  %115 = vmatprep.subr.mxu0 0.0
  %116 = vmatpush2.msra.mxu0 0.0
  %117 = vmatprep.mubr.f32.mxu0 0.0
  %118 = vmatmul.mubr.f32.gmra.mxu0 %v48
  %v119 = vpop.f32.mrf.mxu0
  %v120 = vadd.f32 %v44, %v119
  %v121 = vpop.f32.mrf.mxu0
  %122 = vmatprep.mubr.f32.mxu0 0.0
  %123 = vmatmul.mubr.f32.gmra.mxu0 %v51
  %v124 = vpop.f32.mrf.mxu0
  %v125 = vadd.f32 %v44, %v124
  %v126 = vpop.f32.mrf.mxu0
  %127 = vdwg.mxu0
  %v128 = vmul.f32 %v120, 0.5
  %v129 = vmul.f32 %v125, 0.5
  %v130 = vmul.f32 %v120, 0.70710677
  %v131 = vmul.f32 %v125, 0.70710677
  %v132 = verf.f32.pop %v130
  %v133 = verf.f32.pop %v131
  %v134 = vadd.f32 %v132, 1.0
  %v135 = vadd.f32 %v133, 1.0
  %v136 = vmul.f32 %v128, %v134
  %v137 = vmul.f32 %v129, %v135
  %v138 = vld [vmem:[#allocation2] sm:$0xff]
  %v139 = vld [vmem:[#allocation2 + $0x8] sm:$0xff]
  %v140 = vld [vmem:[%s3] sm:$0xff]
  %v141 = vld [vmem:[%s3 + $0x8] sm:$0xff]
  %v142 = vld [vmem:[%s3 + $0x10] sm:$0xff]
  %v143 = vld [vmem:[%s3 + $0x18] sm:$0xff]
  %v144 = vld [vmem:[%s3 + $0x20] sm:$0xff]
  %v145 = vld [vmem:[%s3 + $0x28] sm:$0xff]
  %v146 = vld [vmem:[%s3 + $0x30] sm:$0xff]
  %v147 = vld [vmem:[%s3 + $0x38] sm:$0xff]
  %v148 = vld [vmem:[%s3 + $0x40] sm:$0xff]
  %v149 = vld [vmem:[%s3 + $0x48] sm:$0xff]
  %v150 = vld [vmem:[%s3 + $0x50] sm:$0xff]
  %v151 = vld [vmem:[%s3 + $0x58] sm:$0xff]
  %v152 = vld [vmem:[%s3 + $0x60] sm:$0xff]
  %v153 = vld [vmem:[%s3 + $0x68] sm:$0xff]
  %v154 = vld [vmem:[%s3 + $0x70] sm:$0xff]
  %v155 = vld [vmem:[%s3 + $0x78] sm:$0xff]
  %156 = vmatprep.subr.mxu0 0.0
  %157 = vmatpush1.msra.mxu0 %v155
  %158 = vmatprep.subr.mxu0 0.0
  %159 = vmatpush1.msra.mxu0 %v154
  %160 = vmatprep.subr.mxu0 0.0
  %161 = vmatpush1.msra.mxu0 %v153
  %162 = vmatprep.subr.mxu0 0.0
  %163 = vmatpush1.msra.mxu0 %v152
  %164 = vmatprep.subr.mxu0 0.0
  %165 = vmatpush1.msra.mxu0 %v151
  %166 = vmatprep.subr.mxu0 0.0
  %167 = vmatpush1.msra.mxu0 %v150
  %168 = vmatprep.subr.mxu0 0.0
  %169 = vmatpush1.msra.mxu0 %v149
  %170 = vmatprep.subr.mxu0 0.0
  %171 = vmatpush1.msra.mxu0 %v148
  %172 = vmatprep.subr.mxu0 0.0
  %173 = vmatpush1.msra.mxu0 %v147
  %174 = vmatprep.subr.mxu0 0.0
  %175 = vmatpush1.msra.mxu0 %v146
  %176 = vmatprep.subr.mxu0 0.0
  %177 = vmatpush1.msra.mxu0 %v145
  %178 = vmatprep.subr.mxu0 0.0
  %179 = vmatpush1.msra.mxu0 %v144
  %180 = vmatprep.subr.mxu0 0.0
  %181 = vmatpush1.msra.mxu0 %v143
  %182 = vmatprep.subr.mxu0 0.0
  %183 = vmatpush1.msra.mxu0 %v142
  %184 = vmatprep.subr.mxu0 0.0
  %185 = vmatpush1.msra.mxu0 %v141
  %186 = vmatprep.subr.mxu0 0.0
  %187 = vmatpush1.msra.mxu0 %v140
  %188 = vmatprep.subr.mxu0 0.0
  %189 = vmatpush2.msra.mxu0 0.0
  %190 = vmatprep.subr.mxu0 0.0
  %191 = vmatpush2.msra.mxu0 0.0
  %192 = vmatprep.subr.mxu0 0.0
  %193 = vmatpush2.msra.mxu0 0.0
  %194 = vmatprep.subr.mxu0 0.0
  %195 = vmatpush2.msra.mxu0 0.0
  %196 = vmatprep.subr.mxu0 0.0
  %197 = vmatpush2.msra.mxu0 0.0
  %198 = vmatprep.subr.mxu0 0.0
  %199 = vmatpush2.msra.mxu0 0.0
  %200 = vmatprep.subr.mxu0 0.0
  %201 = vmatpush2.msra.mxu0 0.0
  %202 = vmatprep.subr.mxu0 0.0
  %203 = vmatpush2.msra.mxu0 0.0
  %204 = vmatprep.subr.mxu0 0.0
  %205 = vmatpush2.msra.mxu0 0.0
  %206 = vmatprep.subr.mxu0 0.0
  %207 = vmatpush2.msra.mxu0 0.0
  %208 = vmatprep.subr.mxu0 0.0
  %209 = vmatpush2.msra.mxu0 0.0
  %210 = vmatprep.subr.mxu0 0.0
  %211 = vmatpush2.msra.mxu0 0.0
  %212 = vmatprep.subr.mxu0 0.0
  %213 = vmatpush2.msra.mxu0 0.0
  %214 = vmatprep.subr.mxu0 0.0
  %215 = vmatpush2.msra.mxu0 0.0
  %216 = vmatprep.subr.mxu0 0.0
  %217 = vmatpush2.msra.mxu0 0.0
  %218 = vmatprep.subr.mxu0 0.0
  %219 = vmatpush2.msra.mxu0 0.0
  %220 = vmatprep.mubr.f32.mxu0 0.0
  %221 = vmatmul.mubr.f32.gmra.mxu0 %v136
  %v222 = vpop.f32.mrf.mxu0
  %v223 = vadd.f32 0.0, %v222
  %v224 = vpop.f32.mrf.mxu0
  %225 = vmatprep.mubr.f32.mxu0 0.0
  %226 = vmatmul.mubr.f32.gmra.mxu0 %v137
  %v227 = vpop.f32.mrf.mxu0
  %v228 = vadd.f32 0.0, %v227
  %v229 = vpop.f32.mrf.mxu0
  %230 = vdwg.mxu0
  %v231 = vadd.f32 %v138, %v223
  %v232 = vadd.f32 %v139, %v228
  %233 = vst.msk [vmem:[#allocation2] sm:$0xff] %vm46, %v231
  %234 = vst.msk [vmem:[#allocation2 + $0x8] sm:$0xff] %vm46, %v232
  // Predicated region
  $region34: #{knowledge_reasoner_forward.12} parent=0 // pred_check
    %p235 = pneg %p26
  $region35: #{knowledge_reasoner_forward.12} parent=0 // pred_check_branch
    %237 = sbr.rel (%p235) target = $region37
  $region36: #{knowledge_reasoner_forward.12} parent=0 // pred_region
    %v238 = vld [vmem:[#allocation2] sm:$0xff]
    %v239 = vld [vmem:[#allocation2 + $0x8] sm:$0xff]
    %v240 = vld [vmem:[%s4] sm:$0x1]
    %v242 = vlaneseq
    %v243 = vshrl.u32 %v242, 7
    %v244 = vsub.s32 0, %v243
    %v245 = vrot.slane %v240, %v244
    %v247 = vadd.f32 %v238, %v245
    %v248 = vadd.f32 %v239, %v245
    %v249 = vadd.f32 %v247, %v33
    %v250 = vadd.f32 %v248, %v34
    %v251 = vld [vmem:[%s5] sm:$0x1]
    %v252 = vld [vmem:[%s6] sm:$0x1]
    %v253 = vsel %vm46, %v249, 0.0
    %254 = vadd.xlane.f32.xlu0 %v253
    %v255 = vpop.xlane.xlu0 %254
    %v256 = vsel %vm46, %v250, 0.0
    %257 = vadd.xlane.f32.xlu0 %v256
    %v258 = vpop.xlane.xlu0 %257
    %v259 = vrcp.pop 32.0
    %v260 = vmul.f32 %v255, %v259
    %v261 = vmul.f32 %v258, %v259
    %v262 = vsub.f32 %v249, %v260
    %v263 = vsub.f32 %v250, %v261
    %v264 = vmul.f32 %v262, %v262
    %v265 = vmul.f32 %v263, %v263
    %v266 = vsel %vm46, %v264, 0.0
    %267 = vadd.xlane.f32.xlu0 %v266
    %v268 = vpop.xlane.xlu0 %267
    %v269 = vsel %vm46, %v265, 0.0
    %270 = vadd.xlane.f32.xlu0 %v269
    %v271 = vpop.xlane.xlu0 %270
    %v272 = vmul.f32 %v268, %v259
    %v273 = vmul.f32 %v271, %v259
    %v274 = vadd.f32 %v272, 1e-05
    %v275 = vadd.f32 %v273, 1e-05
    %v276 = vrsqrt.pop %v274
    %v277 = vrsqrt.pop %v275
    %v278 = vmul.f32 %v262, %v276
    %v279 = vmul.f32 %v263, %v277
    %v281 = vlaneseq
    %v282 = vshrl.u32 %v281, 7
    %v283 = vsub.s32 0, %v282
    %v284 = vrot.slane %v251, %v283
    %v286 = vmul.f32 %v278, %v284
    %v287 = vmul.f32 %v279, %v284
    %v289 = vlaneseq
    %v290 = vshrl.u32 %v289, 7
    %v291 = vsub.s32 0, %v290
    %v292 = vrot.slane %v252, %v291
    %v294 = vadd.f32 %v286, %v292
    %v295 = vadd.f32 %v287, %v292
    %296 = vst.msk [vmem:[%s7] sm:$0xff] %vm46, %v294
    %297 = vst.msk [vmem:[%s7 + $0x8] sm:$0xff] %vm46, %v295
  $region37: #{knowledge_reasoner_forward.12} parent=0 // pred_fallthru
    _
  // Predicated region
  $region38: #{knowledge_reasoner_forward.12} parent=0 // pred_check
    _
  $region39: #{knowledge_reasoner_forward.12} parent=0 // pred_check_branch
    %299 = sbr.rel (0) target = $region41
  $region40: #{knowledge_reasoner_forward.12} parent=0 // pred_region
    _
  $region41: #{knowledge_reasoner_forward.12} parent=0 // pred_fallthru
    _
  // Predicated region
  $region42: #{knowledge_reasoner_forward.12} parent=0 // pred_check
    _
  $region43: #{knowledge_reasoner_forward.12} parent=0 // pred_check_branch
    %301 = sbr.rel (0) target = $region45
  $region44: #{knowledge_reasoner_forward.12} parent=0 // pred_region
    _
  $region45: #{knowledge_reasoner_forward.12} parent=0 // pred_fallthru
    _

</llo_original>
